<compile_context>
chip_gen: v7x
topology: tpu7x:2x2x1
jax: 0.10.0
libtpu: 0.0.40
codegen_flags: <defaults>
</compile_context>

<pallas_src>
import functools

import jax
import jax.numpy as jnp
from jax.experimental import pallas as pl
from jax.experimental.pallas import tpu as pltpu  # noqa: F401  (TPU backend)


# ----------------------------------------------------------------------------
# Pallas kernels (each runs as one whole-layer block -> no grid-step overhead)
# ----------------------------------------------------------------------------
def _apply_act(x, act):
    if act == "relu":
        return jnp.maximum(x, 0.0)
    if act == "sigmoid":
        # numerically-stable sigmoid; tanh routes through the EUP slot
        return 0.5 * (jnp.tanh(0.5 * x) + 1.0)
    return x


def _conv_act_kernel(w_ref, a_ref, b_ref, o_ref, *, act):
    # w:[Cout,K] bf16, a:[K,M] bf16, b:[Cout,1] f32 -> o:[Cout,M] f32
    acc = jnp.dot(w_ref[...], a_ref[...], preferred_element_type=jnp.float32)
    acc = acc + b_ref[...]
    o_ref[...] = _apply_act(acc, act)


def _conv_act_bn_kernel(w_ref, a_ref, b_ref, g_ref, be_ref, o_ref, *, act, eps):
    # fused conv + bias + activation + training-mode BatchNorm (batch stats)
    acc = jnp.dot(w_ref[...], a_ref[...], preferred_element_type=jnp.float32)
    acc = acc + b_ref[...]
    acc = _apply_act(acc, act)
    mean = jnp.mean(acc, axis=1, keepdims=True)
    var = jnp.mean(jnp.square(acc - mean), axis=1, keepdims=True)  # biased (PyTorch train fwd)
    o_ref[...] = (acc - mean) * jax.lax.rsqrt(var + eps) * g_ref[...] + be_ref[...]


def _pool_bn_kernel(x_ref, g_ref, be_ref, o_ref, *, eps):
    # x:[k*k, C, M] f32 -> maxpool over leading axis, then BatchNorm -> [C, M]
    x = jnp.max(x_ref[...], axis=0)
    mean = jnp.mean(x, axis=1, keepdims=True)
    var = jnp.mean(jnp.square(x - mean), axis=1, keepdims=True)
    o_ref[...] = (x - mean) * jax.lax.rsqrt(var + eps) * g_ref[...] + be_ref[...]


# ----------------------------------------------------------------------------
# Layer wrappers (im2col glue in XLA; all compute inside the Pallas kernels)
# ----------------------------------------------------------------------------
def _fused_matmul(a, wmat, bias, act, bn, eps=1e-5):
    """a:[K,M] f32, wmat:[Cout,K] f32 -> [Cout,M] f32 (bias/act/BN fused)."""
    K, M = a.shape
    Cout = wmat.shape[0]
    a16 = a.astype(jnp.bfloat16)          # bf16 MXU inputs, f32 accumulate
    w16 = wmat.astype(jnp.bfloat16)
    b2 = bias.reshape(Cout, 1).astype(jnp.float32)
    out_shape = jax.ShapeDtypeStruct((Cout, M), jnp.float32)
    if bn is None:
        return pl.pallas_call(
            functools.partial(_conv_act_kernel, act=act),
            out_shape=out_shape,
        )(w16, a16, b2)
    gamma, beta = bn
    return pl.pallas_call(
        functools.partial(_conv_act_bn_kernel, act=act, eps=eps),
        out_shape=out_shape,
    )(w16, a16, b2,
      gamma.reshape(Cout, 1).astype(jnp.float32),
      beta.reshape(Cout, 1).astype(jnp.float32))


def _im2col_t(x4, kh, kw, pads):
    """x4:[C,N,H,W] -> A:[C*kh*kw, N*Ho*Wo] (transposed im2col, K rows)."""
    C, N, H, W = x4.shape
    pt, pb, pL, pR = pads
    xp = jnp.pad(x4, ((0, 0), (0, 0), (pt, pb), (pL, pR)))
    Hp, Wp = H + pt + pb, W + pL + pR
    Ho, Wo = Hp - kh + 1, Wp - kw + 1
    slabs = [xp[:, :, dh:dh + Ho, dw:dw + Wo]
             for dh in range(kh) for dw in range(kw)]
    a = jnp.stack(slabs, axis=1).reshape(C * kh * kw, N * Ho * Wo)
    return a, (N, Ho, Wo)


def conv_block(x_cm, nhw, w, b, pad, act, bn=None):
    """Conv2d stride=1 on a [Cin, N*H*W] slab; returns ([Cout, M'], (N,Ho,Wo))."""
    Cout, Cin, kh, kw = w.shape
    N, H, W = nhw
    x4 = x_cm.reshape(Cin, N, H, W)
    a, out_nhw = _im2col_t(x4, kh, kw, (pad, pad, pad, pad))
    out = _fused_matmul(a, w.reshape(Cout, Cin * kh * kw), b, act, bn)
    return out, out_nhw


def convt_block(x_cm, nhw, w, b, stride, pad, opad, act, bn=None):
    """ConvTranspose2d on a [Cin, N*H*W] slab (PyTorch weight layout [Cin,Cout,kh,kw])."""
    Cin, Cout, kh, kw = w.shape
    N, H, W = nhw
    x4 = x_cm.reshape(Cin, N, H, W)
    s = stride
    if s == 1:
        xd = x4
    else:
        # TODO(synk): sub-pixel (phase) decomposition would skip the 1-1/s^2 zero
        # taps of the upsampled input; omitted — layers here are tiny.
        Hd, Wd = (H - 1) * s + 1, (W - 1) * s + 1
        xd = jnp.zeros((Cin, N, Hd, Wd), x4.dtype).at[:, :, ::s, ::s].set(x4)
    pt = kh - 1 - pad
    pb = kh - 1 - pad + opad
    pL = kw - 1 - pad
    pR = kw - 1 - pad + opad
    a, out_nhw = _im2col_t(xd, kh, kw, (pt, pb, pL, pR))
    # equivalent forward-conv weight: swap in/out channels and flip spatially
    w_eq = jnp.flip(jnp.transpose(w, (1, 0, 2, 3)), axis=(2, 3))  # [Cout,Cin,kh,kw]
    out = _fused_matmul(a, w_eq.reshape(Cout, Cin * kh * kw), b, act, bn)
    return out, out_nhw


def pool_bn_block(x_cm, nhw, k, gamma, beta, eps=1e-5):
    """MaxPool2d(k, k) followed by BatchNorm2d, fused in one kernel."""
    N, H, W = nhw
    C = x_cm.shape[0]
    Ph, Pw = H // k, W // k
    xr = x_cm.reshape(C, N, Ph, k, Pw, k)
    xr = jnp.transpose(xr, (3, 5, 0, 1, 2, 4)).reshape(k * k, C, N * Ph * Pw)
    out = pl.pallas_call(
        functools.partial(_pool_bn_kernel, eps=eps),
        out_shape=jax.ShapeDtypeStruct((C, N * Ph * Pw), jnp.float32),
    )(xr, gamma.reshape(C, 1).astype(jnp.float32),
      beta.reshape(C, 1).astype(jnp.float32))
    return out, (N, Ph, Pw)


# ----------------------------------------------------------------------------
# Deterministic parameter construction (synthetic weights, no checkpoint load)
# ----------------------------------------------------------------------------
def init_params():
    key = jax.random.PRNGKey(1)
    params = {}
    idx = [0]

    def nxt():
        idx[0] += 1
        return jax.random.fold_in(key, idx[0])

    def conv_p(name, cout, cin, k):
        params[name + "_w"] = 0.1 * jax.random.normal(nxt(), (cout, cin, k, k), jnp.float32)
        params[name + "_b"] = 0.01 * jax.random.normal(nxt(), (cout,), jnp.float32)

    def convt_p(name, cin, cout, k):
        params[name + "_w"] = 0.1 * jax.random.normal(nxt(), (cin, cout, k, k), jnp.float32)
        params[name + "_b"] = 0.01 * jax.random.normal(nxt(), (cout,), jnp.float32)

    def bn_p(name, c):
        params[name + "_g"] = jnp.ones((c,), jnp.float32)
        params[name + "_b"] = jnp.zeros((c,), jnp.float32)

    # Encoder
    conv_p("e1", 4, 1, 3);   bn_p("ebn1", 4)
    conv_p("e2", 4, 4, 3);   bn_p("ebn2", 4)
    conv_p("e3", 8, 4, 3);   bn_p("ebn3", 8)
    conv_p("e4", 16, 8, 3);  bn_p("ebn4", 16)
    conv_p("e5", 16, 16, 3); bn_p("ebn5", 16)
    conv_p("e6", 8, 16, 3);  bn_p("ebn6", 8)
    # Decoder
    convt_p("d1", 8, 16, 3);  bn_p("dbn1", 16)
    convt_p("d2", 16, 16, 3); bn_p("dbn2", 16)
    convt_p("d3", 16, 16, 3)
    convt_p("d4", 16, 16, 3); bn_p("dbn4", 16)
    convt_p("d5", 16, 8, 3);  bn_p("dbn5", 8)
    convt_p("d6", 8, 4, 3)
    convt_p("d7", 4, 4, 4);   bn_p("dbn7", 4)
    convt_p("d8", 4, 1, 3)
    convt_p("d9", 1, 1, 6)
    return params


# ----------------------------------------------------------------------------
# Forward pass (matches nn.Sequential ordering of the PyTorch module)
# ----------------------------------------------------------------------------
def forward(x, p):
    N, Cin, H, W = x.shape
    h = jnp.transpose(x, (1, 0, 2, 3)).reshape(Cin, N * H * W)  # channel-major slab
    nhw = (N, H, W)

    # ------------------------ Encoder ------------------------
    h, nhw = conv_block(h, nhw, p["e1_w"], p["e1_b"], 1, "relu", (p["ebn1_g"], p["ebn1_b"]))
    h, nhw = conv_block(h, nhw, p["e2_w"], p["e2_b"], 1, "relu")
    h, nhw = pool_bn_block(h, nhw, 5, p["ebn2_g"], p["ebn2_b"])
    h, nhw = conv_block(h, nhw, p["e3_w"], p["e3_b"], 1, "relu")
    h, nhw = pool_bn_block(h, nhw, 3, p["ebn3_g"], p["ebn3_b"])
    h, nhw = conv_block(h, nhw, p["e4_w"], p["e4_b"], 1, "relu", (p["ebn4_g"], p["ebn4_b"]))
    h, nhw = conv_block(h, nhw, p["e5_w"], p["e5_b"], 1, "relu")
    h, nhw = pool_bn_block(h, nhw, 2, p["ebn5_g"], p["ebn5_b"])
    h, nhw = conv_block(h, nhw, p["e6_w"], p["e6_b"], 1, "relu")
    h, nhw = pool_bn_block(h, nhw, 2, p["ebn6_g"], p["ebn6_b"])
    enc_slab, enc_nhw = h, nhw

    # ------------------------ Decoder ------------------------
    d, dn = convt_block(enc_slab, enc_nhw, p["d1_w"], p["d1_b"], 1, 1, 0, "relu",
                        (p["dbn1_g"], p["dbn1_b"]))
    d, dn = convt_block(d, dn, p["d2_w"], p["d2_b"], 2, 1, 1, "relu", (p["dbn2_g"], p["dbn2_b"]))
    d, dn = convt_block(d, dn, p["d3_w"], p["d3_b"], 1, 1, 0, "none")
    d, dn = convt_block(d, dn, p["d4_w"], p["d4_b"], 2, 1, 1, "relu", (p["dbn4_g"], p["dbn4_b"]))
    d, dn = convt_block(d, dn, p["d5_w"], p["d5_b"], 1, 1, 0, "relu", (p["dbn5_g"], p["dbn5_b"]))
    d, dn = convt_block(d, dn, p["d6_w"], p["d6_b"], 1, 1, 0, "none")
    d, dn = convt_block(d, dn, p["d7_w"], p["d7_b"], 3, 1, 1, "relu", (p["dbn7_g"], p["dbn7_b"]))
    d, dn = convt_block(d, dn, p["d8_w"], p["d8_b"], 1, 1, 0, "none")
    d, dn = convt_block(d, dn, p["d9_w"], p["d9_b"], 5, 1, 1, "sigmoid")

    Ne, He, We = enc_nhw
    encoder = jnp.transpose(enc_slab.reshape(enc_slab.shape[0], Ne, He, We), (1, 0, 2, 3))
    Nd, Hd, Wd = dn
    decoder = jnp.transpose(d.reshape(d.shape[0], Nd, Hd, Wd), (1, 0, 2, 3))
    return encoder, decoder


if __name__ == "__main__":
    # Smallest spatial size that survives the 5*3*2*2 pooling chain is 60.
    N, C, H, W = 2, 1, 60, 60
    x = jax.random.uniform(jax.random.PRNGKey(0), (N, C, H, W), jnp.float32)
    params = init_params()

    fwd = jax.jit(forward)
    enc, dec = fwd(x, params)
    jax.block_until_ready((enc, dec))

    assert enc.shape == (N, 8, 1, 1), enc.shape
    assert dec.shape == (N, 1, 60, 60), dec.shape
    assert jnp.all(jnp.isfinite(enc)) and jnp.all(jnp.isfinite(dec))
    print("KERNEL_OK")
</pallas_src>

<mosaic_0001>
module attributes {stable_mosaic.version = 11 : i64} {
  func.func @_conv_act_bn_kernel(%arg0: memref<4x9xbf16, #tpu.memory_space<vmem>>, %arg1: memref<9x7200xbf16, #tpu.memory_space<vmem>>, %arg2: memref<4x1xf32, #tpu.memory_space<vmem>>, %arg3: memref<4x1xf32, #tpu.memory_space<vmem>>, %arg4: memref<4x1xf32, #tpu.memory_space<vmem>>, %arg5: memref<4x7200xf32, #tpu.memory_space<vmem>>) attributes {dimension_semantics = [], scalar_prefetch = 0 : i64, scratch_operands = 0 : i64, tpu.core_type = #tpu.core_type<tc>} {
    %c0 = arith.constant 0 : index
    %c0_0 = arith.constant 0 : index
    %0 = vector.load %arg0[%c0, %c0_0] : memref<4x9xbf16, #tpu.memory_space<vmem>>, vector<4x9xbf16>
    %c0_1 = arith.constant 0 : index
    %c0_2 = arith.constant 0 : index
    %1 = vector.load %arg1[%c0_1, %c0_2] : memref<9x7200xbf16, #tpu.memory_space<vmem>>, vector<9x7200xbf16>
    %cst = arith.constant dense<0.000000e+00> : vector<4x7200xf32>
    %2 = tpu.matmul %0, %1, %cst {dimension_numbers = #tpu.dot_dimension_numbers<[1], [0], [0], [1], [0, 0, 1, 1], [], []>} : vector<4x9xbf16>, vector<9x7200xbf16>, vector<4x7200xf32> -> vector<4x7200xf32>
    %c0_3 = arith.constant 0 : index
    %c0_4 = arith.constant 0 : index
    %3 = vector.load %arg2[%c0_3, %c0_4] : memref<4x1xf32, #tpu.memory_space<vmem>>, vector<4x1xf32>
    %4 = vector.broadcast %3 : vector<4x1xf32> to vector<4x7200xf32>
    %5 = arith.addf %2, %4 : vector<4x7200xf32>
    %cst_5 = arith.constant 0.000000e+00 : f32
    %6 = vector.broadcast %cst_5 : f32 to vector<4x7200xf32>
    %7 = arith.maximumf %5, %6 : vector<4x7200xf32>
    %cst_6 = arith.constant dense<0.000000e+00> : vector<4xf32>
    %8 = vector.multi_reduction <add>, %7, %cst_6 [1] : vector<4x7200xf32> to vector<4xf32>
    %9 = vector.shape_cast %8 : vector<4xf32> to vector<4x1xf32>
    %cst_7 = arith.constant 7.200000e+03 : f32
    %10 = vector.broadcast %cst_7 : f32 to vector<4x1xf32>
    %11 = arith.divf %9, %10 : vector<4x1xf32>
    %12 = vector.broadcast %11 : vector<4x1xf32> to vector<4x7200xf32>
    %13 = arith.subf %7, %12 : vector<4x7200xf32>
    %14 = arith.mulf %13, %13 : vector<4x7200xf32>
    %cst_8 = arith.constant dense<0.000000e+00> : vector<4xf32>
    %15 = vector.multi_reduction <add>, %14, %cst_8 [1] : vector<4x7200xf32> to vector<4xf32>
    %16 = vector.shape_cast %15 : vector<4xf32> to vector<4x1xf32>
    %cst_9 = arith.constant 7.200000e+03 : f32
    %17 = vector.broadcast %cst_9 : f32 to vector<4x1xf32>
    %18 = arith.divf %16, %17 : vector<4x1xf32>
    %19 = vector.broadcast %11 : vector<4x1xf32> to vector<4x7200xf32>
    %20 = arith.subf %7, %19 : vector<4x7200xf32>
    %cst_10 = arith.constant 9.99999974E-6 : f32
    %21 = vector.broadcast %cst_10 : f32 to vector<4x1xf32>
    %22 = arith.addf %18, %21 : vector<4x1xf32>
    %23 = math.rsqrt %22 : vector<4x1xf32>
    %24 = vector.broadcast %23 : vector<4x1xf32> to vector<4x7200xf32>
    %25 = arith.mulf %20, %24 : vector<4x7200xf32>
    %c0_11 = arith.constant 0 : index
    %c0_12 = arith.constant 0 : index
    %26 = vector.load %arg3[%c0_11, %c0_12] : memref<4x1xf32, #tpu.memory_space<vmem>>, vector<4x1xf32>
    %27 = vector.broadcast %26 : vector<4x1xf32> to vector<4x7200xf32>
    %28 = arith.mulf %25, %27 : vector<4x7200xf32>
    %c0_13 = arith.constant 0 : index
    %c0_14 = arith.constant 0 : index
    %29 = vector.load %arg4[%c0_13, %c0_14] : memref<4x1xf32, #tpu.memory_space<vmem>>, vector<4x1xf32>
    %30 = vector.broadcast %29 : vector<4x1xf32> to vector<4x7200xf32>
    %31 = arith.addf %28, %30 : vector<4x7200xf32>
    %c0_15 = arith.constant 0 : index
    %c0_16 = arith.constant 0 : index
    %32 = vector.load %arg5[%c0_15, %c0_16] : memref<4x7200xf32, #tpu.memory_space<vmem>>, vector<4x7200xf32>
    tpu.vector_store %arg5[%c0_15, %c0_16], %31 {strides = array<i32>} : memref<4x7200xf32, #tpu.memory_space<vmem>>, vector<4x7200xf32>,
    return
  }
}

module attributes {stable_mosaic.version = 11 : i64} {
  func.func @_conv_act_kernel(%arg0: memref<4x36xbf16, #tpu.memory_space<vmem>>, %arg1: memref<36x7200xbf16, #tpu.memory_space<vmem>>, %arg2: memref<4x1xf32, #tpu.memory_space<vmem>>, %arg3: memref<4x7200xf32, #tpu.memory_space<vmem>>) attributes {dimension_semantics = [], scalar_prefetch = 0 : i64, scratch_operands = 0 : i64, tpu.core_type = #tpu.core_type<tc>} {
    %c0 = arith.constant 0 : index
    %c0_0 = arith.constant 0 : index
    %0 = vector.load %arg0[%c0, %c0_0] : memref<4x36xbf16, #tpu.memory_space<vmem>>, vector<4x36xbf16>
    %c0_1 = arith.constant 0 : index
    %c0_2 = arith.constant 0 : index
    %1 = vector.load %arg1[%c0_1, %c0_2] : memref<36x7200xbf16, #tpu.memory_space<vmem>>, vector<36x7200xbf16>
    %cst = arith.constant dense<0.000000e+00> : vector<4x7200xf32>
    %2 = tpu.matmul %0, %1, %cst {dimension_numbers = #tpu.dot_dimension_numbers<[1], [0], [0], [1], [0, 0, 1, 1], [], []>} : vector<4x36xbf16>, vector<36x7200xbf16>, vector<4x7200xf32> -> vector<4x7200xf32>
    %c0_3 = arith.constant 0 : index
    %c0_4 = arith.constant 0 : index
    %3 = vector.load %arg2[%c0_3, %c0_4] : memref<4x1xf32, #tpu.memory_space<vmem>>, vector<4x1xf32>
    %4 = vector.broadcast %3 : vector<4x1xf32> to vector<4x7200xf32>
    %5 = arith.addf %2, %4 : vector<4x7200xf32>
    %cst_5 = arith.constant 0.000000e+00 : f32
    %6 = vector.broadcast %cst_5 : f32 to vector<4x7200xf32>
    %7 = arith.maximumf %5, %6 : vector<4x7200xf32>
    %c0_6 = arith.constant 0 : index
    %c0_7 = arith.constant 0 : index
    %8 = vector.load %arg3[%c0_6, %c0_7] : memref<4x7200xf32, #tpu.memory_space<vmem>>, vector<4x7200xf32>
    tpu.vector_store %arg3[%c0_6, %c0_7], %7 {strides = array<i32>} : memref<4x7200xf32, #tpu.memory_space<vmem>>, vector<4x7200xf32>,
    return
  }
}

module attributes {stable_mosaic.version = 11 : i64} {
  func.func @_pool_bn_kernel(%arg0: memref<25x4x288xf32, #tpu.memory_space<vmem>>, %arg1: memref<4x1xf32, #tpu.memory_space<vmem>>, %arg2: memref<4x1xf32, #tpu.memory_space<vmem>>, %arg3: memref<4x288xf32, #tpu.memory_space<vmem>>) attributes {dimension_semantics = [], scalar_prefetch = 0 : i64, scratch_operands = 0 : i64, tpu.core_type = #tpu.core_type<tc>} {
    %c0 = arith.constant 0 : index
    %c0_0 = arith.constant 0 : index
    %c0_1 = arith.constant 0 : index
    %0 = vector.load %arg0[%c0, %c0_0, %c0_1] : memref<25x4x288xf32, #tpu.memory_space<vmem>>, vector<25x4x288xf32>
    %cst = arith.constant dense<0xFF800000> : vector<4x288xf32>
    %1 = vector.multi_reduction <maximumf>, %0, %cst [0] : vector<25x4x288xf32> to vector<4x288xf32>
    %cst_2 = arith.constant dense<0.000000e+00> : vector<4xf32>
    %2 = vector.multi_reduction <add>, %1, %cst_2 [1] : vector<4x288xf32> to vector<4xf32>
    %3 = vector.shape_cast %2 : vector<4xf32> to vector<4x1xf32>
    %cst_3 = arith.constant 2.880000e+02 : f32
    %4 = vector.broadcast %cst_3 : f32 to vector<4x1xf32>
    %5 = arith.divf %3, %4 : vector<4x1xf32>
    %6 = vector.broadcast %5 : vector<4x1xf32> to vector<4x288xf32>
    %7 = arith.subf %1, %6 : vector<4x288xf32>
    %8 = arith.mulf %7, %7 : vector<4x288xf32>
    %cst_4 = arith.constant dense<0.000000e+00> : vector<4xf32>
    %9 = vector.multi_reduction <add>, %8, %cst_4 [1] : vector<4x288xf32> to vector<4xf32>
    %10 = vector.shape_cast %9 : vector<4xf32> to vector<4x1xf32>
    %cst_5 = arith.constant 2.880000e+02 : f32
    %11 = vector.broadcast %cst_5 : f32 to vector<4x1xf32>
    %12 = arith.divf %10, %11 : vector<4x1xf32>
    %13 = vector.broadcast %5 : vector<4x1xf32> to vector<4x288xf32>
    %14 = arith.subf %1, %13 : vector<4x288xf32>
    %cst_6 = arith.constant 9.99999974E-6 : f32
    %15 = vector.broadcast %cst_6 : f32 to vector<4x1xf32>
    %16 = arith.addf %12, %15 : vector<4x1xf32>
    %17 = math.rsqrt %16 : vector<4x1xf32>
    %18 = vector.broadcast %17 : vector<4x1xf32> to vector<4x288xf32>
    %19 = arith.mulf %14, %18 : vector<4x288xf32>
    %c0_7 = arith.constant 0 : index
    %c0_8 = arith.constant 0 : index
    %20 = vector.load %arg1[%c0_7, %c0_8] : memref<4x1xf32, #tpu.memory_space<vmem>>, vector<4x1xf32>
    %21 = vector.broadcast %20 : vector<4x1xf32> to vector<4x288xf32>
    %22 = arith.mulf %19, %21 : vector<4x288xf32>
    %c0_9 = arith.constant 0 : index
    %c0_10 = arith.constant 0 : index
    %23 = vector.load %arg2[%c0_9, %c0_10] : memref<4x1xf32, #tpu.memory_space<vmem>>, vector<4x1xf32>
    %24 = vector.broadcast %23 : vector<4x1xf32> to vector<4x288xf32>
    %25 = arith.addf %22, %24 : vector<4x288xf32>
    %c0_11 = arith.constant 0 : index
    %c0_12 = arith.constant 0 : index
    %26 = vector.load %arg3[%c0_11, %c0_12] : memref<4x288xf32, #tpu.memory_space<vmem>>, vector<4x288xf32>
    tpu.vector_store %arg3[%c0_11, %c0_12], %25 {strides = array<i32>} : memref<4x288xf32, #tpu.memory_space<vmem>>, vector<4x288xf32>,
    return
  }
}

module attributes {stable_mosaic.version = 11 : i64} {
  func.func @_conv_act_kernel(%arg0: memref<8x36xbf16, #tpu.memory_space<vmem>>, %arg1: memref<36x288xbf16, #tpu.memory_space<vmem>>, %arg2: memref<8x1xf32, #tpu.memory_space<vmem>>, %arg3: memref<8x288xf32, #tpu.memory_space<vmem>>) attributes {dimension_semantics = [], scalar_prefetch = 0 : i64, scratch_operands = 0 : i64, tpu.core_type = #tpu.core_type<tc>} {
    %c0 = arith.constant 0 : index
    %c0_0 = arith.constant 0 : index
    %0 = vector.load %arg0[%c0, %c0_0] : memref<8x36xbf16, #tpu.memory_space<vmem>>, vector<8x36xbf16>
    %c0_1 = arith.constant 0 : index
    %c0_2 = arith.constant 0 : index
    %1 = vector.load %arg1[%c0_1, %c0_2] : memref<36x288xbf16, #tpu.memory_space<vmem>>, vector<36x288xbf16>
    %cst = arith.constant dense<0.000000e+00> : vector<8x288xf32>
    %2 = tpu.matmul %0, %1, %cst {dimension_numbers = #tpu.dot_dimension_numbers<[1], [0], [0], [1], [0, 0, 1, 1], [], []>} : vector<8x36xbf16>, vector<36x288xbf16>, vector<8x288xf32> -> vector<8x288xf32>
    %c0_3 = arith.constant 0 : index
    %c0_4 = arith.constant 0 : index
    %3 = vector.load %arg2[%c0_3, %c0_4] : memref<8x1xf32, #tpu.memory_space<vmem>>, vector<8x1xf32>
    %4 = vector.broadcast %3 : vector<8x1xf32> to vector<8x288xf32>
    %5 = arith.addf %2, %4 : vector<8x288xf32>
    %cst_5 = arith.constant 0.000000e+00 : f32
    %6 = vector.broadcast %cst_5 : f32 to vector<8x288xf32>
    %7 = arith.maximumf %5, %6 : vector<8x288xf32>
    %c0_6 = arith.constant 0 : index
    %c0_7 = arith.constant 0 : index
    %8 = vector.load %arg3[%c0_6, %c0_7] : memref<8x288xf32, #tpu.memory_space<vmem>>, vector<8x288xf32>
    tpu.vector_store %arg3[%c0_6, %c0_7], %7 {strides = array<i32>} : memref<8x288xf32, #tpu.memory_space<vmem>>, vector<8x288xf32>,
    return
  }
}

module attributes {stable_mosaic.version = 11 : i64} {
  func.func @_pool_bn_kernel(%arg0: memref<9x8x32xf32, #tpu.memory_space<vmem>>, %arg1: memref<8x1xf32, #tpu.memory_space<vmem>>, %arg2: memref<8x1xf32, #tpu.memory_space<vmem>>, %arg3: memref<8x32xf32, #tpu.memory_space<vmem>>) attributes {dimension_semantics = [], scalar_prefetch = 0 : i64, scratch_operands = 0 : i64, tpu.core_type = #tpu.core_type<tc>} {
    %c0 = arith.constant 0 : index
    %c0_0 = arith.constant 0 : index
    %c0_1 = arith.constant 0 : index
    %0 = vector.load %arg0[%c0, %c0_0, %c0_1] : memref<9x8x32xf32, #tpu.memory_space<vmem>>, vector<9x8x32xf32>
    %cst = arith.constant dense<0xFF800000> : vector<8x32xf32>
    %1 = vector.multi_reduction <maximumf>, %0, %cst [0] : vector<9x8x32xf32> to vector<8x32xf32>
    %cst_2 = arith.constant dense<0.000000e+00> : vector<8xf32>
    %2 = vector.multi_reduction <add>, %1, %cst_2 [1] : vector<8x32xf32> to vector<8xf32>
    %3 = vector.shape_cast %2 : vector<8xf32> to vector<8x1xf32>
    %cst_3 = arith.constant 3.200000e+01 : f32
    %4 = vector.broadcast %cst_3 : f32 to vector<8x1xf32>
    %5 = arith.divf %3, %4 : vector<8x1xf32>
    %6 = vector.broadcast %5 : vector<8x1xf32> to vector<8x32xf32>
    %7 = arith.subf %1, %6 : vector<8x32xf32>
    %8 = arith.mulf %7, %7 : vector<8x32xf32>
    %cst_4 = arith.constant dense<0.000000e+00> : vector<8xf32>
    %9 = vector.multi_reduction <add>, %8, %cst_4 [1] : vector<8x32xf32> to vector<8xf32>
    %10 = vector.shape_cast %9 : vector<8xf32> to vector<8x1xf32>
    %cst_5 = arith.constant 3.200000e+01 : f32
    %11 = vector.broadcast %cst_5 : f32 to vector<8x1xf32>
    %12 = arith.divf %10, %11 : vector<8x1xf32>
    %13 = vector.broadcast %5 : vector<8x1xf32> to vector<8x32xf32>
    %14 = arith.subf %1, %13 : vector<8x32xf32>
    %cst_6 = arith.constant 9.99999974E-6 : f32
    %15 = vector.broadcast %cst_6 : f32 to vector<8x1xf32>
    %16 = arith.addf %12, %15 : vector<8x1xf32>
    %17 = math.rsqrt %16 : vector<8x1xf32>
    %18 = vector.broadcast %17 : vector<8x1xf32> to vector<8x32xf32>
    %19 = arith.mulf %14, %18 : vector<8x32xf32>
    %c0_7 = arith.constant 0 : index
    %c0_8 = arith.constant 0 : index
    %20 = vector.load %arg1[%c0_7, %c0_8] : memref<8x1xf32, #tpu.memory_space<vmem>>, vector<8x1xf32>
    %21 = vector.broadcast %20 : vector<8x1xf32> to vector<8x32xf32>
    %22 = arith.mulf %19, %21 : vector<8x32xf32>
    %c0_9 = arith.constant 0 : index
    %c0_10 = arith.constant 0 : index
    %23 = vector.load %arg2[%c0_9, %c0_10] : memref<8x1xf32, #tpu.memory_space<vmem>>, vector<8x1xf32>
    %24 = vector.broadcast %23 : vector<8x1xf32> to vector<8x32xf32>
    %25 = arith.addf %22, %24 : vector<8x32xf32>
    %c0_11 = arith.constant 0 : index
    %c0_12 = arith.constant 0 : index
    %26 = vector.load %arg3[%c0_11, %c0_12] : memref<8x32xf32, #tpu.memory_space<vmem>>, vector<8x32xf32>
    tpu.vector_store %arg3[%c0_11, %c0_12], %25 {strides = array<i32>} : memref<8x32xf32, #tpu.memory_space<vmem>>, vector<8x32xf32>,
    return
  }
}

module attributes {stable_mosaic.version = 11 : i64} {
  func.func @_conv_act_bn_kernel(%arg0: memref<16x72xbf16, #tpu.memory_space<vmem>>, %arg1: memref<72x32xbf16, #tpu.memory_space<vmem>>, %arg2: memref<16x1xf32, #tpu.memory_space<vmem>>, %arg3: memref<16x1xf32, #tpu.memory_space<vmem>>, %arg4: memref<16x1xf32, #tpu.memory_space<vmem>>, %arg5: memref<16x32xf32, #tpu.memory_space<vmem>>) attributes {dimension_semantics = [], scalar_prefetch = 0 : i64, scratch_operands = 0 : i64, tpu.core_type = #tpu.core_type<tc>} {
    %c0 = arith.constant 0 : index
    %c0_0 = arith.constant 0 : index
    %0 = vector.load %arg0[%c0, %c0_0] : memref<16x72xbf16, #tpu.memory_space<vmem>>, vector<16x72xbf16>
    %c0_1 = arith.constant 0 : index
    %c0_2 = arith.constant 0 : index
    %1 = vector.load %arg1[%c0_1, %c0_2] : memref<72x32xbf16, #tpu.memory_space<vmem>>, vector<72x32xbf16>
    %cst = arith.constant dense<0.000000e+00> : vector<16x32xf32>
    %2 = tpu.matmul %0, %1, %cst {dimension_numbers = #tpu.dot_dimension_numbers<[1], [0], [0], [1], [0, 0, 1, 1], [], []>} : vector<16x72xbf16>, vector<72x32xbf16>, vector<16x32xf32> -> vector<16x32xf32>
    %c0_3 = arith.constant 0 : index
    %c0_4 = arith.constant 0 : index
    %3 = vector.load %arg2[%c0_3, %c0_4] : memref<16x1xf32, #tpu.memory_space<vmem>>, vector<16x1xf32>
    %4 = vector.broadcast %3 : vector<16x1xf32> to vector<16x32xf32>
    %5 = arith.addf %2, %4 : vector<16x32xf32>
    %cst_5 = arith.constant 0.000000e+00 : f32
    %6 = vector.broadcast %cst_5 : f32 to vector<16x32xf32>
    %7 = arith.maximumf %5, %6 : vector<16x32xf32>
    %cst_6 = arith.constant dense<0.000000e+00> : vector<16xf32>
    %8 = vector.multi_reduction <add>, %7, %cst_6 [1] : vector<16x32xf32> to vector<16xf32>
    %9 = vector.shape_cast %8 : vector<16xf32> to vector<16x1xf32>
    %cst_7 = arith.constant 3.200000e+01 : f32
    %10 = vector.broadcast %cst_7 : f32 to vector<16x1xf32>
    %11 = arith.divf %9, %10 : vector<16x1xf32>
    %12 = vector.broadcast %11 : vector<16x1xf32> to vector<16x32xf32>
    %13 = arith.subf %7, %12 : vector<16x32xf32>
    %14 = arith.mulf %13, %13 : vector<16x32xf32>
    %cst_8 = arith.constant dense<0.000000e+00> : vector<16xf32>
    %15 = vector.multi_reduction <add>, %14, %cst_8 [1] : vector<16x32xf32> to vector<16xf32>
    %16 = vector.shape_cast %15 : vector<16xf32> to vector<16x1xf32>
    %cst_9 = arith.constant 3.200000e+01 : f32
    %17 = vector.broadcast %cst_9 : f32 to vector<16x1xf32>
    %18 = arith.divf %16, %17 : vector<16x1xf32>
    %19 = vector.broadcast %11 : vector<16x1xf32> to vector<16x32xf32>
    %20 = arith.subf %7, %19 : vector<16x32xf32>
    %cst_10 = arith.constant 9.99999974E-6 : f32
    %21 = vector.broadcast %cst_10 : f32 to vector<16x1xf32>
    %22 = arith.addf %18, %21 : vector<16x1xf32>
    %23 = math.rsqrt %22 : vector<16x1xf32>
    %24 = vector.broadcast %23 : vector<16x1xf32> to vector<16x32xf32>
    %25 = arith.mulf %20, %24 : vector<16x32xf32>
    %c0_11 = arith.constant 0 : index
    %c0_12 = arith.constant 0 : index
    %26 = vector.load %arg3[%c0_11, %c0_12] : memref<16x1xf32, #tpu.memory_space<vmem>>, vector<16x1xf32>
    %27 = vector.broadcast %26 : vector<16x1xf32> to vector<16x32xf32>
    %28 = arith.mulf %25, %27 : vector<16x32xf32>
    %c0_13 = arith.constant 0 : index
    %c0_14 = arith.constant 0 : index
    %29 = vector.load %arg4[%c0_13, %c0_14] : memref<16x1xf32, #tpu.memory_space<vmem>>, vector<16x1xf32>
    %30 = vector.broadcast %29 : vector<16x1xf32> to vector<16x32xf32>
    %31 = arith.addf %28, %30 : vector<16x32xf32>
    %c0_15 = arith.constant 0 : index
    %c0_16 = arith.constant 0 : index
    %32 = vector.load %arg5[%c0_15, %c0_16] : memref<16x32xf32, #tpu.memory_space<vmem>>, vector<16x32xf32>
    tpu.vector_store %arg5[%c0_15, %c0_16], %31 {strides = array<i32>} : memref<16x32xf32, #tpu.memory_space<vmem>>, vector<16x32xf32>,
    return
  }
}

module attributes {stable_mosaic.version = 11 : i64} {
  func.func @_conv_act_kernel(%arg0: memref<16x144xbf16, #tpu.memory_space<vmem>>, %arg1: memref<144x32xbf16, #tpu.memory_space<vmem>>, %arg2: memref<16x1xf32, #tpu.memory_space<vmem>>, %arg3: memref<16x32xf32, #tpu.memory_space<vmem>>) attributes {dimension_semantics = [], scalar_prefetch = 0 : i64, scratch_operands = 0 : i64, tpu.core_type = #tpu.core_type<tc>} {
    %c0 = arith.constant 0 : index
    %c0_0 = arith.constant 0 : index
    %0 = vector.load %arg0[%c0, %c0_0] : memref<16x144xbf16, #tpu.memory_space<vmem>>, vector<16x144xbf16>
    %c0_1 = arith.constant 0 : index
    %c0_2 = arith.constant 0 : index
    %1 = vector.load %arg1[%c0_1, %c0_2] : memref<144x32xbf16, #tpu.memory_space<vmem>>, vector<144x32xbf16>
    %cst = arith.constant dense<0.000000e+00> : vector<16x32xf32>
    %2 = tpu.matmul %0, %1, %cst {dimension_numbers = #tpu.dot_dimension_numbers<[1], [0], [0], [1], [0, 0, 1, 1], [], []>} : vector<16x144xbf16>, vector<144x32xbf16>, vector<16x32xf32> -> vector<16x32xf32>
    %c0_3 = arith.constant 0 : index
    %c0_4 = arith.constant 0 : index
    %3 = vector.load %arg2[%c0_3, %c0_4] : memref<16x1xf32, #tpu.memory_space<vmem>>, vector<16x1xf32>
    %4 = vector.broadcast %3 : vector<16x1xf32> to vector<16x32xf32>
    %5 = arith.addf %2, %4 : vector<16x32xf32>
    %cst_5 = arith.constant 0.000000e+00 : f32
    %6 = vector.broadcast %cst_5 : f32 to vector<16x32xf32>
    %7 = arith.maximumf %5, %6 : vector<16x32xf32>
    %c0_6 = arith.constant 0 : index
    %c0_7 = arith.constant 0 : index
    %8 = vector.load %arg3[%c0_6, %c0_7] : memref<16x32xf32, #tpu.memory_space<vmem>>, vector<16x32xf32>
    tpu.vector_store %arg3[%c0_6, %c0_7], %7 {strides = array<i32>} : memref<16x32xf32, #tpu.memory_space<vmem>>, vector<16x32xf32>,
    return
  }
}

module attributes {stable_mosaic.version = 11 : i64} {
  func.func @_pool_bn_kernel(%arg0: memref<4x16x8xf32, #tpu.memory_space<vmem>>, %arg1: memref<16x1xf32, #tpu.memory_space<vmem>>, %arg2: memref<16x1xf32, #tpu.memory_space<vmem>>, %arg3: memref<16x8xf32, #tpu.memory_space<vmem>>) attributes {dimension_semantics = [], scalar_prefetch = 0 : i64, scratch_operands = 0 : i64, tpu.core_type = #tpu.core_type<tc>} {
    %c0 = arith.constant 0 : index
    %c0_0 = arith.constant 0 : index
    %c0_1 = arith.constant 0 : index
    %0 = vector.load %arg0[%c0, %c0_0, %c0_1] : memref<4x16x8xf32, #tpu.memory_space<vmem>>, vector<4x16x8xf32>
    %cst = arith.constant dense<0xFF800000> : vector<16x8xf32>
    %1 = vector.multi_reduction <maximumf>, %0, %cst [0] : vector<4x16x8xf32> to vector<16x8xf32>
    %cst_2 = arith.constant dense<0.000000e+00> : vector<16xf32>
    %2 = vector.multi_reduction <add>, %1, %cst_2 [1] : vector<16x8xf32> to vector<16xf32>
    %3 = vector.shape_cast %2 : vector<16xf32> to vector<16x1xf32>
    %cst_3 = arith.constant 8.000000e+00 : f32
    %4 = vector.broadcast %cst_3 : f32 to vector<16x1xf32>
    %5 = arith.divf %3, %4 : vector<16x1xf32>
    %6 = vector.broadcast %5 : vector<16x1xf32> to vector<16x8xf32>
    %7 = arith.subf %1, %6 : vector<16x8xf32>
    %8 = arith.mulf %7, %7 : vector<16x8xf32>
    %cst_4 = arith.constant dense<0.000000e+00> : vector<16xf32>
    %9 = vector.multi_reduction <add>, %8, %cst_4 [1] : vector<16x8xf32> to vector<16xf32>
    %10 = vector.shape_cast %9 : vector<16xf32> to vector<16x1xf32>
    %cst_5 = arith.constant 8.000000e+00 : f32
    %11 = vector.broadcast %cst_5 : f32 to vector<16x1xf32>
    %12 = arith.divf %10, %11 : vector<16x1xf32>
    %13 = vector.broadcast %5 : vector<16x1xf32> to vector<16x8xf32>
    %14 = arith.subf %1, %13 : vector<16x8xf32>
    %cst_6 = arith.constant 9.99999974E-6 : f32
    %15 = vector.broadcast %cst_6 : f32 to vector<16x1xf32>
    %16 = arith.addf %12, %15 : vector<16x1xf32>
    %17 = math.rsqrt %16 : vector<16x1xf32>
    %18 = vector.broadcast %17 : vector<16x1xf32> to vector<16x8xf32>
    %19 = arith.mulf %14, %18 : vector<16x8xf32>
    %c0_7 = arith.constant 0 : index
    %c0_8 = arith.constant 0 : index
    %20 = vector.load %arg1[%c0_7, %c0_8] : memref<16x1xf32, #tpu.memory_space<vmem>>, vector<16x1xf32>
    %21 = vector.broadcast %20 : vector<16x1xf32> to vector<16x8xf32>
    %22 = arith.mulf %19, %21 : vector<16x8xf32>
    %c0_9 = arith.constant 0 : index
    %c0_10 = arith.constant 0 : index
    %23 = vector.load %arg2[%c0_9, %c0_10] : memref<16x1xf32, #tpu.memory_space<vmem>>, vector<16x1xf32>
    %24 = vector.broadcast %23 : vector<16x1xf32> to vector<16x8xf32>
    %25 = arith.addf %22, %24 : vector<16x8xf32>
    %c0_11 = arith.constant 0 : index
    %c0_12 = arith.constant 0 : index
    %26 = vector.load %arg3[%c0_11, %c0_12] : memref<16x8xf32, #tpu.memory_space<vmem>>, vector<16x8xf32>
    tpu.vector_store %arg3[%c0_11, %c0_12], %25 {strides = array<i32>} : memref<16x8xf32, #tpu.memory_space<vmem>>, vector<16x8xf32>,
    return
  }
}

module attributes {stable_mosaic.version = 11 : i64} {
  func.func @_conv_act_kernel(%arg0: memref<8x144xbf16, #tpu.memory_space<vmem>>, %arg1: memref<144x8xbf16, #tpu.memory_space<vmem>>, %arg2: memref<8x1xf32, #tpu.memory_space<vmem>>, %arg3: memref<8x8xf32, #tpu.memory_space<vmem>>) attributes {dimension_semantics = [], scalar_prefetch = 0 : i64, scratch_operands = 0 : i64, tpu.core_type = #tpu.core_type<tc>} {
    %c0 = arith.constant 0 : index
    %c0_0 = arith.constant 0 : index
    %0 = vector.load %arg0[%c0, %c0_0] : memref<8x144xbf16, #tpu.memory_space<vmem>>, vector<8x144xbf16>
    %c0_1 = arith.constant 0 : index
    %c0_2 = arith.constant 0 : index
    %1 = vector.load %arg1[%c0_1, %c0_2] : memref<144x8xbf16, #tpu.memory_space<vmem>>, vector<144x8xbf16>
    %cst = arith.constant dense<0.000000e+00> : vector<8x8xf32>
    %2 = tpu.matmul %0, %1, %cst {dimension_numbers = #tpu.dot_dimension_numbers<[1], [0], [0], [1], [0, 0, 1, 1], [], []>} : vector<8x144xbf16>, vector<144x8xbf16>, vector<8x8xf32> -> vector<8x8xf32>
    %c0_3 = arith.constant 0 : index
    %c0_4 = arith.constant 0 : index
    %3 = vector.load %arg2[%c0_3, %c0_4] : memref<8x1xf32, #tpu.memory_space<vmem>>, vector<8x1xf32>
    %4 = vector.broadcast %3 : vector<8x1xf32> to vector<8x8xf32>
    %5 = arith.addf %2, %4 : vector<8x8xf32>
    %cst_5 = arith.constant 0.000000e+00 : f32
    %6 = vector.broadcast %cst_5 : f32 to vector<8x8xf32>
    %7 = arith.maximumf %5, %6 : vector<8x8xf32>
    %c0_6 = arith.constant 0 : index
    %c0_7 = arith.constant 0 : index
    %8 = vector.load %arg3[%c0_6, %c0_7] : memref<8x8xf32, #tpu.memory_space<vmem>>, vector<8x8xf32>
    tpu.vector_store %arg3[%c0_6, %c0_7], %7 {strides = array<i32>} : memref<8x8xf32, #tpu.memory_space<vmem>>, vector<8x8xf32>,
    return
  }
}

module attributes {stable_mosaic.version = 11 : i64} {
  func.func @_pool_bn_kernel(%arg0: memref<4x8x2xf32, #tpu.memory_space<vmem>>, %arg1: memref<8x1xf32, #tpu.memory_space<vmem>>, %arg2: memref<8x1xf32, #tpu.memory_space<vmem>>, %arg3: memref<8x2xf32, #tpu.memory_space<vmem>>) attributes {dimension_semantics = [], scalar_prefetch = 0 : i64, scratch_operands = 0 : i64, tpu.core_type = #tpu.core_type<tc>} {
    %c0 = arith.constant 0 : index
    %c0_0 = arith.constant 0 : index
    %c0_1 = arith.constant 0 : index
    %0 = vector.load %arg0[%c0, %c0_0, %c0_1] : memref<4x8x2xf32, #tpu.memory_space<vmem>>, vector<4x8x2xf32>
    %cst = arith.constant dense<0xFF800000> : vector<8x2xf32>
    %1 = vector.multi_reduction <maximumf>, %0, %cst [0] : vector<4x8x2xf32> to vector<8x2xf32>
    %cst_2 = arith.constant dense<0.000000e+00> : vector<8xf32>
    %2 = vector.multi_reduction <add>, %1, %cst_2 [1] : vector<8x2xf32> to vector<8xf32>
    %3 = vector.shape_cast %2 : vector<8xf32> to vector<8x1xf32>
    %cst_3 = arith.constant 2.000000e+00 : f32
    %4 = vector.broadcast %cst_3 : f32 to vector<8x1xf32>
    %5 = arith.divf %3, %4 : vector<8x1xf32>
    %6 = vector.broadcast %5 : vector<8x1xf32> to vector<8x2xf32>
    %7 = arith.subf %1, %6 : vector<8x2xf32>
    %8 = arith.mulf %7, %7 : vector<8x2xf32>
    %cst_4 = arith.constant dense<0.000000e+00> : vector<8xf32>
    %9 = vector.multi_reduction <add>, %8, %cst_4 [1] : vector<8x2xf32> to vector<8xf32>
    %10 = vector.shape_cast %9 : vector<8xf32> to vector<8x1xf32>
    %cst_5 = arith.constant 2.000000e+00 : f32
    %11 = vector.broadcast %cst_5 : f32 to vector<8x1xf32>
    %12 = arith.divf %10, %11 : vector<8x1xf32>
    %13 = vector.broadcast %5 : vector<8x1xf32> to vector<8x2xf32>
    %14 = arith.subf %1, %13 : vector<8x2xf32>
    %cst_6 = arith.constant 9.99999974E-6 : f32
    %15 = vector.broadcast %cst_6 : f32 to vector<8x1xf32>
    %16 = arith.addf %12, %15 : vector<8x1xf32>
    %17 = math.rsqrt %16 : vector<8x1xf32>
    %18 = vector.broadcast %17 : vector<8x1xf32> to vector<8x2xf32>
    %19 = arith.mulf %14, %18 : vector<8x2xf32>
    %c0_7 = arith.constant 0 : index
    %c0_8 = arith.constant 0 : index
    %20 = vector.load %arg1[%c0_7, %c0_8] : memref<8x1xf32, #tpu.memory_space<vmem>>, vector<8x1xf32>
    %21 = vector.broadcast %20 : vector<8x1xf32> to vector<8x2xf32>
    %22 = arith.mulf %19, %21 : vector<8x2xf32>
    %c0_9 = arith.constant 0 : index
    %c0_10 = arith.constant 0 : index
    %23 = vector.load %arg2[%c0_9, %c0_10] : memref<8x1xf32, #tpu.memory_space<vmem>>, vector<8x1xf32>
    %24 = vector.broadcast %23 : vector<8x1xf32> to vector<8x2xf32>
    %25 = arith.addf %22, %24 : vector<8x2xf32>
    %c0_11 = arith.constant 0 : index
    %c0_12 = arith.constant 0 : index
    %26 = vector.load %arg3[%c0_11, %c0_12] : memref<8x2xf32, #tpu.memory_space<vmem>>, vector<8x2xf32>
    tpu.vector_store %arg3[%c0_11, %c0_12], %25 {strides = array<i32>} : memref<8x2xf32, #tpu.memory_space<vmem>>, vector<8x2xf32>,
    return
  }
}

module attributes {stable_mosaic.version = 11 : i64} {
  func.func @_conv_act_bn_kernel(%arg0: memref<16x72xbf16, #tpu.memory_space<vmem>>, %arg1: memref<72x2xbf16, #tpu.memory_space<vmem>>, %arg2: memref<16x1xf32, #tpu.memory_space<vmem>>, %arg3: memref<16x1xf32, #tpu.memory_space<vmem>>, %arg4: memref<16x1xf32, #tpu.memory_space<vmem>>, %arg5: memref<16x2xf32, #tpu.memory_space<vmem>>) attributes {dimension_semantics = [], scalar_prefetch = 0 : i64, scratch_operands = 0 : i64, tpu.core_type = #tpu.core_type<tc>} {
    %c0 = arith.constant 0 : index
    %c0_0 = arith.constant 0 : index
    %0 = vector.load %arg0[%c0, %c0_0] : memref<16x72xbf16, #tpu.memory_space<vmem>>, vector<16x72xbf16>
    %c0_1 = arith.constant 0 : index
    %c0_2 = arith.constant 0 : index
    %1 = vector.load %arg1[%c0_1, %c0_2] : memref<72x2xbf16, #tpu.memory_space<vmem>>, vector<72x2xbf16>
    %cst = arith.constant dense<0.000000e+00> : vector<16x2xf32>
    %2 = tpu.matmul %0, %1, %cst {dimension_numbers = #tpu.dot_dimension_numbers<[1], [0], [0], [1], [0, 0, 1, 1], [], []>} : vector<16x72xbf16>, vector<72x2xbf16>, vector<16x2xf32> -> vector<16x2xf32>
    %c0_3 = arith.constant 0 : index
    %c0_4 = arith.constant 0 : index
    %3 = vector.load %arg2[%c0_3, %c0_4] : memref<16x1xf32, #tpu.memory_space<vmem>>, vector<16x1xf32>
    %4 = vector.broadcast %3 : vector<16x1xf32> to vector<16x2xf32>
    %5 = arith.addf %2, %4 : vector<16x2xf32>
    %cst_5 = arith.constant 0.000000e+00 : f32
    %6 = vector.broadcast %cst_5 : f32 to vector<16x2xf32>
    %7 = arith.maximumf %5, %6 : vector<16x2xf32>
    %cst_6 = arith.constant dense<0.000000e+00> : vector<16xf32>
    %8 = vector.multi_reduction <add>, %7, %cst_6 [1] : vector<16x2xf32> to vector<16xf32>
    %9 = vector.shape_cast %8 : vector<16xf32> to vector<16x1xf32>
    %cst_7 = arith.constant 2.000000e+00 : f32
    %10 = vector.broadcast %cst_7 : f32 to vector<16x1xf32>
    %11 = arith.divf %9, %10 : vector<16x1xf32>
    %12 = vector.broadcast %11 : vector<16x1xf32> to vector<16x2xf32>
    %13 = arith.subf %7, %12 : vector<16x2xf32>
    %14 = arith.mulf %13, %13 : vector<16x2xf32>
    %cst_8 = arith.constant dense<0.000000e+00> : vector<16xf32>
    %15 = vector.multi_reduction <add>, %14, %cst_8 [1] : vector<16x2xf32> to vector<16xf32>
    %16 = vector.shape_cast %15 : vector<16xf32> to vector<16x1xf32>
    %cst_9 = arith.constant 2.000000e+00 : f32
    %17 = vector.broadcast %cst_9 : f32 to vector<16x1xf32>
    %18 = arith.divf %16, %17 : vector<16x1xf32>
    %19 = vector.broadcast %11 : vector<16x1xf32> to vector<16x2xf32>
    %20 = arith.subf %7, %19 : vector<16x2xf32>
    %cst_10 = arith.constant 9.99999974E-6 : f32
    %21 = vector.broadcast %cst_10 : f32 to vector<16x1xf32>
    %22 = arith.addf %18, %21 : vector<16x1xf32>
    %23 = math.rsqrt %22 : vector<16x1xf32>
    %24 = vector.broadcast %23 : vector<16x1xf32> to vector<16x2xf32>
    %25 = arith.mulf %20, %24 : vector<16x2xf32>
    %c0_11 = arith.constant 0 : index
    %c0_12 = arith.constant 0 : index
    %26 = vector.load %arg3[%c0_11, %c0_12] : memref<16x1xf32, #tpu.memory_space<vmem>>, vector<16x1xf32>
    %27 = vector.broadcast %26 : vector<16x1xf32> to vector<16x2xf32>
    %28 = arith.mulf %25, %27 : vector<16x2xf32>
    %c0_13 = arith.constant 0 : index
    %c0_14 = arith.constant 0 : index
    %29 = vector.load %arg4[%c0_13, %c0_14] : memref<16x1xf32, #tpu.memory_space<vmem>>, vector<16x1xf32>
    %30 = vector.broadcast %29 : vector<16x1xf32> to vector<16x2xf32>
    %31 = arith.addf %28, %30 : vector<16x2xf32>
    %c0_15 = arith.constant 0 : index
    %c0_16 = arith.constant 0 : index
    %32 = vector.load %arg5[%c0_15, %c0_16] : memref<16x2xf32, #tpu.memory_space<vmem>>, vector<16x2xf32>
    tpu.vector_store %arg5[%c0_15, %c0_16], %31 {strides = array<i32>} : memref<16x2xf32, #tpu.memory_space<vmem>>, vector<16x2xf32>,
    return
  }
}

module attributes {stable_mosaic.version = 11 : i64} {
  func.func @_conv_act_kernel(%arg0: memref<16x144xbf16, #tpu.memory_space<vmem>>, %arg1: memref<144x8xbf16, #tpu.memory_space<vmem>>, %arg2: memref<16x1xf32, #tpu.memory_space<vmem>>, %arg3: memref<16x8xf32, #tpu.memory_space<vmem>>) attributes {dimension_semantics = [], scalar_prefetch = 0 : i64, scratch_operands = 0 : i64, tpu.core_type = #tpu.core_type<tc>} {
    %c0 = arith.constant 0 : index
    %c0_0 = arith.constant 0 : index
    %0 = vector.load %arg0[%c0, %c0_0] : memref<16x144xbf16, #tpu.memory_space<vmem>>, vector<16x144xbf16>
    %c0_1 = arith.constant 0 : index
    %c0_2 = arith.constant 0 : index
    %1 = vector.load %arg1[%c0_1, %c0_2] : memref<144x8xbf16, #tpu.memory_space<vmem>>, vector<144x8xbf16>
    %cst = arith.constant dense<0.000000e+00> : vector<16x8xf32>
    %2 = tpu.matmul %0, %1, %cst {dimension_numbers = #tpu.dot_dimension_numbers<[1], [0], [0], [1], [0, 0, 1, 1], [], []>} : vector<16x144xbf16>, vector<144x8xbf16>, vector<16x8xf32> -> vector<16x8xf32>
    %c0_3 = arith.constant 0 : index
    %c0_4 = arith.constant 0 : index
    %3 = vector.load %arg2[%c0_3, %c0_4] : memref<16x1xf32, #tpu.memory_space<vmem>>, vector<16x1xf32>
    %4 = vector.broadcast %3 : vector<16x1xf32> to vector<16x8xf32>
    %5 = arith.addf %2, %4 : vector<16x8xf32>
    %c0_5 = arith.constant 0 : index
    %c0_6 = arith.constant 0 : index
    %6 = vector.load %arg3[%c0_5, %c0_6] : memref<16x8xf32, #tpu.memory_space<vmem>>, vector<16x8xf32>
    tpu.vector_store %arg3[%c0_5, %c0_6], %5 {strides = array<i32>} : memref<16x8xf32, #tpu.memory_space<vmem>>, vector<16x8xf32>,
    return
  }
}

module attributes {stable_mosaic.version = 11 : i64} {
  func.func @_conv_act_bn_kernel(%arg0: memref<16x144xbf16, #tpu.memory_space<vmem>>, %arg1: memref<144x8xbf16, #tpu.memory_space<vmem>>, %arg2: memref<16x1xf32, #tpu.memory_space<vmem>>, %arg3: memref<16x1xf32, #tpu.memory_space<vmem>>, %arg4: memref<16x1xf32, #tpu.memory_space<vmem>>, %arg5: memref<16x8xf32, #tpu.memory_space<vmem>>) attributes {dimension_semantics = [], scalar_prefetch = 0 : i64, scratch_operands = 0 : i64, tpu.core_type = #tpu.core_type<tc>} {
    %c0 = arith.constant 0 : index
    %c0_0 = arith.constant 0 : index
    %0 = vector.load %arg0[%c0, %c0_0] : memref<16x144xbf16, #tpu.memory_space<vmem>>, vector<16x144xbf16>
    %c0_1 = arith.constant 0 : index
    %c0_2 = arith.constant 0 : index
    %1 = vector.load %arg1[%c0_1, %c0_2] : memref<144x8xbf16, #tpu.memory_space<vmem>>, vector<144x8xbf16>
    %cst = arith.constant dense<0.000000e+00> : vector<16x8xf32>
    %2 = tpu.matmul %0, %1, %cst {dimension_numbers = #tpu.dot_dimension_numbers<[1], [0], [0], [1], [0, 0, 1, 1], [], []>} : vector<16x144xbf16>, vector<144x8xbf16>, vector<16x8xf32> -> vector<16x8xf32>
    %c0_3 = arith.constant 0 : index
    %c0_4 = arith.constant 0 : index
    %3 = vector.load %arg2[%c0_3, %c0_4] : memref<16x1xf32, #tpu.memory_space<vmem>>, vector<16x1xf32>
    %4 = vector.broadcast %3 : vector<16x1xf32> to vector<16x8xf32>
    %5 = arith.addf %2, %4 : vector<16x8xf32>
    %cst_5 = arith.constant 0.000000e+00 : f32
    %6 = vector.broadcast %cst_5 : f32 to vector<16x8xf32>
    %7 = arith.maximumf %5, %6 : vector<16x8xf32>
    %cst_6 = arith.constant dense<0.000000e+00> : vector<16xf32>
    %8 = vector.multi_reduction <add>, %7, %cst_6 [1] : vector<16x8xf32> to vector<16xf32>
    %9 = vector.shape_cast %8 : vector<16xf32> to vector<16x1xf32>
    %cst_7 = arith.constant 8.000000e+00 : f32
    %10 = vector.broadcast %cst_7 : f32 to vector<16x1xf32>
    %11 = arith.divf %9, %10 : vector<16x1xf32>
    %12 = vector.broadcast %11 : vector<16x1xf32> to vector<16x8xf32>
    %13 = arith.subf %7, %12 : vector<16x8xf32>
    %14 = arith.mulf %13, %13 : vector<16x8xf32>
    %cst_8 = arith.constant dense<0.000000e+00> : vector<16xf32>
    %15 = vector.multi_reduction <add>, %14, %cst_8 [1] : vector<16x8xf32> to vector<16xf32>
    %16 = vector.shape_cast %15 : vector<16xf32> to vector<16x1xf32>
    %cst_9 = arith.constant 8.000000e+00 : f32
    %17 = vector.broadcast %cst_9 : f32 to vector<16x1xf32>
    %18 = arith.divf %16, %17 : vector<16x1xf32>
    %19 = vector.broadcast %11 : vector<16x1xf32> to vector<16x8xf32>
    %20 = arith.subf %7, %19 : vector<16x8xf32>
    %cst_10 = arith.constant 9.99999974E-6 : f32
    %21 = vector.broadcast %cst_10 : f32 to vector<16x1xf32>
    %22 = arith.addf %18, %21 : vector<16x1xf32>
    %23 = math.rsqrt %22 : vector<16x1xf32>
    %24 = vector.broadcast %23 : vector<16x1xf32> to vector<16x8xf32>
    %25 = arith.mulf %20, %24 : vector<16x8xf32>
    %c0_11 = arith.constant 0 : index
    %c0_12 = arith.constant 0 : index
    %26 = vector.load %arg3[%c0_11, %c0_12] : memref<16x1xf32, #tpu.memory_space<vmem>>, vector<16x1xf32>
    %27 = vector.broadcast %26 : vector<16x1xf32> to vector<16x8xf32>
    %28 = arith.mulf %25, %27 : vector<16x8xf32>
    %c0_13 = arith.constant 0 : index
    %c0_14 = arith.constant 0 : index
    %29 = vector.load %arg4[%c0_13, %c0_14] : memref<16x1xf32, #tpu.memory_space<vmem>>, vector<16x1xf32>
    %30 = vector.broadcast %29 : vector<16x1xf32> to vector<16x8xf32>
    %31 = arith.addf %28, %30 : vector<16x8xf32>
    %c0_15 = arith.constant 0 : index
    %c0_16 = arith.constant 0 : index
    %32 = vector.load %arg5[%c0_15, %c0_16] : memref<16x8xf32, #tpu.memory_space<vmem>>, vector<16x8xf32>
    tpu.vector_store %arg5[%c0_15, %c0_16], %31 {strides = array<i32>} : memref<16x8xf32, #tpu.memory_space<vmem>>, vector<16x8xf32>,
    return
  }
}

module attributes {stable_mosaic.version = 11 : i64} {
  func.func @_conv_act_bn_kernel(%arg0: memref<16x144xbf16, #tpu.memory_space<vmem>>, %arg1: memref<144x32xbf16, #tpu.memory_space<vmem>>, %arg2: memref<16x1xf32, #tpu.memory_space<vmem>>, %arg3: memref<16x1xf32, #tpu.memory_space<vmem>>, %arg4: memref<16x1xf32, #tpu.memory_space<vmem>>, %arg5: memref<16x32xf32, #tpu.memory_space<vmem>>) attributes {dimension_semantics = [], scalar_prefetch = 0 : i64, scratch_operands = 0 : i64, tpu.core_type = #tpu.core_type<tc>} {
    %c0 = arith.constant 0 : index
    %c0_0 = arith.constant 0 : index
    %0 = vector.load %arg0[%c0, %c0_0] : memref<16x144xbf16, #tpu.memory_space<vmem>>, vector<16x144xbf16>
    %c0_1 = arith.constant 0 : index
    %c0_2 = arith.constant 0 : index
    %1 = vector.load %arg1[%c0_1, %c0_2] : memref<144x32xbf16, #tpu.memory_space<vmem>>, vector<144x32xbf16>
    %cst = arith.constant dense<0.000000e+00> : vector<16x32xf32>
    %2 = tpu.matmul %0, %1, %cst {dimension_numbers = #tpu.dot_dimension_numbers<[1], [0], [0], [1], [0, 0, 1, 1], [], []>} : vector<16x144xbf16>, vector<144x32xbf16>, vector<16x32xf32> -> vector<16x32xf32>
    %c0_3 = arith.constant 0 : index
    %c0_4 = arith.constant 0 : index
    %3 = vector.load %arg2[%c0_3, %c0_4] : memref<16x1xf32, #tpu.memory_space<vmem>>, vector<16x1xf32>
    %4 = vector.broadcast %3 : vector<16x1xf32> to vector<16x32xf32>
    %5 = arith.addf %2, %4 : vector<16x32xf32>
    %cst_5 = arith.constant 0.000000e+00 : f32
    %6 = vector.broadcast %cst_5 : f32 to vector<16x32xf32>
    %7 = arith.maximumf %5, %6 : vector<16x32xf32>
    %cst_6 = arith.constant dense<0.000000e+00> : vector<16xf32>
    %8 = vector.multi_reduction <add>, %7, %cst_6 [1] : vector<16x32xf32> to vector<16xf32>
    %9 = vector.shape_cast %8 : vector<16xf32> to vector<16x1xf32>
    %cst_7 = arith.constant 3.200000e+01 : f32
    %10 = vector.broadcast %cst_7 : f32 to vector<16x1xf32>
    %11 = arith.divf %9, %10 : vector<16x1xf32>
    %12 = vector.broadcast %11 : vector<16x1xf32> to vector<16x32xf32>
    %13 = arith.subf %7, %12 : vector<16x32xf32>
    %14 = arith.mulf %13, %13 : vector<16x32xf32>
    %cst_8 = arith.constant dense<0.000000e+00> : vector<16xf32>
    %15 = vector.multi_reduction <add>, %14, %cst_8 [1] : vector<16x32xf32> to vector<16xf32>
    %16 = vector.shape_cast %15 : vector<16xf32> to vector<16x1xf32>
    %cst_9 = arith.constant 3.200000e+01 : f32
    %17 = vector.broadcast %cst_9 : f32 to vector<16x1xf32>
    %18 = arith.divf %16, %17 : vector<16x1xf32>
    %19 = vector.broadcast %11 : vector<16x1xf32> to vector<16x32xf32>
    %20 = arith.subf %7, %19 : vector<16x32xf32>
    %cst_10 = arith.constant 9.99999974E-6 : f32
    %21 = vector.broadcast %cst_10 : f32 to vector<16x1xf32>
    %22 = arith.addf %18, %21 : vector<16x1xf32>
    %23 = math.rsqrt %22 : vector<16x1xf32>
    %24 = vector.broadcast %23 : vector<16x1xf32> to vector<16x32xf32>
    %25 = arith.mulf %20, %24 : vector<16x32xf32>
    %c0_11 = arith.constant 0 : index
    %c0_12 = arith.constant 0 : index
    %26 = vector.load %arg3[%c0_11, %c0_12] : memref<16x1xf32, #tpu.memory_space<vmem>>, vector<16x1xf32>
    %27 = vector.broadcast %26 : vector<16x1xf32> to vector<16x32xf32>
    %28 = arith.mulf %25, %27 : vector<16x32xf32>
    %c0_13 = arith.constant 0 : index
    %c0_14 = arith.constant 0 : index
    %29 = vector.load %arg4[%c0_13, %c0_14] : memref<16x1xf32, #tpu.memory_space<vmem>>, vector<16x1xf32>
    %30 = vector.broadcast %29 : vector<16x1xf32> to vector<16x32xf32>
    %31 = arith.addf %28, %30 : vector<16x32xf32>
    %c0_15 = arith.constant 0 : index
    %c0_16 = arith.constant 0 : index
    %32 = vector.load %arg5[%c0_15, %c0_16] : memref<16x32xf32, #tpu.memory_space<vmem>>, vector<16x32xf32>
    tpu.vector_store %arg5[%c0_15, %c0_16], %31 {strides = array<i32>} : memref<16x32xf32, #tpu.memory_space<vmem>>, vector<16x32xf32>,
    return
  }
}

module attributes {stable_mosaic.version = 11 : i64} {
  func.func @_conv_act_bn_kernel(%arg0: memref<8x144xbf16, #tpu.memory_space<vmem>>, %arg1: memref<144x32xbf16, #tpu.memory_space<vmem>>, %arg2: memref<8x1xf32, #tpu.memory_space<vmem>>, %arg3: memref<8x1xf32, #tpu.memory_space<vmem>>, %arg4: memref<8x1xf32, #tpu.memory_space<vmem>>, %arg5: memref<8x32xf32, #tpu.memory_space<vmem>>) attributes {dimension_semantics = [], scalar_prefetch = 0 : i64, scratch_operands = 0 : i64, tpu.core_type = #tpu.core_type<tc>} {
    %c0 = arith.constant 0 : index
    %c0_0 = arith.constant 0 : index
    %0 = vector.load %arg0[%c0, %c0_0] : memref<8x144xbf16, #tpu.memory_space<vmem>>, vector<8x144xbf16>
    %c0_1 = arith.constant 0 : index
    %c0_2 = arith.constant 0 : index
    %1 = vector.load %arg1[%c0_1, %c0_2] : memref<144x32xbf16, #tpu.memory_space<vmem>>, vector<144x32xbf16>
    %cst = arith.constant dense<0.000000e+00> : vector<8x32xf32>
    %2 = tpu.matmul %0, %1, %cst {dimension_numbers = #tpu.dot_dimension_numbers<[1], [0], [0], [1], [0, 0, 1, 1], [], []>} : vector<8x144xbf16>, vector<144x32xbf16>, vector<8x32xf32> -> vector<8x32xf32>
    %c0_3 = arith.constant 0 : index
    %c0_4 = arith.constant 0 : index
    %3 = vector.load %arg2[%c0_3, %c0_4] : memref<8x1xf32, #tpu.memory_space<vmem>>, vector<8x1xf32>
    %4 = vector.broadcast %3 : vector<8x1xf32> to vector<8x32xf32>
    %5 = arith.addf %2, %4 : vector<8x32xf32>
    %cst_5 = arith.constant 0.000000e+00 : f32
    %6 = vector.broadcast %cst_5 : f32 to vector<8x32xf32>
    %7 = arith.maximumf %5, %6 : vector<8x32xf32>
    %cst_6 = arith.constant dense<0.000000e+00> : vector<8xf32>
    %8 = vector.multi_reduction <add>, %7, %cst_6 [1] : vector<8x32xf32> to vector<8xf32>
    %9 = vector.shape_cast %8 : vector<8xf32> to vector<8x1xf32>
    %cst_7 = arith.constant 3.200000e+01 : f32
    %10 = vector.broadcast %cst_7 : f32 to vector<8x1xf32>
    %11 = arith.divf %9, %10 : vector<8x1xf32>
    %12 = vector.broadcast %11 : vector<8x1xf32> to vector<8x32xf32>
    %13 = arith.subf %7, %12 : vector<8x32xf32>
    %14 = arith.mulf %13, %13 : vector<8x32xf32>
    %cst_8 = arith.constant dense<0.000000e+00> : vector<8xf32>
    %15 = vector.multi_reduction <add>, %14, %cst_8 [1] : vector<8x32xf32> to vector<8xf32>
    %16 = vector.shape_cast %15 : vector<8xf32> to vector<8x1xf32>
    %cst_9 = arith.constant 3.200000e+01 : f32
    %17 = vector.broadcast %cst_9 : f32 to vector<8x1xf32>
    %18 = arith.divf %16, %17 : vector<8x1xf32>
    %19 = vector.broadcast %11 : vector<8x1xf32> to vector<8x32xf32>
    %20 = arith.subf %7, %19 : vector<8x32xf32>
    %cst_10 = arith.constant 9.99999974E-6 : f32
    %21 = vector.broadcast %cst_10 : f32 to vector<8x1xf32>
    %22 = arith.addf %18, %21 : vector<8x1xf32>
    %23 = math.rsqrt %22 : vector<8x1xf32>
    %24 = vector.broadcast %23 : vector<8x1xf32> to vector<8x32xf32>
    %25 = arith.mulf %20, %24 : vector<8x32xf32>
    %c0_11 = arith.constant 0 : index
    %c0_12 = arith.constant 0 : index
    %26 = vector.load %arg3[%c0_11, %c0_12] : memref<8x1xf32, #tpu.memory_space<vmem>>, vector<8x1xf32>
    %27 = vector.broadcast %26 : vector<8x1xf32> to vector<8x32xf32>
    %28 = arith.mulf %25, %27 : vector<8x32xf32>
    %c0_13 = arith.constant 0 : index
    %c0_14 = arith.constant 0 : index
    %29 = vector.load %arg4[%c0_13, %c0_14] : memref<8x1xf32, #tpu.memory_space<vmem>>, vector<8x1xf32>
    %30 = vector.broadcast %29 : vector<8x1xf32> to vector<8x32xf32>
    %31 = arith.addf %28, %30 : vector<8x32xf32>
    %c0_15 = arith.constant 0 : index
    %c0_16 = arith.constant 0 : index
    %32 = vector.load %arg5[%c0_15, %c0_16] : memref<8x32xf32, #tpu.memory_space<vmem>>, vector<8x32xf32>
    tpu.vector_store %arg5[%c0_15, %c0_16], %31 {strides = array<i32>} : memref<8x32xf32, #tpu.memory_space<vmem>>, vector<8x32xf32>,
    return
  }
}

module attributes {stable_mosaic.version = 11 : i64} {
  func.func @_conv_act_kernel(%arg0: memref<4x72xbf16, #tpu.memory_space<vmem>>, %arg1: memref<72x32xbf16, #tpu.memory_space<vmem>>, %arg2: memref<4x1xf32, #tpu.memory_space<vmem>>, %arg3: memref<4x32xf32, #tpu.memory_space<vmem>>) attributes {dimension_semantics = [], scalar_prefetch = 0 : i64, scratch_operands = 0 : i64, tpu.core_type = #tpu.core_type<tc>} {
    %c0 = arith.constant 0 : index
    %c0_0 = arith.constant 0 : index
    %0 = vector.load %arg0[%c0, %c0_0] : memref<4x72xbf16, #tpu.memory_space<vmem>>, vector<4x72xbf16>
    %c0_1 = arith.constant 0 : index
    %c0_2 = arith.constant 0 : index
    %1 = vector.load %arg1[%c0_1, %c0_2] : memref<72x32xbf16, #tpu.memory_space<vmem>>, vector<72x32xbf16>
    %cst = arith.constant dense<0.000000e+00> : vector<4x32xf32>
    %2 = tpu.matmul %0, %1, %cst {dimension_numbers = #tpu.dot_dimension_numbers<[1], [0], [0], [1], [0, 0, 1, 1], [], []>} : vector<4x72xbf16>, vector<72x32xbf16>, vector<4x32xf32> -> vector<4x32xf32>
    %c0_3 = arith.constant 0 : index
    %c0_4 = arith.constant 0 : index
    %3 = vector.load %arg2[%c0_3, %c0_4] : memref<4x1xf32, #tpu.memory_space<vmem>>, vector<4x1xf32>
    %4 = vector.broadcast %3 : vector<4x1xf32> to vector<4x32xf32>
    %5 = arith.addf %2, %4 : vector<4x32xf32>
    %c0_5 = arith.constant 0 : index
    %c0_6 = arith.constant 0 : index
    %6 = vector.load %arg3[%c0_5, %c0_6] : memref<4x32xf32, #tpu.memory_space<vmem>>, vector<4x32xf32>
    tpu.vector_store %arg3[%c0_5, %c0_6], %5 {strides = array<i32>} : memref<4x32xf32, #tpu.memory_space<vmem>>, vector<4x32xf32>,
    return
  }
}

module attributes {stable_mosaic.version = 11 : i64} {
  func.func @_conv_act_bn_kernel(%arg0: memref<4x64xbf16, #tpu.memory_space<vmem>>, %arg1: memref<64x288xbf16, #tpu.memory_space<vmem>>, %arg2: memref<4x1xf32, #tpu.memory_space<vmem>>, %arg3: memref<4x1xf32, #tpu.memory_space<vmem>>, %arg4: memref<4x1xf32, #tpu.memory_space<vmem>>, %arg5: memref<4x288xf32, #tpu.memory_space<vmem>>) attributes {dimension_semantics = [], scalar_prefetch = 0 : i64, scratch_operands = 0 : i64, tpu.core_type = #tpu.core_type<tc>} {
    %c0 = arith.constant 0 : index
    %c0_0 = arith.constant 0 : index
    %0 = vector.load %arg0[%c0, %c0_0] : memref<4x64xbf16, #tpu.memory_space<vmem>>, vector<4x64xbf16>
    %c0_1 = arith.constant 0 : index
    %c0_2 = arith.constant 0 : index
    %1 = vector.load %arg1[%c0_1, %c0_2] : memref<64x288xbf16, #tpu.memory_space<vmem>>, vector<64x288xbf16>
    %cst = arith.constant dense<0.000000e+00> : vector<4x288xf32>
    %2 = tpu.matmul %0, %1, %cst {dimension_numbers = #tpu.dot_dimension_numbers<[1], [0], [0], [1], [0, 0, 1, 1], [], []>} : vector<4x64xbf16>, vector<64x288xbf16>, vector<4x288xf32> -> vector<4x288xf32>
    %c0_3 = arith.constant 0 : index
    %c0_4 = arith.constant 0 : index
    %3 = vector.load %arg2[%c0_3, %c0_4] : memref<4x1xf32, #tpu.memory_space<vmem>>, vector<4x1xf32>
    %4 = vector.broadcast %3 : vector<4x1xf32> to vector<4x288xf32>
    %5 = arith.addf %2, %4 : vector<4x288xf32>
    %cst_5 = arith.constant 0.000000e+00 : f32
    %6 = vector.broadcast %cst_5 : f32 to vector<4x288xf32>
    %7 = arith.maximumf %5, %6 : vector<4x288xf32>
    %cst_6 = arith.constant dense<0.000000e+00> : vector<4xf32>
    %8 = vector.multi_reduction <add>, %7, %cst_6 [1] : vector<4x288xf32> to vector<4xf32>
    %9 = vector.shape_cast %8 : vector<4xf32> to vector<4x1xf32>
    %cst_7 = arith.constant 2.880000e+02 : f32
    %10 = vector.broadcast %cst_7 : f32 to vector<4x1xf32>
    %11 = arith.divf %9, %10 : vector<4x1xf32>
    %12 = vector.broadcast %11 : vector<4x1xf32> to vector<4x288xf32>
    %13 = arith.subf %7, %12 : vector<4x288xf32>
    %14 = arith.mulf %13, %13 : vector<4x288xf32>
    %cst_8 = arith.constant dense<0.000000e+00> : vector<4xf32>
    %15 = vector.multi_reduction <add>, %14, %cst_8 [1] : vector<4x288xf32> to vector<4xf32>
    %16 = vector.shape_cast %15 : vector<4xf32> to vector<4x1xf32>
    %cst_9 = arith.constant 2.880000e+02 : f32
    %17 = vector.broadcast %cst_9 : f32 to vector<4x1xf32>
    %18 = arith.divf %16, %17 : vector<4x1xf32>
    %19 = vector.broadcast %11 : vector<4x1xf32> to vector<4x288xf32>
    %20 = arith.subf %7, %19 : vector<4x288xf32>
    %cst_10 = arith.constant 9.99999974E-6 : f32
    %21 = vector.broadcast %cst_10 : f32 to vector<4x1xf32>
    %22 = arith.addf %18, %21 : vector<4x1xf32>
    %23 = math.rsqrt %22 : vector<4x1xf32>
    %24 = vector.broadcast %23 : vector<4x1xf32> to vector<4x288xf32>
    %25 = arith.mulf %20, %24 : vector<4x288xf32>
    %c0_11 = arith.constant 0 : index
    %c0_12 = arith.constant 0 : index
    %26 = vector.load %arg3[%c0_11, %c0_12] : memref<4x1xf32, #tpu.memory_space<vmem>>, vector<4x1xf32>
    %27 = vector.broadcast %26 : vector<4x1xf32> to vector<4x288xf32>
    %28 = arith.mulf %25, %27 : vector<4x288xf32>
    %c0_13 = arith.constant 0 : index
    %c0_14 = arith.constant 0 : index
    %29 = vector.load %arg4[%c0_13, %c0_14] : memref<4x1xf32, #tpu.memory_space<vmem>>, vector<4x1xf32>
    %30 = vector.broadcast %29 : vector<4x1xf32> to vector<4x288xf32>
    %31 = arith.addf %28, %30 : vector<4x288xf32>
    %c0_15 = arith.constant 0 : index
    %c0_16 = arith.constant 0 : index
    %32 = vector.load %arg5[%c0_15, %c0_16] : memref<4x288xf32, #tpu.memory_space<vmem>>, vector<4x288xf32>
    tpu.vector_store %arg5[%c0_15, %c0_16], %31 {strides = array<i32>} : memref<4x288xf32, #tpu.memory_space<vmem>>, vector<4x288xf32>,
    return
  }
}

module attributes {stable_mosaic.version = 11 : i64} {
  func.func @_conv_act_kernel(%arg0: memref<1x36xbf16, #tpu.memory_space<vmem>>, %arg1: memref<36x288xbf16, #tpu.memory_space<vmem>>, %arg2: memref<1x1xf32, #tpu.memory_space<vmem>>, %arg3: memref<1x288xf32, #tpu.memory_space<vmem>>) attributes {dimension_semantics = [], scalar_prefetch = 0 : i64, scratch_operands = 0 : i64, tpu.core_type = #tpu.core_type<tc>} {
    %c0 = arith.constant 0 : index
    %c0_0 = arith.constant 0 : index
    %0 = vector.load %arg0[%c0, %c0_0] : memref<1x36xbf16, #tpu.memory_space<vmem>>, vector<1x36xbf16>
    %c0_1 = arith.constant 0 : index
    %c0_2 = arith.constant 0 : index
    %1 = vector.load %arg1[%c0_1, %c0_2] : memref<36x288xbf16, #tpu.memory_space<vmem>>, vector<36x288xbf16>
    %cst = arith.constant dense<0.000000e+00> : vector<1x288xf32>
    %2 = tpu.matmul %0, %1, %cst {dimension_numbers = #tpu.dot_dimension_numbers<[1], [0], [0], [1], [0, 0, 1, 1], [], []>} : vector<1x36xbf16>, vector<36x288xbf16>, vector<1x288xf32> -> vector<1x288xf32>
    %c0_3 = arith.constant 0 : index
    %c0_4 = arith.constant 0 : index
    %3 = vector.load %arg2[%c0_3, %c0_4] : memref<1x1xf32, #tpu.memory_space<vmem>>, vector<1x1xf32>
    %4 = vector.broadcast %3 : vector<1x1xf32> to vector<1x288xf32>
    %5 = arith.addf %2, %4 : vector<1x288xf32>
    %c0_5 = arith.constant 0 : index
    %c0_6 = arith.constant 0 : index
    %6 = vector.load %arg3[%c0_5, %c0_6] : memref<1x288xf32, #tpu.memory_space<vmem>>, vector<1x288xf32>
    tpu.vector_store %arg3[%c0_5, %c0_6], %5 {strides = array<i32>} : memref<1x288xf32, #tpu.memory_space<vmem>>, vector<1x288xf32>,
    return
  }
}

module attributes {stable_mosaic.version = 11 : i64} {
  func.func @_conv_act_kernel(%arg0: memref<1x36xbf16, #tpu.memory_space<vmem>>, %arg1: memref<36x7200xbf16, #tpu.memory_space<vmem>>, %arg2: memref<1x1xf32, #tpu.memory_space<vmem>>, %arg3: memref<1x7200xf32, #tpu.memory_space<vmem>>) attributes {dimension_semantics = [], scalar_prefetch = 0 : i64, scratch_operands = 0 : i64, tpu.core_type = #tpu.core_type<tc>} {
    %c0 = arith.constant 0 : index
    %c0_0 = arith.constant 0 : index
    %0 = vector.load %arg0[%c0, %c0_0] : memref<1x36xbf16, #tpu.memory_space<vmem>>, vector<1x36xbf16>
    %c0_1 = arith.constant 0 : index
    %c0_2 = arith.constant 0 : index
    %1 = vector.load %arg1[%c0_1, %c0_2] : memref<36x7200xbf16, #tpu.memory_space<vmem>>, vector<36x7200xbf16>
    %cst = arith.constant dense<0.000000e+00> : vector<1x7200xf32>
    %2 = tpu.matmul %0, %1, %cst {dimension_numbers = #tpu.dot_dimension_numbers<[1], [0], [0], [1], [0, 0, 1, 1], [], []>} : vector<1x36xbf16>, vector<36x7200xbf16>, vector<1x7200xf32> -> vector<1x7200xf32>
    %c0_3 = arith.constant 0 : index
    %c0_4 = arith.constant 0 : index
    %3 = vector.load %arg2[%c0_3, %c0_4] : memref<1x1xf32, #tpu.memory_space<vmem>>, vector<1x1xf32>
    %4 = vector.broadcast %3 : vector<1x1xf32> to vector<1x7200xf32>
    %5 = arith.addf %2, %4 : vector<1x7200xf32>
    %cst_5 = arith.constant 5.000000e-01 : f32
    %6 = vector.broadcast %cst_5 : f32 to vector<1x7200xf32>
    %7 = arith.mulf %6, %5 : vector<1x7200xf32>
    %8 = math.tanh %7 : vector<1x7200xf32>
    %cst_6 = arith.constant 1.000000e+00 : f32
    %9 = vector.broadcast %cst_6 : f32 to vector<1x7200xf32>
    %10 = arith.addf %8, %9 : vector<1x7200xf32>
    %cst_7 = arith.constant 5.000000e-01 : f32
    %11 = vector.broadcast %cst_7 : f32 to vector<1x7200xf32>
    %12 = arith.mulf %11, %10 : vector<1x7200xf32>
    %c0_8 = arith.constant 0 : index
    %c0_9 = arith.constant 0 : index
    %13 = vector.load %arg3[%c0_8, %c0_9] : memref<1x7200xf32, #tpu.memory_space<vmem>>, vector<1x7200xf32>
    tpu.vector_store %arg3[%c0_8, %c0_9], %12 {strides = array<i32>} : memref<1x7200xf32, #tpu.memory_space<vmem>>, vector<1x7200xf32>,
    return
  }
}

</mosaic_0001>

<llo_original>
// kernel: forward.19
$region0: #{forward.19}
  #allocation0 [shape = 'u32[]', space=smem, size = 0x4, offset = 0x4, fixed_abs, tag = 'smem constant byte address 0x4 - core index']
  #allocation1 [shape = 'u32[144,128]{1,0:T(1,128)}', space=vmem, size = 0x12000, scoped, tag = 'internal scratch']
  %s0 = inlined_call_operand.vmem [shape: bf16[4,9], index: 0, kind: input, shape index: {}]
  %s1 = inlined_call_operand.vmem [shape: bf16[9,7200], index: 1, kind: input, shape index: {}]
  %s2 = inlined_call_operand.vmem [shape: f32[4,1], index: 2, kind: input, shape index: {}]
  %s3 = inlined_call_operand.vmem [shape: f32[4,1], index: 3, kind: input, shape index: {}]
  %s4 = inlined_call_operand.vmem [shape: f32[4,1], index: 4, kind: input, shape index: {}]
  %s5 = inlined_call_operand.vmem [shape: f32[4,7200], index: 5, kind: output, shape index: {}]
  %s6 = sld [smem:[#allocation0]]
  $region30: #{forward.19} parent=0
    _
  %s8 = ssub.s32 1, %s6
  %s9 = scalar_select 0, %s8, %s6
  // Predicated region
  $region2: #{forward.19} parent=0 // pred_check
    _
  $region3: #{forward.19} parent=0 // pred_check_branch
    %11 = sbr.rel (0) target = $region5
  $region4: #{forward.19} parent=0 // pred_region
    _
  $region5: #{forward.19} parent=0 // pred_fallthru
    _
  // Predicated region
  $region6: #{forward.19} parent=0 // pred_check
    _
  $region7: #{forward.19} parent=0 // pred_check_branch
    %13 = sbr.rel (0) target = $region9
  $region8: #{forward.19} parent=0 // pred_region
    _
  $region9: #{forward.19} parent=0 // pred_fallthru
    _
  // Predicated region
  $region10: #{forward.19} parent=0 // pred_check
    _
  $region11: #{forward.19} parent=0 // pred_check_branch
    %15 = sbr.rel (0) target = $region13
  $region12: #{forward.19} parent=0 // pred_region
    _
  $region13: #{forward.19} parent=0 // pred_fallthru
    _
  // Predicated region
  $region14: #{forward.19} parent=0 // pred_check
    _
  $region15: #{forward.19} parent=0 // pred_check_branch
    %17 = sbr.rel (0) target = $region17
  $region16: #{forward.19} parent=0 // pred_region
    _
  $region17: #{forward.19} parent=0 // pred_fallthru
    _
  // Predicated region
  $region18: #{forward.19} parent=0 // pred_check
    _
  $region19: #{forward.19} parent=0 // pred_check_branch
    %19 = sbr.rel (0) target = $region21
  $region20: #{forward.19} parent=0 // pred_region
    _
  $region21: #{forward.19} parent=0 // pred_fallthru
    _
  %v21 = vld [vmem:[%s0] sm:$0x3]
  %v22 = vld [vmem:[%s1] sm:$0xff]
  %v23 = vld [vmem:[%s1 + $0x8] sm:$0xff]
  %v24 = vld [vmem:[%s1 + $0x10] sm:$0xff]
  %v25 = vld [vmem:[%s1 + $0x18] sm:$0xff]
  %v26 = vld [vmem:[%s1 + $0x20] sm:$0xff]
  %v27 = vld [vmem:[%s1 + $0x28] sm:$0xff]
  %v28 = vld [vmem:[%s1 + $0x30] sm:$0xff]
  %v29 = vld [vmem:[%s1 + $0x38] sm:$0xff]
  %v30 = vld [vmem:[%s1 + $0x40] sm:$0xff]
  %v31 = vld [vmem:[%s1 + $0x48] sm:$0xff]
  %v32 = vld [vmem:[%s1 + $0x50] sm:$0xff]
  %v33 = vld [vmem:[%s1 + $0x58] sm:$0xff]
  %v34 = vld [vmem:[%s1 + $0x60] sm:$0xff]
  %v35 = vld [vmem:[%s1 + $0x68] sm:$0xff]
  %v36 = vld [vmem:[%s1 + $0x70] sm:$0xff]
  %v37 = vld [vmem:[%s1 + $0x78] sm:$0xff]
  %v38 = vld [vmem:[%s1 + $0x80] sm:$0xff]
  %v39 = vld [vmem:[%s1 + $0x88] sm:$0xff]
  %v40 = vld [vmem:[%s1 + $0x90] sm:$0xff]
  %v41 = vld [vmem:[%s1 + $0x98] sm:$0xff]
  %v42 = vld [vmem:[%s1 + $0xa0] sm:$0xff]
  %v43 = vld [vmem:[%s1 + $0xa8] sm:$0xff]
  %v44 = vld [vmem:[%s1 + $0xb0] sm:$0xff]
  %v45 = vld [vmem:[%s1 + $0xb8] sm:$0xff]
  %v46 = vld [vmem:[%s1 + $0xc0] sm:$0xff]
  %v47 = vld [vmem:[%s1 + $0xc8] sm:$0xff]
  %v48 = vld [vmem:[%s1 + $0xd0] sm:$0xff]
  %v49 = vld [vmem:[%s1 + $0xd8] sm:$0xff]
  %v50 = vld [vmem:[%s1 + $0xe0] sm:$0xf]
  %v51 = vld [vmem:[%s1 + $0xe4] sm:$0x11]
  %v52 = vld [vmem:[%s1 + $0xec] sm:$0x11]
  %v53 = vld [vmem:[%s1 + $0xf4] sm:$0x11]
  %v54 = vld [vmem:[%s1 + $0xfc] sm:$0x11]
  %v55 = vld [vmem:[%s1 + $0x104] sm:$0x11]
  %v56 = vld [vmem:[%s1 + $0x10c] sm:$0x11]
  %v57 = vld [vmem:[%s1 + $0x114] sm:$0x11]
  %v58 = vld [vmem:[%s1 + $0x11c] sm:$0x11]
  %v59 = vld [vmem:[%s1 + $0x124] sm:$0x11]
  %v60 = vld [vmem:[%s1 + $0x12c] sm:$0x11]
  %v61 = vld [vmem:[%s1 + $0x134] sm:$0x11]
  %v62 = vld [vmem:[%s1 + $0x13c] sm:$0x11]
  %v63 = vld [vmem:[%s1 + $0x144] sm:$0x11]
  %v64 = vld [vmem:[%s1 + $0x14c] sm:$0x11]
  %v65 = vld [vmem:[%s1 + $0x154] sm:$0x11]
  %v66 = vld [vmem:[%s1 + $0x15c] sm:$0x11]
  %v67 = vld [vmem:[%s1 + $0x164] sm:$0x11]
  %v68 = vld [vmem:[%s1 + $0x16c] sm:$0x11]
  %v69 = vld [vmem:[%s1 + $0x174] sm:$0x11]
  %v70 = vld [vmem:[%s1 + $0x17c] sm:$0x11]
  %v71 = vld [vmem:[%s1 + $0x184] sm:$0x11]
  %v72 = vld [vmem:[%s1 + $0x18c] sm:$0x11]
  %v73 = vld [vmem:[%s1 + $0x194] sm:$0x11]
  %v74 = vld [vmem:[%s1 + $0x19c] sm:$0x11]
  %v75 = vld [vmem:[%s1 + $0x1a4] sm:$0x11]
  %v76 = vld [vmem:[%s1 + $0x1ac] sm:$0x11]
  %v77 = vld [vmem:[%s1 + $0x1b4] sm:$0x11]
  %v78 = vld [vmem:[%s1 + $0x1bc] sm:$0x11]
  %v79 = vld [vmem:[%s1 + $0x1c4] sm:$0x1]
  %v80 = vld [vmem:[%s2] sm:$0xf]
  %82 = vset.pattern.permute.xlu0 0
  %83 = vperm.xlu0 %82, %v80
  %v84 = vpop.permute.xlu0 %83
  %v144 = vunpack.c.l.b16 %v22
  %v145 = vunpack.c.h.b16 %v22
  %v146 = vunpack.c.l.b16 %v23
  %v147 = vunpack.c.h.b16 %v23
  %v148 = vunpack.c.l.b16 %v24
  %v149 = vunpack.c.h.b16 %v24
  %v150 = vunpack.c.l.b16 %v25
  %v151 = vunpack.c.h.b16 %v25
  %v152 = vunpack.c.l.b16 %v26
  %v153 = vunpack.c.h.b16 %v26
  %v154 = vunpack.c.l.b16 %v27
  %v155 = vunpack.c.h.b16 %v27
  %v156 = vunpack.c.l.b16 %v28
  %v157 = vunpack.c.h.b16 %v28
  %v158 = vunpack.c.l.b16 %v29
  %v159 = vunpack.c.h.b16 %v29
  %v160 = vunpack.c.l.b16 %v30
  %v161 = vunpack.c.h.b16 %v30
  %v162 = vunpack.c.l.b16 %v31
  %v163 = vunpack.c.h.b16 %v31
  %v164 = vunpack.c.l.b16 %v32
  %v165 = vunpack.c.h.b16 %v32
  %v166 = vunpack.c.l.b16 %v33
  %v167 = vunpack.c.h.b16 %v33
  %v168 = vunpack.c.l.b16 %v34
  %v169 = vunpack.c.h.b16 %v34
  %v170 = vunpack.c.l.b16 %v35
  %v171 = vunpack.c.h.b16 %v35
  %v172 = vunpack.c.l.b16 %v36
  %v173 = vunpack.c.h.b16 %v36
  %v174 = vunpack.c.l.b16 %v37
  %v175 = vunpack.c.h.b16 %v37
  %v176 = vunpack.c.l.b16 %v38
  %v177 = vunpack.c.h.b16 %v38
  %v178 = vunpack.c.l.b16 %v39
  %v179 = vunpack.c.h.b16 %v39
  %v180 = vunpack.c.l.b16 %v40
  %v181 = vunpack.c.h.b16 %v40
  %v182 = vunpack.c.l.b16 %v41
  %v183 = vunpack.c.h.b16 %v41
  %v184 = vunpack.c.l.b16 %v42
  %v185 = vunpack.c.h.b16 %v42
  %v186 = vunpack.c.l.b16 %v43
  %v187 = vunpack.c.h.b16 %v43
  %v188 = vunpack.c.l.b16 %v44
  %v189 = vunpack.c.h.b16 %v44
  %v190 = vunpack.c.l.b16 %v45
  %v191 = vunpack.c.h.b16 %v45
  %v192 = vunpack.c.l.b16 %v46
  %v193 = vunpack.c.h.b16 %v46
  %v194 = vunpack.c.l.b16 %v47
  %v195 = vunpack.c.h.b16 %v47
  %v196 = vunpack.c.l.b16 %v48
  %v197 = vunpack.c.h.b16 %v48
  %v198 = vunpack.c.l.b16 %v49
  %v199 = vunpack.c.h.b16 %v49
  %v200 = vunpack.c.l.b16 %v50
  %v201 = vunpack.c.l.b16 %v51
  %v202 = vunpack.c.h.b16 %v51
  %v203 = vunpack.c.l.b16 %v52
  %v204 = vunpack.c.h.b16 %v52
  %v205 = vunpack.c.l.b16 %v53
  %v206 = vunpack.c.h.b16 %v53
  %v207 = vunpack.c.l.b16 %v54
  %v208 = vunpack.c.h.b16 %v54
  %v209 = vunpack.c.l.b16 %v55
  %v210 = vunpack.c.h.b16 %v55
  %v211 = vunpack.c.l.b16 %v56
  %v212 = vunpack.c.h.b16 %v56
  %v213 = vunpack.c.l.b16 %v57
  %v214 = vunpack.c.h.b16 %v57
  %v215 = vunpack.c.l.b16 %v58
  %v216 = vunpack.c.h.b16 %v58
  %v217 = vunpack.c.l.b16 %v59
  %v218 = vunpack.c.h.b16 %v59
  %v219 = vunpack.c.l.b16 %v60
  %v220 = vunpack.c.h.b16 %v60
  %v221 = vunpack.c.l.b16 %v61
  %v222 = vunpack.c.h.b16 %v61
  %v223 = vunpack.c.l.b16 %v62
  %v224 = vunpack.c.h.b16 %v62
  %v225 = vunpack.c.l.b16 %v63
  %v226 = vunpack.c.h.b16 %v63
  %v227 = vunpack.c.l.b16 %v64
  %v228 = vunpack.c.h.b16 %v64
  %v229 = vunpack.c.l.b16 %v65
  %v230 = vunpack.c.h.b16 %v65
  %v231 = vunpack.c.l.b16 %v66
  %v232 = vunpack.c.h.b16 %v66
  %v233 = vunpack.c.l.b16 %v67
  %v234 = vunpack.c.h.b16 %v67
  %v235 = vunpack.c.l.b16 %v68
  %v236 = vunpack.c.h.b16 %v68
  %v237 = vunpack.c.l.b16 %v69
  %v238 = vunpack.c.h.b16 %v69
  %v239 = vunpack.c.l.b16 %v70
  %v240 = vunpack.c.h.b16 %v70
  %v241 = vunpack.c.l.b16 %v71
  %v242 = vunpack.c.h.b16 %v71
  %v243 = vunpack.c.l.b16 %v72
  %v244 = vunpack.c.h.b16 %v72
  %v245 = vunpack.c.l.b16 %v73
  %v246 = vunpack.c.h.b16 %v73
  %v247 = vunpack.c.l.b16 %v74
  %v248 = vunpack.c.h.b16 %v74
  %v249 = vunpack.c.l.b16 %v75
  %v250 = vunpack.c.h.b16 %v75
  %v251 = vunpack.c.l.b16 %v76
  %v252 = vunpack.c.h.b16 %v76
  %v253 = vunpack.c.l.b16 %v77
  %v254 = vunpack.c.h.b16 %v77
  %v255 = vunpack.c.l.b16 %v78
  %v256 = vunpack.c.h.b16 %v78
  %v257 = vunpack.c.l.b16 %v79
  %v258 = vpack.c.b16 %v201, %v144
  %v259 = vpack.c.b16 %v202, %v145
  %v260 = vpack.c.b16 %v203, %v146
  %v261 = vpack.c.b16 %v204, %v147
  %v262 = vpack.c.b16 %v205, %v148
  %v263 = vpack.c.b16 %v206, %v149
  %v264 = vpack.c.b16 %v207, %v150
  %v265 = vpack.c.b16 %v208, %v151
  %v266 = vpack.c.b16 %v209, %v152
  %v267 = vpack.c.b16 %v210, %v153
  %v268 = vpack.c.b16 %v211, %v154
  %v269 = vpack.c.b16 %v212, %v155
  %v270 = vpack.c.b16 %v213, %v156
  %v271 = vpack.c.b16 %v214, %v157
  %v272 = vpack.c.b16 %v215, %v158
  %v273 = vpack.c.b16 %v216, %v159
  %v274 = vpack.c.b16 %v217, %v160
  %v275 = vpack.c.b16 %v218, %v161
  %v276 = vpack.c.b16 %v219, %v162
  %v277 = vpack.c.b16 %v220, %v163
  %v278 = vpack.c.b16 %v221, %v164
  %v279 = vpack.c.b16 %v222, %v165
  %v280 = vpack.c.b16 %v223, %v166
  %v281 = vpack.c.b16 %v224, %v167
  %v282 = vpack.c.b16 %v225, %v168
  %v283 = vpack.c.b16 %v226, %v169
  %v284 = vpack.c.b16 %v227, %v170
  %v285 = vpack.c.b16 %v228, %v171
  %v286 = vpack.c.b16 %v229, %v172
  %v287 = vpack.c.b16 %v230, %v173
  %v288 = vpack.c.b16 %v231, %v174
  %v289 = vpack.c.b16 %v232, %v175
  %v290 = vpack.c.b16 %v233, %v176
  %v291 = vpack.c.b16 %v234, %v177
  %v292 = vpack.c.b16 %v235, %v178
  %v293 = vpack.c.b16 %v236, %v179
  %v294 = vpack.c.b16 %v237, %v180
  %v295 = vpack.c.b16 %v238, %v181
  %v296 = vpack.c.b16 %v239, %v182
  %v297 = vpack.c.b16 %v240, %v183
  %v298 = vpack.c.b16 %v241, %v184
  %v299 = vpack.c.b16 %v242, %v185
  %v300 = vpack.c.b16 %v243, %v186
  %v301 = vpack.c.b16 %v244, %v187
  %v302 = vpack.c.b16 %v245, %v188
  %v303 = vpack.c.b16 %v246, %v189
  %v304 = vpack.c.b16 %v247, %v190
  %v305 = vpack.c.b16 %v248, %v191
  %v306 = vpack.c.b16 %v249, %v192
  %v307 = vpack.c.b16 %v250, %v193
  %v308 = vpack.c.b16 %v251, %v194
  %v309 = vpack.c.b16 %v252, %v195
  %v310 = vpack.c.b16 %v253, %v196
  %v311 = vpack.c.b16 %v254, %v197
  %v312 = vpack.c.b16 %v255, %v198
  %v313 = vpack.c.b16 %v256, %v199
  %v314 = vpack.c.b16 %v257, %v200
  %vm315 = vcmask 72704
  %v317 = vsel %vm315, %v21, 0
  %vm319 = vcmask 1043456
  %vm320 = vcmask 1044480
  %v321 = vsel %vm319, 4294967295, 65535
  %v322 = vsel %vm320, %v321, 0
  %v324 = vand.u32 %v258, %v322
  %v327 = vand.u32 %v259, %v322
  %v330 = vand.u32 %v260, %v322
  %v333 = vand.u32 %v261, %v322
  %v336 = vand.u32 %v262, %v322
  %v339 = vand.u32 %v263, %v322
  %v342 = vand.u32 %v264, %v322
  %v345 = vand.u32 %v265, %v322
  %v348 = vand.u32 %v266, %v322
  %v351 = vand.u32 %v267, %v322
  %v354 = vand.u32 %v268, %v322
  %v357 = vand.u32 %v269, %v322
  %v360 = vand.u32 %v270, %v322
  %v363 = vand.u32 %v271, %v322
  %v366 = vand.u32 %v272, %v322
  %v369 = vand.u32 %v273, %v322
  %v372 = vand.u32 %v274, %v322
  %v375 = vand.u32 %v275, %v322
  %v378 = vand.u32 %v276, %v322
  %v381 = vand.u32 %v277, %v322
  %v384 = vand.u32 %v278, %v322
  %v387 = vand.u32 %v279, %v322
  %v390 = vand.u32 %v280, %v322
  %v393 = vand.u32 %v281, %v322
  %v396 = vand.u32 %v282, %v322
  %v399 = vand.u32 %v283, %v322
  %v402 = vand.u32 %v284, %v322
  %v405 = vand.u32 %v285, %v322
  %v408 = vand.u32 %v286, %v322
  %v411 = vand.u32 %v287, %v322
  %v414 = vand.u32 %v288, %v322
  %v417 = vand.u32 %v289, %v322
  %v420 = vand.u32 %v290, %v322
  %v423 = vand.u32 %v291, %v322
  %v426 = vand.u32 %v292, %v322
  %v429 = vand.u32 %v293, %v322
  %v432 = vand.u32 %v294, %v322
  %v435 = vand.u32 %v295, %v322
  %v438 = vand.u32 %v296, %v322
  %v441 = vand.u32 %v297, %v322
  %v444 = vand.u32 %v298, %v322
  %v447 = vand.u32 %v299, %v322
  %v450 = vand.u32 %v300, %v322
  %v453 = vand.u32 %v301, %v322
  %v456 = vand.u32 %v302, %v322
  %v459 = vand.u32 %v303, %v322
  %v462 = vand.u32 %v304, %v322
  %v465 = vand.u32 %v305, %v322
  %v468 = vand.u32 %v306, %v322
  %v471 = vand.u32 %v307, %v322
  %v474 = vand.u32 %v308, %v322
  %v477 = vand.u32 %v309, %v322
  %v480 = vand.u32 %v310, %v322
  %v483 = vand.u32 %v311, %v322
  %v486 = vand.u32 %v312, %v322
  %v489 = vand.u32 %v313, %v322
  %v492 = vand.u32 %v314, %v322
  %494 = vmatprep.subr.bf16.mxu0 %v327
  %495 = vmatpush1.bf16.msra.mxu0 %v324
  %496 = vmatprep.subr.bf16.mxu0 0
  %497 = vmatpush1.bf16.msra.mxu0 0
  %498 = vmatprep.subr.bf16.mxu0 0
  %499 = vmatpush1.bf16.msra.mxu0 0
  %500 = vmatprep.subr.bf16.mxu0 0
  %501 = vmatpush1.bf16.msra.mxu0 0
  %502 = vmatprep.subr.bf16.mxu0 0
  %503 = vmatpush1.bf16.msra.mxu0 0
  %504 = vmatprep.subr.bf16.mxu0 0
  %505 = vmatpush1.bf16.msra.mxu0 0
  %506 = vmatprep.subr.bf16.mxu0 0
  %507 = vmatpush1.bf16.msra.mxu0 0
  %508 = vmatprep.subr.bf16.mxu0 0
  %509 = vmatpush1.bf16.msra.mxu0 0
  %510 = vmatprep.subr.bf16.mxu0 0
  %511 = vmatpush1.bf16.msra.mxu0 0
  %512 = vmatprep.subr.bf16.mxu0 0
  %513 = vmatpush1.bf16.msra.mxu0 0
  %514 = vmatprep.subr.bf16.mxu0 0
  %515 = vmatpush1.bf16.msra.mxu0 0
  %516 = vmatprep.subr.bf16.mxu0 0
  %517 = vmatpush1.bf16.msra.mxu0 0
  %518 = vmatprep.subr.bf16.mxu0 0
  %519 = vmatpush1.bf16.msra.mxu0 0
  %520 = vmatprep.subr.bf16.mxu0 0
  %521 = vmatpush1.bf16.msra.mxu0 0
  %522 = vmatprep.subr.bf16.mxu0 0
  %523 = vmatpush1.bf16.msra.mxu0 0
  %524 = vmatprep.subr.bf16.mxu0 0
  %525 = vmatpush1.bf16.msra.mxu0 0
  %526 = vmatprep.mubr.bf16.mxu0 0
  %527 = vmatmul.mubr.bf16.gmra.mrb[0].mxu0 %v317
  %v528 = vpop.f32.mrb[0].mxu0
  %v529 = vadd.f32 %v84, %v528
  %v530 = vpop.f32.mrb[0].mxu0
  %v531 = vadd.f32 %v84, %v530
  %v532 = vpop.f32.mrb[0].mxu0
  %v533 = vpop.f32.mrb[0].mxu0
  %534 = vdwg.mxu0
  %535 = vmatprep.subr.bf16.mxu0 %v333
  %536 = vmatpush1.bf16.msra.mxu0 %v330
  %537 = vmatprep.subr.bf16.mxu0 0
  %538 = vmatpush1.bf16.msra.mxu0 0
  %539 = vmatprep.subr.bf16.mxu0 0
  %540 = vmatpush1.bf16.msra.mxu0 0
  %541 = vmatprep.subr.bf16.mxu0 0
  %542 = vmatpush1.bf16.msra.mxu0 0
  %543 = vmatprep.subr.bf16.mxu0 0
  %544 = vmatpush1.bf16.msra.mxu0 0
  %545 = vmatprep.subr.bf16.mxu0 0
  %546 = vmatpush1.bf16.msra.mxu0 0
  %547 = vmatprep.subr.bf16.mxu0 0
  %548 = vmatpush1.bf16.msra.mxu0 0
  %549 = vmatprep.subr.bf16.mxu0 0
  %550 = vmatpush1.bf16.msra.mxu0 0
  %551 = vmatprep.subr.bf16.mxu0 0
  %552 = vmatpush1.bf16.msra.mxu0 0
  %553 = vmatprep.subr.bf16.mxu0 0
  %554 = vmatpush1.bf16.msra.mxu0 0
  %555 = vmatprep.subr.bf16.mxu0 0
  %556 = vmatpush1.bf16.msra.mxu0 0
  %557 = vmatprep.subr.bf16.mxu0 0
  %558 = vmatpush1.bf16.msra.mxu0 0
  %559 = vmatprep.subr.bf16.mxu0 0
  %560 = vmatpush1.bf16.msra.mxu0 0
  %561 = vmatprep.subr.bf16.mxu0 0
  %562 = vmatpush1.bf16.msra.mxu0 0
  %563 = vmatprep.subr.bf16.mxu0 0
  %564 = vmatpush1.bf16.msra.mxu0 0
  %565 = vmatprep.subr.bf16.mxu0 0
  %566 = vmatpush1.bf16.msra.mxu0 0
  %567 = vmatprep.mubr.bf16.mxu0 0
  %568 = vmatmul.mubr.bf16.gmra.mrb[0].mxu0 %v317
  %v569 = vpop.f32.mrb[0].mxu0
  %v570 = vadd.f32 %v84, %v569
  %v571 = vpop.f32.mrb[0].mxu0
  %v572 = vadd.f32 %v84, %v571
  %v573 = vpop.f32.mrb[0].mxu0
  %v574 = vpop.f32.mrb[0].mxu0
  %575 = vdwg.mxu0
  %576 = vmatprep.subr.bf16.mxu0 %v339
  %577 = vmatpush1.bf16.msra.mxu0 %v336
  %578 = vmatprep.subr.bf16.mxu0 0
  %579 = vmatpush1.bf16.msra.mxu0 0
  %580 = vmatprep.subr.bf16.mxu0 0
  %581 = vmatpush1.bf16.msra.mxu0 0
  %582 = vmatprep.subr.bf16.mxu0 0
  %583 = vmatpush1.bf16.msra.mxu0 0
  %584 = vmatprep.subr.bf16.mxu0 0
  %585 = vmatpush1.bf16.msra.mxu0 0
  %586 = vmatprep.subr.bf16.mxu0 0
  %587 = vmatpush1.bf16.msra.mxu0 0
  %588 = vmatprep.subr.bf16.mxu0 0
  %589 = vmatpush1.bf16.msra.mxu0 0
  %590 = vmatprep.subr.bf16.mxu0 0
  %591 = vmatpush1.bf16.msra.mxu0 0
  %592 = vmatprep.subr.bf16.mxu0 0
  %593 = vmatpush1.bf16.msra.mxu0 0
  %594 = vmatprep.subr.bf16.mxu0 0
  %595 = vmatpush1.bf16.msra.mxu0 0
  %596 = vmatprep.subr.bf16.mxu0 0
  %597 = vmatpush1.bf16.msra.mxu0 0
  %598 = vmatprep.subr.bf16.mxu0 0
  %599 = vmatpush1.bf16.msra.mxu0 0
  %600 = vmatprep.subr.bf16.mxu0 0
  %601 = vmatpush1.bf16.msra.mxu0 0
  %602 = vmatprep.subr.bf16.mxu0 0
  %603 = vmatpush1.bf16.msra.mxu0 0
  %604 = vmatprep.subr.bf16.mxu0 0
  %605 = vmatpush1.bf16.msra.mxu0 0
  %606 = vmatprep.subr.bf16.mxu0 0
  %607 = vmatpush1.bf16.msra.mxu0 0
  %608 = vmatprep.mubr.bf16.mxu0 0
  %609 = vmatmul.mubr.bf16.gmra.mrb[0].mxu0 %v317
  %v610 = vpop.f32.mrb[0].mxu0
  %v611 = vadd.f32 %v84, %v610
  %v612 = vpop.f32.mrb[0].mxu0
  %v613 = vadd.f32 %v84, %v612
  %v614 = vpop.f32.mrb[0].mxu0
  %v615 = vpop.f32.mrb[0].mxu0
  %616 = vdwg.mxu0
  %617 = vmatprep.subr.bf16.mxu0 %v345
  %618 = vmatpush1.bf16.msra.mxu0 %v342
  %619 = vmatprep.subr.bf16.mxu0 0
  %620 = vmatpush1.bf16.msra.mxu0 0
  %621 = vmatprep.subr.bf16.mxu0 0
  %622 = vmatpush1.bf16.msra.mxu0 0
  %623 = vmatprep.subr.bf16.mxu0 0
  %624 = vmatpush1.bf16.msra.mxu0 0
  %625 = vmatprep.subr.bf16.mxu0 0
  %626 = vmatpush1.bf16.msra.mxu0 0
  %627 = vmatprep.subr.bf16.mxu0 0
  %628 = vmatpush1.bf16.msra.mxu0 0
  %629 = vmatprep.subr.bf16.mxu0 0
  %630 = vmatpush1.bf16.msra.mxu0 0
  %631 = vmatprep.subr.bf16.mxu0 0
  %632 = vmatpush1.bf16.msra.mxu0 0
  %633 = vmatprep.subr.bf16.mxu0 0
  %634 = vmatpush1.bf16.msra.mxu0 0
  %635 = vmatprep.subr.bf16.mxu0 0
  %636 = vmatpush1.bf16.msra.mxu0 0
  %637 = vmatprep.subr.bf16.mxu0 0
  %638 = vmatpush1.bf16.msra.mxu0 0
  %639 = vmatprep.subr.bf16.mxu0 0
  %640 = vmatpush1.bf16.msra.mxu0 0
  %641 = vmatprep.subr.bf16.mxu0 0
  %642 = vmatpush1.bf16.msra.mxu0 0
  %643 = vmatprep.subr.bf16.mxu0 0
  %644 = vmatpush1.bf16.msra.mxu0 0
  %645 = vmatprep.subr.bf16.mxu0 0
  %646 = vmatpush1.bf16.msra.mxu0 0
  %647 = vmatprep.subr.bf16.mxu0 0
  %648 = vmatpush1.bf16.msra.mxu0 0
  %649 = vmatprep.mubr.bf16.mxu0 0
  %650 = vmatmul.mubr.bf16.gmra.mrb[0].mxu0 %v317
  %v651 = vpop.f32.mrb[0].mxu0
  %v652 = vadd.f32 %v84, %v651
  %v653 = vpop.f32.mrb[0].mxu0
  %v654 = vadd.f32 %v84, %v653
  %v655 = vpop.f32.mrb[0].mxu0
  %v656 = vpop.f32.mrb[0].mxu0
  %657 = vdwg.mxu0
  %658 = vmatprep.subr.bf16.mxu0 %v351
  %659 = vmatpush1.bf16.msra.mxu0 %v348
  %660 = vmatprep.subr.bf16.mxu0 0
  %661 = vmatpush1.bf16.msra.mxu0 0
  %662 = vmatprep.subr.bf16.mxu0 0
  %663 = vmatpush1.bf16.msra.mxu0 0
  %664 = vmatprep.subr.bf16.mxu0 0
  %665 = vmatpush1.bf16.msra.mxu0 0
  %666 = vmatprep.subr.bf16.mxu0 0
  %667 = vmatpush1.bf16.msra.mxu0 0
  %668 = vmatprep.subr.bf16.mxu0 0
  %669 = vmatpush1.bf16.msra.mxu0 0
  %670 = vmatprep.subr.bf16.mxu0 0
  %671 = vmatpush1.bf16.msra.mxu0 0
  %672 = vmatprep.subr.bf16.mxu0 0
  %673 = vmatpush1.bf16.msra.mxu0 0
  %674 = vmatprep.subr.bf16.mxu0 0
  %675 = vmatpush1.bf16.msra.mxu0 0
  %676 = vmatprep.subr.bf16.mxu0 0
  %677 = vmatpush1.bf16.msra.mxu0 0
  %678 = vmatprep.subr.bf16.mxu0 0
  %679 = vmatpush1.bf16.msra.mxu0 0
  %680 = vmatprep.subr.bf16.mxu0 0
  %681 = vmatpush1.bf16.msra.mxu0 0
  %682 = vmatprep.subr.bf16.mxu0 0
  %683 = vmatpush1.bf16.msra.mxu0 0
  %684 = vmatprep.subr.bf16.mxu0 0
  %685 = vmatpush1.bf16.msra.mxu0 0
  %686 = vmatprep.subr.bf16.mxu0 0
  %687 = vmatpush1.bf16.msra.mxu0 0
  %688 = vmatprep.subr.bf16.mxu0 0
  %689 = vmatpush1.bf16.msra.mxu0 0
  %690 = vmatprep.mubr.bf16.mxu0 0
  %691 = vmatmul.mubr.bf16.gmra.mrb[0].mxu0 %v317
  %v692 = vpop.f32.mrb[0].mxu0
  %v693 = vadd.f32 %v84, %v692
  %v694 = vpop.f32.mrb[0].mxu0
  %v695 = vadd.f32 %v84, %v694
  %v696 = vpop.f32.mrb[0].mxu0
  %v697 = vpop.f32.mrb[0].mxu0
  %698 = vdwg.mxu0
  %699 = vmatprep.subr.bf16.mxu0 %v357
  %700 = vmatpush1.bf16.msra.mxu0 %v354
  %701 = vmatprep.subr.bf16.mxu0 0
  %702 = vmatpush1.bf16.msra.mxu0 0
  %703 = vmatprep.subr.bf16.mxu0 0
  %704 = vmatpush1.bf16.msra.mxu0 0
  %705 = vmatprep.subr.bf16.mxu0 0
  %706 = vmatpush1.bf16.msra.mxu0 0
  %707 = vmatprep.subr.bf16.mxu0 0
  %708 = vmatpush1.bf16.msra.mxu0 0
  %709 = vmatprep.subr.bf16.mxu0 0
  %710 = vmatpush1.bf16.msra.mxu0 0
  %711 = vmatprep.subr.bf16.mxu0 0
  %712 = vmatpush1.bf16.msra.mxu0 0
  %713 = vmatprep.subr.bf16.mxu0 0
  %714 = vmatpush1.bf16.msra.mxu0 0
  %715 = vmatprep.subr.bf16.mxu0 0
  %716 = vmatpush1.bf16.msra.mxu0 0
  %717 = vmatprep.subr.bf16.mxu0 0
  %718 = vmatpush1.bf16.msra.mxu0 0
  %719 = vmatprep.subr.bf16.mxu0 0
  %720 = vmatpush1.bf16.msra.mxu0 0
  %721 = vmatprep.subr.bf16.mxu0 0
  %722 = vmatpush1.bf16.msra.mxu0 0
  %723 = vmatprep.subr.bf16.mxu0 0
  %724 = vmatpush1.bf16.msra.mxu0 0
  %725 = vmatprep.subr.bf16.mxu0 0
  %726 = vmatpush1.bf16.msra.mxu0 0
  %727 = vmatprep.subr.bf16.mxu0 0
  %728 = vmatpush1.bf16.msra.mxu0 0
  %729 = vmatprep.subr.bf16.mxu0 0
  %730 = vmatpush1.bf16.msra.mxu0 0
  %731 = vmatprep.mubr.bf16.mxu0 0
  %732 = vmatmul.mubr.bf16.gmra.mrb[0].mxu0 %v317
  %v733 = vpop.f32.mrb[0].mxu0
  %v734 = vadd.f32 %v84, %v733
  %v735 = vpop.f32.mrb[0].mxu0
  %v736 = vadd.f32 %v84, %v735
  %v737 = vpop.f32.mrb[0].mxu0
  %v738 = vpop.f32.mrb[0].mxu0
  %739 = vdwg.mxu0
  %740 = vmatprep.subr.bf16.mxu0 %v363
  %741 = vmatpush1.bf16.msra.mxu0 %v360
  %742 = vmatprep.subr.bf16.mxu0 0
  %743 = vmatpush1.bf16.msra.mxu0 0
  %744 = vmatprep.subr.bf16.mxu0 0
  %745 = vmatpush1.bf16.msra.mxu0 0
  %746 = vmatprep.subr.bf16.mxu0 0
  %747 = vmatpush1.bf16.msra.mxu0 0
  %748 = vmatprep.subr.bf16.mxu0 0
  %749 = vmatpush1.bf16.msra.mxu0 0
  %750 = vmatprep.subr.bf16.mxu0 0
  %751 = vmatpush1.bf16.msra.mxu0 0
  %752 = vmatprep.subr.bf16.mxu0 0
  %753 = vmatpush1.bf16.msra.mxu0 0
  %754 = vmatprep.subr.bf16.mxu0 0
  %755 = vmatpush1.bf16.msra.mxu0 0
  %756 = vmatprep.subr.bf16.mxu0 0
  %757 = vmatpush1.bf16.msra.mxu0 0
  %758 = vmatprep.subr.bf16.mxu0 0
  %759 = vmatpush1.bf16.msra.mxu0 0
  %760 = vmatprep.subr.bf16.mxu0 0
  %761 = vmatpush1.bf16.msra.mxu0 0
  %762 = vmatprep.subr.bf16.mxu0 0
  %763 = vmatpush1.bf16.msra.mxu0 0
  %764 = vmatprep.subr.bf16.mxu0 0
  %765 = vmatpush1.bf16.msra.mxu0 0
  %766 = vmatprep.subr.bf16.mxu0 0
  %767 = vmatpush1.bf16.msra.mxu0 0
  %768 = vmatprep.subr.bf16.mxu0 0
  %769 = vmatpush1.bf16.msra.mxu0 0
  %770 = vmatprep.subr.bf16.mxu0 0
  %771 = vmatpush1.bf16.msra.mxu0 0
  %772 = vmatprep.mubr.bf16.mxu0 0
  %773 = vmatmul.mubr.bf16.gmra.mrb[0].mxu0 %v317
  %v774 = vpop.f32.mrb[0].mxu0
  %v775 = vadd.f32 %v84, %v774
  %v776 = vpop.f32.mrb[0].mxu0
  %v777 = vadd.f32 %v84, %v776
  %v778 = vpop.f32.mrb[0].mxu0
  %v779 = vpop.f32.mrb[0].mxu0
  %780 = vdwg.mxu0
  %781 = vmatprep.subr.bf16.mxu0 %v369
  %782 = vmatpush1.bf16.msra.mxu0 %v366
  %783 = vmatprep.subr.bf16.mxu0 0
  %784 = vmatpush1.bf16.msra.mxu0 0
  %785 = vmatprep.subr.bf16.mxu0 0
  %786 = vmatpush1.bf16.msra.mxu0 0
  %787 = vmatprep.subr.bf16.mxu0 0
  %788 = vmatpush1.bf16.msra.mxu0 0
  %789 = vmatprep.subr.bf16.mxu0 0
  %790 = vmatpush1.bf16.msra.mxu0 0
  %791 = vmatprep.subr.bf16.mxu0 0
  %792 = vmatpush1.bf16.msra.mxu0 0
  %793 = vmatprep.subr.bf16.mxu0 0
  %794 = vmatpush1.bf16.msra.mxu0 0
  %795 = vmatprep.subr.bf16.mxu0 0
  %796 = vmatpush1.bf16.msra.mxu0 0
  %797 = vmatprep.subr.bf16.mxu0 0
  %798 = vmatpush1.bf16.msra.mxu0 0
  %799 = vmatprep.subr.bf16.mxu0 0
  %800 = vmatpush1.bf16.msra.mxu0 0
  %801 = vmatprep.subr.bf16.mxu0 0
  %802 = vmatpush1.bf16.msra.mxu0 0
  %803 = vmatprep.subr.bf16.mxu0 0
  %804 = vmatpush1.bf16.msra.mxu0 0
  %805 = vmatprep.subr.bf16.mxu0 0
  %806 = vmatpush1.bf16.msra.mxu0 0
  %807 = vmatprep.subr.bf16.mxu0 0
  %808 = vmatpush1.bf16.msra.mxu0 0
  %809 = vmatprep.subr.bf16.mxu0 0
  %810 = vmatpush1.bf16.msra.mxu0 0
  %811 = vmatprep.subr.bf16.mxu0 0
  %812 = vmatpush1.bf16.msra.mxu0 0
  %813 = vmatprep.mubr.bf16.mxu0 0
  %814 = vmatmul.mubr.bf16.gmra.mrb[0].mxu0 %v317
  %v815 = vpop.f32.mrb[0].mxu0
  %v816 = vadd.f32 %v84, %v815
  %v817 = vpop.f32.mrb[0].mxu0
  %v818 = vadd.f32 %v84, %v817
  %v819 = vpop.f32.mrb[0].mxu0
  %v820 = vpop.f32.mrb[0].mxu0
  %821 = vdwg.mxu0
  %822 = vmatprep.subr.bf16.mxu0 %v375
  %823 = vmatpush1.bf16.msra.mxu0 %v372
  %824 = vmatprep.subr.bf16.mxu0 0
  %825 = vmatpush1.bf16.msra.mxu0 0
  %826 = vmatprep.subr.bf16.mxu0 0
  %827 = vmatpush1.bf16.msra.mxu0 0
  %828 = vmatprep.subr.bf16.mxu0 0
  %829 = vmatpush1.bf16.msra.mxu0 0
  %830 = vmatprep.subr.bf16.mxu0 0
  %831 = vmatpush1.bf16.msra.mxu0 0
  %832 = vmatprep.subr.bf16.mxu0 0
  %833 = vmatpush1.bf16.msra.mxu0 0
  %834 = vmatprep.subr.bf16.mxu0 0
  %835 = vmatpush1.bf16.msra.mxu0 0
  %836 = vmatprep.subr.bf16.mxu0 0
  %837 = vmatpush1.bf16.msra.mxu0 0
  %838 = vmatprep.subr.bf16.mxu0 0
  %839 = vmatpush1.bf16.msra.mxu0 0
  %840 = vmatprep.subr.bf16.mxu0 0
  %841 = vmatpush1.bf16.msra.mxu0 0
  %842 = vmatprep.subr.bf16.mxu0 0
  %843 = vmatpush1.bf16.msra.mxu0 0
  %844 = vmatprep.subr.bf16.mxu0 0
  %845 = vmatpush1.bf16.msra.mxu0 0
  %846 = vmatprep.subr.bf16.mxu0 0
  %847 = vmatpush1.bf16.msra.mxu0 0
  %848 = vmatprep.subr.bf16.mxu0 0
  %849 = vmatpush1.bf16.msra.mxu0 0
  %850 = vmatprep.subr.bf16.mxu0 0
  %851 = vmatpush1.bf16.msra.mxu0 0
  %852 = vmatprep.subr.bf16.mxu0 0
  %853 = vmatpush1.bf16.msra.mxu0 0
  %854 = vmatprep.mubr.bf16.mxu0 0
  %855 = vmatmul.mubr.bf16.gmra.mrb[0].mxu0 %v317
  %v856 = vpop.f32.mrb[0].mxu0
  %v857 = vadd.f32 %v84, %v856
  %v858 = vpop.f32.mrb[0].mxu0
  %v859 = vadd.f32 %v84, %v858
  %v860 = vpop.f32.mrb[0].mxu0
  %v861 = vpop.f32.mrb[0].mxu0
  %862 = vdwg.mxu0
  %863 = vmatprep.subr.bf16.mxu0 %v381
  %864 = vmatpush1.bf16.msra.mxu0 %v378
  %865 = vmatprep.subr.bf16.mxu0 0
  %866 = vmatpush1.bf16.msra.mxu0 0
  %867 = vmatprep.subr.bf16.mxu0 0
  %868 = vmatpush1.bf16.msra.mxu0 0
  %869 = vmatprep.subr.bf16.mxu0 0
  %870 = vmatpush1.bf16.msra.mxu0 0
  %871 = vmatprep.subr.bf16.mxu0 0
  %872 = vmatpush1.bf16.msra.mxu0 0
  %873 = vmatprep.subr.bf16.mxu0 0
  %874 = vmatpush1.bf16.msra.mxu0 0
  %875 = vmatprep.subr.bf16.mxu0 0
  %876 = vmatpush1.bf16.msra.mxu0 0
  %877 = vmatprep.subr.bf16.mxu0 0
  %878 = vmatpush1.bf16.msra.mxu0 0
  %879 = vmatprep.subr.bf16.mxu0 0
  %880 = vmatpush1.bf16.msra.mxu0 0
  %881 = vmatprep.subr.bf16.mxu0 0
  %882 = vmatpush1.bf16.msra.mxu0 0
  %883 = vmatprep.subr.bf16.mxu0 0
  %884 = vmatpush1.bf16.msra.mxu0 0
  %885 = vmatprep.subr.bf16.mxu0 0
  %886 = vmatpush1.bf16.msra.mxu0 0
  %887 = vmatprep.subr.bf16.mxu0 0
  %888 = vmatpush1.bf16.msra.mxu0 0
  %889 = vmatprep.subr.bf16.mxu0 0
  %890 = vmatpush1.bf16.msra.mxu0 0
  %891 = vmatprep.subr.bf16.mxu0 0
  %892 = vmatpush1.bf16.msra.mxu0 0
  %893 = vmatprep.subr.bf16.mxu0 0
  %894 = vmatpush1.bf16.msra.mxu0 0
  %895 = vmatprep.mubr.bf16.mxu0 0
  %896 = vmatmul.mubr.bf16.gmra.mrb[0].mxu0 %v317
  %v897 = vpop.f32.mrb[0].mxu0
  %v898 = vadd.f32 %v84, %v897
  %v899 = vpop.f32.mrb[0].mxu0
  %v900 = vadd.f32 %v84, %v899
  %v901 = vpop.f32.mrb[0].mxu0
  %v902 = vpop.f32.mrb[0].mxu0
  %903 = vdwg.mxu0
  %904 = vmatprep.subr.bf16.mxu0 %v387
  %905 = vmatpush1.bf16.msra.mxu0 %v384
  %906 = vmatprep.subr.bf16.mxu0 0
  %907 = vmatpush1.bf16.msra.mxu0 0
  %908 = vmatprep.subr.bf16.mxu0 0
  %909 = vmatpush1.bf16.msra.mxu0 0
  %910 = vmatprep.subr.bf16.mxu0 0
  %911 = vmatpush1.bf16.msra.mxu0 0
  %912 = vmatprep.subr.bf16.mxu0 0
  %913 = vmatpush1.bf16.msra.mxu0 0
  %914 = vmatprep.subr.bf16.mxu0 0
  %915 = vmatpush1.bf16.msra.mxu0 0
  %916 = vmatprep.subr.bf16.mxu0 0
  %917 = vmatpush1.bf16.msra.mxu0 0
  %918 = vmatprep.subr.bf16.mxu0 0
  %919 = vmatpush1.bf16.msra.mxu0 0
  %920 = vmatprep.subr.bf16.mxu0 0
  %921 = vmatpush1.bf16.msra.mxu0 0
  %922 = vmatprep.subr.bf16.mxu0 0
  %923 = vmatpush1.bf16.msra.mxu0 0
  %924 = vmatprep.subr.bf16.mxu0 0
  %925 = vmatpush1.bf16.msra.mxu0 0
  %926 = vmatprep.subr.bf16.mxu0 0
  %927 = vmatpush1.bf16.msra.mxu0 0
  %928 = vmatprep.subr.bf16.mxu0 0
  %929 = vmatpush1.bf16.msra.mxu0 0
  %930 = vmatprep.subr.bf16.mxu0 0
  %931 = vmatpush1.bf16.msra.mxu0 0
  %932 = vmatprep.subr.bf16.mxu0 0
  %933 = vmatpush1.bf16.msra.mxu0 0
  %934 = vmatprep.subr.bf16.mxu0 0
  %935 = vmatpush1.bf16.msra.mxu0 0
  %936 = vmatprep.mubr.bf16.mxu0 0
  %937 = vmatmul.mubr.bf16.gmra.mrb[0].mxu0 %v317
  %v938 = vpop.f32.mrb[0].mxu0
  %v939 = vadd.f32 %v84, %v938
  %v940 = vpop.f32.mrb[0].mxu0
  %v941 = vadd.f32 %v84, %v940
  %v942 = vpop.f32.mrb[0].mxu0
  %v943 = vpop.f32.mrb[0].mxu0
  %944 = vdwg.mxu0
  %945 = vmatprep.subr.bf16.mxu0 %v393
  %946 = vmatpush1.bf16.msra.mxu0 %v390
  %947 = vmatprep.subr.bf16.mxu0 0
  %948 = vmatpush1.bf16.msra.mxu0 0
  %949 = vmatprep.subr.bf16.mxu0 0
  %950 = vmatpush1.bf16.msra.mxu0 0
  %951 = vmatprep.subr.bf16.mxu0 0
  %952 = vmatpush1.bf16.msra.mxu0 0
  %953 = vmatprep.subr.bf16.mxu0 0
  %954 = vmatpush1.bf16.msra.mxu0 0
  %955 = vmatprep.subr.bf16.mxu0 0
  %956 = vmatpush1.bf16.msra.mxu0 0
  %957 = vmatprep.subr.bf16.mxu0 0
  %958 = vmatpush1.bf16.msra.mxu0 0
  %959 = vmatprep.subr.bf16.mxu0 0
  %960 = vmatpush1.bf16.msra.mxu0 0
  %961 = vmatprep.subr.bf16.mxu0 0
  %962 = vmatpush1.bf16.msra.mxu0 0
  %963 = vmatprep.subr.bf16.mxu0 0
  %964 = vmatpush1.bf16.msra.mxu0 0
  %965 = vmatprep.subr.bf16.mxu0 0
  %966 = vmatpush1.bf16.msra.mxu0 0
  %967 = vmatprep.subr.bf16.mxu0 0
  %968 = vmatpush1.bf16.msra.mxu0 0
  %969 = vmatprep.subr.bf16.mxu0 0
  %970 = vmatpush1.bf16.msra.mxu0 0
  %971 = vmatprep.subr.bf16.mxu0 0
  %972 = vmatpush1.bf16.msra.mxu0 0
  %973 = vmatprep.subr.bf16.mxu0 0
  %974 = vmatpush1.bf16.msra.mxu0 0
  %975 = vmatprep.subr.bf16.mxu0 0
  %976 = vmatpush1.bf16.msra.mxu0 0
  %977 = vmatprep.mubr.bf16.mxu0 0
  %978 = vmatmul.mubr.bf16.gmra.mrb[0].mxu0 %v317
  %v979 = vpop.f32.mrb[0].mxu0
  %v980 = vadd.f32 %v84, %v979
  %v981 = vpop.f32.mrb[0].mxu0
  %v982 = vadd.f32 %v84, %v981
  %v983 = vpop.f32.mrb[0].mxu0
  %v984 = vpop.f32.mrb[0].mxu0
  %985 = vdwg.mxu0
  %986 = vmatprep.subr.bf16.mxu0 %v399
  %987 = vmatpush1.bf16.msra.mxu0 %v396
  %988 = vmatprep.subr.bf16.mxu0 0
  %989 = vmatpush1.bf16.msra.mxu0 0
  %990 = vmatprep.subr.bf16.mxu0 0
  %991 = vmatpush1.bf16.msra.mxu0 0
  %992 = vmatprep.subr.bf16.mxu0 0
  %993 = vmatpush1.bf16.msra.mxu0 0
  %994 = vmatprep.subr.bf16.mxu0 0
  %995 = vmatpush1.bf16.msra.mxu0 0
  %996 = vmatprep.subr.bf16.mxu0 0
  %997 = vmatpush1.bf16.msra.mxu0 0
  %998 = vmatprep.subr.bf16.mxu0 0
  %999 = vmatpush1.bf16.msra.mxu0 0
  %1000 = vmatprep.subr.bf16.mxu0 0
  %1001 = vmatpush1.bf16.msra.mxu0 0
  %1002 = vmatprep.subr.bf16.mxu0 0
  %1003 = vmatpush1.bf16.msra.mxu0 0
  %1004 = vmatprep.subr.bf16.mxu0 0
  %1005 = vmatpush1.bf16.msra.mxu0 0
  %1006 = vmatprep.subr.bf16.mxu0 0
  %1007 = vmatpush1.bf16.msra.mxu0 0
  %1008 = vmatprep.subr.bf16.mxu0 0
  %1009 = vmatpush1.bf16.msra.mxu0 0
  %1010 = vmatprep.subr.bf16.mxu0 0
  %1011 = vmatpush1.bf16.msra.mxu0 0
  %1012 = vmatprep.subr.bf16.mxu0 0
  %1013 = vmatpush1.bf16.msra.mxu0 0
  %1014 = vmatprep.subr.bf16.mxu0 0
  %1015 = vmatpush1.bf16.msra.mxu0 0
  %1016 = vmatprep.subr.bf16.mxu0 0
  %1017 = vmatpush1.bf16.msra.mxu0 0
  %1018 = vmatprep.mubr.bf16.mxu0 0
  %1019 = vmatmul.mubr.bf16.gmra.mrb[0].mxu0 %v317
  %v1020 = vpop.f32.mrb[0].mxu0
  %v1021 = vadd.f32 %v84, %v1020
  %v1022 = vpop.f32.mrb[0].mxu0
  %v1023 = vadd.f32 %v84, %v1022
  %v1024 = vpop.f32.mrb[0].mxu0
  %v1025 = vpop.f32.mrb[0].mxu0
  %1026 = vdwg.mxu0
  %1027 = vmatprep.subr.bf16.mxu0 %v405
  %1028 = vmatpush1.bf16.msra.mxu0 %v402
  %1029 = vmatprep.subr.bf16.mxu0 0
  %1030 = vmatpush1.bf16.msra.mxu0 0
  %1031 = vmatprep.subr.bf16.mxu0 0
  %1032 = vmatpush1.bf16.msra.mxu0 0
  %1033 = vmatprep.subr.bf16.mxu0 0
  %1034 = vmatpush1.bf16.msra.mxu0 0
  %1035 = vmatprep.subr.bf16.mxu0 0
  %1036 = vmatpush1.bf16.msra.mxu0 0
  %1037 = vmatprep.subr.bf16.mxu0 0
  %1038 = vmatpush1.bf16.msra.mxu0 0
  %1039 = vmatprep.subr.bf16.mxu0 0
  %1040 = vmatpush1.bf16.msra.mxu0 0
  %1041 = vmatprep.subr.bf16.mxu0 0
  %1042 = vmatpush1.bf16.msra.mxu0 0
  %1043 = vmatprep.subr.bf16.mxu0 0
  %1044 = vmatpush1.bf16.msra.mxu0 0
  %1045 = vmatprep.subr.bf16.mxu0 0
  %1046 = vmatpush1.bf16.msra.mxu0 0
  %1047 = vmatprep.subr.bf16.mxu0 0
  %1048 = vmatpush1.bf16.msra.mxu0 0
  %1049 = vmatprep.subr.bf16.mxu0 0
  %1050 = vmatpush1.bf16.msra.mxu0 0
  %1051 = vmatprep.subr.bf16.mxu0 0
  %1052 = vmatpush1.bf16.msra.mxu0 0
  %1053 = vmatprep.subr.bf16.mxu0 0
  %1054 = vmatpush1.bf16.msra.mxu0 0
  %1055 = vmatprep.subr.bf16.mxu0 0
  %1056 = vmatpush1.bf16.msra.mxu0 0
  %1057 = vmatprep.subr.bf16.mxu0 0
  %1058 = vmatpush1.bf16.msra.mxu0 0
  %1059 = vmatprep.mubr.bf16.mxu0 0
  %1060 = vmatmul.mubr.bf16.gmra.mrb[0].mxu0 %v317
  %v1061 = vpop.f32.mrb[0].mxu0
  %v1062 = vadd.f32 %v84, %v1061
  %v1063 = vpop.f32.mrb[0].mxu0
  %v1064 = vadd.f32 %v84, %v1063
  %v1065 = vpop.f32.mrb[0].mxu0
  %v1066 = vpop.f32.mrb[0].mxu0
  %1067 = vdwg.mxu0
  %1068 = vmatprep.subr.bf16.mxu0 %v411
  %1069 = vmatpush1.bf16.msra.mxu0 %v408
  %1070 = vmatprep.subr.bf16.mxu0 0
  %1071 = vmatpush1.bf16.msra.mxu0 0
  %1072 = vmatprep.subr.bf16.mxu0 0
  %1073 = vmatpush1.bf16.msra.mxu0 0
  %1074 = vmatprep.subr.bf16.mxu0 0
  %1075 = vmatpush1.bf16.msra.mxu0 0
  %1076 = vmatprep.subr.bf16.mxu0 0
  %1077 = vmatpush1.bf16.msra.mxu0 0
  %1078 = vmatprep.subr.bf16.mxu0 0
  %1079 = vmatpush1.bf16.msra.mxu0 0
  %1080 = vmatprep.subr.bf16.mxu0 0
  %1081 = vmatpush1.bf16.msra.mxu0 0
  %1082 = vmatprep.subr.bf16.mxu0 0
  %1083 = vmatpush1.bf16.msra.mxu0 0
  %1084 = vmatprep.subr.bf16.mxu0 0
  %1085 = vmatpush1.bf16.msra.mxu0 0
  %1086 = vmatprep.subr.bf16.mxu0 0
  %1087 = vmatpush1.bf16.msra.mxu0 0
  %1088 = vmatprep.subr.bf16.mxu0 0
  %1089 = vmatpush1.bf16.msra.mxu0 0
  %1090 = vmatprep.subr.bf16.mxu0 0
  %1091 = vmatpush1.bf16.msra.mxu0 0
  %1092 = vmatprep.subr.bf16.mxu0 0
  %1093 = vmatpush1.bf16.msra.mxu0 0
  %1094 = vmatprep.subr.bf16.mxu0 0
  %1095 = vmatpush1.bf16.msra.mxu0 0
  %1096 = vmatprep.subr.bf16.mxu0 0
  %1097 = vmatpush1.bf16.msra.mxu0 0
  %1098 = vmatprep.subr.bf16.mxu0 0
  %1099 = vmatpush1.bf16.msra.mxu0 0
  %1100 = vmatprep.mubr.bf16.mxu0 0
  %1101 = vmatmul.mubr.bf16.gmra.mrb[0].mxu0 %v317
  %v1102 = vpop.f32.mrb[0].mxu0
  %v1103 = vadd.f32 %v84, %v1102
  %v1104 = vpop.f32.mrb[0].mxu0
  %v1105 = vadd.f32 %v84, %v1104
  %v1106 = vpop.f32.mrb[0].mxu0
  %v1107 = vpop.f32.mrb[0].mxu0
  %1108 = vdwg.mxu0
  %1109 = vmatprep.subr.bf16.mxu0 %v417
  %1110 = vmatpush1.bf16.msra.mxu0 %v414
  %1111 = vmatprep.subr.bf16.mxu0 0
  %1112 = vmatpush1.bf16.msra.mxu0 0
  %1113 = vmatprep.subr.bf16.mxu0 0
  %1114 = vmatpush1.bf16.msra.mxu0 0
  %1115 = vmatprep.subr.bf16.mxu0 0
  %1116 = vmatpush1.bf16.msra.mxu0 0
  %1117 = vmatprep.subr.bf16.mxu0 0
  %1118 = vmatpush1.bf16.msra.mxu0 0
  %1119 = vmatprep.subr.bf16.mxu0 0
  %1120 = vmatpush1.bf16.msra.mxu0 0
  %1121 = vmatprep.subr.bf16.mxu0 0
  %1122 = vmatpush1.bf16.msra.mxu0 0
  %1123 = vmatprep.subr.bf16.mxu0 0
  %1124 = vmatpush1.bf16.msra.mxu0 0
  %1125 = vmatprep.subr.bf16.mxu0 0
  %1126 = vmatpush1.bf16.msra.mxu0 0
  %1127 = vmatprep.subr.bf16.mxu0 0
  %1128 = vmatpush1.bf16.msra.mxu0 0
  %1129 = vmatprep.subr.bf16.mxu0 0
  %1130 = vmatpush1.bf16.msra.mxu0 0
  %1131 = vmatprep.subr.bf16.mxu0 0
  %1132 = vmatpush1.bf16.msra.mxu0 0
  %1133 = vmatprep.subr.bf16.mxu0 0
  %1134 = vmatpush1.bf16.msra.mxu0 0
  %1135 = vmatprep.subr.bf16.mxu0 0
  %1136 = vmatpush1.bf16.msra.mxu0 0
  %1137 = vmatprep.subr.bf16.mxu0 0
  %1138 = vmatpush1.bf16.msra.mxu0 0
  %1139 = vmatprep.subr.bf16.mxu0 0
  %1140 = vmatpush1.bf16.msra.mxu0 0
  %1141 = vmatprep.mubr.bf16.mxu0 0
  %1142 = vmatmul.mubr.bf16.gmra.mrb[0].mxu0 %v317
  %v1143 = vpop.f32.mrb[0].mxu0
  %v1144 = vadd.f32 %v84, %v1143
  %v1145 = vpop.f32.mrb[0].mxu0
  %v1146 = vadd.f32 %v84, %v1145
  %v1147 = vpop.f32.mrb[0].mxu0
  %v1148 = vpop.f32.mrb[0].mxu0
  %1149 = vdwg.mxu0
  %1150 = vmatprep.subr.bf16.mxu0 %v423
  %1151 = vmatpush1.bf16.msra.mxu0 %v420
  %1152 = vmatprep.subr.bf16.mxu0 0
  %1153 = vmatpush1.bf16.msra.mxu0 0
  %1154 = vmatprep.subr.bf16.mxu0 0
  %1155 = vmatpush1.bf16.msra.mxu0 0
  %1156 = vmatprep.subr.bf16.mxu0 0
  %1157 = vmatpush1.bf16.msra.mxu0 0
  %1158 = vmatprep.subr.bf16.mxu0 0
  %1159 = vmatpush1.bf16.msra.mxu0 0
  %1160 = vmatprep.subr.bf16.mxu0 0
  %1161 = vmatpush1.bf16.msra.mxu0 0
  %1162 = vmatprep.subr.bf16.mxu0 0
  %1163 = vmatpush1.bf16.msra.mxu0 0
  %1164 = vmatprep.subr.bf16.mxu0 0
  %1165 = vmatpush1.bf16.msra.mxu0 0
  %1166 = vmatprep.subr.bf16.mxu0 0
  %1167 = vmatpush1.bf16.msra.mxu0 0
  %1168 = vmatprep.subr.bf16.mxu0 0
  %1169 = vmatpush1.bf16.msra.mxu0 0
  %1170 = vmatprep.subr.bf16.mxu0 0
  %1171 = vmatpush1.bf16.msra.mxu0 0
  %1172 = vmatprep.subr.bf16.mxu0 0
  %1173 = vmatpush1.bf16.msra.mxu0 0
  %1174 = vmatprep.subr.bf16.mxu0 0
  %1175 = vmatpush1.bf16.msra.mxu0 0
  %1176 = vmatprep.subr.bf16.mxu0 0
  %1177 = vmatpush1.bf16.msra.mxu0 0
  %1178 = vmatprep.subr.bf16.mxu0 0
  %1179 = vmatpush1.bf16.msra.mxu0 0
  %1180 = vmatprep.subr.bf16.mxu0 0
  %1181 = vmatpush1.bf16.msra.mxu0 0
  %1182 = vmatprep.mubr.bf16.mxu0 0
  %1183 = vmatmul.mubr.bf16.gmra.mrb[0].mxu0 %v317
  %v1184 = vpop.f32.mrb[0].mxu0
  %v1185 = vadd.f32 %v84, %v1184
  %v1186 = vpop.f32.mrb[0].mxu0
  %v1187 = vadd.f32 %v84, %v1186
  %v1188 = vpop.f32.mrb[0].mxu0
  %v1189 = vpop.f32.mrb[0].mxu0
  %1190 = vdwg.mxu0
  %1191 = vmatprep.subr.bf16.mxu0 %v429
  %1192 = vmatpush1.bf16.msra.mxu0 %v426
  %1193 = vmatprep.subr.bf16.mxu0 0
  %1194 = vmatpush1.bf16.msra.mxu0 0
  %1195 = vmatprep.subr.bf16.mxu0 0
  %1196 = vmatpush1.bf16.msra.mxu0 0
  %1197 = vmatprep.subr.bf16.mxu0 0
  %1198 = vmatpush1.bf16.msra.mxu0 0
  %1199 = vmatprep.subr.bf16.mxu0 0
  %1200 = vmatpush1.bf16.msra.mxu0 0
  %1201 = vmatprep.subr.bf16.mxu0 0
  %1202 = vmatpush1.bf16.msra.mxu0 0
  %1203 = vmatprep.subr.bf16.mxu0 0
  %1204 = vmatpush1.bf16.msra.mxu0 0
  %1205 = vmatprep.subr.bf16.mxu0 0
  %1206 = vmatpush1.bf16.msra.mxu0 0
  %1207 = vmatprep.subr.bf16.mxu0 0
  %1208 = vmatpush1.bf16.msra.mxu0 0
  %1209 = vmatprep.subr.bf16.mxu0 0
  %1210 = vmatpush1.bf16.msra.mxu0 0
  %1211 = vmatprep.subr.bf16.mxu0 0
  %1212 = vmatpush1.bf16.msra.mxu0 0
  %1213 = vmatprep.subr.bf16.mxu0 0
  %1214 = vmatpush1.bf16.msra.mxu0 0
  %1215 = vmatprep.subr.bf16.mxu0 0
  %1216 = vmatpush1.bf16.msra.mxu0 0
  %1217 = vmatprep.subr.bf16.mxu0 0
  %1218 = vmatpush1.bf16.msra.mxu0 0
  %1219 = vmatprep.subr.bf16.mxu0 0
  %1220 = vmatpush1.bf16.msra.mxu0 0
  %1221 = vmatprep.subr.bf16.mxu0 0
  %1222 = vmatpush1.bf16.msra.mxu0 0
  %1223 = vmatprep.mubr.bf16.mxu0 0
  %1224 = vmatmul.mubr.bf16.gmra.mrb[0].mxu0 %v317
  %v1225 = vpop.f32.mrb[0].mxu0
  %v1226 = vadd.f32 %v84, %v1225
  %v1227 = vpop.f32.mrb[0].mxu0
  %v1228 = vadd.f32 %v84, %v1227
  %v1229 = vpop.f32.mrb[0].mxu0
  %v1230 = vpop.f32.mrb[0].mxu0
  %1231 = vdwg.mxu0
  %1232 = vmatprep.subr.bf16.mxu0 %v435
  %1233 = vmatpush1.bf16.msra.mxu0 %v432
  %1234 = vmatprep.subr.bf16.mxu0 0
  %1235 = vmatpush1.bf16.msra.mxu0 0
  %1236 = vmatprep.subr.bf16.mxu0 0
  %1237 = vmatpush1.bf16.msra.mxu0 0
  %1238 = vmatprep.subr.bf16.mxu0 0
  %1239 = vmatpush1.bf16.msra.mxu0 0
  %1240 = vmatprep.subr.bf16.mxu0 0
  %1241 = vmatpush1.bf16.msra.mxu0 0
  %1242 = vmatprep.subr.bf16.mxu0 0
  %1243 = vmatpush1.bf16.msra.mxu0 0
  %1244 = vmatprep.subr.bf16.mxu0 0
  %1245 = vmatpush1.bf16.msra.mxu0 0
  %1246 = vmatprep.subr.bf16.mxu0 0
  %1247 = vmatpush1.bf16.msra.mxu0 0
  %1248 = vmatprep.subr.bf16.mxu0 0
  %1249 = vmatpush1.bf16.msra.mxu0 0
  %1250 = vmatprep.subr.bf16.mxu0 0
  %1251 = vmatpush1.bf16.msra.mxu0 0
  %1252 = vmatprep.subr.bf16.mxu0 0
  %1253 = vmatpush1.bf16.msra.mxu0 0
  %1254 = vmatprep.subr.bf16.mxu0 0
  %1255 = vmatpush1.bf16.msra.mxu0 0
  %1256 = vmatprep.subr.bf16.mxu0 0
  %1257 = vmatpush1.bf16.msra.mxu0 0
  %1258 = vmatprep.subr.bf16.mxu0 0
  %1259 = vmatpush1.bf16.msra.mxu0 0
  %1260 = vmatprep.subr.bf16.mxu0 0
  %1261 = vmatpush1.bf16.msra.mxu0 0
  %1262 = vmatprep.subr.bf16.mxu0 0
  %1263 = vmatpush1.bf16.msra.mxu0 0
  %1264 = vmatprep.mubr.bf16.mxu0 0
  %1265 = vmatmul.mubr.bf16.gmra.mrb[0].mxu0 %v317
  %v1266 = vpop.f32.mrb[0].mxu0
  %v1267 = vadd.f32 %v84, %v1266
  %v1268 = vpop.f32.mrb[0].mxu0
  %v1269 = vadd.f32 %v84, %v1268
  %v1270 = vpop.f32.mrb[0].mxu0
  %v1271 = vpop.f32.mrb[0].mxu0
  %1272 = vdwg.mxu0
  %1273 = vmatprep.subr.bf16.mxu0 %v441
  %1274 = vmatpush1.bf16.msra.mxu0 %v438
  %1275 = vmatprep.subr.bf16.mxu0 0
  %1276 = vmatpush1.bf16.msra.mxu0 0
  %1277 = vmatprep.subr.bf16.mxu0 0
  %1278 = vmatpush1.bf16.msra.mxu0 0
  %1279 = vmatprep.subr.bf16.mxu0 0
  %1280 = vmatpush1.bf16.msra.mxu0 0
  %1281 = vmatprep.subr.bf16.mxu0 0
  %1282 = vmatpush1.bf16.msra.mxu0 0
  %1283 = vmatprep.subr.bf16.mxu0 0
  %1284 = vmatpush1.bf16.msra.mxu0 0
  %1285 = vmatprep.subr.bf16.mxu0 0
  %1286 = vmatpush1.bf16.msra.mxu0 0
  %1287 = vmatprep.subr.bf16.mxu0 0
  %1288 = vmatpush1.bf16.msra.mxu0 0
  %1289 = vmatprep.subr.bf16.mxu0 0
  %1290 = vmatpush1.bf16.msra.mxu0 0
  %1291 = vmatprep.subr.bf16.mxu0 0
  %1292 = vmatpush1.bf16.msra.mxu0 0
  %1293 = vmatprep.subr.bf16.mxu0 0
  %1294 = vmatpush1.bf16.msra.mxu0 0
  %1295 = vmatprep.subr.bf16.mxu0 0
  %1296 = vmatpush1.bf16.msra.mxu0 0
  %1297 = vmatprep.subr.bf16.mxu0 0
  %1298 = vmatpush1.bf16.msra.mxu0 0
  %1299 = vmatprep.subr.bf16.mxu0 0
  %1300 = vmatpush1.bf16.msra.mxu0 0
  %1301 = vmatprep.subr.bf16.mxu0 0
  %1302 = vmatpush1.bf16.msra.mxu0 0
  %1303 = vmatprep.subr.bf16.mxu0 0
  %1304 = vmatpush1.bf16.msra.mxu0 0
  %1305 = vmatprep.mubr.bf16.mxu0 0
  %1306 = vmatmul.mubr.bf16.gmra.mrb[0].mxu0 %v317
  %v1307 = vpop.f32.mrb[0].mxu0
  %v1308 = vadd.f32 %v84, %v1307
  %v1309 = vpop.f32.mrb[0].mxu0
  %v1310 = vadd.f32 %v84, %v1309
  %v1311 = vpop.f32.mrb[0].mxu0
  %v1312 = vpop.f32.mrb[0].mxu0
  %1313 = vdwg.mxu0
  %1314 = vmatprep.subr.bf16.mxu0 %v447
  %1315 = vmatpush1.bf16.msra.mxu0 %v444
  %1316 = vmatprep.subr.bf16.mxu0 0
  %1317 = vmatpush1.bf16.msra.mxu0 0
  %1318 = vmatprep.subr.bf16.mxu0 0
  %1319 = vmatpush1.bf16.msra.mxu0 0
  %1320 = vmatprep.subr.bf16.mxu0 0
  %1321 = vmatpush1.bf16.msra.mxu0 0
  %1322 = vmatprep.subr.bf16.mxu0 0
  %1323 = vmatpush1.bf16.msra.mxu0 0
  %1324 = vmatprep.subr.bf16.mxu0 0
  %1325 = vmatpush1.bf16.msra.mxu0 0
  %1326 = vmatprep.subr.bf16.mxu0 0
  %1327 = vmatpush1.bf16.msra.mxu0 0
  %1328 = vmatprep.subr.bf16.mxu0 0
  %1329 = vmatpush1.bf16.msra.mxu0 0
  %1330 = vmatprep.subr.bf16.mxu0 0
  %1331 = vmatpush1.bf16.msra.mxu0 0
  %1332 = vmatprep.subr.bf16.mxu0 0
  %1333 = vmatpush1.bf16.msra.mxu0 0
  %1334 = vmatprep.subr.bf16.mxu0 0
  %1335 = vmatpush1.bf16.msra.mxu0 0
  %1336 = vmatprep.subr.bf16.mxu0 0
  %1337 = vmatpush1.bf16.msra.mxu0 0
  %1338 = vmatprep.subr.bf16.mxu0 0
  %1339 = vmatpush1.bf16.msra.mxu0 0
  %1340 = vmatprep.subr.bf16.mxu0 0
  %1341 = vmatpush1.bf16.msra.mxu0 0
  %1342 = vmatprep.subr.bf16.mxu0 0
  %1343 = vmatpush1.bf16.msra.mxu0 0
  %1344 = vmatprep.subr.bf16.mxu0 0
  %1345 = vmatpush1.bf16.msra.mxu0 0
  %1346 = vmatprep.mubr.bf16.mxu0 0
  %1347 = vmatmul.mubr.bf16.gmra.mrb[0].mxu0 %v317
  %v1348 = vpop.f32.mrb[0].mxu0
  %v1349 = vadd.f32 %v84, %v1348
  %v1350 = vpop.f32.mrb[0].mxu0
  %v1351 = vadd.f32 %v84, %v1350
  %v1352 = vpop.f32.mrb[0].mxu0
  %v1353 = vpop.f32.mrb[0].mxu0
  %1354 = vdwg.mxu0
  %1355 = vmatprep.subr.bf16.mxu0 %v453
  %1356 = vmatpush1.bf16.msra.mxu0 %v450
  %1357 = vmatprep.subr.bf16.mxu0 0
  %1358 = vmatpush1.bf16.msra.mxu0 0
  %1359 = vmatprep.subr.bf16.mxu0 0
  %1360 = vmatpush1.bf16.msra.mxu0 0
  %1361 = vmatprep.subr.bf16.mxu0 0
  %1362 = vmatpush1.bf16.msra.mxu0 0
  %1363 = vmatprep.subr.bf16.mxu0 0
  %1364 = vmatpush1.bf16.msra.mxu0 0
  %1365 = vmatprep.subr.bf16.mxu0 0
  %1366 = vmatpush1.bf16.msra.mxu0 0
  %1367 = vmatprep.subr.bf16.mxu0 0
  %1368 = vmatpush1.bf16.msra.mxu0 0
  %1369 = vmatprep.subr.bf16.mxu0 0
  %1370 = vmatpush1.bf16.msra.mxu0 0
  %1371 = vmatprep.subr.bf16.mxu0 0
  %1372 = vmatpush1.bf16.msra.mxu0 0
  %1373 = vmatprep.subr.bf16.mxu0 0
  %1374 = vmatpush1.bf16.msra.mxu0 0
  %1375 = vmatprep.subr.bf16.mxu0 0
  %1376 = vmatpush1.bf16.msra.mxu0 0
  %1377 = vmatprep.subr.bf16.mxu0 0
  %1378 = vmatpush1.bf16.msra.mxu0 0
  %1379 = vmatprep.subr.bf16.mxu0 0
  %1380 = vmatpush1.bf16.msra.mxu0 0
  %1381 = vmatprep.subr.bf16.mxu0 0
  %1382 = vmatpush1.bf16.msra.mxu0 0
  %1383 = vmatprep.subr.bf16.mxu0 0
  %1384 = vmatpush1.bf16.msra.mxu0 0
  %1385 = vmatprep.subr.bf16.mxu0 0
  %1386 = vmatpush1.bf16.msra.mxu0 0
  %1387 = vmatprep.mubr.bf16.mxu0 0
  %1388 = vmatmul.mubr.bf16.gmra.mrb[0].mxu0 %v317
  %v1389 = vpop.f32.mrb[0].mxu0
  %v1390 = vadd.f32 %v84, %v1389
  %v1391 = vpop.f32.mrb[0].mxu0
  %v1392 = vadd.f32 %v84, %v1391
  %v1393 = vpop.f32.mrb[0].mxu0
  %v1394 = vpop.f32.mrb[0].mxu0
  %1395 = vdwg.mxu0
  %1396 = vmatprep.subr.bf16.mxu0 %v459
  %1397 = vmatpush1.bf16.msra.mxu0 %v456
  %1398 = vmatprep.subr.bf16.mxu0 0
  %1399 = vmatpush1.bf16.msra.mxu0 0
  %1400 = vmatprep.subr.bf16.mxu0 0
  %1401 = vmatpush1.bf16.msra.mxu0 0
  %1402 = vmatprep.subr.bf16.mxu0 0
  %1403 = vmatpush1.bf16.msra.mxu0 0
  %1404 = vmatprep.subr.bf16.mxu0 0
  %1405 = vmatpush1.bf16.msra.mxu0 0
  %1406 = vmatprep.subr.bf16.mxu0 0
  %1407 = vmatpush1.bf16.msra.mxu0 0
  %1408 = vmatprep.subr.bf16.mxu0 0
  %1409 = vmatpush1.bf16.msra.mxu0 0
  %1410 = vmatprep.subr.bf16.mxu0 0
  %1411 = vmatpush1.bf16.msra.mxu0 0
  %1412 = vmatprep.subr.bf16.mxu0 0
  %1413 = vmatpush1.bf16.msra.mxu0 0
  %1414 = vmatprep.subr.bf16.mxu0 0
  %1415 = vmatpush1.bf16.msra.mxu0 0
  %1416 = vmatprep.subr.bf16.mxu0 0
  %1417 = vmatpush1.bf16.msra.mxu0 0
  %1418 = vmatprep.subr.bf16.mxu0 0
  %1419 = vmatpush1.bf16.msra.mxu0 0
  %1420 = vmatprep.subr.bf16.mxu0 0
  %1421 = vmatpush1.bf16.msra.mxu0 0
  %1422 = vmatprep.subr.bf16.mxu0 0
  %1423 = vmatpush1.bf16.msra.mxu0 0
  %1424 = vmatprep.subr.bf16.mxu0 0
  %1425 = vmatpush1.bf16.msra.mxu0 0
  %1426 = vmatprep.subr.bf16.mxu0 0
  %1427 = vmatpush1.bf16.msra.mxu0 0
  %1428 = vmatprep.mubr.bf16.mxu0 0
  %1429 = vmatmul.mubr.bf16.gmra.mrb[0].mxu0 %v317
  %v1430 = vpop.f32.mrb[0].mxu0
  %v1431 = vadd.f32 %v84, %v1430
  %v1432 = vpop.f32.mrb[0].mxu0
  %v1433 = vadd.f32 %v84, %v1432
  %v1434 = vpop.f32.mrb[0].mxu0
  %v1435 = vpop.f32.mrb[0].mxu0
  %1436 = vdwg.mxu0
  %1437 = vmatprep.subr.bf16.mxu0 %v465
  %1438 = vmatpush1.bf16.msra.mxu0 %v462
  %1439 = vmatprep.subr.bf16.mxu0 0
  %1440 = vmatpush1.bf16.msra.mxu0 0
  %1441 = vmatprep.subr.bf16.mxu0 0
  %1442 = vmatpush1.bf16.msra.mxu0 0
  %1443 = vmatprep.subr.bf16.mxu0 0
  %1444 = vmatpush1.bf16.msra.mxu0 0
  %1445 = vmatprep.subr.bf16.mxu0 0
  %1446 = vmatpush1.bf16.msra.mxu0 0
  %1447 = vmatprep.subr.bf16.mxu0 0
  %1448 = vmatpush1.bf16.msra.mxu0 0
  %1449 = vmatprep.subr.bf16.mxu0 0
  %1450 = vmatpush1.bf16.msra.mxu0 0
  %1451 = vmatprep.subr.bf16.mxu0 0
  %1452 = vmatpush1.bf16.msra.mxu0 0
  %1453 = vmatprep.subr.bf16.mxu0 0
  %1454 = vmatpush1.bf16.msra.mxu0 0
  %1455 = vmatprep.subr.bf16.mxu0 0
  %1456 = vmatpush1.bf16.msra.mxu0 0
  %1457 = vmatprep.subr.bf16.mxu0 0
  %1458 = vmatpush1.bf16.msra.mxu0 0
  %1459 = vmatprep.subr.bf16.mxu0 0
  %1460 = vmatpush1.bf16.msra.mxu0 0
  %1461 = vmatprep.subr.bf16.mxu0 0
  %1462 = vmatpush1.bf16.msra.mxu0 0
  %1463 = vmatprep.subr.bf16.mxu0 0
  %1464 = vmatpush1.bf16.msra.mxu0 0
  %1465 = vmatprep.subr.bf16.mxu0 0
  %1466 = vmatpush1.bf16.msra.mxu0 0
  %1467 = vmatprep.subr.bf16.mxu0 0
  %1468 = vmatpush1.bf16.msra.mxu0 0
  %1469 = vmatprep.mubr.bf16.mxu0 0
  %1470 = vmatmul.mubr.bf16.gmra.mrb[0].mxu0 %v317
  %v1471 = vpop.f32.mrb[0].mxu0
  %v1472 = vadd.f32 %v84, %v1471
  %v1473 = vpop.f32.mrb[0].mxu0
  %v1474 = vadd.f32 %v84, %v1473
  %v1475 = vpop.f32.mrb[0].mxu0
  %v1476 = vpop.f32.mrb[0].mxu0
  %1477 = vdwg.mxu0
  %1478 = vmatprep.subr.bf16.mxu0 %v471
  %1479 = vmatpush1.bf16.msra.mxu0 %v468
  %1480 = vmatprep.subr.bf16.mxu0 0
  %1481 = vmatpush1.bf16.msra.mxu0 0
  %1482 = vmatprep.subr.bf16.mxu0 0
  %1483 = vmatpush1.bf16.msra.mxu0 0
  %1484 = vmatprep.subr.bf16.mxu0 0
  %1485 = vmatpush1.bf16.msra.mxu0 0
  %1486 = vmatprep.subr.bf16.mxu0 0
  %1487 = vmatpush1.bf16.msra.mxu0 0
  %1488 = vmatprep.subr.bf16.mxu0 0
  %1489 = vmatpush1.bf16.msra.mxu0 0
  %1490 = vmatprep.subr.bf16.mxu0 0
  %1491 = vmatpush1.bf16.msra.mxu0 0
  %1492 = vmatprep.subr.bf16.mxu0 0
  %1493 = vmatpush1.bf16.msra.mxu0 0
  %1494 = vmatprep.subr.bf16.mxu0 0
  %1495 = vmatpush1.bf16.msra.mxu0 0
  %1496 = vmatprep.subr.bf16.mxu0 0
  %1497 = vmatpush1.bf16.msra.mxu0 0
  %1498 = vmatprep.subr.bf16.mxu0 0
  %1499 = vmatpush1.bf16.msra.mxu0 0
  %1500 = vmatprep.subr.bf16.mxu0 0
  %1501 = vmatpush1.bf16.msra.mxu0 0
  %1502 = vmatprep.subr.bf16.mxu0 0
  %1503 = vmatpush1.bf16.msra.mxu0 0
  %1504 = vmatprep.subr.bf16.mxu0 0
  %1505 = vmatpush1.bf16.msra.mxu0 0
  %1506 = vmatprep.subr.bf16.mxu0 0
  %1507 = vmatpush1.bf16.msra.mxu0 0
  %1508 = vmatprep.subr.bf16.mxu0 0
  %1509 = vmatpush1.bf16.msra.mxu0 0
  %1510 = vmatprep.mubr.bf16.mxu0 0
  %1511 = vmatmul.mubr.bf16.gmra.mrb[0].mxu0 %v317
  %v1512 = vpop.f32.mrb[0].mxu0
  %v1513 = vadd.f32 %v84, %v1512
  %v1514 = vpop.f32.mrb[0].mxu0
  %v1515 = vadd.f32 %v84, %v1514
  %v1516 = vpop.f32.mrb[0].mxu0
  %v1517 = vpop.f32.mrb[0].mxu0
  %1518 = vdwg.mxu0
  %1519 = vmatprep.subr.bf16.mxu0 %v477
  %1520 = vmatpush1.bf16.msra.mxu0 %v474
  %1521 = vmatprep.subr.bf16.mxu0 0
  %1522 = vmatpush1.bf16.msra.mxu0 0
  %1523 = vmatprep.subr.bf16.mxu0 0
  %1524 = vmatpush1.bf16.msra.mxu0 0
  %1525 = vmatprep.subr.bf16.mxu0 0
  %1526 = vmatpush1.bf16.msra.mxu0 0
  %1527 = vmatprep.subr.bf16.mxu0 0
  %1528 = vmatpush1.bf16.msra.mxu0 0
  %1529 = vmatprep.subr.bf16.mxu0 0
  %1530 = vmatpush1.bf16.msra.mxu0 0
  %1531 = vmatprep.subr.bf16.mxu0 0
  %1532 = vmatpush1.bf16.msra.mxu0 0
  %1533 = vmatprep.subr.bf16.mxu0 0
  %1534 = vmatpush1.bf16.msra.mxu0 0
  %1535 = vmatprep.subr.bf16.mxu0 0
  %1536 = vmatpush1.bf16.msra.mxu0 0
  %1537 = vmatprep.subr.bf16.mxu0 0
  %1538 = vmatpush1.bf16.msra.mxu0 0
  %1539 = vmatprep.subr.bf16.mxu0 0
  %1540 = vmatpush1.bf16.msra.mxu0 0
  %1541 = vmatprep.subr.bf16.mxu0 0
  %1542 = vmatpush1.bf16.msra.mxu0 0
  %1543 = vmatprep.subr.bf16.mxu0 0
  %1544 = vmatpush1.bf16.msra.mxu0 0
  %1545 = vmatprep.subr.bf16.mxu0 0
  %1546 = vmatpush1.bf16.msra.mxu0 0
  %1547 = vmatprep.subr.bf16.mxu0 0
  %1548 = vmatpush1.bf16.msra.mxu0 0
  %1549 = vmatprep.subr.bf16.mxu0 0
  %1550 = vmatpush1.bf16.msra.mxu0 0
  %1551 = vmatprep.mubr.bf16.mxu0 0
  %1552 = vmatmul.mubr.bf16.gmra.mrb[0].mxu0 %v317
  %v1553 = vpop.f32.mrb[0].mxu0
  %v1554 = vadd.f32 %v84, %v1553
  %v1555 = vpop.f32.mrb[0].mxu0
  %v1556 = vadd.f32 %v84, %v1555
  %v1557 = vpop.f32.mrb[0].mxu0
  %v1558 = vpop.f32.mrb[0].mxu0
  %1559 = vdwg.mxu0
  %1560 = vmatprep.subr.bf16.mxu0 %v483
  %1561 = vmatpush1.bf16.msra.mxu0 %v480
  %1562 = vmatprep.subr.bf16.mxu0 0
  %1563 = vmatpush1.bf16.msra.mxu0 0
  %1564 = vmatprep.subr.bf16.mxu0 0
  %1565 = vmatpush1.bf16.msra.mxu0 0
  %1566 = vmatprep.subr.bf16.mxu0 0
  %1567 = vmatpush1.bf16.msra.mxu0 0
  %1568 = vmatprep.subr.bf16.mxu0 0
  %1569 = vmatpush1.bf16.msra.mxu0 0
  %1570 = vmatprep.subr.bf16.mxu0 0
  %1571 = vmatpush1.bf16.msra.mxu0 0
  %1572 = vmatprep.subr.bf16.mxu0 0
  %1573 = vmatpush1.bf16.msra.mxu0 0
  %1574 = vmatprep.subr.bf16.mxu0 0
  %1575 = vmatpush1.bf16.msra.mxu0 0
  %1576 = vmatprep.subr.bf16.mxu0 0
  %1577 = vmatpush1.bf16.msra.mxu0 0
  %1578 = vmatprep.subr.bf16.mxu0 0
  %1579 = vmatpush1.bf16.msra.mxu0 0
  %1580 = vmatprep.subr.bf16.mxu0 0
  %1581 = vmatpush1.bf16.msra.mxu0 0
  %1582 = vmatprep.subr.bf16.mxu0 0
  %1583 = vmatpush1.bf16.msra.mxu0 0
  %1584 = vmatprep.subr.bf16.mxu0 0
  %1585 = vmatpush1.bf16.msra.mxu0 0
  %1586 = vmatprep.subr.bf16.mxu0 0
  %1587 = vmatpush1.bf16.msra.mxu0 0
  %1588 = vmatprep.subr.bf16.mxu0 0
  %1589 = vmatpush1.bf16.msra.mxu0 0
  %1590 = vmatprep.subr.bf16.mxu0 0
  %1591 = vmatpush1.bf16.msra.mxu0 0
  %1592 = vmatprep.mubr.bf16.mxu0 0
  %1593 = vmatmul.mubr.bf16.gmra.mrb[0].mxu0 %v317
  %v1594 = vpop.f32.mrb[0].mxu0
  %v1595 = vadd.f32 %v84, %v1594
  %v1596 = vpop.f32.mrb[0].mxu0
  %v1597 = vadd.f32 %v84, %v1596
  %v1598 = vpop.f32.mrb[0].mxu0
  %v1599 = vpop.f32.mrb[0].mxu0
  %1600 = vdwg.mxu0
  %1601 = vmatprep.subr.bf16.mxu0 %v489
  %1602 = vmatpush1.bf16.msra.mxu0 %v486
  %1603 = vmatprep.subr.bf16.mxu0 0
  %1604 = vmatpush1.bf16.msra.mxu0 0
  %1605 = vmatprep.subr.bf16.mxu0 0
  %1606 = vmatpush1.bf16.msra.mxu0 0
  %1607 = vmatprep.subr.bf16.mxu0 0
  %1608 = vmatpush1.bf16.msra.mxu0 0
  %1609 = vmatprep.subr.bf16.mxu0 0
  %1610 = vmatpush1.bf16.msra.mxu0 0
  %1611 = vmatprep.subr.bf16.mxu0 0
  %1612 = vmatpush1.bf16.msra.mxu0 0
  %1613 = vmatprep.subr.bf16.mxu0 0
  %1614 = vmatpush1.bf16.msra.mxu0 0
  %1615 = vmatprep.subr.bf16.mxu0 0
  %1616 = vmatpush1.bf16.msra.mxu0 0
  %1617 = vmatprep.subr.bf16.mxu0 0
  %1618 = vmatpush1.bf16.msra.mxu0 0
  %1619 = vmatprep.subr.bf16.mxu0 0
  %1620 = vmatpush1.bf16.msra.mxu0 0
  %1621 = vmatprep.subr.bf16.mxu0 0
  %1622 = vmatpush1.bf16.msra.mxu0 0
  %1623 = vmatprep.subr.bf16.mxu0 0
  %1624 = vmatpush1.bf16.msra.mxu0 0
  %1625 = vmatprep.subr.bf16.mxu0 0
  %1626 = vmatpush1.bf16.msra.mxu0 0
  %1627 = vmatprep.subr.bf16.mxu0 0
  %1628 = vmatpush1.bf16.msra.mxu0 0
  %1629 = vmatprep.subr.bf16.mxu0 0
  %1630 = vmatpush1.bf16.msra.mxu0 0
  %1631 = vmatprep.subr.bf16.mxu0 0
  %1632 = vmatpush1.bf16.msra.mxu0 0
  %1633 = vmatprep.mubr.bf16.mxu0 0
  %1634 = vmatmul.mubr.bf16.gmra.mrb[0].mxu0 %v317
  %v1635 = vpop.f32.mrb[0].mxu0
  %v1636 = vadd.f32 %v84, %v1635
  %v1637 = vpop.f32.mrb[0].mxu0
  %v1638 = vadd.f32 %v84, %v1637
  %v1639 = vpop.f32.mrb[0].mxu0
  %v1640 = vpop.f32.mrb[0].mxu0
  %1641 = vdwg.mxu0
  %1642 = vmatprep.subr.bf16.mxu0 0
  %1643 = vmatpush1.bf16.msra.mxu0 %v492
  %1644 = vmatprep.subr.bf16.mxu0 0
  %1645 = vmatpush1.bf16.msra.mxu0 0
  %1646 = vmatprep.subr.bf16.mxu0 0
  %1647 = vmatpush1.bf16.msra.mxu0 0
  %1648 = vmatprep.subr.bf16.mxu0 0
  %1649 = vmatpush1.bf16.msra.mxu0 0
  %1650 = vmatprep.subr.bf16.mxu0 0
  %1651 = vmatpush1.bf16.msra.mxu0 0
  %1652 = vmatprep.subr.bf16.mxu0 0
  %1653 = vmatpush1.bf16.msra.mxu0 0
  %1654 = vmatprep.subr.bf16.mxu0 0
  %1655 = vmatpush1.bf16.msra.mxu0 0
  %1656 = vmatprep.subr.bf16.mxu0 0
  %1657 = vmatpush1.bf16.msra.mxu0 0
  %1658 = vmatprep.subr.bf16.mxu0 0
  %1659 = vmatpush1.bf16.msra.mxu0 0
  %1660 = vmatprep.subr.bf16.mxu0 0
  %1661 = vmatpush1.bf16.msra.mxu0 0
  %1662 = vmatprep.subr.bf16.mxu0 0
  %1663 = vmatpush1.bf16.msra.mxu0 0
  %1664 = vmatprep.subr.bf16.mxu0 0
  %1665 = vmatpush1.bf16.msra.mxu0 0
  %1666 = vmatprep.subr.bf16.mxu0 0
  %1667 = vmatpush1.bf16.msra.mxu0 0
  %1668 = vmatprep.subr.bf16.mxu0 0
  %1669 = vmatpush1.bf16.msra.mxu0 0
  %1670 = vmatprep.subr.bf16.mxu0 0
  %1671 = vmatpush1.bf16.msra.mxu0 0
  %1672 = vmatprep.subr.bf16.mxu0 0
  %1673 = vmatpush1.bf16.msra.mxu0 0
  %1674 = vmatprep.mubr.bf16.mxu0 0
  %1675 = vmatmul.mubr.bf16.gmra.mrb[0].mxu0 %v317
  %v1676 = vpop.f32.mrb[0].mxu0
  %v1677 = vadd.f32 %v84, %v1676
  %v1678 = vpop.f32.mrb[0].mxu0
  %v1679 = vpop.f32.mrb[0].mxu0
  %v1680 = vpop.f32.mrb[0].mxu0
  %1681 = vdwg.mxu0
  %v1682 = vmax.f32 %v529, 0.0
  %v1683 = vmax.f32 %v531, 0.0
  %v1684 = vmax.f32 %v570, 0.0
  %v1685 = vmax.f32 %v572, 0.0
  %v1686 = vmax.f32 %v611, 0.0
  %v1687 = vmax.f32 %v613, 0.0
  %v1688 = vmax.f32 %v652, 0.0
  %v1689 = vmax.f32 %v654, 0.0
  %v1690 = vmax.f32 %v693, 0.0
  %v1691 = vmax.f32 %v695, 0.0
  %v1692 = vmax.f32 %v734, 0.0
  %v1693 = vmax.f32 %v736, 0.0
  %v1694 = vmax.f32 %v775, 0.0
  %v1695 = vmax.f32 %v777, 0.0
  %v1696 = vmax.f32 %v816, 0.0
  %v1697 = vmax.f32 %v818, 0.0
  %v1698 = vmax.f32 %v857, 0.0
  %v1699 = vmax.f32 %v859, 0.0
  %v1700 = vmax.f32 %v898, 0.0
  %v1701 = vmax.f32 %v900, 0.0
  %v1702 = vmax.f32 %v939, 0.0
  %v1703 = vmax.f32 %v941, 0.0
  %v1704 = vmax.f32 %v980, 0.0
  %v1705 = vmax.f32 %v982, 0.0
  %v1706 = vmax.f32 %v1021, 0.0
  %v1707 = vmax.f32 %v1023, 0.0
  %v1708 = vmax.f32 %v1062, 0.0
  %v1709 = vmax.f32 %v1064, 0.0
  %v1710 = vmax.f32 %v1103, 0.0
  %v1711 = vmax.f32 %v1105, 0.0
  %v1712 = vmax.f32 %v1144, 0.0
  %v1713 = vmax.f32 %v1146, 0.0
  %v1714 = vmax.f32 %v1185, 0.0
  %v1715 = vmax.f32 %v1187, 0.0
  %v1716 = vmax.f32 %v1226, 0.0
  %v1717 = vmax.f32 %v1228, 0.0
  %v1718 = vmax.f32 %v1267, 0.0
  %v1719 = vmax.f32 %v1269, 0.0
  %v1720 = vmax.f32 %v1308, 0.0
  %v1721 = vmax.f32 %v1310, 0.0
  %v1722 = vmax.f32 %v1349, 0.0
  %v1723 = vmax.f32 %v1351, 0.0
  %v1724 = vmax.f32 %v1390, 0.0
  %v1725 = vmax.f32 %v1392, 0.0
  %v1726 = vmax.f32 %v1431, 0.0
  %v1727 = vmax.f32 %v1433, 0.0
  %v1728 = vmax.f32 %v1472, 0.0
  %v1729 = vmax.f32 %v1474, 0.0
  %v1730 = vmax.f32 %v1513, 0.0
  %v1731 = vmax.f32 %v1515, 0.0
  %v1732 = vmax.f32 %v1554, 0.0
  %v1733 = vmax.f32 %v1556, 0.0
  %v1734 = vmax.f32 %v1595, 0.0
  %v1735 = vmax.f32 %v1597, 0.0
  %v1736 = vmax.f32 %v1636, 0.0
  %v1737 = vmax.f32 %v1638, 0.0
  %v1738 = vmax.f32 %v1677, 0.0
  %v1739 = vsel %vm319, %v1682, 0.0
  %v1740 = vsel %vm319, %v1683, 0.0
  %v1741 = vadd.f32 %v1739, %v1740
  %v1742 = vsel %vm319, %v1684, 0.0
  %v1743 = vadd.f32 %v1741, %v1742
  %v1744 = vsel %vm319, %v1685, 0.0
  %v1745 = vadd.f32 %v1743, %v1744
  %v1746 = vsel %vm319, %v1686, 0.0
  %v1747 = vadd.f32 %v1745, %v1746
  %v1748 = vsel %vm319, %v1687, 0.0
  %v1749 = vadd.f32 %v1747, %v1748
  %v1750 = vsel %vm319, %v1688, 0.0
  %v1751 = vadd.f32 %v1749, %v1750
  %v1752 = vsel %vm319, %v1689, 0.0
  %v1753 = vadd.f32 %v1751, %v1752
  %v1754 = vsel %vm319, %v1690, 0.0
  %v1755 = vadd.f32 %v1753, %v1754
  %v1756 = vsel %vm319, %v1691, 0.0
  %v1757 = vadd.f32 %v1755, %v1756
  %v1758 = vsel %vm319, %v1692, 0.0
  %v1759 = vadd.f32 %v1757, %v1758
  %v1760 = vsel %vm319, %v1693, 0.0
  %v1761 = vadd.f32 %v1759, %v1760
  %v1762 = vsel %vm319, %v1694, 0.0
  %v1763 = vadd.f32 %v1761, %v1762
  %v1764 = vsel %vm319, %v1695, 0.0
  %v1765 = vadd.f32 %v1763, %v1764
  %v1766 = vsel %vm319, %v1696, 0.0
  %v1767 = vadd.f32 %v1765, %v1766
  %v1768 = vsel %vm319, %v1697, 0.0
  %v1769 = vadd.f32 %v1767, %v1768
  %v1770 = vsel %vm319, %v1698, 0.0
  %v1771 = vadd.f32 %v1769, %v1770
  %v1772 = vsel %vm319, %v1699, 0.0
  %v1773 = vadd.f32 %v1771, %v1772
  %v1774 = vsel %vm319, %v1700, 0.0
  %v1775 = vadd.f32 %v1773, %v1774
  %v1776 = vsel %vm319, %v1701, 0.0
  %v1777 = vadd.f32 %v1775, %v1776
  %v1778 = vsel %vm319, %v1702, 0.0
  %v1779 = vadd.f32 %v1777, %v1778
  %v1780 = vsel %vm319, %v1703, 0.0
  %v1781 = vadd.f32 %v1779, %v1780
  %v1782 = vsel %vm319, %v1704, 0.0
  %v1783 = vadd.f32 %v1781, %v1782
  %v1784 = vsel %vm319, %v1705, 0.0
  %v1785 = vadd.f32 %v1783, %v1784
  %v1786 = vsel %vm319, %v1706, 0.0
  %v1787 = vadd.f32 %v1785, %v1786
  %v1788 = vsel %vm319, %v1707, 0.0
  %v1789 = vadd.f32 %v1787, %v1788
  %v1790 = vsel %vm319, %v1708, 0.0
  %v1791 = vadd.f32 %v1789, %v1790
  %v1792 = vsel %vm319, %v1709, 0.0
  %v1793 = vadd.f32 %v1791, %v1792
  %v1794 = vsel %vm319, %v1710, 0.0
  %v1795 = vadd.f32 %v1793, %v1794
  %v1796 = vsel %vm319, %v1711, 0.0
  %v1797 = vadd.f32 %v1795, %v1796
  %v1798 = vsel %vm319, %v1712, 0.0
  %v1799 = vadd.f32 %v1797, %v1798
  %v1800 = vsel %vm319, %v1713, 0.0
  %v1801 = vadd.f32 %v1799, %v1800
  %v1802 = vsel %vm319, %v1714, 0.0
  %v1803 = vadd.f32 %v1801, %v1802
  %v1804 = vsel %vm319, %v1715, 0.0
  %v1805 = vadd.f32 %v1803, %v1804
  %v1806 = vsel %vm319, %v1716, 0.0
  %v1807 = vadd.f32 %v1805, %v1806
  %v1808 = vsel %vm319, %v1717, 0.0
  %v1809 = vadd.f32 %v1807, %v1808
  %v1810 = vsel %vm319, %v1718, 0.0
  %v1811 = vadd.f32 %v1809, %v1810
  %v1812 = vsel %vm319, %v1719, 0.0
  %v1813 = vadd.f32 %v1811, %v1812
  %v1814 = vsel %vm319, %v1720, 0.0
  %v1815 = vadd.f32 %v1813, %v1814
  %v1816 = vsel %vm319, %v1721, 0.0
  %v1817 = vadd.f32 %v1815, %v1816
  %v1818 = vsel %vm319, %v1722, 0.0
  %v1819 = vadd.f32 %v1817, %v1818
  %v1820 = vsel %vm319, %v1723, 0.0
  %v1821 = vadd.f32 %v1819, %v1820
  %v1822 = vsel %vm319, %v1724, 0.0
  %v1823 = vadd.f32 %v1821, %v1822
  %v1824 = vsel %vm319, %v1725, 0.0
  %v1825 = vadd.f32 %v1823, %v1824
  %v1826 = vsel %vm319, %v1726, 0.0
  %v1827 = vadd.f32 %v1825, %v1826
  %v1828 = vsel %vm319, %v1727, 0.0
  %v1829 = vadd.f32 %v1827, %v1828
  %v1830 = vsel %vm319, %v1728, 0.0
  %v1831 = vadd.f32 %v1829, %v1830
  %v1832 = vsel %vm319, %v1729, 0.0
  %v1833 = vadd.f32 %v1831, %v1832
  %v1834 = vsel %vm319, %v1730, 0.0
  %v1835 = vadd.f32 %v1833, %v1834
  %v1836 = vsel %vm319, %v1731, 0.0
  %v1837 = vadd.f32 %v1835, %v1836
  %v1838 = vsel %vm319, %v1732, 0.0
  %v1839 = vadd.f32 %v1837, %v1838
  %v1840 = vsel %vm319, %v1733, 0.0
  %v1841 = vadd.f32 %v1839, %v1840
  %v1842 = vsel %vm319, %v1734, 0.0
  %v1843 = vadd.f32 %v1841, %v1842
  %v1844 = vsel %vm319, %v1735, 0.0
  %v1845 = vadd.f32 %v1843, %v1844
  %v1846 = vsel %vm319, %v1736, 0.0
  %v1847 = vadd.f32 %v1845, %v1846
  %v1848 = vsel %vm319, %v1737, 0.0
  %v1849 = vadd.f32 %v1847, %v1848
  %vm1850 = vcmask 257024
  %v1851 = vsel %vm1850, %v1738, 0.0
  %v1852 = vadd.f32 %v1849, %v1851
  %1853 = vadd.xlane.f32.xlu0 %v1852
  %v1854 = vpop.xlane.xlu0 %1853
  %v1855 = vrcp.pop 7200.0
  %v1856 = vmul.f32 %v1854, %v1855
  %v1857 = vsub.f32 %v1682, %v1856
  %v1858 = vsub.f32 %v1683, %v1856
  %v1859 = vsub.f32 %v1684, %v1856
  %v1860 = vsub.f32 %v1685, %v1856
  %v1861 = vsub.f32 %v1686, %v1856
  %v1862 = vsub.f32 %v1687, %v1856
  %v1863 = vsub.f32 %v1688, %v1856
  %v1864 = vsub.f32 %v1689, %v1856
  %v1865 = vsub.f32 %v1690, %v1856
  %v1866 = vsub.f32 %v1691, %v1856
  %v1867 = vsub.f32 %v1692, %v1856
  %v1868 = vsub.f32 %v1693, %v1856
  %v1869 = vsub.f32 %v1694, %v1856
  %v1870 = vsub.f32 %v1695, %v1856
  %v1871 = vsub.f32 %v1696, %v1856
  %v1872 = vsub.f32 %v1697, %v1856
  %v1873 = vsub.f32 %v1698, %v1856
  %v1874 = vsub.f32 %v1699, %v1856
  %v1875 = vsub.f32 %v1700, %v1856
  %v1876 = vsub.f32 %v1701, %v1856
  %v1877 = vsub.f32 %v1702, %v1856
  %v1878 = vsub.f32 %v1703, %v1856
  %v1879 = vsub.f32 %v1704, %v1856
  %v1880 = vsub.f32 %v1705, %v1856
  %v1881 = vsub.f32 %v1706, %v1856
  %v1882 = vsub.f32 %v1707, %v1856
  %v1883 = vsub.f32 %v1708, %v1856
  %v1884 = vsub.f32 %v1709, %v1856
  %v1885 = vsub.f32 %v1710, %v1856
  %v1886 = vsub.f32 %v1711, %v1856
  %v1887 = vsub.f32 %v1712, %v1856
  %v1888 = vsub.f32 %v1713, %v1856
  %v1889 = vsub.f32 %v1714, %v1856
  %v1890 = vsub.f32 %v1715, %v1856
  %v1891 = vsub.f32 %v1716, %v1856
  %v1892 = vsub.f32 %v1717, %v1856
  %v1893 = vsub.f32 %v1718, %v1856
  %v1894 = vsub.f32 %v1719, %v1856
  %v1895 = vsub.f32 %v1720, %v1856
  %v1896 = vsub.f32 %v1721, %v1856
  %v1897 = vsub.f32 %v1722, %v1856
  %v1898 = vsub.f32 %v1723, %v1856
  %v1899 = vsub.f32 %v1724, %v1856
  %v1900 = vsub.f32 %v1725, %v1856
  %v1901 = vsub.f32 %v1726, %v1856
  %v1902 = vsub.f32 %v1727, %v1856
  %v1903 = vsub.f32 %v1728, %v1856
  %v1904 = vsub.f32 %v1729, %v1856
  %v1905 = vsub.f32 %v1730, %v1856
  %v1906 = vsub.f32 %v1731, %v1856
  %v1907 = vsub.f32 %v1732, %v1856
  %v1908 = vsub.f32 %v1733, %v1856
  %v1909 = vsub.f32 %v1734, %v1856
  %v1910 = vsub.f32 %v1735, %v1856
  %v1911 = vsub.f32 %v1736, %v1856
  %v1912 = vsub.f32 %v1737, %v1856
  %v1913 = vsub.f32 %v1738, %v1856
  %v1914 = vmul.f32 %v1857, %v1857
  %v1915 = vmul.f32 %v1858, %v1858
  %v1916 = vmul.f32 %v1859, %v1859
  %v1917 = vmul.f32 %v1860, %v1860
  %v1918 = vmul.f32 %v1861, %v1861
  %v1919 = vmul.f32 %v1862, %v1862
  %v1920 = vmul.f32 %v1863, %v1863
  %v1921 = vmul.f32 %v1864, %v1864
  %v1922 = vmul.f32 %v1865, %v1865
  %v1923 = vmul.f32 %v1866, %v1866
  %v1924 = vmul.f32 %v1867, %v1867
  %v1925 = vmul.f32 %v1868, %v1868
  %v1926 = vmul.f32 %v1869, %v1869
  %v1927 = vmul.f32 %v1870, %v1870
  %v1928 = vmul.f32 %v1871, %v1871
  %v1929 = vmul.f32 %v1872, %v1872
  %v1930 = vmul.f32 %v1873, %v1873
  %v1931 = vmul.f32 %v1874, %v1874
  %v1932 = vmul.f32 %v1875, %v1875
  %v1933 = vmul.f32 %v1876, %v1876
  %v1934 = vmul.f32 %v1877, %v1877
  %v1935 = vmul.f32 %v1878, %v1878
  %v1936 = vmul.f32 %v1879, %v1879
  %v1937 = vmul.f32 %v1880, %v1880
  %v1938 = vmul.f32 %v1881, %v1881
  %v1939 = vmul.f32 %v1882, %v1882
  %v1940 = vmul.f32 %v1883, %v1883
  %v1941 = vmul.f32 %v1884, %v1884
  %v1942 = vmul.f32 %v1885, %v1885
  %v1943 = vmul.f32 %v1886, %v1886
  %v1944 = vmul.f32 %v1887, %v1887
  %v1945 = vmul.f32 %v1888, %v1888
  %v1946 = vmul.f32 %v1889, %v1889
  %v1947 = vmul.f32 %v1890, %v1890
  %v1948 = vmul.f32 %v1891, %v1891
  %v1949 = vmul.f32 %v1892, %v1892
  %v1950 = vmul.f32 %v1893, %v1893
  %v1951 = vmul.f32 %v1894, %v1894
  %v1952 = vmul.f32 %v1895, %v1895
  %v1953 = vmul.f32 %v1896, %v1896
  %v1954 = vmul.f32 %v1897, %v1897
  %v1955 = vmul.f32 %v1898, %v1898
  %v1956 = vmul.f32 %v1899, %v1899
  %v1957 = vmul.f32 %v1900, %v1900
  %v1958 = vmul.f32 %v1901, %v1901
  %v1959 = vmul.f32 %v1902, %v1902
  %v1960 = vmul.f32 %v1903, %v1903
  %v1961 = vmul.f32 %v1904, %v1904
  %v1962 = vmul.f32 %v1905, %v1905
  %v1963 = vmul.f32 %v1906, %v1906
  %v1964 = vmul.f32 %v1907, %v1907
  %v1965 = vmul.f32 %v1908, %v1908
  %v1966 = vmul.f32 %v1909, %v1909
  %v1967 = vmul.f32 %v1910, %v1910
  %v1968 = vmul.f32 %v1911, %v1911
  %v1969 = vmul.f32 %v1912, %v1912
  %v1970 = vmul.f32 %v1913, %v1913
  %v1971 = vsel %vm319, %v1914, 0.0
  %v1972 = vsel %vm319, %v1915, 0.0
  %v1973 = vadd.f32 %v1971, %v1972
  %v1974 = vsel %vm319, %v1916, 0.0
  %v1975 = vadd.f32 %v1973, %v1974
  %v1976 = vsel %vm319, %v1917, 0.0
  %v1977 = vadd.f32 %v1975, %v1976
  %v1978 = vsel %vm319, %v1918, 0.0
  %v1979 = vadd.f32 %v1977, %v1978
  %v1980 = vsel %vm319, %v1919, 0.0
  %v1981 = vadd.f32 %v1979, %v1980
  %v1982 = vsel %vm319, %v1920, 0.0
  %v1983 = vadd.f32 %v1981, %v1982
  %v1984 = vsel %vm319, %v1921, 0.0
  %v1985 = vadd.f32 %v1983, %v1984
  %v1986 = vsel %vm319, %v1922, 0.0
  %v1987 = vadd.f32 %v1985, %v1986
  %v1988 = vsel %vm319, %v1923, 0.0
  %v1989 = vadd.f32 %v1987, %v1988
  %v1990 = vsel %vm319, %v1924, 0.0
  %v1991 = vadd.f32 %v1989, %v1990
  %v1992 = vsel %vm319, %v1925, 0.0
  %v1993 = vadd.f32 %v1991, %v1992
  %v1994 = vsel %vm319, %v1926, 0.0
  %v1995 = vadd.f32 %v1993, %v1994
  %v1996 = vsel %vm319, %v1927, 0.0
  %v1997 = vadd.f32 %v1995, %v1996
  %v1998 = vsel %vm319, %v1928, 0.0
  %v1999 = vadd.f32 %v1997, %v1998
  %v2000 = vsel %vm319, %v1929, 0.0
  %v2001 = vadd.f32 %v1999, %v2000
  %v2002 = vsel %vm319, %v1930, 0.0
  %v2003 = vadd.f32 %v2001, %v2002
  %v2004 = vsel %vm319, %v1931, 0.0
  %v2005 = vadd.f32 %v2003, %v2004
  %v2006 = vsel %vm319, %v1932, 0.0
  %v2007 = vadd.f32 %v2005, %v2006
  %v2008 = vsel %vm319, %v1933, 0.0
  %v2009 = vadd.f32 %v2007, %v2008
  %v2010 = vsel %vm319, %v1934, 0.0
  %v2011 = vadd.f32 %v2009, %v2010
  %v2012 = vsel %vm319, %v1935, 0.0
  %v2013 = vadd.f32 %v2011, %v2012
  %v2014 = vsel %vm319, %v1936, 0.0
  %v2015 = vadd.f32 %v2013, %v2014
  %v2016 = vsel %vm319, %v1937, 0.0
  %v2017 = vadd.f32 %v2015, %v2016
  %v2018 = vsel %vm319, %v1938, 0.0
  %v2019 = vadd.f32 %v2017, %v2018
  %v2020 = vsel %vm319, %v1939, 0.0
  %v2021 = vadd.f32 %v2019, %v2020
  %v2022 = vsel %vm319, %v1940, 0.0
  %v2023 = vadd.f32 %v2021, %v2022
  %v2024 = vsel %vm319, %v1941, 0.0
  %v2025 = vadd.f32 %v2023, %v2024
  %v2026 = vsel %vm319, %v1942, 0.0
  %v2027 = vadd.f32 %v2025, %v2026
  %v2028 = vsel %vm319, %v1943, 0.0
  %v2029 = vadd.f32 %v2027, %v2028
  %v2030 = vsel %vm319, %v1944, 0.0
  %v2031 = vadd.f32 %v2029, %v2030
  %v2032 = vsel %vm319, %v1945, 0.0
  %v2033 = vadd.f32 %v2031, %v2032
  %v2034 = vsel %vm319, %v1946, 0.0
  %v2035 = vadd.f32 %v2033, %v2034
  %v2036 = vsel %vm319, %v1947, 0.0
  %v2037 = vadd.f32 %v2035, %v2036
  %v2038 = vsel %vm319, %v1948, 0.0
  %v2039 = vadd.f32 %v2037, %v2038
  %v2040 = vsel %vm319, %v1949, 0.0
  %v2041 = vadd.f32 %v2039, %v2040
  %v2042 = vsel %vm319, %v1950, 0.0
  %v2043 = vadd.f32 %v2041, %v2042
  %v2044 = vsel %vm319, %v1951, 0.0
  %v2045 = vadd.f32 %v2043, %v2044
  %v2046 = vsel %vm319, %v1952, 0.0
  %v2047 = vadd.f32 %v2045, %v2046
  %v2048 = vsel %vm319, %v1953, 0.0
  %v2049 = vadd.f32 %v2047, %v2048
  %v2050 = vsel %vm319, %v1954, 0.0
  %v2051 = vadd.f32 %v2049, %v2050
  %v2052 = vsel %vm319, %v1955, 0.0
  %v2053 = vadd.f32 %v2051, %v2052
  %v2054 = vsel %vm319, %v1956, 0.0
  %v2055 = vadd.f32 %v2053, %v2054
  %v2056 = vsel %vm319, %v1957, 0.0
  %v2057 = vadd.f32 %v2055, %v2056
  %v2058 = vsel %vm319, %v1958, 0.0
  %v2059 = vadd.f32 %v2057, %v2058
  %v2060 = vsel %vm319, %v1959, 0.0
  %v2061 = vadd.f32 %v2059, %v2060
  %v2062 = vsel %vm319, %v1960, 0.0
  %v2063 = vadd.f32 %v2061, %v2062
  %v2064 = vsel %vm319, %v1961, 0.0
  %v2065 = vadd.f32 %v2063, %v2064
  %v2066 = vsel %vm319, %v1962, 0.0
  %v2067 = vadd.f32 %v2065, %v2066
  %v2068 = vsel %vm319, %v1963, 0.0
  %v2069 = vadd.f32 %v2067, %v2068
  %v2070 = vsel %vm319, %v1964, 0.0
  %v2071 = vadd.f32 %v2069, %v2070
  %v2072 = vsel %vm319, %v1965, 0.0
  %v2073 = vadd.f32 %v2071, %v2072
  %v2074 = vsel %vm319, %v1966, 0.0
  %v2075 = vadd.f32 %v2073, %v2074
  %v2076 = vsel %vm319, %v1967, 0.0
  %v2077 = vadd.f32 %v2075, %v2076
  %v2078 = vsel %vm319, %v1968, 0.0
  %v2079 = vadd.f32 %v2077, %v2078
  %v2080 = vsel %vm319, %v1969, 0.0
  %v2081 = vadd.f32 %v2079, %v2080
  %v2082 = vsel %vm1850, %v1970, 0.0
  %v2083 = vadd.f32 %v2081, %v2082
  %2084 = vadd.xlane.f32.xlu0 %v2083
  %v2085 = vpop.xlane.xlu0 %2084
  %v2086 = vmul.f32 %v2085, %v1855
  %v2087 = vadd.f32 %v2086, 1e-05
  %v2088 = vrsqrt.pop %v2087
  %v2089 = vmul.f32 %v1857, %v2088
  %v2090 = vmul.f32 %v1858, %v2088
  %v2091 = vmul.f32 %v1859, %v2088
  %v2092 = vmul.f32 %v1860, %v2088
  %v2093 = vmul.f32 %v1861, %v2088
  %v2094 = vmul.f32 %v1862, %v2088
  %v2095 = vmul.f32 %v1863, %v2088
  %v2096 = vmul.f32 %v1864, %v2088
  %v2097 = vmul.f32 %v1865, %v2088
  %v2098 = vmul.f32 %v1866, %v2088
  %v2099 = vmul.f32 %v1867, %v2088
  %v2100 = vmul.f32 %v1868, %v2088
  %v2101 = vmul.f32 %v1869, %v2088
  %v2102 = vmul.f32 %v1870, %v2088
  %v2103 = vmul.f32 %v1871, %v2088
  %v2104 = vmul.f32 %v1872, %v2088
  %v2105 = vmul.f32 %v1873, %v2088
  %v2106 = vmul.f32 %v1874, %v2088
  %v2107 = vmul.f32 %v1875, %v2088
  %v2108 = vmul.f32 %v1876, %v2088
  %v2109 = vmul.f32 %v1877, %v2088
  %v2110 = vmul.f32 %v1878, %v2088
  %v2111 = vmul.f32 %v1879, %v2088
  %v2112 = vmul.f32 %v1880, %v2088
  %v2113 = vmul.f32 %v1881, %v2088
  %v2114 = vmul.f32 %v1882, %v2088
  %v2115 = vmul.f32 %v1883, %v2088
  %v2116 = vmul.f32 %v1884, %v2088
  %v2117 = vmul.f32 %v1885, %v2088
  %v2118 = vmul.f32 %v1886, %v2088
  %v2119 = vmul.f32 %v1887, %v2088
  %v2120 = vmul.f32 %v1888, %v2088
  %v2121 = vmul.f32 %v1889, %v2088
  %v2122 = vmul.f32 %v1890, %v2088
  %v2123 = vmul.f32 %v1891, %v2088
  %v2124 = vmul.f32 %v1892, %v2088
  %v2125 = vmul.f32 %v1893, %v2088
  %v2126 = vmul.f32 %v1894, %v2088
  %v2127 = vmul.f32 %v1895, %v2088
  %v2128 = vmul.f32 %v1896, %v2088
  %v2129 = vmul.f32 %v1897, %v2088
  %v2130 = vmul.f32 %v1898, %v2088
  %v2131 = vmul.f32 %v1899, %v2088
  %v2132 = vmul.f32 %v1900, %v2088
  %v2133 = vmul.f32 %v1901, %v2088
  %v2134 = vmul.f32 %v1902, %v2088
  %v2135 = vmul.f32 %v1903, %v2088
  %v2136 = vmul.f32 %v1904, %v2088
  %v2137 = vmul.f32 %v1905, %v2088
  %v2138 = vmul.f32 %v1906, %v2088
  %v2139 = vmul.f32 %v1907, %v2088
  %v2140 = vmul.f32 %v1908, %v2088
  %v2141 = vmul.f32 %v1909, %v2088
  %v2142 = vmul.f32 %v1910, %v2088
  %v2143 = vmul.f32 %v1911, %v2088
  %v2144 = vmul.f32 %v1912, %v2088
  %v2145 = vmul.f32 %v1913, %v2088
  %v2146 = vld [vmem:[%s3] sm:$0xf]
  %2148 = vset.pattern.permute.xlu0 0
  %2149 = vperm.xlu0 %2148, %v2146
  %v2150 = vpop.permute.xlu0 %2149
  %v2152 = vmul.f32 %v2089, %v2150
  %v2153 = vmul.f32 %v2090, %v2150
  %v2154 = vmul.f32 %v2091, %v2150
  %v2155 = vmul.f32 %v2092, %v2150
  %v2156 = vmul.f32 %v2093, %v2150
  %v2157 = vmul.f32 %v2094, %v2150
  %v2158 = vmul.f32 %v2095, %v2150
  %v2159 = vmul.f32 %v2096, %v2150
  %v2160 = vmul.f32 %v2097, %v2150
  %v2161 = vmul.f32 %v2098, %v2150
  %v2162 = vmul.f32 %v2099, %v2150
  %v2163 = vmul.f32 %v2100, %v2150
  %v2164 = vmul.f32 %v2101, %v2150
  %v2165 = vmul.f32 %v2102, %v2150
  %v2166 = vmul.f32 %v2103, %v2150
  %v2167 = vmul.f32 %v2104, %v2150
  %v2168 = vmul.f32 %v2105, %v2150
  %v2169 = vmul.f32 %v2106, %v2150
  %v2170 = vmul.f32 %v2107, %v2150
  %v2171 = vmul.f32 %v2108, %v2150
  %v2172 = vmul.f32 %v2109, %v2150
  %v2173 = vmul.f32 %v2110, %v2150
  %v2174 = vmul.f32 %v2111, %v2150
  %v2175 = vmul.f32 %v2112, %v2150
  %v2176 = vmul.f32 %v2113, %v2150
  %v2177 = vmul.f32 %v2114, %v2150
  %v2178 = vmul.f32 %v2115, %v2150
  %v2179 = vmul.f32 %v2116, %v2150
  %v2180 = vmul.f32 %v2117, %v2150
  %v2181 = vmul.f32 %v2118, %v2150
  %v2182 = vmul.f32 %v2119, %v2150
  %v2183 = vmul.f32 %v2120, %v2150
  %v2184 = vmul.f32 %v2121, %v2150
  %v2185 = vmul.f32 %v2122, %v2150
  %v2186 = vmul.f32 %v2123, %v2150
  %v2187 = vmul.f32 %v2124, %v2150
  %v2188 = vmul.f32 %v2125, %v2150
  %v2189 = vmul.f32 %v2126, %v2150
  %v2190 = vmul.f32 %v2127, %v2150
  %v2191 = vmul.f32 %v2128, %v2150
  %v2192 = vmul.f32 %v2129, %v2150
  %v2193 = vmul.f32 %v2130, %v2150
  %v2194 = vmul.f32 %v2131, %v2150
  %v2195 = vmul.f32 %v2132, %v2150
  %v2196 = vmul.f32 %v2133, %v2150
  %v2197 = vmul.f32 %v2134, %v2150
  %v2198 = vmul.f32 %v2135, %v2150
  %v2199 = vmul.f32 %v2136, %v2150
  %v2200 = vmul.f32 %v2137, %v2150
  %v2201 = vmul.f32 %v2138, %v2150
  %v2202 = vmul.f32 %v2139, %v2150
  %v2203 = vmul.f32 %v2140, %v2150
  %v2204 = vmul.f32 %v2141, %v2150
  %v2205 = vmul.f32 %v2142, %v2150
  %v2206 = vmul.f32 %v2143, %v2150
  %v2207 = vmul.f32 %v2144, %v2150
  %v2208 = vmul.f32 %v2145, %v2150
  %v2209 = vld [vmem:[%s4] sm:$0xf]
  %2211 = vset.pattern.permute.xlu0 0
  %2212 = vperm.xlu0 %2211, %v2209
  %v2213 = vpop.permute.xlu0 %2212
  %v2215 = vadd.f32 %v2152, %v2213
  %v2216 = vadd.f32 %v2153, %v2213
  %v2217 = vadd.f32 %v2154, %v2213
  %v2218 = vadd.f32 %v2155, %v2213
  %v2219 = vadd.f32 %v2156, %v2213
  %v2220 = vadd.f32 %v2157, %v2213
  %v2221 = vadd.f32 %v2158, %v2213
  %v2222 = vadd.f32 %v2159, %v2213
  %v2223 = vadd.f32 %v2160, %v2213
  %v2224 = vadd.f32 %v2161, %v2213
  %v2225 = vadd.f32 %v2162, %v2213
  %v2226 = vadd.f32 %v2163, %v2213
  %v2227 = vadd.f32 %v2164, %v2213
  %v2228 = vadd.f32 %v2165, %v2213
  %v2229 = vadd.f32 %v2166, %v2213
  %v2230 = vadd.f32 %v2167, %v2213
  %v2231 = vadd.f32 %v2168, %v2213
  %v2232 = vadd.f32 %v2169, %v2213
  %v2233 = vadd.f32 %v2170, %v2213
  %v2234 = vadd.f32 %v2171, %v2213
  %v2235 = vadd.f32 %v2172, %v2213
  %v2236 = vadd.f32 %v2173, %v2213
  %v2237 = vadd.f32 %v2174, %v2213
  %v2238 = vadd.f32 %v2175, %v2213
  %v2239 = vadd.f32 %v2176, %v2213
  %v2240 = vadd.f32 %v2177, %v2213
  %v2241 = vadd.f32 %v2178, %v2213
  %v2242 = vadd.f32 %v2179, %v2213
  %v2243 = vadd.f32 %v2180, %v2213
  %v2244 = vadd.f32 %v2181, %v2213
  %v2245 = vadd.f32 %v2182, %v2213
  %v2246 = vadd.f32 %v2183, %v2213
  %v2247 = vadd.f32 %v2184, %v2213
  %v2248 = vadd.f32 %v2185, %v2213
  %v2249 = vadd.f32 %v2186, %v2213
  %v2250 = vadd.f32 %v2187, %v2213
  %v2251 = vadd.f32 %v2188, %v2213
  %v2252 = vadd.f32 %v2189, %v2213
  %v2253 = vadd.f32 %v2190, %v2213
  %v2254 = vadd.f32 %v2191, %v2213
  %v2255 = vadd.f32 %v2192, %v2213
  %v2256 = vadd.f32 %v2193, %v2213
  %v2257 = vadd.f32 %v2194, %v2213
  %v2258 = vadd.f32 %v2195, %v2213
  %v2259 = vadd.f32 %v2196, %v2213
  %v2260 = vadd.f32 %v2197, %v2213
  %v2261 = vadd.f32 %v2198, %v2213
  %v2262 = vadd.f32 %v2199, %v2213
  %v2263 = vadd.f32 %v2200, %v2213
  %v2264 = vadd.f32 %v2201, %v2213
  %v2265 = vadd.f32 %v2202, %v2213
  %v2266 = vadd.f32 %v2203, %v2213
  %v2267 = vadd.f32 %v2204, %v2213
  %v2268 = vadd.f32 %v2205, %v2213
  %v2269 = vadd.f32 %v2206, %v2213
  %v2270 = vadd.f32 %v2207, %v2213
  %v2271 = vadd.f32 %v2208, %v2213
  %v2328 = vcombine.low %v2215, %v2216
  %v2329 = vcombine.low %v2217, %v2218
  %v2330 = vcombine.low %v2219, %v2220
  %v2331 = vcombine.low %v2221, %v2222
  %v2332 = vcombine.low %v2223, %v2224
  %v2333 = vcombine.low %v2225, %v2226
  %v2334 = vcombine.low %v2227, %v2228
  %v2335 = vcombine.low %v2229, %v2230
  %v2336 = vcombine.low %v2231, %v2232
  %v2337 = vcombine.low %v2233, %v2234
  %v2338 = vcombine.low %v2235, %v2236
  %v2339 = vcombine.low %v2237, %v2238
  %v2340 = vcombine.low %v2239, %v2240
  %v2341 = vcombine.low %v2241, %v2242
  %v2342 = vcombine.low %v2243, %v2244
  %v2343 = vcombine.low %v2245, %v2246
  %v2344 = vcombine.low %v2247, %v2248
  %v2345 = vcombine.low %v2249, %v2250
  %v2346 = vcombine.low %v2251, %v2252
  %v2347 = vcombine.low %v2253, %v2254
  %v2348 = vcombine.low %v2255, %v2256
  %v2349 = vcombine.low %v2257, %v2258
  %v2350 = vcombine.low %v2259, %v2260
  %v2351 = vcombine.low %v2261, %v2262
  %v2352 = vcombine.low %v2263, %v2264
  %v2353 = vcombine.low %v2265, %v2266
  %v2354 = vcombine.low %v2267, %v2268
  %v2355 = vcombine.low %v2269, %v2270
  %2384 = vst [vmem:[%s5] sm:$0xff] %v2328
  %2385 = vst [vmem:[%s5 + $0x8] sm:$0xff] %v2329
  %2386 = vst [vmem:[%s5 + $0x10] sm:$0xff] %v2330
  %2387 = vst [vmem:[%s5 + $0x18] sm:$0xff] %v2331
  %2388 = vst [vmem:[%s5 + $0x20] sm:$0xff] %v2332
  %2389 = vst [vmem:[%s5 + $0x28] sm:$0xff] %v2333
  %2390 = vst [vmem:[%s5 + $0x30] sm:$0xff] %v2334
  %2391 = vst [vmem:[%s5 + $0x38] sm:$0xff] %v2335
  %2392 = vst [vmem:[%s5 + $0x40] sm:$0xff] %v2336
  %2393 = vst [vmem:[%s5 + $0x48] sm:$0xff] %v2337
  %2394 = vst [vmem:[%s5 + $0x50] sm:$0xff] %v2338
  %2395 = vst [vmem:[%s5 + $0x58] sm:$0xff] %v2339
  %2396 = vst [vmem:[%s5 + $0x60] sm:$0xff] %v2340
  %2397 = vst [vmem:[%s5 + $0x68] sm:$0xff] %v2341
  %2398 = vst [vmem:[%s5 + $0x70] sm:$0xff] %v2342
  %2399 = vst [vmem:[%s5 + $0x78] sm:$0xff] %v2343
  %2400 = vst [vmem:[%s5 + $0x80] sm:$0xff] %v2344
  %2401 = vst [vmem:[%s5 + $0x88] sm:$0xff] %v2345
  %2402 = vst [vmem:[%s5 + $0x90] sm:$0xff] %v2346
  %2403 = vst [vmem:[%s5 + $0x98] sm:$0xff] %v2347
  %2404 = vst [vmem:[%s5 + $0xa0] sm:$0xff] %v2348
  %2405 = vst [vmem:[%s5 + $0xa8] sm:$0xff] %v2349
  %2406 = vst [vmem:[%s5 + $0xb0] sm:$0xff] %v2350
  %2407 = vst [vmem:[%s5 + $0xb8] sm:$0xff] %v2351
  %2408 = vst [vmem:[%s5 + $0xc0] sm:$0xff] %v2352
  %2409 = vst [vmem:[%s5 + $0xc8] sm:$0xff] %v2353
  %2410 = vst [vmem:[%s5 + $0xd0] sm:$0xff] %v2354
  %2411 = vst [vmem:[%s5 + $0xd8] sm:$0xff] %v2355
  %2412 = vst.msk [vmem:[%s5 + $0xe0] sm:$0xf] %vm1850, %v2271
  // Predicated region
  $region22: #{forward.19} parent=0 // pred_check
    _
  $region23: #{forward.19} parent=0 // pred_check_branch
    %2414 = sbr.rel (0) target = $region25
  $region24: #{forward.19} parent=0 // pred_region
    _
  $region25: #{forward.19} parent=0 // pred_fallthru
    _
  // Predicated region
  $region26: #{forward.19} parent=0 // pred_check
    _
  $region27: #{forward.19} parent=0 // pred_check_branch
    %2416 = sbr.rel (0) target = $region29
  $region28: #{forward.19} parent=0 // pred_region
    _
  $region29: #{forward.19} parent=0 // pred_fallthru
    _

// kernel: forward.20
$region0: #{forward.20}
  #allocation0 [shape = 'u32[]', space=smem, size = 0x4, offset = 0x4, fixed_abs, tag = 'smem constant byte address 0x4 - core index']
  #allocation1 [shape = 'u32[144,128]{1,0:T(1,128)}', space=vmem, size = 0x12000, scoped, tag = 'internal scratch']
  %s0 = inlined_call_operand.vmem [shape: bf16[4,36], index: 0, kind: input, shape index: {}]
  %s1 = inlined_call_operand.vmem [shape: bf16[36,7200], index: 1, kind: input, shape index: {}]
  %s2 = inlined_call_operand.vmem [shape: f32[4,1], index: 2, kind: input, shape index: {}]
  %s3 = inlined_call_operand.vmem [shape: f32[4,7200], index: 3, kind: output, shape index: {}]
  %s4 = sld [smem:[#allocation0]]
  $region22: #{forward.20} parent=0
    _
  %s6 = ssub.s32 1, %s4
  %s7 = scalar_select 0, %s6, %s4
  // Predicated region
  $region2: #{forward.20} parent=0 // pred_check
    _
  $region3: #{forward.20} parent=0 // pred_check_branch
    %9 = sbr.rel (0) target = $region5
  $region4: #{forward.20} parent=0 // pred_region
    _
  $region5: #{forward.20} parent=0 // pred_fallthru
    _
  // Predicated region
  $region6: #{forward.20} parent=0 // pred_check
    _
  $region7: #{forward.20} parent=0 // pred_check_branch
    %11 = sbr.rel (0) target = $region9
  $region8: #{forward.20} parent=0 // pred_region
    _
  $region9: #{forward.20} parent=0 // pred_fallthru
    _
  // Predicated region
  $region10: #{forward.20} parent=0 // pred_check
    _
  $region11: #{forward.20} parent=0 // pred_check_branch
    %13 = sbr.rel (0) target = $region13
  $region12: #{forward.20} parent=0 // pred_region
    _
  $region13: #{forward.20} parent=0 // pred_fallthru
    _
  %v15 = vld [vmem:[%s0] sm:$0x3]
  %v16 = vld [vmem:[%s1] sm:$0xff]
  %v17 = vld [vmem:[%s1 + $0x8] sm:$0xff]
  %v18 = vld [vmem:[%s1 + $0x10] sm:$0xff]
  %v19 = vld [vmem:[%s1 + $0x18] sm:$0xff]
  %v20 = vld [vmem:[%s1 + $0x20] sm:$0xff]
  %v21 = vld [vmem:[%s1 + $0x28] sm:$0xff]
  %v22 = vld [vmem:[%s1 + $0x30] sm:$0xff]
  %v23 = vld [vmem:[%s1 + $0x38] sm:$0xff]
  %v24 = vld [vmem:[%s1 + $0x40] sm:$0xff]
  %v25 = vld [vmem:[%s1 + $0x48] sm:$0xff]
  %v26 = vld [vmem:[%s1 + $0x50] sm:$0xff]
  %v27 = vld [vmem:[%s1 + $0x58] sm:$0xff]
  %v28 = vld [vmem:[%s1 + $0x60] sm:$0xff]
  %v29 = vld [vmem:[%s1 + $0x68] sm:$0xff]
  %v30 = vld [vmem:[%s1 + $0x70] sm:$0xff]
  %v31 = vld [vmem:[%s1 + $0x78] sm:$0xff]
  %v32 = vld [vmem:[%s1 + $0x80] sm:$0xff]
  %v33 = vld [vmem:[%s1 + $0x88] sm:$0xff]
  %v34 = vld [vmem:[%s1 + $0x90] sm:$0xff]
  %v35 = vld [vmem:[%s1 + $0x98] sm:$0xff]
  %v36 = vld [vmem:[%s1 + $0xa0] sm:$0xff]
  %v37 = vld [vmem:[%s1 + $0xa8] sm:$0xff]
  %v38 = vld [vmem:[%s1 + $0xb0] sm:$0xff]
  %v39 = vld [vmem:[%s1 + $0xb8] sm:$0xff]
  %v40 = vld [vmem:[%s1 + $0xc0] sm:$0xff]
  %v41 = vld [vmem:[%s1 + $0xc8] sm:$0xff]
  %v42 = vld [vmem:[%s1 + $0xd0] sm:$0xff]
  %v43 = vld [vmem:[%s1 + $0xd8] sm:$0xff]
  %v44 = vld [vmem:[%s1 + $0xe0] sm:$0xf]
  %v45 = vld [vmem:[%s1 + $0xe4] sm:$0xff]
  %v46 = vld [vmem:[%s1 + $0xec] sm:$0xff]
  %v47 = vld [vmem:[%s1 + $0xf4] sm:$0xff]
  %v48 = vld [vmem:[%s1 + $0xfc] sm:$0xff]
  %v49 = vld [vmem:[%s1 + $0x104] sm:$0xff]
  %v50 = vld [vmem:[%s1 + $0x10c] sm:$0xff]
  %v51 = vld [vmem:[%s1 + $0x114] sm:$0xff]
  %v52 = vld [vmem:[%s1 + $0x11c] sm:$0xff]
  %v53 = vld [vmem:[%s1 + $0x124] sm:$0xff]
  %v54 = vld [vmem:[%s1 + $0x12c] sm:$0xff]
  %v55 = vld [vmem:[%s1 + $0x134] sm:$0xff]
  %v56 = vld [vmem:[%s1 + $0x13c] sm:$0xff]
  %v57 = vld [vmem:[%s1 + $0x144] sm:$0xff]
  %v58 = vld [vmem:[%s1 + $0x14c] sm:$0xff]
  %v59 = vld [vmem:[%s1 + $0x154] sm:$0xff]
  %v60 = vld [vmem:[%s1 + $0x15c] sm:$0xff]
  %v61 = vld [vmem:[%s1 + $0x164] sm:$0xff]
  %v62 = vld [vmem:[%s1 + $0x16c] sm:$0xff]
  %v63 = vld [vmem:[%s1 + $0x174] sm:$0xff]
  %v64 = vld [vmem:[%s1 + $0x17c] sm:$0xff]
  %v65 = vld [vmem:[%s1 + $0x184] sm:$0xff]
  %v66 = vld [vmem:[%s1 + $0x18c] sm:$0xff]
  %v67 = vld [vmem:[%s1 + $0x194] sm:$0xff]
  %v68 = vld [vmem:[%s1 + $0x19c] sm:$0xff]
  %v69 = vld [vmem:[%s1 + $0x1a4] sm:$0xff]
  %v70 = vld [vmem:[%s1 + $0x1ac] sm:$0xff]
  %v71 = vld [vmem:[%s1 + $0x1b4] sm:$0xff]
  %v72 = vld [vmem:[%s1 + $0x1bc] sm:$0xff]
  %v73 = vld [vmem:[%s1 + $0x1c4] sm:$0xf]
  %v74 = vld [vmem:[%s1 + $0x1c8] sm:$0xff]
  %v75 = vld [vmem:[%s1 + $0x1d0] sm:$0xff]
  %v76 = vld [vmem:[%s1 + $0x1d8] sm:$0xff]
  %v77 = vld [vmem:[%s1 + $0x1e0] sm:$0xff]
  %v78 = vld [vmem:[%s1 + $0x1e8] sm:$0xff]
  %v79 = vld [vmem:[%s1 + $0x1f0] sm:$0xff]
  %v80 = vld [vmem:[%s1 + $0x1f8] sm:$0xff]
  %v81 = vld [vmem:[%s1 + $0x200] sm:$0xff]
  %v82 = vld [vmem:[%s1 + $0x208] sm:$0xff]
  %v83 = vld [vmem:[%s1 + $0x210] sm:$0xff]
  %v84 = vld [vmem:[%s1 + $0x218] sm:$0xff]
  %v85 = vld [vmem:[%s1 + $0x220] sm:$0xff]
  %v86 = vld [vmem:[%s1 + $0x228] sm:$0xff]
  %v87 = vld [vmem:[%s1 + $0x230] sm:$0xff]
  %v88 = vld [vmem:[%s1 + $0x238] sm:$0xff]
  %v89 = vld [vmem:[%s1 + $0x240] sm:$0xff]
  %v90 = vld [vmem:[%s1 + $0x248] sm:$0xff]
  %v91 = vld [vmem:[%s1 + $0x250] sm:$0xff]
  %v92 = vld [vmem:[%s1 + $0x258] sm:$0xff]
  %v93 = vld [vmem:[%s1 + $0x260] sm:$0xff]
  %v94 = vld [vmem:[%s1 + $0x268] sm:$0xff]
  %v95 = vld [vmem:[%s1 + $0x270] sm:$0xff]
  %v96 = vld [vmem:[%s1 + $0x278] sm:$0xff]
  %v97 = vld [vmem:[%s1 + $0x280] sm:$0xff]
  %v98 = vld [vmem:[%s1 + $0x288] sm:$0xff]
  %v99 = vld [vmem:[%s1 + $0x290] sm:$0xff]
  %v100 = vld [vmem:[%s1 + $0x298] sm:$0xff]
  %v101 = vld [vmem:[%s1 + $0x2a0] sm:$0xff]
  %v102 = vld [vmem:[%s1 + $0x2a8] sm:$0xf]
  %v103 = vld [vmem:[%s1 + $0x2ac] sm:$0xff]
  %v104 = vld [vmem:[%s1 + $0x2b4] sm:$0xff]
  %v105 = vld [vmem:[%s1 + $0x2bc] sm:$0xff]
  %v106 = vld [vmem:[%s1 + $0x2c4] sm:$0xff]
  %v107 = vld [vmem:[%s1 + $0x2cc] sm:$0xff]
  %v108 = vld [vmem:[%s1 + $0x2d4] sm:$0xff]
  %v109 = vld [vmem:[%s1 + $0x2dc] sm:$0xff]
  %v110 = vld [vmem:[%s1 + $0x2e4] sm:$0xff]
  %v111 = vld [vmem:[%s1 + $0x2ec] sm:$0xff]
  %v112 = vld [vmem:[%s1 + $0x2f4] sm:$0xff]
  %v113 = vld [vmem:[%s1 + $0x2fc] sm:$0xff]
  %v114 = vld [vmem:[%s1 + $0x304] sm:$0xff]
  %v115 = vld [vmem:[%s1 + $0x30c] sm:$0xff]
  %v116 = vld [vmem:[%s1 + $0x314] sm:$0xff]
  %v117 = vld [vmem:[%s1 + $0x31c] sm:$0xff]
  %v118 = vld [vmem:[%s1 + $0x324] sm:$0xff]
  %v119 = vld [vmem:[%s1 + $0x32c] sm:$0xff]
  %v120 = vld [vmem:[%s1 + $0x334] sm:$0xff]
  %v121 = vld [vmem:[%s1 + $0x33c] sm:$0xff]
  %v122 = vld [vmem:[%s1 + $0x344] sm:$0xff]
  %v123 = vld [vmem:[%s1 + $0x34c] sm:$0xff]
  %v124 = vld [vmem:[%s1 + $0x354] sm:$0xff]
  %v125 = vld [vmem:[%s1 + $0x35c] sm:$0xff]
  %v126 = vld [vmem:[%s1 + $0x364] sm:$0xff]
  %v127 = vld [vmem:[%s1 + $0x36c] sm:$0xff]
  %v128 = vld [vmem:[%s1 + $0x374] sm:$0xff]
  %v129 = vld [vmem:[%s1 + $0x37c] sm:$0xff]
  %v130 = vld [vmem:[%s1 + $0x384] sm:$0xff]
  %v131 = vld [vmem:[%s1 + $0x38c] sm:$0xf]
  %v132 = vld [vmem:[%s1 + $0x390] sm:$0x33]
  %v133 = vld [vmem:[%s1 + $0x398] sm:$0x33]
  %v134 = vld [vmem:[%s1 + $0x3a0] sm:$0x33]
  %v135 = vld [vmem:[%s1 + $0x3a8] sm:$0x33]
  %v136 = vld [vmem:[%s1 + $0x3b0] sm:$0x33]
  %v137 = vld [vmem:[%s1 + $0x3b8] sm:$0x33]
  %v138 = vld [vmem:[%s1 + $0x3c0] sm:$0x33]
  %v139 = vld [vmem:[%s1 + $0x3c8] sm:$0x33]
  %v140 = vld [vmem:[%s1 + $0x3d0] sm:$0x33]
  %v141 = vld [vmem:[%s1 + $0x3d8] sm:$0x33]
  %v142 = vld [vmem:[%s1 + $0x3e0] sm:$0x33]
  %v143 = vld [vmem:[%s1 + $0x3e8] sm:$0x33]
  %v144 = vld [vmem:[%s1 + $0x3f0] sm:$0x33]
  %v145 = vld [vmem:[%s1 + $0x3f8] sm:$0x33]
  %v146 = vld [vmem:[%s1 + $0x400] sm:$0x33]
  %v147 = vld [vmem:[%s1 + $0x408] sm:$0x33]
  %v148 = vld [vmem:[%s1 + $0x410] sm:$0x33]
  %v149 = vld [vmem:[%s1 + $0x418] sm:$0x33]
  %v150 = vld [vmem:[%s1 + $0x420] sm:$0x33]
  %v151 = vld [vmem:[%s1 + $0x428] sm:$0x33]
  %v152 = vld [vmem:[%s1 + $0x430] sm:$0x33]
  %v153 = vld [vmem:[%s1 + $0x438] sm:$0x33]
  %v154 = vld [vmem:[%s1 + $0x440] sm:$0x33]
  %v155 = vld [vmem:[%s1 + $0x448] sm:$0x33]
  %v156 = vld [vmem:[%s1 + $0x450] sm:$0x33]
  %v157 = vld [vmem:[%s1 + $0x458] sm:$0x33]
  %v158 = vld [vmem:[%s1 + $0x460] sm:$0x33]
  %v159 = vld [vmem:[%s1 + $0x468] sm:$0x33]
  %v160 = vld [vmem:[%s1 + $0x470] sm:$0x3]
  %v161 = vld [vmem:[%s2] sm:$0xf]
  %163 = vset.pattern.permute.xlu0 0
  %164 = vperm.xlu0 %163, %v161
  %v165 = vpop.permute.xlu0 %164
  %v312 = vunpack.c.l.b16 %v16
  %v313 = vunpack.c.h.b16 %v16
  %v314 = vunpack.c.l.b16 %v17
  %v315 = vunpack.c.h.b16 %v17
  %v316 = vunpack.c.l.b16 %v18
  %v317 = vunpack.c.h.b16 %v18
  %v318 = vunpack.c.l.b16 %v19
  %v319 = vunpack.c.h.b16 %v19
  %v320 = vunpack.c.l.b16 %v20
  %v321 = vunpack.c.h.b16 %v20
  %v322 = vunpack.c.l.b16 %v21
  %v323 = vunpack.c.h.b16 %v21
  %v324 = vunpack.c.l.b16 %v22
  %v325 = vunpack.c.h.b16 %v22
  %v326 = vunpack.c.l.b16 %v23
  %v327 = vunpack.c.h.b16 %v23
  %v328 = vunpack.c.l.b16 %v24
  %v329 = vunpack.c.h.b16 %v24
  %v330 = vunpack.c.l.b16 %v25
  %v331 = vunpack.c.h.b16 %v25
  %v332 = vunpack.c.l.b16 %v26
  %v333 = vunpack.c.h.b16 %v26
  %v334 = vunpack.c.l.b16 %v27
  %v335 = vunpack.c.h.b16 %v27
  %v336 = vunpack.c.l.b16 %v28
  %v337 = vunpack.c.h.b16 %v28
  %v338 = vunpack.c.l.b16 %v29
  %v339 = vunpack.c.h.b16 %v29
  %v340 = vunpack.c.l.b16 %v30
  %v341 = vunpack.c.h.b16 %v30
  %v342 = vunpack.c.l.b16 %v31
  %v343 = vunpack.c.h.b16 %v31
  %v344 = vunpack.c.l.b16 %v32
  %v345 = vunpack.c.h.b16 %v32
  %v346 = vunpack.c.l.b16 %v33
  %v347 = vunpack.c.h.b16 %v33
  %v348 = vunpack.c.l.b16 %v34
  %v349 = vunpack.c.h.b16 %v34
  %v350 = vunpack.c.l.b16 %v35
  %v351 = vunpack.c.h.b16 %v35
  %v352 = vunpack.c.l.b16 %v36
  %v353 = vunpack.c.h.b16 %v36
  %v354 = vunpack.c.l.b16 %v37
  %v355 = vunpack.c.h.b16 %v37
  %v356 = vunpack.c.l.b16 %v38
  %v357 = vunpack.c.h.b16 %v38
  %v358 = vunpack.c.l.b16 %v39
  %v359 = vunpack.c.h.b16 %v39
  %v360 = vunpack.c.l.b16 %v40
  %v361 = vunpack.c.h.b16 %v40
  %v362 = vunpack.c.l.b16 %v41
  %v363 = vunpack.c.h.b16 %v41
  %v364 = vunpack.c.l.b16 %v42
  %v365 = vunpack.c.h.b16 %v42
  %v366 = vunpack.c.l.b16 %v43
  %v367 = vunpack.c.h.b16 %v43
  %v368 = vunpack.c.l.b16 %v44
  %v369 = vunpack.c.l.b16 %v45
  %v370 = vunpack.c.h.b16 %v45
  %v371 = vunpack.c.l.b16 %v46
  %v372 = vunpack.c.h.b16 %v46
  %v373 = vunpack.c.l.b16 %v47
  %v374 = vunpack.c.h.b16 %v47
  %v375 = vunpack.c.l.b16 %v48
  %v376 = vunpack.c.h.b16 %v48
  %v377 = vunpack.c.l.b16 %v49
  %v378 = vunpack.c.h.b16 %v49
  %v379 = vunpack.c.l.b16 %v50
  %v380 = vunpack.c.h.b16 %v50
  %v381 = vunpack.c.l.b16 %v51
  %v382 = vunpack.c.h.b16 %v51
  %v383 = vunpack.c.l.b16 %v52
  %v384 = vunpack.c.h.b16 %v52
  %v385 = vunpack.c.l.b16 %v53
  %v386 = vunpack.c.h.b16 %v53
  %v387 = vunpack.c.l.b16 %v54
  %v388 = vunpack.c.h.b16 %v54
  %v389 = vunpack.c.l.b16 %v55
  %v390 = vunpack.c.h.b16 %v55
  %v391 = vunpack.c.l.b16 %v56
  %v392 = vunpack.c.h.b16 %v56
  %v393 = vunpack.c.l.b16 %v57
  %v394 = vunpack.c.h.b16 %v57
  %v395 = vunpack.c.l.b16 %v58
  %v396 = vunpack.c.h.b16 %v58
  %v397 = vunpack.c.l.b16 %v59
  %v398 = vunpack.c.h.b16 %v59
  %v399 = vunpack.c.l.b16 %v60
  %v400 = vunpack.c.h.b16 %v60
  %v401 = vunpack.c.l.b16 %v61
  %v402 = vunpack.c.h.b16 %v61
  %v403 = vunpack.c.l.b16 %v62
  %v404 = vunpack.c.h.b16 %v62
  %v405 = vunpack.c.l.b16 %v63
  %v406 = vunpack.c.h.b16 %v63
  %v407 = vunpack.c.l.b16 %v64
  %v408 = vunpack.c.h.b16 %v64
  %v409 = vunpack.c.l.b16 %v65
  %v410 = vunpack.c.h.b16 %v65
  %v411 = vunpack.c.l.b16 %v66
  %v412 = vunpack.c.h.b16 %v66
  %v413 = vunpack.c.l.b16 %v67
  %v414 = vunpack.c.h.b16 %v67
  %v415 = vunpack.c.l.b16 %v68
  %v416 = vunpack.c.h.b16 %v68
  %v417 = vunpack.c.l.b16 %v69
  %v418 = vunpack.c.h.b16 %v69
  %v419 = vunpack.c.l.b16 %v70
  %v420 = vunpack.c.h.b16 %v70
  %v421 = vunpack.c.l.b16 %v71
  %v422 = vunpack.c.h.b16 %v71
  %v423 = vunpack.c.l.b16 %v72
  %v424 = vunpack.c.h.b16 %v72
  %v425 = vunpack.c.l.b16 %v73
  %v426 = vunpack.c.l.b16 %v74
  %v427 = vunpack.c.h.b16 %v74
  %v428 = vunpack.c.l.b16 %v75
  %v429 = vunpack.c.h.b16 %v75
  %v430 = vunpack.c.l.b16 %v76
  %v431 = vunpack.c.h.b16 %v76
  %v432 = vunpack.c.l.b16 %v77
  %v433 = vunpack.c.h.b16 %v77
  %v434 = vunpack.c.l.b16 %v78
  %v435 = vunpack.c.h.b16 %v78
  %v436 = vunpack.c.l.b16 %v79
  %v437 = vunpack.c.h.b16 %v79
  %v438 = vunpack.c.l.b16 %v80
  %v439 = vunpack.c.h.b16 %v80
  %v440 = vunpack.c.l.b16 %v81
  %v441 = vunpack.c.h.b16 %v81
  %v442 = vunpack.c.l.b16 %v82
  %v443 = vunpack.c.h.b16 %v82
  %v444 = vunpack.c.l.b16 %v83
  %v445 = vunpack.c.h.b16 %v83
  %v446 = vunpack.c.l.b16 %v84
  %v447 = vunpack.c.h.b16 %v84
  %v448 = vunpack.c.l.b16 %v85
  %v449 = vunpack.c.h.b16 %v85
  %v450 = vunpack.c.l.b16 %v86
  %v451 = vunpack.c.h.b16 %v86
  %v452 = vunpack.c.l.b16 %v87
  %v453 = vunpack.c.h.b16 %v87
  %v454 = vunpack.c.l.b16 %v88
  %v455 = vunpack.c.h.b16 %v88
  %v456 = vunpack.c.l.b16 %v89
  %v457 = vunpack.c.h.b16 %v89
  %v458 = vunpack.c.l.b16 %v90
  %v459 = vunpack.c.h.b16 %v90
  %v460 = vunpack.c.l.b16 %v91
  %v461 = vunpack.c.h.b16 %v91
  %v462 = vunpack.c.l.b16 %v92
  %v463 = vunpack.c.h.b16 %v92
  %v464 = vunpack.c.l.b16 %v93
  %v465 = vunpack.c.h.b16 %v93
  %v466 = vunpack.c.l.b16 %v94
  %v467 = vunpack.c.h.b16 %v94
  %v468 = vunpack.c.l.b16 %v95
  %v469 = vunpack.c.h.b16 %v95
  %v470 = vunpack.c.l.b16 %v96
  %v471 = vunpack.c.h.b16 %v96
  %v472 = vunpack.c.l.b16 %v97
  %v473 = vunpack.c.h.b16 %v97
  %v474 = vunpack.c.l.b16 %v98
  %v475 = vunpack.c.h.b16 %v98
  %v476 = vunpack.c.l.b16 %v99
  %v477 = vunpack.c.h.b16 %v99
  %v478 = vunpack.c.l.b16 %v100
  %v479 = vunpack.c.h.b16 %v100
  %v480 = vunpack.c.l.b16 %v101
  %v481 = vunpack.c.h.b16 %v101
  %v482 = vunpack.c.l.b16 %v102
  %v483 = vunpack.c.l.b16 %v103
  %v484 = vunpack.c.h.b16 %v103
  %v485 = vunpack.c.l.b16 %v104
  %v486 = vunpack.c.h.b16 %v104
  %v487 = vunpack.c.l.b16 %v105
  %v488 = vunpack.c.h.b16 %v105
  %v489 = vunpack.c.l.b16 %v106
  %v490 = vunpack.c.h.b16 %v106
  %v491 = vunpack.c.l.b16 %v107
  %v492 = vunpack.c.h.b16 %v107
  %v493 = vunpack.c.l.b16 %v108
  %v494 = vunpack.c.h.b16 %v108
  %v495 = vunpack.c.l.b16 %v109
  %v496 = vunpack.c.h.b16 %v109
  %v497 = vunpack.c.l.b16 %v110
  %v498 = vunpack.c.h.b16 %v110
  %v499 = vunpack.c.l.b16 %v111
  %v500 = vunpack.c.h.b16 %v111
  %v501 = vunpack.c.l.b16 %v112
  %v502 = vunpack.c.h.b16 %v112
  %v503 = vunpack.c.l.b16 %v113
  %v504 = vunpack.c.h.b16 %v113
  %v505 = vunpack.c.l.b16 %v114
  %v506 = vunpack.c.h.b16 %v114
  %v507 = vunpack.c.l.b16 %v115
  %v508 = vunpack.c.h.b16 %v115
  %v509 = vunpack.c.l.b16 %v116
  %v510 = vunpack.c.h.b16 %v116
  %v511 = vunpack.c.l.b16 %v117
  %v512 = vunpack.c.h.b16 %v117
  %v513 = vunpack.c.l.b16 %v118
  %v514 = vunpack.c.h.b16 %v118
  %v515 = vunpack.c.l.b16 %v119
  %v516 = vunpack.c.h.b16 %v119
  %v517 = vunpack.c.l.b16 %v120
  %v518 = vunpack.c.h.b16 %v120
  %v519 = vunpack.c.l.b16 %v121
  %v520 = vunpack.c.h.b16 %v121
  %v521 = vunpack.c.l.b16 %v122
  %v522 = vunpack.c.h.b16 %v122
  %v523 = vunpack.c.l.b16 %v123
  %v524 = vunpack.c.h.b16 %v123
  %v525 = vunpack.c.l.b16 %v124
  %v526 = vunpack.c.h.b16 %v124
  %v527 = vunpack.c.l.b16 %v125
  %v528 = vunpack.c.h.b16 %v125
  %v529 = vunpack.c.l.b16 %v126
  %v530 = vunpack.c.h.b16 %v126
  %v531 = vunpack.c.l.b16 %v127
  %v532 = vunpack.c.h.b16 %v127
  %v533 = vunpack.c.l.b16 %v128
  %v534 = vunpack.c.h.b16 %v128
  %v535 = vunpack.c.l.b16 %v129
  %v536 = vunpack.c.h.b16 %v129
  %v537 = vunpack.c.l.b16 %v130
  %v538 = vunpack.c.h.b16 %v130
  %v539 = vunpack.c.l.b16 %v131
  %v540 = vunpack.c.l.b16 %v132
  %v541 = vunpack.c.h.b16 %v132
  %v542 = vunpack.c.l.b16 %v133
  %v543 = vunpack.c.h.b16 %v133
  %v544 = vunpack.c.l.b16 %v134
  %v545 = vunpack.c.h.b16 %v134
  %v546 = vunpack.c.l.b16 %v135
  %v547 = vunpack.c.h.b16 %v135
  %v548 = vunpack.c.l.b16 %v136
  %v549 = vunpack.c.h.b16 %v136
  %v550 = vunpack.c.l.b16 %v137
  %v551 = vunpack.c.h.b16 %v137
  %v552 = vunpack.c.l.b16 %v138
  %v553 = vunpack.c.h.b16 %v138
  %v554 = vunpack.c.l.b16 %v139
  %v555 = vunpack.c.h.b16 %v139
  %v556 = vunpack.c.l.b16 %v140
  %v557 = vunpack.c.h.b16 %v140
  %v558 = vunpack.c.l.b16 %v141
  %v559 = vunpack.c.h.b16 %v141
  %v560 = vunpack.c.l.b16 %v142
  %v561 = vunpack.c.h.b16 %v142
  %v562 = vunpack.c.l.b16 %v143
  %v563 = vunpack.c.h.b16 %v143
  %v564 = vunpack.c.l.b16 %v144
  %v565 = vunpack.c.h.b16 %v144
  %v566 = vunpack.c.l.b16 %v145
  %v567 = vunpack.c.h.b16 %v145
  %v568 = vunpack.c.l.b16 %v146
  %v569 = vunpack.c.h.b16 %v146
  %v570 = vunpack.c.l.b16 %v147
  %v571 = vunpack.c.h.b16 %v147
  %v572 = vunpack.c.l.b16 %v148
  %v573 = vunpack.c.h.b16 %v148
  %v574 = vunpack.c.l.b16 %v149
  %v575 = vunpack.c.h.b16 %v149
  %v576 = vunpack.c.l.b16 %v150
  %v577 = vunpack.c.h.b16 %v150
  %v578 = vunpack.c.l.b16 %v151
  %v579 = vunpack.c.h.b16 %v151
  %v580 = vunpack.c.l.b16 %v152
  %v581 = vunpack.c.h.b16 %v152
  %v582 = vunpack.c.l.b16 %v153
  %v583 = vunpack.c.h.b16 %v153
  %v584 = vunpack.c.l.b16 %v154
  %v585 = vunpack.c.h.b16 %v154
  %v586 = vunpack.c.l.b16 %v155
  %v587 = vunpack.c.h.b16 %v155
  %v588 = vunpack.c.l.b16 %v156
  %v589 = vunpack.c.h.b16 %v156
  %v590 = vunpack.c.l.b16 %v157
  %v591 = vunpack.c.h.b16 %v157
  %v592 = vunpack.c.l.b16 %v158
  %v593 = vunpack.c.h.b16 %v158
  %v594 = vunpack.c.l.b16 %v159
  %v595 = vunpack.c.h.b16 %v159
  %v596 = vunpack.c.l.b16 %v160
  %v597 = vpack.c.b16 %v369, %v312
  %v598 = vpack.c.b16 %v370, %v313
  %v599 = vpack.c.b16 %v371, %v314
  %v600 = vpack.c.b16 %v372, %v315
  %v601 = vpack.c.b16 %v373, %v316
  %v602 = vpack.c.b16 %v374, %v317
  %v603 = vpack.c.b16 %v375, %v318
  %v604 = vpack.c.b16 %v376, %v319
  %v605 = vpack.c.b16 %v377, %v320
  %v606 = vpack.c.b16 %v378, %v321
  %v607 = vpack.c.b16 %v379, %v322
  %v608 = vpack.c.b16 %v380, %v323
  %v609 = vpack.c.b16 %v381, %v324
  %v610 = vpack.c.b16 %v382, %v325
  %v611 = vpack.c.b16 %v383, %v326
  %v612 = vpack.c.b16 %v384, %v327
  %v613 = vpack.c.b16 %v385, %v328
  %v614 = vpack.c.b16 %v386, %v329
  %v615 = vpack.c.b16 %v387, %v330
  %v616 = vpack.c.b16 %v388, %v331
  %v617 = vpack.c.b16 %v389, %v332
  %v618 = vpack.c.b16 %v390, %v333
  %v619 = vpack.c.b16 %v391, %v334
  %v620 = vpack.c.b16 %v392, %v335
  %v621 = vpack.c.b16 %v393, %v336
  %v622 = vpack.c.b16 %v394, %v337
  %v623 = vpack.c.b16 %v395, %v338
  %v624 = vpack.c.b16 %v396, %v339
  %v625 = vpack.c.b16 %v397, %v340
  %v626 = vpack.c.b16 %v398, %v341
  %v627 = vpack.c.b16 %v399, %v342
  %v628 = vpack.c.b16 %v400, %v343
  %v629 = vpack.c.b16 %v401, %v344
  %v630 = vpack.c.b16 %v402, %v345
  %v631 = vpack.c.b16 %v403, %v346
  %v632 = vpack.c.b16 %v404, %v347
  %v633 = vpack.c.b16 %v405, %v348
  %v634 = vpack.c.b16 %v406, %v349
  %v635 = vpack.c.b16 %v407, %v350
  %v636 = vpack.c.b16 %v408, %v351
  %v637 = vpack.c.b16 %v409, %v352
  %v638 = vpack.c.b16 %v410, %v353
  %v639 = vpack.c.b16 %v411, %v354
  %v640 = vpack.c.b16 %v412, %v355
  %v641 = vpack.c.b16 %v413, %v356
  %v642 = vpack.c.b16 %v414, %v357
  %v643 = vpack.c.b16 %v415, %v358
  %v644 = vpack.c.b16 %v416, %v359
  %v645 = vpack.c.b16 %v417, %v360
  %v646 = vpack.c.b16 %v418, %v361
  %v647 = vpack.c.b16 %v419, %v362
  %v648 = vpack.c.b16 %v420, %v363
  %v649 = vpack.c.b16 %v421, %v364
  %v650 = vpack.c.b16 %v422, %v365
  %v651 = vpack.c.b16 %v423, %v366
  %v652 = vpack.c.b16 %v424, %v367
  %v653 = vpack.c.b16 %v425, %v368
  %v654 = vpack.c.b16 %v483, %v426
  %v655 = vpack.c.b16 %v484, %v427
  %v656 = vpack.c.b16 %v485, %v428
  %v657 = vpack.c.b16 %v486, %v429
  %v658 = vpack.c.b16 %v487, %v430
  %v659 = vpack.c.b16 %v488, %v431
  %v660 = vpack.c.b16 %v489, %v432
  %v661 = vpack.c.b16 %v490, %v433
  %v662 = vpack.c.b16 %v491, %v434
  %v663 = vpack.c.b16 %v492, %v435
  %v664 = vpack.c.b16 %v493, %v436
  %v665 = vpack.c.b16 %v494, %v437
  %v666 = vpack.c.b16 %v495, %v438
  %v667 = vpack.c.b16 %v496, %v439
  %v668 = vpack.c.b16 %v497, %v440
  %v669 = vpack.c.b16 %v498, %v441
  %v670 = vpack.c.b16 %v499, %v442
  %v671 = vpack.c.b16 %v500, %v443
  %v672 = vpack.c.b16 %v501, %v444
  %v673 = vpack.c.b16 %v502, %v445
  %v674 = vpack.c.b16 %v503, %v446
  %v675 = vpack.c.b16 %v504, %v447
  %v676 = vpack.c.b16 %v505, %v448
  %v677 = vpack.c.b16 %v506, %v449
  %v678 = vpack.c.b16 %v507, %v450
  %v679 = vpack.c.b16 %v508, %v451
  %v680 = vpack.c.b16 %v509, %v452
  %v681 = vpack.c.b16 %v510, %v453
  %v682 = vpack.c.b16 %v511, %v454
  %v683 = vpack.c.b16 %v512, %v455
  %v684 = vpack.c.b16 %v513, %v456
  %v685 = vpack.c.b16 %v514, %v457
  %v686 = vpack.c.b16 %v515, %v458
  %v687 = vpack.c.b16 %v516, %v459
  %v688 = vpack.c.b16 %v517, %v460
  %v689 = vpack.c.b16 %v518, %v461
  %v690 = vpack.c.b16 %v519, %v462
  %v691 = vpack.c.b16 %v520, %v463
  %v692 = vpack.c.b16 %v521, %v464
  %v693 = vpack.c.b16 %v522, %v465
  %v694 = vpack.c.b16 %v523, %v466
  %v695 = vpack.c.b16 %v524, %v467
  %v696 = vpack.c.b16 %v525, %v468
  %v697 = vpack.c.b16 %v526, %v469
  %v698 = vpack.c.b16 %v527, %v470
  %v699 = vpack.c.b16 %v528, %v471
  %v700 = vpack.c.b16 %v529, %v472
  %v701 = vpack.c.b16 %v530, %v473
  %v702 = vpack.c.b16 %v531, %v474
  %v703 = vpack.c.b16 %v532, %v475
  %v704 = vpack.c.b16 %v533, %v476
  %v705 = vpack.c.b16 %v534, %v477
  %v706 = vpack.c.b16 %v535, %v478
  %v707 = vpack.c.b16 %v536, %v479
  %v708 = vpack.c.b16 %v537, %v480
  %v709 = vpack.c.b16 %v538, %v481
  %v710 = vpack.c.b16 %v539, %v482
  %v711 = vpack.c.b16 %v540, %v540
  %v712 = vpack.c.b16 %v541, %v541
  %v713 = vpack.c.b16 %v542, %v542
  %v714 = vpack.c.b16 %v543, %v543
  %v715 = vpack.c.b16 %v544, %v544
  %v716 = vpack.c.b16 %v545, %v545
  %v717 = vpack.c.b16 %v546, %v546
  %v718 = vpack.c.b16 %v547, %v547
  %v719 = vpack.c.b16 %v548, %v548
  %v720 = vpack.c.b16 %v549, %v549
  %v721 = vpack.c.b16 %v550, %v550
  %v722 = vpack.c.b16 %v551, %v551
  %v723 = vpack.c.b16 %v552, %v552
  %v724 = vpack.c.b16 %v553, %v553
  %v725 = vpack.c.b16 %v554, %v554
  %v726 = vpack.c.b16 %v555, %v555
  %v727 = vpack.c.b16 %v556, %v556
  %v728 = vpack.c.b16 %v557, %v557
  %v729 = vpack.c.b16 %v558, %v558
  %v730 = vpack.c.b16 %v559, %v559
  %v731 = vpack.c.b16 %v560, %v560
  %v732 = vpack.c.b16 %v561, %v561
  %v733 = vpack.c.b16 %v562, %v562
  %v734 = vpack.c.b16 %v563, %v563
  %v735 = vpack.c.b16 %v564, %v564
  %v736 = vpack.c.b16 %v565, %v565
  %v737 = vpack.c.b16 %v566, %v566
  %v738 = vpack.c.b16 %v567, %v567
  %v739 = vpack.c.b16 %v568, %v568
  %v740 = vpack.c.b16 %v569, %v569
  %v741 = vpack.c.b16 %v570, %v570
  %v742 = vpack.c.b16 %v571, %v571
  %v743 = vpack.c.b16 %v572, %v572
  %v744 = vpack.c.b16 %v573, %v573
  %v745 = vpack.c.b16 %v574, %v574
  %v746 = vpack.c.b16 %v575, %v575
  %v747 = vpack.c.b16 %v576, %v576
  %v748 = vpack.c.b16 %v577, %v577
  %v749 = vpack.c.b16 %v578, %v578
  %v750 = vpack.c.b16 %v579, %v579
  %v751 = vpack.c.b16 %v580, %v580
  %v752 = vpack.c.b16 %v581, %v581
  %v753 = vpack.c.b16 %v582, %v582
  %v754 = vpack.c.b16 %v583, %v583
  %v755 = vpack.c.b16 %v584, %v584
  %v756 = vpack.c.b16 %v585, %v585
  %v757 = vpack.c.b16 %v586, %v586
  %v758 = vpack.c.b16 %v587, %v587
  %v759 = vpack.c.b16 %v588, %v588
  %v760 = vpack.c.b16 %v589, %v589
  %v761 = vpack.c.b16 %v590, %v590
  %v762 = vpack.c.b16 %v591, %v591
  %v763 = vpack.c.b16 %v592, %v592
  %v764 = vpack.c.b16 %v593, %v593
  %v765 = vpack.c.b16 %v594, %v594
  %v766 = vpack.c.b16 %v595, %v595
  %v767 = vpack.c.b16 %v596, %v596
  %vm882 = vcmask 293888
  %v884 = vsel %vm882, %v15, 0
  %vm886 = vcmask 1041408
  %v888 = vsel %vm886, %v711, 0
  %v891 = vsel %vm886, %v712, 0
  %v894 = vsel %vm886, %v713, 0
  %v897 = vsel %vm886, %v714, 0
  %v900 = vsel %vm886, %v715, 0
  %v903 = vsel %vm886, %v716, 0
  %v906 = vsel %vm886, %v717, 0
  %v909 = vsel %vm886, %v718, 0
  %v912 = vsel %vm886, %v719, 0
  %v915 = vsel %vm886, %v720, 0
  %v918 = vsel %vm886, %v721, 0
  %v921 = vsel %vm886, %v722, 0
  %v924 = vsel %vm886, %v723, 0
  %v927 = vsel %vm886, %v724, 0
  %v930 = vsel %vm886, %v725, 0
  %v933 = vsel %vm886, %v726, 0
  %v936 = vsel %vm886, %v727, 0
  %v939 = vsel %vm886, %v728, 0
  %v942 = vsel %vm886, %v729, 0
  %v945 = vsel %vm886, %v730, 0
  %v948 = vsel %vm886, %v731, 0
  %v951 = vsel %vm886, %v732, 0
  %v954 = vsel %vm886, %v733, 0
  %v957 = vsel %vm886, %v734, 0
  %v960 = vsel %vm886, %v735, 0
  %v963 = vsel %vm886, %v736, 0
  %v966 = vsel %vm886, %v737, 0
  %v969 = vsel %vm886, %v738, 0
  %v972 = vsel %vm886, %v739, 0
  %v975 = vsel %vm886, %v740, 0
  %v978 = vsel %vm886, %v741, 0
  %v981 = vsel %vm886, %v742, 0
  %v984 = vsel %vm886, %v743, 0
  %v987 = vsel %vm886, %v744, 0
  %v990 = vsel %vm886, %v745, 0
  %v993 = vsel %vm886, %v746, 0
  %v996 = vsel %vm886, %v747, 0
  %v999 = vsel %vm886, %v748, 0
  %v1002 = vsel %vm886, %v749, 0
  %v1005 = vsel %vm886, %v750, 0
  %v1008 = vsel %vm886, %v751, 0
  %v1011 = vsel %vm886, %v752, 0
  %v1014 = vsel %vm886, %v753, 0
  %v1017 = vsel %vm886, %v754, 0
  %v1020 = vsel %vm886, %v755, 0
  %v1023 = vsel %vm886, %v756, 0
  %v1026 = vsel %vm886, %v757, 0
  %v1029 = vsel %vm886, %v758, 0
  %v1032 = vsel %vm886, %v759, 0
  %v1035 = vsel %vm886, %v760, 0
  %v1038 = vsel %vm886, %v761, 0
  %v1041 = vsel %vm886, %v762, 0
  %v1044 = vsel %vm886, %v763, 0
  %v1047 = vsel %vm886, %v764, 0
  %v1050 = vsel %vm886, %v765, 0
  %v1053 = vsel %vm886, %v766, 0
  %v1056 = vsel %vm886, %v767, 0
  %1058 = vmatprep.subr.bf16.mxu0 %v598
  %1059 = vmatpush1.bf16.msra.mxu0 %v597
  %1060 = vmatprep.subr.bf16.mxu0 %v655
  %1061 = vmatpush1.bf16.msra.mxu0 %v654
  %1062 = vmatprep.subr.bf16.mxu0 %v891
  %1063 = vmatpush1.bf16.msra.mxu0 %v888
  %1064 = vmatprep.subr.bf16.mxu0 0
  %1065 = vmatpush1.bf16.msra.mxu0 0
  %1066 = vmatprep.subr.bf16.mxu0 0
  %1067 = vmatpush1.bf16.msra.mxu0 0
  %1068 = vmatprep.subr.bf16.mxu0 0
  %1069 = vmatpush1.bf16.msra.mxu0 0
  %1070 = vmatprep.subr.bf16.mxu0 0
  %1071 = vmatpush1.bf16.msra.mxu0 0
  %1072 = vmatprep.subr.bf16.mxu0 0
  %1073 = vmatpush1.bf16.msra.mxu0 0
  %1074 = vmatprep.subr.bf16.mxu0 0
  %1075 = vmatpush1.bf16.msra.mxu0 0
  %1076 = vmatprep.subr.bf16.mxu0 0
  %1077 = vmatpush1.bf16.msra.mxu0 0
  %1078 = vmatprep.subr.bf16.mxu0 0
  %1079 = vmatpush1.bf16.msra.mxu0 0
  %1080 = vmatprep.subr.bf16.mxu0 0
  %1081 = vmatpush1.bf16.msra.mxu0 0
  %1082 = vmatprep.subr.bf16.mxu0 0
  %1083 = vmatpush1.bf16.msra.mxu0 0
  %1084 = vmatprep.subr.bf16.mxu0 0
  %1085 = vmatpush1.bf16.msra.mxu0 0
  %1086 = vmatprep.subr.bf16.mxu0 0
  %1087 = vmatpush1.bf16.msra.mxu0 0
  %1088 = vmatprep.subr.bf16.mxu0 0
  %1089 = vmatpush1.bf16.msra.mxu0 0
  %1090 = vmatprep.mubr.bf16.mxu0 0
  %1091 = vmatmul.mubr.bf16.gmra.mrb[0].mxu0 %v884
  %v1092 = vpop.f32.mrb[0].mxu0
  %v1093 = vadd.f32 %v165, %v1092
  %v1094 = vpop.f32.mrb[0].mxu0
  %v1095 = vadd.f32 %v165, %v1094
  %v1096 = vpop.f32.mrb[0].mxu0
  %v1097 = vpop.f32.mrb[0].mxu0
  %1098 = vdwg.mxu0
  %1099 = vmatprep.subr.bf16.mxu0 %v600
  %1100 = vmatpush1.bf16.msra.mxu0 %v599
  %1101 = vmatprep.subr.bf16.mxu0 %v657
  %1102 = vmatpush1.bf16.msra.mxu0 %v656
  %1103 = vmatprep.subr.bf16.mxu0 %v897
  %1104 = vmatpush1.bf16.msra.mxu0 %v894
  %1105 = vmatprep.subr.bf16.mxu0 0
  %1106 = vmatpush1.bf16.msra.mxu0 0
  %1107 = vmatprep.subr.bf16.mxu0 0
  %1108 = vmatpush1.bf16.msra.mxu0 0
  %1109 = vmatprep.subr.bf16.mxu0 0
  %1110 = vmatpush1.bf16.msra.mxu0 0
  %1111 = vmatprep.subr.bf16.mxu0 0
  %1112 = vmatpush1.bf16.msra.mxu0 0
  %1113 = vmatprep.subr.bf16.mxu0 0
  %1114 = vmatpush1.bf16.msra.mxu0 0
  %1115 = vmatprep.subr.bf16.mxu0 0
  %1116 = vmatpush1.bf16.msra.mxu0 0
  %1117 = vmatprep.subr.bf16.mxu0 0
  %1118 = vmatpush1.bf16.msra.mxu0 0
  %1119 = vmatprep.subr.bf16.mxu0 0
  %1120 = vmatpush1.bf16.msra.mxu0 0
  %1121 = vmatprep.subr.bf16.mxu0 0
  %1122 = vmatpush1.bf16.msra.mxu0 0
  %1123 = vmatprep.subr.bf16.mxu0 0
  %1124 = vmatpush1.bf16.msra.mxu0 0
  %1125 = vmatprep.subr.bf16.mxu0 0
  %1126 = vmatpush1.bf16.msra.mxu0 0
  %1127 = vmatprep.subr.bf16.mxu0 0
  %1128 = vmatpush1.bf16.msra.mxu0 0
  %1129 = vmatprep.subr.bf16.mxu0 0
  %1130 = vmatpush1.bf16.msra.mxu0 0
  %1131 = vmatprep.mubr.bf16.mxu0 0
  %1132 = vmatmul.mubr.bf16.gmra.mrb[0].mxu0 %v884
  %v1133 = vpop.f32.mrb[0].mxu0
  %v1134 = vadd.f32 %v165, %v1133
  %v1135 = vpop.f32.mrb[0].mxu0
  %v1136 = vadd.f32 %v165, %v1135
  %v1137 = vpop.f32.mrb[0].mxu0
  %v1138 = vpop.f32.mrb[0].mxu0
  %1139 = vdwg.mxu0
  %1140 = vmatprep.subr.bf16.mxu0 %v602
  %1141 = vmatpush1.bf16.msra.mxu0 %v601
  %1142 = vmatprep.subr.bf16.mxu0 %v659
  %1143 = vmatpush1.bf16.msra.mxu0 %v658
  %1144 = vmatprep.subr.bf16.mxu0 %v903
  %1145 = vmatpush1.bf16.msra.mxu0 %v900
  %1146 = vmatprep.subr.bf16.mxu0 0
  %1147 = vmatpush1.bf16.msra.mxu0 0
  %1148 = vmatprep.subr.bf16.mxu0 0
  %1149 = vmatpush1.bf16.msra.mxu0 0
  %1150 = vmatprep.subr.bf16.mxu0 0
  %1151 = vmatpush1.bf16.msra.mxu0 0
  %1152 = vmatprep.subr.bf16.mxu0 0
  %1153 = vmatpush1.bf16.msra.mxu0 0
  %1154 = vmatprep.subr.bf16.mxu0 0
  %1155 = vmatpush1.bf16.msra.mxu0 0
  %1156 = vmatprep.subr.bf16.mxu0 0
  %1157 = vmatpush1.bf16.msra.mxu0 0
  %1158 = vmatprep.subr.bf16.mxu0 0
  %1159 = vmatpush1.bf16.msra.mxu0 0
  %1160 = vmatprep.subr.bf16.mxu0 0
  %1161 = vmatpush1.bf16.msra.mxu0 0
  %1162 = vmatprep.subr.bf16.mxu0 0
  %1163 = vmatpush1.bf16.msra.mxu0 0
  %1164 = vmatprep.subr.bf16.mxu0 0
  %1165 = vmatpush1.bf16.msra.mxu0 0
  %1166 = vmatprep.subr.bf16.mxu0 0
  %1167 = vmatpush1.bf16.msra.mxu0 0
  %1168 = vmatprep.subr.bf16.mxu0 0
  %1169 = vmatpush1.bf16.msra.mxu0 0
  %1170 = vmatprep.subr.bf16.mxu0 0
  %1171 = vmatpush1.bf16.msra.mxu0 0
  %1172 = vmatprep.mubr.bf16.mxu0 0
  %1173 = vmatmul.mubr.bf16.gmra.mrb[0].mxu0 %v884
  %v1174 = vpop.f32.mrb[0].mxu0
  %v1175 = vadd.f32 %v165, %v1174
  %v1176 = vpop.f32.mrb[0].mxu0
  %v1177 = vadd.f32 %v165, %v1176
  %v1178 = vpop.f32.mrb[0].mxu0
  %v1179 = vpop.f32.mrb[0].mxu0
  %1180 = vdwg.mxu0
  %1181 = vmatprep.subr.bf16.mxu0 %v604
  %1182 = vmatpush1.bf16.msra.mxu0 %v603
  %1183 = vmatprep.subr.bf16.mxu0 %v661
  %1184 = vmatpush1.bf16.msra.mxu0 %v660
  %1185 = vmatprep.subr.bf16.mxu0 %v909
  %1186 = vmatpush1.bf16.msra.mxu0 %v906
  %1187 = vmatprep.subr.bf16.mxu0 0
  %1188 = vmatpush1.bf16.msra.mxu0 0
  %1189 = vmatprep.subr.bf16.mxu0 0
  %1190 = vmatpush1.bf16.msra.mxu0 0
  %1191 = vmatprep.subr.bf16.mxu0 0
  %1192 = vmatpush1.bf16.msra.mxu0 0
  %1193 = vmatprep.subr.bf16.mxu0 0
  %1194 = vmatpush1.bf16.msra.mxu0 0
  %1195 = vmatprep.subr.bf16.mxu0 0
  %1196 = vmatpush1.bf16.msra.mxu0 0
  %1197 = vmatprep.subr.bf16.mxu0 0
  %1198 = vmatpush1.bf16.msra.mxu0 0
  %1199 = vmatprep.subr.bf16.mxu0 0
  %1200 = vmatpush1.bf16.msra.mxu0 0
  %1201 = vmatprep.subr.bf16.mxu0 0
  %1202 = vmatpush1.bf16.msra.mxu0 0
  %1203 = vmatprep.subr.bf16.mxu0 0
  %1204 = vmatpush1.bf16.msra.mxu0 0
  %1205 = vmatprep.subr.bf16.mxu0 0
  %1206 = vmatpush1.bf16.msra.mxu0 0
  %1207 = vmatprep.subr.bf16.mxu0 0
  %1208 = vmatpush1.bf16.msra.mxu0 0
  %1209 = vmatprep.subr.bf16.mxu0 0
  %1210 = vmatpush1.bf16.msra.mxu0 0
  %1211 = vmatprep.subr.bf16.mxu0 0
  %1212 = vmatpush1.bf16.msra.mxu0 0
  %1213 = vmatprep.mubr.bf16.mxu0 0
  %1214 = vmatmul.mubr.bf16.gmra.mrb[0].mxu0 %v884
  %v1215 = vpop.f32.mrb[0].mxu0
  %v1216 = vadd.f32 %v165, %v1215
  %v1217 = vpop.f32.mrb[0].mxu0
  %v1218 = vadd.f32 %v165, %v1217
  %v1219 = vpop.f32.mrb[0].mxu0
  %v1220 = vpop.f32.mrb[0].mxu0
  %1221 = vdwg.mxu0
  %1222 = vmatprep.subr.bf16.mxu0 %v606
  %1223 = vmatpush1.bf16.msra.mxu0 %v605
  %1224 = vmatprep.subr.bf16.mxu0 %v663
  %1225 = vmatpush1.bf16.msra.mxu0 %v662
  %1226 = vmatprep.subr.bf16.mxu0 %v915
  %1227 = vmatpush1.bf16.msra.mxu0 %v912
  %1228 = vmatprep.subr.bf16.mxu0 0
  %1229 = vmatpush1.bf16.msra.mxu0 0
  %1230 = vmatprep.subr.bf16.mxu0 0
  %1231 = vmatpush1.bf16.msra.mxu0 0
  %1232 = vmatprep.subr.bf16.mxu0 0
  %1233 = vmatpush1.bf16.msra.mxu0 0
  %1234 = vmatprep.subr.bf16.mxu0 0
  %1235 = vmatpush1.bf16.msra.mxu0 0
  %1236 = vmatprep.subr.bf16.mxu0 0
  %1237 = vmatpush1.bf16.msra.mxu0 0
  %1238 = vmatprep.subr.bf16.mxu0 0
  %1239 = vmatpush1.bf16.msra.mxu0 0
  %1240 = vmatprep.subr.bf16.mxu0 0
  %1241 = vmatpush1.bf16.msra.mxu0 0
  %1242 = vmatprep.subr.bf16.mxu0 0
  %1243 = vmatpush1.bf16.msra.mxu0 0
  %1244 = vmatprep.subr.bf16.mxu0 0
  %1245 = vmatpush1.bf16.msra.mxu0 0
  %1246 = vmatprep.subr.bf16.mxu0 0
  %1247 = vmatpush1.bf16.msra.mxu0 0
  %1248 = vmatprep.subr.bf16.mxu0 0
  %1249 = vmatpush1.bf16.msra.mxu0 0
  %1250 = vmatprep.subr.bf16.mxu0 0
  %1251 = vmatpush1.bf16.msra.mxu0 0
  %1252 = vmatprep.subr.bf16.mxu0 0
  %1253 = vmatpush1.bf16.msra.mxu0 0
  %1254 = vmatprep.mubr.bf16.mxu0 0
  %1255 = vmatmul.mubr.bf16.gmra.mrb[0].mxu0 %v884
  %v1256 = vpop.f32.mrb[0].mxu0
  %v1257 = vadd.f32 %v165, %v1256
  %v1258 = vpop.f32.mrb[0].mxu0
  %v1259 = vadd.f32 %v165, %v1258
  %v1260 = vpop.f32.mrb[0].mxu0
  %v1261 = vpop.f32.mrb[0].mxu0
  %1262 = vdwg.mxu0
  %1263 = vmatprep.subr.bf16.mxu0 %v608
  %1264 = vmatpush1.bf16.msra.mxu0 %v607
  %1265 = vmatprep.subr.bf16.mxu0 %v665
  %1266 = vmatpush1.bf16.msra.mxu0 %v664
  %1267 = vmatprep.subr.bf16.mxu0 %v921
  %1268 = vmatpush1.bf16.msra.mxu0 %v918
  %1269 = vmatprep.subr.bf16.mxu0 0
  %1270 = vmatpush1.bf16.msra.mxu0 0
  %1271 = vmatprep.subr.bf16.mxu0 0
  %1272 = vmatpush1.bf16.msra.mxu0 0
  %1273 = vmatprep.subr.bf16.mxu0 0
  %1274 = vmatpush1.bf16.msra.mxu0 0
  %1275 = vmatprep.subr.bf16.mxu0 0
  %1276 = vmatpush1.bf16.msra.mxu0 0
  %1277 = vmatprep.subr.bf16.mxu0 0
  %1278 = vmatpush1.bf16.msra.mxu0 0
  %1279 = vmatprep.subr.bf16.mxu0 0
  %1280 = vmatpush1.bf16.msra.mxu0 0
  %1281 = vmatprep.subr.bf16.mxu0 0
  %1282 = vmatpush1.bf16.msra.mxu0 0
  %1283 = vmatprep.subr.bf16.mxu0 0
  %1284 = vmatpush1.bf16.msra.mxu0 0
  %1285 = vmatprep.subr.bf16.mxu0 0
  %1286 = vmatpush1.bf16.msra.mxu0 0
  %1287 = vmatprep.subr.bf16.mxu0 0
  %1288 = vmatpush1.bf16.msra.mxu0 0
  %1289 = vmatprep.subr.bf16.mxu0 0
  %1290 = vmatpush1.bf16.msra.mxu0 0
  %1291 = vmatprep.subr.bf16.mxu0 0
  %1292 = vmatpush1.bf16.msra.mxu0 0
  %1293 = vmatprep.subr.bf16.mxu0 0
  %1294 = vmatpush1.bf16.msra.mxu0 0
  %1295 = vmatprep.mubr.bf16.mxu0 0
  %1296 = vmatmul.mubr.bf16.gmra.mrb[0].mxu0 %v884
  %v1297 = vpop.f32.mrb[0].mxu0
  %v1298 = vadd.f32 %v165, %v1297
  %v1299 = vpop.f32.mrb[0].mxu0
  %v1300 = vadd.f32 %v165, %v1299
  %v1301 = vpop.f32.mrb[0].mxu0
  %v1302 = vpop.f32.mrb[0].mxu0
  %1303 = vdwg.mxu0
  %1304 = vmatprep.subr.bf16.mxu0 %v610
  %1305 = vmatpush1.bf16.msra.mxu0 %v609
  %1306 = vmatprep.subr.bf16.mxu0 %v667
  %1307 = vmatpush1.bf16.msra.mxu0 %v666
  %1308 = vmatprep.subr.bf16.mxu0 %v927
  %1309 = vmatpush1.bf16.msra.mxu0 %v924
  %1310 = vmatprep.subr.bf16.mxu0 0
  %1311 = vmatpush1.bf16.msra.mxu0 0
  %1312 = vmatprep.subr.bf16.mxu0 0
  %1313 = vmatpush1.bf16.msra.mxu0 0
  %1314 = vmatprep.subr.bf16.mxu0 0
  %1315 = vmatpush1.bf16.msra.mxu0 0
  %1316 = vmatprep.subr.bf16.mxu0 0
  %1317 = vmatpush1.bf16.msra.mxu0 0
  %1318 = vmatprep.subr.bf16.mxu0 0
  %1319 = vmatpush1.bf16.msra.mxu0 0
  %1320 = vmatprep.subr.bf16.mxu0 0
  %1321 = vmatpush1.bf16.msra.mxu0 0
  %1322 = vmatprep.subr.bf16.mxu0 0
  %1323 = vmatpush1.bf16.msra.mxu0 0
  %1324 = vmatprep.subr.bf16.mxu0 0
  %1325 = vmatpush1.bf16.msra.mxu0 0
  %1326 = vmatprep.subr.bf16.mxu0 0
  %1327 = vmatpush1.bf16.msra.mxu0 0
  %1328 = vmatprep.subr.bf16.mxu0 0
  %1329 = vmatpush1.bf16.msra.mxu0 0
  %1330 = vmatprep.subr.bf16.mxu0 0
  %1331 = vmatpush1.bf16.msra.mxu0 0
  %1332 = vmatprep.subr.bf16.mxu0 0
  %1333 = vmatpush1.bf16.msra.mxu0 0
  %1334 = vmatprep.subr.bf16.mxu0 0
  %1335 = vmatpush1.bf16.msra.mxu0 0
  %1336 = vmatprep.mubr.bf16.mxu0 0
  %1337 = vmatmul.mubr.bf16.gmra.mrb[0].mxu0 %v884
  %v1338 = vpop.f32.mrb[0].mxu0
  %v1339 = vadd.f32 %v165, %v1338
  %v1340 = vpop.f32.mrb[0].mxu0
  %v1341 = vadd.f32 %v165, %v1340
  %v1342 = vpop.f32.mrb[0].mxu0
  %v1343 = vpop.f32.mrb[0].mxu0
  %1344 = vdwg.mxu0
  %1345 = vmatprep.subr.bf16.mxu0 %v612
  %1346 = vmatpush1.bf16.msra.mxu0 %v611
  %1347 = vmatprep.subr.bf16.mxu0 %v669
  %1348 = vmatpush1.bf16.msra.mxu0 %v668
  %1349 = vmatprep.subr.bf16.mxu0 %v933
  %1350 = vmatpush1.bf16.msra.mxu0 %v930
  %1351 = vmatprep.subr.bf16.mxu0 0
  %1352 = vmatpush1.bf16.msra.mxu0 0
  %1353 = vmatprep.subr.bf16.mxu0 0
  %1354 = vmatpush1.bf16.msra.mxu0 0
  %1355 = vmatprep.subr.bf16.mxu0 0
  %1356 = vmatpush1.bf16.msra.mxu0 0
  %1357 = vmatprep.subr.bf16.mxu0 0
  %1358 = vmatpush1.bf16.msra.mxu0 0
  %1359 = vmatprep.subr.bf16.mxu0 0
  %1360 = vmatpush1.bf16.msra.mxu0 0
  %1361 = vmatprep.subr.bf16.mxu0 0
  %1362 = vmatpush1.bf16.msra.mxu0 0
  %1363 = vmatprep.subr.bf16.mxu0 0
  %1364 = vmatpush1.bf16.msra.mxu0 0
  %1365 = vmatprep.subr.bf16.mxu0 0
  %1366 = vmatpush1.bf16.msra.mxu0 0
  %1367 = vmatprep.subr.bf16.mxu0 0
  %1368 = vmatpush1.bf16.msra.mxu0 0
  %1369 = vmatprep.subr.bf16.mxu0 0
  %1370 = vmatpush1.bf16.msra.mxu0 0
  %1371 = vmatprep.subr.bf16.mxu0 0
  %1372 = vmatpush1.bf16.msra.mxu0 0
  %1373 = vmatprep.subr.bf16.mxu0 0
  %1374 = vmatpush1.bf16.msra.mxu0 0
  %1375 = vmatprep.subr.bf16.mxu0 0
  %1376 = vmatpush1.bf16.msra.mxu0 0
  %1377 = vmatprep.mubr.bf16.mxu0 0
  %1378 = vmatmul.mubr.bf16.gmra.mrb[0].mxu0 %v884
  %v1379 = vpop.f32.mrb[0].mxu0
  %v1380 = vadd.f32 %v165, %v1379
  %v1381 = vpop.f32.mrb[0].mxu0
  %v1382 = vadd.f32 %v165, %v1381
  %v1383 = vpop.f32.mrb[0].mxu0
  %v1384 = vpop.f32.mrb[0].mxu0
  %1385 = vdwg.mxu0
  %1386 = vmatprep.subr.bf16.mxu0 %v614
  %1387 = vmatpush1.bf16.msra.mxu0 %v613
  %1388 = vmatprep.subr.bf16.mxu0 %v671
  %1389 = vmatpush1.bf16.msra.mxu0 %v670
  %1390 = vmatprep.subr.bf16.mxu0 %v939
  %1391 = vmatpush1.bf16.msra.mxu0 %v936
  %1392 = vmatprep.subr.bf16.mxu0 0
  %1393 = vmatpush1.bf16.msra.mxu0 0
  %1394 = vmatprep.subr.bf16.mxu0 0
  %1395 = vmatpush1.bf16.msra.mxu0 0
  %1396 = vmatprep.subr.bf16.mxu0 0
  %1397 = vmatpush1.bf16.msra.mxu0 0
  %1398 = vmatprep.subr.bf16.mxu0 0
  %1399 = vmatpush1.bf16.msra.mxu0 0
  %1400 = vmatprep.subr.bf16.mxu0 0
  %1401 = vmatpush1.bf16.msra.mxu0 0
  %1402 = vmatprep.subr.bf16.mxu0 0
  %1403 = vmatpush1.bf16.msra.mxu0 0
  %1404 = vmatprep.subr.bf16.mxu0 0
  %1405 = vmatpush1.bf16.msra.mxu0 0
  %1406 = vmatprep.subr.bf16.mxu0 0
  %1407 = vmatpush1.bf16.msra.mxu0 0
  %1408 = vmatprep.subr.bf16.mxu0 0
  %1409 = vmatpush1.bf16.msra.mxu0 0
  %1410 = vmatprep.subr.bf16.mxu0 0
  %1411 = vmatpush1.bf16.msra.mxu0 0
  %1412 = vmatprep.subr.bf16.mxu0 0
  %1413 = vmatpush1.bf16.msra.mxu0 0
  %1414 = vmatprep.subr.bf16.mxu0 0
  %1415 = vmatpush1.bf16.msra.mxu0 0
  %1416 = vmatprep.subr.bf16.mxu0 0
  %1417 = vmatpush1.bf16.msra.mxu0 0
  %1418 = vmatprep.mubr.bf16.mxu0 0
  %1419 = vmatmul.mubr.bf16.gmra.mrb[0].mxu0 %v884
  %v1420 = vpop.f32.mrb[0].mxu0
  %v1421 = vadd.f32 %v165, %v1420
  %v1422 = vpop.f32.mrb[0].mxu0
  %v1423 = vadd.f32 %v165, %v1422
  %v1424 = vpop.f32.mrb[0].mxu0
  %v1425 = vpop.f32.mrb[0].mxu0
  %1426 = vdwg.mxu0
  %1427 = vmatprep.subr.bf16.mxu0 %v616
  %1428 = vmatpush1.bf16.msra.mxu0 %v615
  %1429 = vmatprep.subr.bf16.mxu0 %v673
  %1430 = vmatpush1.bf16.msra.mxu0 %v672
  %1431 = vmatprep.subr.bf16.mxu0 %v945
  %1432 = vmatpush1.bf16.msra.mxu0 %v942
  %1433 = vmatprep.subr.bf16.mxu0 0
  %1434 = vmatpush1.bf16.msra.mxu0 0
  %1435 = vmatprep.subr.bf16.mxu0 0
  %1436 = vmatpush1.bf16.msra.mxu0 0
  %1437 = vmatprep.subr.bf16.mxu0 0
  %1438 = vmatpush1.bf16.msra.mxu0 0
  %1439 = vmatprep.subr.bf16.mxu0 0
  %1440 = vmatpush1.bf16.msra.mxu0 0
  %1441 = vmatprep.subr.bf16.mxu0 0
  %1442 = vmatpush1.bf16.msra.mxu0 0
  %1443 = vmatprep.subr.bf16.mxu0 0
  %1444 = vmatpush1.bf16.msra.mxu0 0
  %1445 = vmatprep.subr.bf16.mxu0 0
  %1446 = vmatpush1.bf16.msra.mxu0 0
  %1447 = vmatprep.subr.bf16.mxu0 0
  %1448 = vmatpush1.bf16.msra.mxu0 0
  %1449 = vmatprep.subr.bf16.mxu0 0
  %1450 = vmatpush1.bf16.msra.mxu0 0
  %1451 = vmatprep.subr.bf16.mxu0 0
  %1452 = vmatpush1.bf16.msra.mxu0 0
  %1453 = vmatprep.subr.bf16.mxu0 0
  %1454 = vmatpush1.bf16.msra.mxu0 0
  %1455 = vmatprep.subr.bf16.mxu0 0
  %1456 = vmatpush1.bf16.msra.mxu0 0
  %1457 = vmatprep.subr.bf16.mxu0 0
  %1458 = vmatpush1.bf16.msra.mxu0 0
  %1459 = vmatprep.mubr.bf16.mxu0 0
  %1460 = vmatmul.mubr.bf16.gmra.mrb[0].mxu0 %v884
  %v1461 = vpop.f32.mrb[0].mxu0
  %v1462 = vadd.f32 %v165, %v1461
  %v1463 = vpop.f32.mrb[0].mxu0
  %v1464 = vadd.f32 %v165, %v1463
  %v1465 = vpop.f32.mrb[0].mxu0
  %v1466 = vpop.f32.mrb[0].mxu0
  %1467 = vdwg.mxu0
  %1468 = vmatprep.subr.bf16.mxu0 %v618
  %1469 = vmatpush1.bf16.msra.mxu0 %v617
  %1470 = vmatprep.subr.bf16.mxu0 %v675
  %1471 = vmatpush1.bf16.msra.mxu0 %v674
  %1472 = vmatprep.subr.bf16.mxu0 %v951
  %1473 = vmatpush1.bf16.msra.mxu0 %v948
  %1474 = vmatprep.subr.bf16.mxu0 0
  %1475 = vmatpush1.bf16.msra.mxu0 0
  %1476 = vmatprep.subr.bf16.mxu0 0
  %1477 = vmatpush1.bf16.msra.mxu0 0
  %1478 = vmatprep.subr.bf16.mxu0 0
  %1479 = vmatpush1.bf16.msra.mxu0 0
  %1480 = vmatprep.subr.bf16.mxu0 0
  %1481 = vmatpush1.bf16.msra.mxu0 0
  %1482 = vmatprep.subr.bf16.mxu0 0
  %1483 = vmatpush1.bf16.msra.mxu0 0
  %1484 = vmatprep.subr.bf16.mxu0 0
  %1485 = vmatpush1.bf16.msra.mxu0 0
  %1486 = vmatprep.subr.bf16.mxu0 0
  %1487 = vmatpush1.bf16.msra.mxu0 0
  %1488 = vmatprep.subr.bf16.mxu0 0
  %1489 = vmatpush1.bf16.msra.mxu0 0
  %1490 = vmatprep.subr.bf16.mxu0 0
  %1491 = vmatpush1.bf16.msra.mxu0 0
  %1492 = vmatprep.subr.bf16.mxu0 0
  %1493 = vmatpush1.bf16.msra.mxu0 0
  %1494 = vmatprep.subr.bf16.mxu0 0
  %1495 = vmatpush1.bf16.msra.mxu0 0
  %1496 = vmatprep.subr.bf16.mxu0 0
  %1497 = vmatpush1.bf16.msra.mxu0 0
  %1498 = vmatprep.subr.bf16.mxu0 0
  %1499 = vmatpush1.bf16.msra.mxu0 0
  %1500 = vmatprep.mubr.bf16.mxu0 0
  %1501 = vmatmul.mubr.bf16.gmra.mrb[0].mxu0 %v884
  %v1502 = vpop.f32.mrb[0].mxu0
  %v1503 = vadd.f32 %v165, %v1502
  %v1504 = vpop.f32.mrb[0].mxu0
  %v1505 = vadd.f32 %v165, %v1504
  %v1506 = vpop.f32.mrb[0].mxu0
  %v1507 = vpop.f32.mrb[0].mxu0
  %1508 = vdwg.mxu0
  %1509 = vmatprep.subr.bf16.mxu0 %v620
  %1510 = vmatpush1.bf16.msra.mxu0 %v619
  %1511 = vmatprep.subr.bf16.mxu0 %v677
  %1512 = vmatpush1.bf16.msra.mxu0 %v676
  %1513 = vmatprep.subr.bf16.mxu0 %v957
  %1514 = vmatpush1.bf16.msra.mxu0 %v954
  %1515 = vmatprep.subr.bf16.mxu0 0
  %1516 = vmatpush1.bf16.msra.mxu0 0
  %1517 = vmatprep.subr.bf16.mxu0 0
  %1518 = vmatpush1.bf16.msra.mxu0 0
  %1519 = vmatprep.subr.bf16.mxu0 0
  %1520 = vmatpush1.bf16.msra.mxu0 0
  %1521 = vmatprep.subr.bf16.mxu0 0
  %1522 = vmatpush1.bf16.msra.mxu0 0
  %1523 = vmatprep.subr.bf16.mxu0 0
  %1524 = vmatpush1.bf16.msra.mxu0 0
  %1525 = vmatprep.subr.bf16.mxu0 0
  %1526 = vmatpush1.bf16.msra.mxu0 0
  %1527 = vmatprep.subr.bf16.mxu0 0
  %1528 = vmatpush1.bf16.msra.mxu0 0
  %1529 = vmatprep.subr.bf16.mxu0 0
  %1530 = vmatpush1.bf16.msra.mxu0 0
  %1531 = vmatprep.subr.bf16.mxu0 0
  %1532 = vmatpush1.bf16.msra.mxu0 0
  %1533 = vmatprep.subr.bf16.mxu0 0
  %1534 = vmatpush1.bf16.msra.mxu0 0
  %1535 = vmatprep.subr.bf16.mxu0 0
  %1536 = vmatpush1.bf16.msra.mxu0 0
  %1537 = vmatprep.subr.bf16.mxu0 0
  %1538 = vmatpush1.bf16.msra.mxu0 0
  %1539 = vmatprep.subr.bf16.mxu0 0
  %1540 = vmatpush1.bf16.msra.mxu0 0
  %1541 = vmatprep.mubr.bf16.mxu0 0
  %1542 = vmatmul.mubr.bf16.gmra.mrb[0].mxu0 %v884
  %v1543 = vpop.f32.mrb[0].mxu0
  %v1544 = vadd.f32 %v165, %v1543
  %v1545 = vpop.f32.mrb[0].mxu0
  %v1546 = vadd.f32 %v165, %v1545
  %v1547 = vpop.f32.mrb[0].mxu0
  %v1548 = vpop.f32.mrb[0].mxu0
  %1549 = vdwg.mxu0
  %1550 = vmatprep.subr.bf16.mxu0 %v622
  %1551 = vmatpush1.bf16.msra.mxu0 %v621
  %1552 = vmatprep.subr.bf16.mxu0 %v679
  %1553 = vmatpush1.bf16.msra.mxu0 %v678
  %1554 = vmatprep.subr.bf16.mxu0 %v963
  %1555 = vmatpush1.bf16.msra.mxu0 %v960
  %1556 = vmatprep.subr.bf16.mxu0 0
  %1557 = vmatpush1.bf16.msra.mxu0 0
  %1558 = vmatprep.subr.bf16.mxu0 0
  %1559 = vmatpush1.bf16.msra.mxu0 0
  %1560 = vmatprep.subr.bf16.mxu0 0
  %1561 = vmatpush1.bf16.msra.mxu0 0
  %1562 = vmatprep.subr.bf16.mxu0 0
  %1563 = vmatpush1.bf16.msra.mxu0 0
  %1564 = vmatprep.subr.bf16.mxu0 0
  %1565 = vmatpush1.bf16.msra.mxu0 0
  %1566 = vmatprep.subr.bf16.mxu0 0
  %1567 = vmatpush1.bf16.msra.mxu0 0
  %1568 = vmatprep.subr.bf16.mxu0 0
  %1569 = vmatpush1.bf16.msra.mxu0 0
  %1570 = vmatprep.subr.bf16.mxu0 0
  %1571 = vmatpush1.bf16.msra.mxu0 0
  %1572 = vmatprep.subr.bf16.mxu0 0
  %1573 = vmatpush1.bf16.msra.mxu0 0
  %1574 = vmatprep.subr.bf16.mxu0 0
  %1575 = vmatpush1.bf16.msra.mxu0 0
  %1576 = vmatprep.subr.bf16.mxu0 0
  %1577 = vmatpush1.bf16.msra.mxu0 0
  %1578 = vmatprep.subr.bf16.mxu0 0
  %1579 = vmatpush1.bf16.msra.mxu0 0
  %1580 = vmatprep.subr.bf16.mxu0 0
  %1581 = vmatpush1.bf16.msra.mxu0 0
  %1582 = vmatprep.mubr.bf16.mxu0 0
  %1583 = vmatmul.mubr.bf16.gmra.mrb[0].mxu0 %v884
  %v1584 = vpop.f32.mrb[0].mxu0
  %v1585 = vadd.f32 %v165, %v1584
  %v1586 = vpop.f32.mrb[0].mxu0
  %v1587 = vadd.f32 %v165, %v1586
  %v1588 = vpop.f32.mrb[0].mxu0
  %v1589 = vpop.f32.mrb[0].mxu0
  %1590 = vdwg.mxu0
  %1591 = vmatprep.subr.bf16.mxu0 %v624
  %1592 = vmatpush1.bf16.msra.mxu0 %v623
  %1593 = vmatprep.subr.bf16.mxu0 %v681
  %1594 = vmatpush1.bf16.msra.mxu0 %v680
  %1595 = vmatprep.subr.bf16.mxu0 %v969
  %1596 = vmatpush1.bf16.msra.mxu0 %v966
  %1597 = vmatprep.subr.bf16.mxu0 0
  %1598 = vmatpush1.bf16.msra.mxu0 0
  %1599 = vmatprep.subr.bf16.mxu0 0
  %1600 = vmatpush1.bf16.msra.mxu0 0
  %1601 = vmatprep.subr.bf16.mxu0 0
  %1602 = vmatpush1.bf16.msra.mxu0 0
  %1603 = vmatprep.subr.bf16.mxu0 0
  %1604 = vmatpush1.bf16.msra.mxu0 0
  %1605 = vmatprep.subr.bf16.mxu0 0
  %1606 = vmatpush1.bf16.msra.mxu0 0
  %1607 = vmatprep.subr.bf16.mxu0 0
  %1608 = vmatpush1.bf16.msra.mxu0 0
  %1609 = vmatprep.subr.bf16.mxu0 0
  %1610 = vmatpush1.bf16.msra.mxu0 0
  %1611 = vmatprep.subr.bf16.mxu0 0
  %1612 = vmatpush1.bf16.msra.mxu0 0
  %1613 = vmatprep.subr.bf16.mxu0 0
  %1614 = vmatpush1.bf16.msra.mxu0 0
  %1615 = vmatprep.subr.bf16.mxu0 0
  %1616 = vmatpush1.bf16.msra.mxu0 0
  %1617 = vmatprep.subr.bf16.mxu0 0
  %1618 = vmatpush1.bf16.msra.mxu0 0
  %1619 = vmatprep.subr.bf16.mxu0 0
  %1620 = vmatpush1.bf16.msra.mxu0 0
  %1621 = vmatprep.subr.bf16.mxu0 0
  %1622 = vmatpush1.bf16.msra.mxu0 0
  %1623 = vmatprep.mubr.bf16.mxu0 0
  %1624 = vmatmul.mubr.bf16.gmra.mrb[0].mxu0 %v884
  %v1625 = vpop.f32.mrb[0].mxu0
  %v1626 = vadd.f32 %v165, %v1625
  %v1627 = vpop.f32.mrb[0].mxu0
  %v1628 = vadd.f32 %v165, %v1627
  %v1629 = vpop.f32.mrb[0].mxu0
  %v1630 = vpop.f32.mrb[0].mxu0
  %1631 = vdwg.mxu0
  %1632 = vmatprep.subr.bf16.mxu0 %v626
  %1633 = vmatpush1.bf16.msra.mxu0 %v625
  %1634 = vmatprep.subr.bf16.mxu0 %v683
  %1635 = vmatpush1.bf16.msra.mxu0 %v682
  %1636 = vmatprep.subr.bf16.mxu0 %v975
  %1637 = vmatpush1.bf16.msra.mxu0 %v972
  %1638 = vmatprep.subr.bf16.mxu0 0
  %1639 = vmatpush1.bf16.msra.mxu0 0
  %1640 = vmatprep.subr.bf16.mxu0 0
  %1641 = vmatpush1.bf16.msra.mxu0 0
  %1642 = vmatprep.subr.bf16.mxu0 0
  %1643 = vmatpush1.bf16.msra.mxu0 0
  %1644 = vmatprep.subr.bf16.mxu0 0
  %1645 = vmatpush1.bf16.msra.mxu0 0
  %1646 = vmatprep.subr.bf16.mxu0 0
  %1647 = vmatpush1.bf16.msra.mxu0 0
  %1648 = vmatprep.subr.bf16.mxu0 0
  %1649 = vmatpush1.bf16.msra.mxu0 0
  %1650 = vmatprep.subr.bf16.mxu0 0
  %1651 = vmatpush1.bf16.msra.mxu0 0
  %1652 = vmatprep.subr.bf16.mxu0 0
  %1653 = vmatpush1.bf16.msra.mxu0 0
  %1654 = vmatprep.subr.bf16.mxu0 0
  %1655 = vmatpush1.bf16.msra.mxu0 0
  %1656 = vmatprep.subr.bf16.mxu0 0
  %1657 = vmatpush1.bf16.msra.mxu0 0
  %1658 = vmatprep.subr.bf16.mxu0 0
  %1659 = vmatpush1.bf16.msra.mxu0 0
  %1660 = vmatprep.subr.bf16.mxu0 0
  %1661 = vmatpush1.bf16.msra.mxu0 0
  %1662 = vmatprep.subr.bf16.mxu0 0
  %1663 = vmatpush1.bf16.msra.mxu0 0
  %1664 = vmatprep.mubr.bf16.mxu0 0
  %1665 = vmatmul.mubr.bf16.gmra.mrb[0].mxu0 %v884
  %v1666 = vpop.f32.mrb[0].mxu0
  %v1667 = vadd.f32 %v165, %v1666
  %v1668 = vpop.f32.mrb[0].mxu0
  %v1669 = vadd.f32 %v165, %v1668
  %v1670 = vpop.f32.mrb[0].mxu0
  %v1671 = vpop.f32.mrb[0].mxu0
  %1672 = vdwg.mxu0
  %1673 = vmatprep.subr.bf16.mxu0 %v628
  %1674 = vmatpush1.bf16.msra.mxu0 %v627
  %1675 = vmatprep.subr.bf16.mxu0 %v685
  %1676 = vmatpush1.bf16.msra.mxu0 %v684
  %1677 = vmatprep.subr.bf16.mxu0 %v981
  %1678 = vmatpush1.bf16.msra.mxu0 %v978
  %1679 = vmatprep.subr.bf16.mxu0 0
  %1680 = vmatpush1.bf16.msra.mxu0 0
  %1681 = vmatprep.subr.bf16.mxu0 0
  %1682 = vmatpush1.bf16.msra.mxu0 0
  %1683 = vmatprep.subr.bf16.mxu0 0
  %1684 = vmatpush1.bf16.msra.mxu0 0
  %1685 = vmatprep.subr.bf16.mxu0 0
  %1686 = vmatpush1.bf16.msra.mxu0 0
  %1687 = vmatprep.subr.bf16.mxu0 0
  %1688 = vmatpush1.bf16.msra.mxu0 0
  %1689 = vmatprep.subr.bf16.mxu0 0
  %1690 = vmatpush1.bf16.msra.mxu0 0
  %1691 = vmatprep.subr.bf16.mxu0 0
  %1692 = vmatpush1.bf16.msra.mxu0 0
  %1693 = vmatprep.subr.bf16.mxu0 0
  %1694 = vmatpush1.bf16.msra.mxu0 0
  %1695 = vmatprep.subr.bf16.mxu0 0
  %1696 = vmatpush1.bf16.msra.mxu0 0
  %1697 = vmatprep.subr.bf16.mxu0 0
  %1698 = vmatpush1.bf16.msra.mxu0 0
  %1699 = vmatprep.subr.bf16.mxu0 0
  %1700 = vmatpush1.bf16.msra.mxu0 0
  %1701 = vmatprep.subr.bf16.mxu0 0
  %1702 = vmatpush1.bf16.msra.mxu0 0
  %1703 = vmatprep.subr.bf16.mxu0 0
  %1704 = vmatpush1.bf16.msra.mxu0 0
  %1705 = vmatprep.mubr.bf16.mxu0 0
  %1706 = vmatmul.mubr.bf16.gmra.mrb[0].mxu0 %v884
  %v1707 = vpop.f32.mrb[0].mxu0
  %v1708 = vadd.f32 %v165, %v1707
  %v1709 = vpop.f32.mrb[0].mxu0
  %v1710 = vadd.f32 %v165, %v1709
  %v1711 = vpop.f32.mrb[0].mxu0
  %v1712 = vpop.f32.mrb[0].mxu0
  %1713 = vdwg.mxu0
  %1714 = vmatprep.subr.bf16.mxu0 %v630
  %1715 = vmatpush1.bf16.msra.mxu0 %v629
  %1716 = vmatprep.subr.bf16.mxu0 %v687
  %1717 = vmatpush1.bf16.msra.mxu0 %v686
  %1718 = vmatprep.subr.bf16.mxu0 %v987
  %1719 = vmatpush1.bf16.msra.mxu0 %v984
  %1720 = vmatprep.subr.bf16.mxu0 0
  %1721 = vmatpush1.bf16.msra.mxu0 0
  %1722 = vmatprep.subr.bf16.mxu0 0
  %1723 = vmatpush1.bf16.msra.mxu0 0
  %1724 = vmatprep.subr.bf16.mxu0 0
  %1725 = vmatpush1.bf16.msra.mxu0 0
  %1726 = vmatprep.subr.bf16.mxu0 0
  %1727 = vmatpush1.bf16.msra.mxu0 0
  %1728 = vmatprep.subr.bf16.mxu0 0
  %1729 = vmatpush1.bf16.msra.mxu0 0
  %1730 = vmatprep.subr.bf16.mxu0 0
  %1731 = vmatpush1.bf16.msra.mxu0 0
  %1732 = vmatprep.subr.bf16.mxu0 0
  %1733 = vmatpush1.bf16.msra.mxu0 0
  %1734 = vmatprep.subr.bf16.mxu0 0
  %1735 = vmatpush1.bf16.msra.mxu0 0
  %1736 = vmatprep.subr.bf16.mxu0 0
  %1737 = vmatpush1.bf16.msra.mxu0 0
  %1738 = vmatprep.subr.bf16.mxu0 0
  %1739 = vmatpush1.bf16.msra.mxu0 0
  %1740 = vmatprep.subr.bf16.mxu0 0
  %1741 = vmatpush1.bf16.msra.mxu0 0
  %1742 = vmatprep.subr.bf16.mxu0 0
  %1743 = vmatpush1.bf16.msra.mxu0 0
  %1744 = vmatprep.subr.bf16.mxu0 0
  %1745 = vmatpush1.bf16.msra.mxu0 0
  %1746 = vmatprep.mubr.bf16.mxu0 0
  %1747 = vmatmul.mubr.bf16.gmra.mrb[0].mxu0 %v884
  %v1748 = vpop.f32.mrb[0].mxu0
  %v1749 = vadd.f32 %v165, %v1748
  %v1750 = vpop.f32.mrb[0].mxu0
  %v1751 = vadd.f32 %v165, %v1750
  %v1752 = vpop.f32.mrb[0].mxu0
  %v1753 = vpop.f32.mrb[0].mxu0
  %1754 = vdwg.mxu0
  %1755 = vmatprep.subr.bf16.mxu0 %v632
  %1756 = vmatpush1.bf16.msra.mxu0 %v631
  %1757 = vmatprep.subr.bf16.mxu0 %v689
  %1758 = vmatpush1.bf16.msra.mxu0 %v688
  %1759 = vmatprep.subr.bf16.mxu0 %v993
  %1760 = vmatpush1.bf16.msra.mxu0 %v990
  %1761 = vmatprep.subr.bf16.mxu0 0
  %1762 = vmatpush1.bf16.msra.mxu0 0
  %1763 = vmatprep.subr.bf16.mxu0 0
  %1764 = vmatpush1.bf16.msra.mxu0 0
  %1765 = vmatprep.subr.bf16.mxu0 0
  %1766 = vmatpush1.bf16.msra.mxu0 0
  %1767 = vmatprep.subr.bf16.mxu0 0
  %1768 = vmatpush1.bf16.msra.mxu0 0
  %1769 = vmatprep.subr.bf16.mxu0 0
  %1770 = vmatpush1.bf16.msra.mxu0 0
  %1771 = vmatprep.subr.bf16.mxu0 0
  %1772 = vmatpush1.bf16.msra.mxu0 0
  %1773 = vmatprep.subr.bf16.mxu0 0
  %1774 = vmatpush1.bf16.msra.mxu0 0
  %1775 = vmatprep.subr.bf16.mxu0 0
  %1776 = vmatpush1.bf16.msra.mxu0 0
  %1777 = vmatprep.subr.bf16.mxu0 0
  %1778 = vmatpush1.bf16.msra.mxu0 0
  %1779 = vmatprep.subr.bf16.mxu0 0
  %1780 = vmatpush1.bf16.msra.mxu0 0
  %1781 = vmatprep.subr.bf16.mxu0 0
  %1782 = vmatpush1.bf16.msra.mxu0 0
  %1783 = vmatprep.subr.bf16.mxu0 0
  %1784 = vmatpush1.bf16.msra.mxu0 0
  %1785 = vmatprep.subr.bf16.mxu0 0
  %1786 = vmatpush1.bf16.msra.mxu0 0
  %1787 = vmatprep.mubr.bf16.mxu0 0
  %1788 = vmatmul.mubr.bf16.gmra.mrb[0].mxu0 %v884
  %v1789 = vpop.f32.mrb[0].mxu0
  %v1790 = vadd.f32 %v165, %v1789
  %v1791 = vpop.f32.mrb[0].mxu0
  %v1792 = vadd.f32 %v165, %v1791
  %v1793 = vpop.f32.mrb[0].mxu0
  %v1794 = vpop.f32.mrb[0].mxu0
  %1795 = vdwg.mxu0
  %1796 = vmatprep.subr.bf16.mxu0 %v634
  %1797 = vmatpush1.bf16.msra.mxu0 %v633
  %1798 = vmatprep.subr.bf16.mxu0 %v691
  %1799 = vmatpush1.bf16.msra.mxu0 %v690
  %1800 = vmatprep.subr.bf16.mxu0 %v999
  %1801 = vmatpush1.bf16.msra.mxu0 %v996
  %1802 = vmatprep.subr.bf16.mxu0 0
  %1803 = vmatpush1.bf16.msra.mxu0 0
  %1804 = vmatprep.subr.bf16.mxu0 0
  %1805 = vmatpush1.bf16.msra.mxu0 0
  %1806 = vmatprep.subr.bf16.mxu0 0
  %1807 = vmatpush1.bf16.msra.mxu0 0
  %1808 = vmatprep.subr.bf16.mxu0 0
  %1809 = vmatpush1.bf16.msra.mxu0 0
  %1810 = vmatprep.subr.bf16.mxu0 0
  %1811 = vmatpush1.bf16.msra.mxu0 0
  %1812 = vmatprep.subr.bf16.mxu0 0
  %1813 = vmatpush1.bf16.msra.mxu0 0
  %1814 = vmatprep.subr.bf16.mxu0 0
  %1815 = vmatpush1.bf16.msra.mxu0 0
  %1816 = vmatprep.subr.bf16.mxu0 0
  %1817 = vmatpush1.bf16.msra.mxu0 0
  %1818 = vmatprep.subr.bf16.mxu0 0
  %1819 = vmatpush1.bf16.msra.mxu0 0
  %1820 = vmatprep.subr.bf16.mxu0 0
  %1821 = vmatpush1.bf16.msra.mxu0 0
  %1822 = vmatprep.subr.bf16.mxu0 0
  %1823 = vmatpush1.bf16.msra.mxu0 0
  %1824 = vmatprep.subr.bf16.mxu0 0
  %1825 = vmatpush1.bf16.msra.mxu0 0
  %1826 = vmatprep.subr.bf16.mxu0 0
  %1827 = vmatpush1.bf16.msra.mxu0 0
  %1828 = vmatprep.mubr.bf16.mxu0 0
  %1829 = vmatmul.mubr.bf16.gmra.mrb[0].mxu0 %v884
  %v1830 = vpop.f32.mrb[0].mxu0
  %v1831 = vadd.f32 %v165, %v1830
  %v1832 = vpop.f32.mrb[0].mxu0
  %v1833 = vadd.f32 %v165, %v1832
  %v1834 = vpop.f32.mrb[0].mxu0
  %v1835 = vpop.f32.mrb[0].mxu0
  %1836 = vdwg.mxu0
  %1837 = vmatprep.subr.bf16.mxu0 %v636
  %1838 = vmatpush1.bf16.msra.mxu0 %v635
  %1839 = vmatprep.subr.bf16.mxu0 %v693
  %1840 = vmatpush1.bf16.msra.mxu0 %v692
  %1841 = vmatprep.subr.bf16.mxu0 %v1005
  %1842 = vmatpush1.bf16.msra.mxu0 %v1002
  %1843 = vmatprep.subr.bf16.mxu0 0
  %1844 = vmatpush1.bf16.msra.mxu0 0
  %1845 = vmatprep.subr.bf16.mxu0 0
  %1846 = vmatpush1.bf16.msra.mxu0 0
  %1847 = vmatprep.subr.bf16.mxu0 0
  %1848 = vmatpush1.bf16.msra.mxu0 0
  %1849 = vmatprep.subr.bf16.mxu0 0
  %1850 = vmatpush1.bf16.msra.mxu0 0
  %1851 = vmatprep.subr.bf16.mxu0 0
  %1852 = vmatpush1.bf16.msra.mxu0 0
  %1853 = vmatprep.subr.bf16.mxu0 0
  %1854 = vmatpush1.bf16.msra.mxu0 0
  %1855 = vmatprep.subr.bf16.mxu0 0
  %1856 = vmatpush1.bf16.msra.mxu0 0
  %1857 = vmatprep.subr.bf16.mxu0 0
  %1858 = vmatpush1.bf16.msra.mxu0 0
  %1859 = vmatprep.subr.bf16.mxu0 0
  %1860 = vmatpush1.bf16.msra.mxu0 0
  %1861 = vmatprep.subr.bf16.mxu0 0
  %1862 = vmatpush1.bf16.msra.mxu0 0
  %1863 = vmatprep.subr.bf16.mxu0 0
  %1864 = vmatpush1.bf16.msra.mxu0 0
  %1865 = vmatprep.subr.bf16.mxu0 0
  %1866 = vmatpush1.bf16.msra.mxu0 0
  %1867 = vmatprep.subr.bf16.mxu0 0
  %1868 = vmatpush1.bf16.msra.mxu0 0
  %1869 = vmatprep.mubr.bf16.mxu0 0
  %1870 = vmatmul.mubr.bf16.gmra.mrb[0].mxu0 %v884
  %v1871 = vpop.f32.mrb[0].mxu0
  %v1872 = vadd.f32 %v165, %v1871
  %v1873 = vpop.f32.mrb[0].mxu0
  %v1874 = vadd.f32 %v165, %v1873
  %v1875 = vpop.f32.mrb[0].mxu0
  %v1876 = vpop.f32.mrb[0].mxu0
  %1877 = vdwg.mxu0
  %1878 = vmatprep.subr.bf16.mxu0 %v638
  %1879 = vmatpush1.bf16.msra.mxu0 %v637
  %1880 = vmatprep.subr.bf16.mxu0 %v695
  %1881 = vmatpush1.bf16.msra.mxu0 %v694
  %1882 = vmatprep.subr.bf16.mxu0 %v1011
  %1883 = vmatpush1.bf16.msra.mxu0 %v1008
  %1884 = vmatprep.subr.bf16.mxu0 0
  %1885 = vmatpush1.bf16.msra.mxu0 0
  %1886 = vmatprep.subr.bf16.mxu0 0
  %1887 = vmatpush1.bf16.msra.mxu0 0
  %1888 = vmatprep.subr.bf16.mxu0 0
  %1889 = vmatpush1.bf16.msra.mxu0 0
  %1890 = vmatprep.subr.bf16.mxu0 0
  %1891 = vmatpush1.bf16.msra.mxu0 0
  %1892 = vmatprep.subr.bf16.mxu0 0
  %1893 = vmatpush1.bf16.msra.mxu0 0
  %1894 = vmatprep.subr.bf16.mxu0 0
  %1895 = vmatpush1.bf16.msra.mxu0 0
  %1896 = vmatprep.subr.bf16.mxu0 0
  %1897 = vmatpush1.bf16.msra.mxu0 0
  %1898 = vmatprep.subr.bf16.mxu0 0
  %1899 = vmatpush1.bf16.msra.mxu0 0
  %1900 = vmatprep.subr.bf16.mxu0 0
  %1901 = vmatpush1.bf16.msra.mxu0 0
  %1902 = vmatprep.subr.bf16.mxu0 0
  %1903 = vmatpush1.bf16.msra.mxu0 0
  %1904 = vmatprep.subr.bf16.mxu0 0
  %1905 = vmatpush1.bf16.msra.mxu0 0
  %1906 = vmatprep.subr.bf16.mxu0 0
  %1907 = vmatpush1.bf16.msra.mxu0 0
  %1908 = vmatprep.subr.bf16.mxu0 0
  %1909 = vmatpush1.bf16.msra.mxu0 0
  %1910 = vmatprep.mubr.bf16.mxu0 0
  %1911 = vmatmul.mubr.bf16.gmra.mrb[0].mxu0 %v884
  %v1912 = vpop.f32.mrb[0].mxu0
  %v1913 = vadd.f32 %v165, %v1912
  %v1914 = vpop.f32.mrb[0].mxu0
  %v1915 = vadd.f32 %v165, %v1914
  %v1916 = vpop.f32.mrb[0].mxu0
  %v1917 = vpop.f32.mrb[0].mxu0
  %1918 = vdwg.mxu0
  %1919 = vmatprep.subr.bf16.mxu0 %v640
  %1920 = vmatpush1.bf16.msra.mxu0 %v639
  %1921 = vmatprep.subr.bf16.mxu0 %v697
  %1922 = vmatpush1.bf16.msra.mxu0 %v696
  %1923 = vmatprep.subr.bf16.mxu0 %v1017
  %1924 = vmatpush1.bf16.msra.mxu0 %v1014
  %1925 = vmatprep.subr.bf16.mxu0 0
  %1926 = vmatpush1.bf16.msra.mxu0 0
  %1927 = vmatprep.subr.bf16.mxu0 0
  %1928 = vmatpush1.bf16.msra.mxu0 0
  %1929 = vmatprep.subr.bf16.mxu0 0
  %1930 = vmatpush1.bf16.msra.mxu0 0
  %1931 = vmatprep.subr.bf16.mxu0 0
  %1932 = vmatpush1.bf16.msra.mxu0 0
  %1933 = vmatprep.subr.bf16.mxu0 0
  %1934 = vmatpush1.bf16.msra.mxu0 0
  %1935 = vmatprep.subr.bf16.mxu0 0
  %1936 = vmatpush1.bf16.msra.mxu0 0
  %1937 = vmatprep.subr.bf16.mxu0 0
  %1938 = vmatpush1.bf16.msra.mxu0 0
  %1939 = vmatprep.subr.bf16.mxu0 0
  %1940 = vmatpush1.bf16.msra.mxu0 0
  %1941 = vmatprep.subr.bf16.mxu0 0
  %1942 = vmatpush1.bf16.msra.mxu0 0
  %1943 = vmatprep.subr.bf16.mxu0 0
  %1944 = vmatpush1.bf16.msra.mxu0 0
  %1945 = vmatprep.subr.bf16.mxu0 0
  %1946 = vmatpush1.bf16.msra.mxu0 0
  %1947 = vmatprep.subr.bf16.mxu0 0
  %1948 = vmatpush1.bf16.msra.mxu0 0
  %1949 = vmatprep.subr.bf16.mxu0 0
  %1950 = vmatpush1.bf16.msra.mxu0 0
  %1951 = vmatprep.mubr.bf16.mxu0 0
  %1952 = vmatmul.mubr.bf16.gmra.mrb[0].mxu0 %v884
  %v1953 = vpop.f32.mrb[0].mxu0
  %v1954 = vadd.f32 %v165, %v1953
  %v1955 = vpop.f32.mrb[0].mxu0
  %v1956 = vadd.f32 %v165, %v1955
  %v1957 = vpop.f32.mrb[0].mxu0
  %v1958 = vpop.f32.mrb[0].mxu0
  %1959 = vdwg.mxu0
  %1960 = vmatprep.subr.bf16.mxu0 %v642
  %1961 = vmatpush1.bf16.msra.mxu0 %v641
  %1962 = vmatprep.subr.bf16.mxu0 %v699
  %1963 = vmatpush1.bf16.msra.mxu0 %v698
  %1964 = vmatprep.subr.bf16.mxu0 %v1023
  %1965 = vmatpush1.bf16.msra.mxu0 %v1020
  %1966 = vmatprep.subr.bf16.mxu0 0
  %1967 = vmatpush1.bf16.msra.mxu0 0
  %1968 = vmatprep.subr.bf16.mxu0 0
  %1969 = vmatpush1.bf16.msra.mxu0 0
  %1970 = vmatprep.subr.bf16.mxu0 0
  %1971 = vmatpush1.bf16.msra.mxu0 0
  %1972 = vmatprep.subr.bf16.mxu0 0
  %1973 = vmatpush1.bf16.msra.mxu0 0
  %1974 = vmatprep.subr.bf16.mxu0 0
  %1975 = vmatpush1.bf16.msra.mxu0 0
  %1976 = vmatprep.subr.bf16.mxu0 0
  %1977 = vmatpush1.bf16.msra.mxu0 0
  %1978 = vmatprep.subr.bf16.mxu0 0
  %1979 = vmatpush1.bf16.msra.mxu0 0
  %1980 = vmatprep.subr.bf16.mxu0 0
  %1981 = vmatpush1.bf16.msra.mxu0 0
  %1982 = vmatprep.subr.bf16.mxu0 0
  %1983 = vmatpush1.bf16.msra.mxu0 0
  %1984 = vmatprep.subr.bf16.mxu0 0
  %1985 = vmatpush1.bf16.msra.mxu0 0
  %1986 = vmatprep.subr.bf16.mxu0 0
  %1987 = vmatpush1.bf16.msra.mxu0 0
  %1988 = vmatprep.subr.bf16.mxu0 0
  %1989 = vmatpush1.bf16.msra.mxu0 0
  %1990 = vmatprep.subr.bf16.mxu0 0
  %1991 = vmatpush1.bf16.msra.mxu0 0
  %1992 = vmatprep.mubr.bf16.mxu0 0
  %1993 = vmatmul.mubr.bf16.gmra.mrb[0].mxu0 %v884
  %v1994 = vpop.f32.mrb[0].mxu0
  %v1995 = vadd.f32 %v165, %v1994
  %v1996 = vpop.f32.mrb[0].mxu0
  %v1997 = vadd.f32 %v165, %v1996
  %v1998 = vpop.f32.mrb[0].mxu0
  %v1999 = vpop.f32.mrb[0].mxu0
  %2000 = vdwg.mxu0
  %2001 = vmatprep.subr.bf16.mxu0 %v644
  %2002 = vmatpush1.bf16.msra.mxu0 %v643
  %2003 = vmatprep.subr.bf16.mxu0 %v701
  %2004 = vmatpush1.bf16.msra.mxu0 %v700
  %2005 = vmatprep.subr.bf16.mxu0 %v1029
  %2006 = vmatpush1.bf16.msra.mxu0 %v1026
  %2007 = vmatprep.subr.bf16.mxu0 0
  %2008 = vmatpush1.bf16.msra.mxu0 0
  %2009 = vmatprep.subr.bf16.mxu0 0
  %2010 = vmatpush1.bf16.msra.mxu0 0
  %2011 = vmatprep.subr.bf16.mxu0 0
  %2012 = vmatpush1.bf16.msra.mxu0 0
  %2013 = vmatprep.subr.bf16.mxu0 0
  %2014 = vmatpush1.bf16.msra.mxu0 0
  %2015 = vmatprep.subr.bf16.mxu0 0
  %2016 = vmatpush1.bf16.msra.mxu0 0
  %2017 = vmatprep.subr.bf16.mxu0 0
  %2018 = vmatpush1.bf16.msra.mxu0 0
  %2019 = vmatprep.subr.bf16.mxu0 0
  %2020 = vmatpush1.bf16.msra.mxu0 0
  %2021 = vmatprep.subr.bf16.mxu0 0
  %2022 = vmatpush1.bf16.msra.mxu0 0
  %2023 = vmatprep.subr.bf16.mxu0 0
  %2024 = vmatpush1.bf16.msra.mxu0 0
  %2025 = vmatprep.subr.bf16.mxu0 0
  %2026 = vmatpush1.bf16.msra.mxu0 0
  %2027 = vmatprep.subr.bf16.mxu0 0
  %2028 = vmatpush1.bf16.msra.mxu0 0
  %2029 = vmatprep.subr.bf16.mxu0 0
  %2030 = vmatpush1.bf16.msra.mxu0 0
  %2031 = vmatprep.subr.bf16.mxu0 0
  %2032 = vmatpush1.bf16.msra.mxu0 0
  %2033 = vmatprep.mubr.bf16.mxu0 0
  %2034 = vmatmul.mubr.bf16.gmra.mrb[0].mxu0 %v884
  %v2035 = vpop.f32.mrb[0].mxu0
  %v2036 = vadd.f32 %v165, %v2035
  %v2037 = vpop.f32.mrb[0].mxu0
  %v2038 = vadd.f32 %v165, %v2037
  %v2039 = vpop.f32.mrb[0].mxu0
  %v2040 = vpop.f32.mrb[0].mxu0
  %2041 = vdwg.mxu0
  %2042 = vmatprep.subr.bf16.mxu0 %v646
  %2043 = vmatpush1.bf16.msra.mxu0 %v645
  %2044 = vmatprep.subr.bf16.mxu0 %v703
  %2045 = vmatpush1.bf16.msra.mxu0 %v702
  %2046 = vmatprep.subr.bf16.mxu0 %v1035
  %2047 = vmatpush1.bf16.msra.mxu0 %v1032
  %2048 = vmatprep.subr.bf16.mxu0 0
  %2049 = vmatpush1.bf16.msra.mxu0 0
  %2050 = vmatprep.subr.bf16.mxu0 0
  %2051 = vmatpush1.bf16.msra.mxu0 0
  %2052 = vmatprep.subr.bf16.mxu0 0
  %2053 = vmatpush1.bf16.msra.mxu0 0
  %2054 = vmatprep.subr.bf16.mxu0 0
  %2055 = vmatpush1.bf16.msra.mxu0 0
  %2056 = vmatprep.subr.bf16.mxu0 0
  %2057 = vmatpush1.bf16.msra.mxu0 0
  %2058 = vmatprep.subr.bf16.mxu0 0
  %2059 = vmatpush1.bf16.msra.mxu0 0
  %2060 = vmatprep.subr.bf16.mxu0 0
  %2061 = vmatpush1.bf16.msra.mxu0 0
  %2062 = vmatprep.subr.bf16.mxu0 0
  %2063 = vmatpush1.bf16.msra.mxu0 0
  %2064 = vmatprep.subr.bf16.mxu0 0
  %2065 = vmatpush1.bf16.msra.mxu0 0
  %2066 = vmatprep.subr.bf16.mxu0 0
  %2067 = vmatpush1.bf16.msra.mxu0 0
  %2068 = vmatprep.subr.bf16.mxu0 0
  %2069 = vmatpush1.bf16.msra.mxu0 0
  %2070 = vmatprep.subr.bf16.mxu0 0
  %2071 = vmatpush1.bf16.msra.mxu0 0
  %2072 = vmatprep.subr.bf16.mxu0 0
  %2073 = vmatpush1.bf16.msra.mxu0 0
  %2074 = vmatprep.mubr.bf16.mxu0 0
  %2075 = vmatmul.mubr.bf16.gmra.mrb[0].mxu0 %v884
  %v2076 = vpop.f32.mrb[0].mxu0
  %v2077 = vadd.f32 %v165, %v2076
  %v2078 = vpop.f32.mrb[0].mxu0
  %v2079 = vadd.f32 %v165, %v2078
  %v2080 = vpop.f32.mrb[0].mxu0
  %v2081 = vpop.f32.mrb[0].mxu0
  %2082 = vdwg.mxu0
  %2083 = vmatprep.subr.bf16.mxu0 %v648
  %2084 = vmatpush1.bf16.msra.mxu0 %v647
  %2085 = vmatprep.subr.bf16.mxu0 %v705
  %2086 = vmatpush1.bf16.msra.mxu0 %v704
  %2087 = vmatprep.subr.bf16.mxu0 %v1041
  %2088 = vmatpush1.bf16.msra.mxu0 %v1038
  %2089 = vmatprep.subr.bf16.mxu0 0
  %2090 = vmatpush1.bf16.msra.mxu0 0
  %2091 = vmatprep.subr.bf16.mxu0 0
  %2092 = vmatpush1.bf16.msra.mxu0 0
  %2093 = vmatprep.subr.bf16.mxu0 0
  %2094 = vmatpush1.bf16.msra.mxu0 0
  %2095 = vmatprep.subr.bf16.mxu0 0
  %2096 = vmatpush1.bf16.msra.mxu0 0
  %2097 = vmatprep.subr.bf16.mxu0 0
  %2098 = vmatpush1.bf16.msra.mxu0 0
  %2099 = vmatprep.subr.bf16.mxu0 0
  %2100 = vmatpush1.bf16.msra.mxu0 0
  %2101 = vmatprep.subr.bf16.mxu0 0
  %2102 = vmatpush1.bf16.msra.mxu0 0
  %2103 = vmatprep.subr.bf16.mxu0 0
  %2104 = vmatpush1.bf16.msra.mxu0 0
  %2105 = vmatprep.subr.bf16.mxu0 0
  %2106 = vmatpush1.bf16.msra.mxu0 0
  %2107 = vmatprep.subr.bf16.mxu0 0
  %2108 = vmatpush1.bf16.msra.mxu0 0
  %2109 = vmatprep.subr.bf16.mxu0 0
  %2110 = vmatpush1.bf16.msra.mxu0 0
  %2111 = vmatprep.subr.bf16.mxu0 0
  %2112 = vmatpush1.bf16.msra.mxu0 0
  %2113 = vmatprep.subr.bf16.mxu0 0
  %2114 = vmatpush1.bf16.msra.mxu0 0
  %2115 = vmatprep.mubr.bf16.mxu0 0
  %2116 = vmatmul.mubr.bf16.gmra.mrb[0].mxu0 %v884
  %v2117 = vpop.f32.mrb[0].mxu0
  %v2118 = vadd.f32 %v165, %v2117
  %v2119 = vpop.f32.mrb[0].mxu0
  %v2120 = vadd.f32 %v165, %v2119
  %v2121 = vpop.f32.mrb[0].mxu0
  %v2122 = vpop.f32.mrb[0].mxu0
  %2123 = vdwg.mxu0
  %2124 = vmatprep.subr.bf16.mxu0 %v650
  %2125 = vmatpush1.bf16.msra.mxu0 %v649
  %2126 = vmatprep.subr.bf16.mxu0 %v707
  %2127 = vmatpush1.bf16.msra.mxu0 %v706
  %2128 = vmatprep.subr.bf16.mxu0 %v1047
  %2129 = vmatpush1.bf16.msra.mxu0 %v1044
  %2130 = vmatprep.subr.bf16.mxu0 0
  %2131 = vmatpush1.bf16.msra.mxu0 0
  %2132 = vmatprep.subr.bf16.mxu0 0
  %2133 = vmatpush1.bf16.msra.mxu0 0
  %2134 = vmatprep.subr.bf16.mxu0 0
  %2135 = vmatpush1.bf16.msra.mxu0 0
  %2136 = vmatprep.subr.bf16.mxu0 0
  %2137 = vmatpush1.bf16.msra.mxu0 0
  %2138 = vmatprep.subr.bf16.mxu0 0
  %2139 = vmatpush1.bf16.msra.mxu0 0
  %2140 = vmatprep.subr.bf16.mxu0 0
  %2141 = vmatpush1.bf16.msra.mxu0 0
  %2142 = vmatprep.subr.bf16.mxu0 0
  %2143 = vmatpush1.bf16.msra.mxu0 0
  %2144 = vmatprep.subr.bf16.mxu0 0
  %2145 = vmatpush1.bf16.msra.mxu0 0
  %2146 = vmatprep.subr.bf16.mxu0 0
  %2147 = vmatpush1.bf16.msra.mxu0 0
  %2148 = vmatprep.subr.bf16.mxu0 0
  %2149 = vmatpush1.bf16.msra.mxu0 0
  %2150 = vmatprep.subr.bf16.mxu0 0
  %2151 = vmatpush1.bf16.msra.mxu0 0
  %2152 = vmatprep.subr.bf16.mxu0 0
  %2153 = vmatpush1.bf16.msra.mxu0 0
  %2154 = vmatprep.subr.bf16.mxu0 0
  %2155 = vmatpush1.bf16.msra.mxu0 0
  %2156 = vmatprep.mubr.bf16.mxu0 0
  %2157 = vmatmul.mubr.bf16.gmra.mrb[0].mxu0 %v884
  %v2158 = vpop.f32.mrb[0].mxu0
  %v2159 = vadd.f32 %v165, %v2158
  %v2160 = vpop.f32.mrb[0].mxu0
  %v2161 = vadd.f32 %v165, %v2160
  %v2162 = vpop.f32.mrb[0].mxu0
  %v2163 = vpop.f32.mrb[0].mxu0
  %2164 = vdwg.mxu0
  %2165 = vmatprep.subr.bf16.mxu0 %v652
  %2166 = vmatpush1.bf16.msra.mxu0 %v651
  %2167 = vmatprep.subr.bf16.mxu0 %v709
  %2168 = vmatpush1.bf16.msra.mxu0 %v708
  %2169 = vmatprep.subr.bf16.mxu0 %v1053
  %2170 = vmatpush1.bf16.msra.mxu0 %v1050
  %2171 = vmatprep.subr.bf16.mxu0 0
  %2172 = vmatpush1.bf16.msra.mxu0 0
  %2173 = vmatprep.subr.bf16.mxu0 0
  %2174 = vmatpush1.bf16.msra.mxu0 0
  %2175 = vmatprep.subr.bf16.mxu0 0
  %2176 = vmatpush1.bf16.msra.mxu0 0
  %2177 = vmatprep.subr.bf16.mxu0 0
  %2178 = vmatpush1.bf16.msra.mxu0 0
  %2179 = vmatprep.subr.bf16.mxu0 0
  %2180 = vmatpush1.bf16.msra.mxu0 0
  %2181 = vmatprep.subr.bf16.mxu0 0
  %2182 = vmatpush1.bf16.msra.mxu0 0
  %2183 = vmatprep.subr.bf16.mxu0 0
  %2184 = vmatpush1.bf16.msra.mxu0 0
  %2185 = vmatprep.subr.bf16.mxu0 0
  %2186 = vmatpush1.bf16.msra.mxu0 0
  %2187 = vmatprep.subr.bf16.mxu0 0
  %2188 = vmatpush1.bf16.msra.mxu0 0
  %2189 = vmatprep.subr.bf16.mxu0 0
  %2190 = vmatpush1.bf16.msra.mxu0 0
  %2191 = vmatprep.subr.bf16.mxu0 0
  %2192 = vmatpush1.bf16.msra.mxu0 0
  %2193 = vmatprep.subr.bf16.mxu0 0
  %2194 = vmatpush1.bf16.msra.mxu0 0
  %2195 = vmatprep.subr.bf16.mxu0 0
  %2196 = vmatpush1.bf16.msra.mxu0 0
  %2197 = vmatprep.mubr.bf16.mxu0 0
  %2198 = vmatmul.mubr.bf16.gmra.mrb[0].mxu0 %v884
  %v2199 = vpop.f32.mrb[0].mxu0
  %v2200 = vadd.f32 %v165, %v2199
  %v2201 = vpop.f32.mrb[0].mxu0
  %v2202 = vadd.f32 %v165, %v2201
  %v2203 = vpop.f32.mrb[0].mxu0
  %v2204 = vpop.f32.mrb[0].mxu0
  %2205 = vdwg.mxu0
  %2206 = vmatprep.subr.bf16.mxu0 0
  %2207 = vmatpush1.bf16.msra.mxu0 %v653
  %2208 = vmatprep.subr.bf16.mxu0 0
  %2209 = vmatpush1.bf16.msra.mxu0 %v710
  %2210 = vmatprep.subr.bf16.mxu0 0
  %2211 = vmatpush1.bf16.msra.mxu0 %v1056
  %2212 = vmatprep.subr.bf16.mxu0 0
  %2213 = vmatpush1.bf16.msra.mxu0 0
  %2214 = vmatprep.subr.bf16.mxu0 0
  %2215 = vmatpush1.bf16.msra.mxu0 0
  %2216 = vmatprep.subr.bf16.mxu0 0
  %2217 = vmatpush1.bf16.msra.mxu0 0
  %2218 = vmatprep.subr.bf16.mxu0 0
  %2219 = vmatpush1.bf16.msra.mxu0 0
  %2220 = vmatprep.subr.bf16.mxu0 0
  %2221 = vmatpush1.bf16.msra.mxu0 0
  %2222 = vmatprep.subr.bf16.mxu0 0
  %2223 = vmatpush1.bf16.msra.mxu0 0
  %2224 = vmatprep.subr.bf16.mxu0 0
  %2225 = vmatpush1.bf16.msra.mxu0 0
  %2226 = vmatprep.subr.bf16.mxu0 0
  %2227 = vmatpush1.bf16.msra.mxu0 0
  %2228 = vmatprep.subr.bf16.mxu0 0
  %2229 = vmatpush1.bf16.msra.mxu0 0
  %2230 = vmatprep.subr.bf16.mxu0 0
  %2231 = vmatpush1.bf16.msra.mxu0 0
  %2232 = vmatprep.subr.bf16.mxu0 0
  %2233 = vmatpush1.bf16.msra.mxu0 0
  %2234 = vmatprep.subr.bf16.mxu0 0
  %2235 = vmatpush1.bf16.msra.mxu0 0
  %2236 = vmatprep.subr.bf16.mxu0 0
  %2237 = vmatpush1.bf16.msra.mxu0 0
  %2238 = vmatprep.mubr.bf16.mxu0 0
  %2239 = vmatmul.mubr.bf16.gmra.mrb[0].mxu0 %v884
  %v2240 = vpop.f32.mrb[0].mxu0
  %v2241 = vadd.f32 %v165, %v2240
  %v2242 = vpop.f32.mrb[0].mxu0
  %v2243 = vpop.f32.mrb[0].mxu0
  %v2244 = vpop.f32.mrb[0].mxu0
  %2245 = vdwg.mxu0
  %v2246 = vmax.f32 %v1093, 0.0
  %v2247 = vmax.f32 %v1095, 0.0
  %v2248 = vmax.f32 %v1134, 0.0
  %v2249 = vmax.f32 %v1136, 0.0
  %v2250 = vmax.f32 %v1175, 0.0
  %v2251 = vmax.f32 %v1177, 0.0
  %v2252 = vmax.f32 %v1216, 0.0
  %v2253 = vmax.f32 %v1218, 0.0
  %v2254 = vmax.f32 %v1257, 0.0
  %v2255 = vmax.f32 %v1259, 0.0
  %v2256 = vmax.f32 %v1298, 0.0
  %v2257 = vmax.f32 %v1300, 0.0
  %v2258 = vmax.f32 %v1339, 0.0
  %v2259 = vmax.f32 %v1341, 0.0
  %v2260 = vmax.f32 %v1380, 0.0
  %v2261 = vmax.f32 %v1382, 0.0
  %v2262 = vmax.f32 %v1421, 0.0
  %v2263 = vmax.f32 %v1423, 0.0
  %v2264 = vmax.f32 %v1462, 0.0
  %v2265 = vmax.f32 %v1464, 0.0
  %v2266 = vmax.f32 %v1503, 0.0
  %v2267 = vmax.f32 %v1505, 0.0
  %v2268 = vmax.f32 %v1544, 0.0
  %v2269 = vmax.f32 %v1546, 0.0
  %v2270 = vmax.f32 %v1585, 0.0
  %v2271 = vmax.f32 %v1587, 0.0
  %v2272 = vmax.f32 %v1626, 0.0
  %v2273 = vmax.f32 %v1628, 0.0
  %v2274 = vmax.f32 %v1667, 0.0
  %v2275 = vmax.f32 %v1669, 0.0
  %v2276 = vmax.f32 %v1708, 0.0
  %v2277 = vmax.f32 %v1710, 0.0
  %v2278 = vmax.f32 %v1749, 0.0
  %v2279 = vmax.f32 %v1751, 0.0
  %v2280 = vmax.f32 %v1790, 0.0
  %v2281 = vmax.f32 %v1792, 0.0
  %v2282 = vmax.f32 %v1831, 0.0
  %v2283 = vmax.f32 %v1833, 0.0
  %v2284 = vmax.f32 %v1872, 0.0
  %v2285 = vmax.f32 %v1874, 0.0
  %v2286 = vmax.f32 %v1913, 0.0
  %v2287 = vmax.f32 %v1915, 0.0
  %v2288 = vmax.f32 %v1954, 0.0
  %v2289 = vmax.f32 %v1956, 0.0
  %v2290 = vmax.f32 %v1995, 0.0
  %v2291 = vmax.f32 %v1997, 0.0
  %v2292 = vmax.f32 %v2036, 0.0
  %v2293 = vmax.f32 %v2038, 0.0
  %v2294 = vmax.f32 %v2077, 0.0
  %v2295 = vmax.f32 %v2079, 0.0
  %v2296 = vmax.f32 %v2118, 0.0
  %v2297 = vmax.f32 %v2120, 0.0
  %v2298 = vmax.f32 %v2159, 0.0
  %v2299 = vmax.f32 %v2161, 0.0
  %v2300 = vmax.f32 %v2200, 0.0
  %v2301 = vmax.f32 %v2202, 0.0
  %v2302 = vmax.f32 %v2241, 0.0
  %v2359 = vcombine.low %v2246, %v2247
  %v2360 = vcombine.low %v2248, %v2249
  %v2361 = vcombine.low %v2250, %v2251
  %v2362 = vcombine.low %v2252, %v2253
  %v2363 = vcombine.low %v2254, %v2255
  %v2364 = vcombine.low %v2256, %v2257
  %v2365 = vcombine.low %v2258, %v2259
  %v2366 = vcombine.low %v2260, %v2261
  %v2367 = vcombine.low %v2262, %v2263
  %v2368 = vcombine.low %v2264, %v2265
  %v2369 = vcombine.low %v2266, %v2267
  %v2370 = vcombine.low %v2268, %v2269
  %v2371 = vcombine.low %v2270, %v2271
  %v2372 = vcombine.low %v2272, %v2273
  %v2373 = vcombine.low %v2274, %v2275
  %v2374 = vcombine.low %v2276, %v2277
  %v2375 = vcombine.low %v2278, %v2279
  %v2376 = vcombine.low %v2280, %v2281
  %v2377 = vcombine.low %v2282, %v2283
  %v2378 = vcombine.low %v2284, %v2285
  %v2379 = vcombine.low %v2286, %v2287
  %v2380 = vcombine.low %v2288, %v2289
  %v2381 = vcombine.low %v2290, %v2291
  %v2382 = vcombine.low %v2292, %v2293
  %v2383 = vcombine.low %v2294, %v2295
  %v2384 = vcombine.low %v2296, %v2297
  %v2385 = vcombine.low %v2298, %v2299
  %v2386 = vcombine.low %v2300, %v2301
  %2415 = vst [vmem:[%s3] sm:$0xff] %v2359
  %2416 = vst [vmem:[%s3 + $0x8] sm:$0xff] %v2360
  %2417 = vst [vmem:[%s3 + $0x10] sm:$0xff] %v2361
  %2418 = vst [vmem:[%s3 + $0x18] sm:$0xff] %v2362
  %2419 = vst [vmem:[%s3 + $0x20] sm:$0xff] %v2363
  %2420 = vst [vmem:[%s3 + $0x28] sm:$0xff] %v2364
  %2421 = vst [vmem:[%s3 + $0x30] sm:$0xff] %v2365
  %2422 = vst [vmem:[%s3 + $0x38] sm:$0xff] %v2366
  %2423 = vst [vmem:[%s3 + $0x40] sm:$0xff] %v2367
  %2424 = vst [vmem:[%s3 + $0x48] sm:$0xff] %v2368
  %2425 = vst [vmem:[%s3 + $0x50] sm:$0xff] %v2369
  %2426 = vst [vmem:[%s3 + $0x58] sm:$0xff] %v2370
  %2427 = vst [vmem:[%s3 + $0x60] sm:$0xff] %v2371
  %2428 = vst [vmem:[%s3 + $0x68] sm:$0xff] %v2372
  %2429 = vst [vmem:[%s3 + $0x70] sm:$0xff] %v2373
  %2430 = vst [vmem:[%s3 + $0x78] sm:$0xff] %v2374
  %2431 = vst [vmem:[%s3 + $0x80] sm:$0xff] %v2375
  %2432 = vst [vmem:[%s3 + $0x88] sm:$0xff] %v2376
  %2433 = vst [vmem:[%s3 + $0x90] sm:$0xff] %v2377
  %2434 = vst [vmem:[%s3 + $0x98] sm:$0xff] %v2378
  %2435 = vst [vmem:[%s3 + $0xa0] sm:$0xff] %v2379
  %2436 = vst [vmem:[%s3 + $0xa8] sm:$0xff] %v2380
  %2437 = vst [vmem:[%s3 + $0xb0] sm:$0xff] %v2381
  %2438 = vst [vmem:[%s3 + $0xb8] sm:$0xff] %v2382
  %2439 = vst [vmem:[%s3 + $0xc0] sm:$0xff] %v2383
  %2440 = vst [vmem:[%s3 + $0xc8] sm:$0xff] %v2384
  %2441 = vst [vmem:[%s3 + $0xd0] sm:$0xff] %v2385
  %2442 = vst [vmem:[%s3 + $0xd8] sm:$0xff] %v2386
  %vm2443 = vcmask 257024
  %2444 = vst.msk [vmem:[%s3 + $0xe0] sm:$0xf] %vm2443, %v2302
  // Predicated region
  $region14: #{forward.20} parent=0 // pred_check
    _
  $region15: #{forward.20} parent=0 // pred_check_branch
    %2446 = sbr.rel (0) target = $region17
  $region16: #{forward.20} parent=0 // pred_region
    _
  $region17: #{forward.20} parent=0 // pred_fallthru
    _
  // Predicated region
  $region18: #{forward.20} parent=0 // pred_check
    _
  $region19: #{forward.20} parent=0 // pred_check_branch
    %2448 = sbr.rel (0) target = $region21
  $region20: #{forward.20} parent=0 // pred_region
    _
  $region21: #{forward.20} parent=0 // pred_fallthru
    _

// kernel: forward.21
$region0: #{forward.21}
  #allocation0 [shape = 'u32[]', space=smem, size = 0x4, offset = 0x4, fixed_abs, tag = 'smem constant byte address 0x4 - core index']
  #allocation1 [shape = 'u32[144,128]{1,0:T(1,128)}', space=vmem, size = 0x12000, scoped, tag = 'internal scratch']
  %s0 = inlined_call_operand.vmem [shape: f32[25,4,288], index: 0, kind: input, shape index: {}]
  %s1 = inlined_call_operand.vmem [shape: f32[4,1], index: 1, kind: input, shape index: {}]
  %s2 = inlined_call_operand.vmem [shape: f32[4,1], index: 2, kind: input, shape index: {}]
  %s3 = inlined_call_operand.vmem [shape: f32[4,288], index: 3, kind: output, shape index: {}]
  %s4 = sld [smem:[#allocation0]]
  $region22: #{forward.21} parent=0
    _
  %s6 = ssub.s32 1, %s4
  %s7 = scalar_select 0, %s6, %s4
  // Predicated region
  $region2: #{forward.21} parent=0 // pred_check
    _
  $region3: #{forward.21} parent=0 // pred_check_branch
    %9 = sbr.rel (0) target = $region5
  $region4: #{forward.21} parent=0 // pred_region
    _
  $region5: #{forward.21} parent=0 // pred_fallthru
    _
  // Predicated region
  $region6: #{forward.21} parent=0 // pred_check
    _
  $region7: #{forward.21} parent=0 // pred_check_branch
    %11 = sbr.rel (0) target = $region9
  $region8: #{forward.21} parent=0 // pred_region
    _
  $region9: #{forward.21} parent=0 // pred_fallthru
    _
  // Predicated region
  $region10: #{forward.21} parent=0 // pred_check
    _
  $region11: #{forward.21} parent=0 // pred_check_branch
    %13 = sbr.rel (0) target = $region13
  $region12: #{forward.21} parent=0 // pred_region
    _
  $region13: #{forward.21} parent=0 // pred_fallthru
    _
  %v14 = vld [vmem:[%s0] sm:$0xff]
  %v15 = vld [vmem:[%s0 + $0x8] sm:$0xf]
  %v16 = vld [vmem:[%s0 + $0xc] sm:$0xff]
  %v17 = vld [vmem:[%s0 + $0x14] sm:$0xf]
  %v18 = vld [vmem:[%s0 + $0x18] sm:$0xff]
  %v19 = vld [vmem:[%s0 + $0x20] sm:$0xf]
  %v20 = vld [vmem:[%s0 + $0x24] sm:$0xff]
  %v21 = vld [vmem:[%s0 + $0x2c] sm:$0xf]
  %v22 = vld [vmem:[%s0 + $0x30] sm:$0xff]
  %v23 = vld [vmem:[%s0 + $0x38] sm:$0xf]
  %v24 = vld [vmem:[%s0 + $0x3c] sm:$0xff]
  %v25 = vld [vmem:[%s0 + $0x44] sm:$0xf]
  %v26 = vld [vmem:[%s0 + $0x48] sm:$0xff]
  %v27 = vld [vmem:[%s0 + $0x50] sm:$0xf]
  %v28 = vld [vmem:[%s0 + $0x54] sm:$0xff]
  %v29 = vld [vmem:[%s0 + $0x5c] sm:$0xf]
  %v30 = vld [vmem:[%s0 + $0x60] sm:$0xff]
  %v31 = vld [vmem:[%s0 + $0x68] sm:$0xf]
  %v32 = vld [vmem:[%s0 + $0x6c] sm:$0xff]
  %v33 = vld [vmem:[%s0 + $0x74] sm:$0xf]
  %v34 = vld [vmem:[%s0 + $0x78] sm:$0xff]
  %v35 = vld [vmem:[%s0 + $0x80] sm:$0xf]
  %v36 = vld [vmem:[%s0 + $0x84] sm:$0xff]
  %v37 = vld [vmem:[%s0 + $0x8c] sm:$0xf]
  %v38 = vld [vmem:[%s0 + $0x90] sm:$0xff]
  %v39 = vld [vmem:[%s0 + $0x98] sm:$0xf]
  %v40 = vld [vmem:[%s0 + $0x9c] sm:$0xff]
  %v41 = vld [vmem:[%s0 + $0xa4] sm:$0xf]
  %v42 = vld [vmem:[%s0 + $0xa8] sm:$0xff]
  %v43 = vld [vmem:[%s0 + $0xb0] sm:$0xf]
  %v44 = vld [vmem:[%s0 + $0xb4] sm:$0xff]
  %v45 = vld [vmem:[%s0 + $0xbc] sm:$0xf]
  %v46 = vld [vmem:[%s0 + $0xc0] sm:$0xff]
  %v47 = vld [vmem:[%s0 + $0xc8] sm:$0xf]
  %v48 = vld [vmem:[%s0 + $0xcc] sm:$0xff]
  %v49 = vld [vmem:[%s0 + $0xd4] sm:$0xf]
  %v50 = vld [vmem:[%s0 + $0xd8] sm:$0xff]
  %v51 = vld [vmem:[%s0 + $0xe0] sm:$0xf]
  %v52 = vld [vmem:[%s0 + $0xe4] sm:$0xff]
  %v53 = vld [vmem:[%s0 + $0xec] sm:$0xf]
  %v54 = vld [vmem:[%s0 + $0xf0] sm:$0xff]
  %v55 = vld [vmem:[%s0 + $0xf8] sm:$0xf]
  %v56 = vld [vmem:[%s0 + $0xfc] sm:$0xff]
  %v57 = vld [vmem:[%s0 + $0x104] sm:$0xf]
  %v58 = vld [vmem:[%s0 + $0x108] sm:$0xff]
  %v59 = vld [vmem:[%s0 + $0x110] sm:$0xf]
  %v60 = vld [vmem:[%s0 + $0x114] sm:$0xff]
  %v61 = vld [vmem:[%s0 + $0x11c] sm:$0xf]
  %v62 = vld [vmem:[%s0 + $0x120] sm:$0xff]
  %v63 = vld [vmem:[%s0 + $0x128] sm:$0xf]
  %v64 = vmax.f32 %v14, %v18
  %v65 = vmax.f32 %v16, %v20
  %v66 = vmax.f32 %v64, %v22
  %v67 = vmax.f32 %v65, %v24
  %v68 = vmax.f32 %v66, %v26
  %v69 = vmax.f32 %v67, %v28
  %v70 = vmax.f32 %v68, %v30
  %v71 = vmax.f32 %v69, %v32
  %v72 = vmax.f32 %v70, %v34
  %v73 = vmax.f32 %v71, %v36
  %v74 = vmax.f32 %v72, %v38
  %v75 = vmax.f32 %v73, %v40
  %v76 = vmax.f32 %v74, %v42
  %v77 = vmax.f32 %v75, %v44
  %v78 = vmax.f32 %v76, %v46
  %v79 = vmax.f32 %v77, %v48
  %v80 = vmax.f32 %v78, %v50
  %v81 = vmax.f32 %v79, %v52
  %v82 = vmax.f32 %v80, %v54
  %v83 = vmax.f32 %v81, %v56
  %v84 = vmax.f32 %v82, %v58
  %v85 = vmax.f32 %v83, %v60
  %v86 = vmax.f32 %v84, %v62
  %v87 = vmax.f32 %v86, %v85
  %vm88 = vcmask 257024
  %v89 = vsel %vm88, %v15, -inf
  %v90 = vsel %vm88, %v17, -inf
  %v91 = vsel %vm88, %v19, -inf
  %v92 = vmax.f32 %v89, %v91
  %v93 = vsel %vm88, %v21, -inf
  %v94 = vmax.f32 %v90, %v93
  %v95 = vsel %vm88, %v23, -inf
  %v96 = vmax.f32 %v92, %v95
  %v97 = vsel %vm88, %v25, -inf
  %v98 = vmax.f32 %v94, %v97
  %v99 = vsel %vm88, %v27, -inf
  %v100 = vmax.f32 %v96, %v99
  %v101 = vsel %vm88, %v29, -inf
  %v102 = vmax.f32 %v98, %v101
  %v103 = vsel %vm88, %v31, -inf
  %v104 = vmax.f32 %v100, %v103
  %v105 = vsel %vm88, %v33, -inf
  %v106 = vmax.f32 %v102, %v105
  %v107 = vsel %vm88, %v35, -inf
  %v108 = vmax.f32 %v104, %v107
  %v109 = vsel %vm88, %v37, -inf
  %v110 = vmax.f32 %v106, %v109
  %v111 = vsel %vm88, %v39, -inf
  %v112 = vmax.f32 %v108, %v111
  %v113 = vsel %vm88, %v41, -inf
  %v114 = vmax.f32 %v110, %v113
  %v115 = vsel %vm88, %v43, -inf
  %v116 = vmax.f32 %v112, %v115
  %v117 = vsel %vm88, %v45, -inf
  %v118 = vmax.f32 %v114, %v117
  %v119 = vsel %vm88, %v47, -inf
  %v120 = vmax.f32 %v116, %v119
  %v121 = vsel %vm88, %v49, -inf
  %v122 = vmax.f32 %v118, %v121
  %v123 = vsel %vm88, %v51, -inf
  %v124 = vmax.f32 %v120, %v123
  %v125 = vsel %vm88, %v53, -inf
  %v126 = vmax.f32 %v122, %v125
  %v127 = vsel %vm88, %v55, -inf
  %v128 = vmax.f32 %v124, %v127
  %v129 = vsel %vm88, %v57, -inf
  %v130 = vmax.f32 %v126, %v129
  %v131 = vsel %vm88, %v59, -inf
  %v132 = vmax.f32 %v128, %v131
  %v133 = vsel %vm88, %v61, -inf
  %v134 = vmax.f32 %v130, %v133
  %v135 = vsel %vm88, %v63, -inf
  %v136 = vmax.f32 %v132, %v135
  %v137 = vmax.f32 %v136, %v134
  %v139 = vcombine.high %v87, %v87
  %vm141 = vcmask 1043456
  %v142 = vsel %vm141, %v87, 0.0
  %v143 = vsel %vm141, %v139, 0.0
  %v144 = vadd.f32 %v142, %v143
  %v145 = vsel %vm88, %v137, 0.0
  %v146 = vadd.f32 %v144, %v145
  %147 = vadd.xlane.f32.xlu0 %v146
  %v148 = vpop.xlane.xlu0 %147
  %v149 = vrcp.pop 288.0
  %v150 = vmul.f32 %v148, %v149
  %v153 = vunpack.c.l.s4 839922192
  %v154 = vunpack.c.0.s8 %v153
  %v155 = vlaneseq
  %v156 = vshrl.u32 %v155, 7
  %v157 = vsub.s32 %v154, %v156
  %v158 = vrot.slane %v150, %v157
  %v160 = vsub.f32 %v87, %v158
  %v161 = vsub.f32 %v137, %v158
  %v162 = vmul.f32 %v160, %v160
  %v163 = vmul.f32 %v161, %v161
  %v165 = vcombine.high %v162, %v162
  %v167 = vsel %vm141, %v162, 0.0
  %v168 = vsel %vm141, %v165, 0.0
  %v169 = vadd.f32 %v167, %v168
  %v170 = vsel %vm88, %v163, 0.0
  %v171 = vadd.f32 %v169, %v170
  %172 = vadd.xlane.f32.xlu0 %v171
  %v173 = vpop.xlane.xlu0 %172
  %v174 = vmul.f32 %v173, %v149
  %v175 = vadd.f32 %v174, 1e-05
  %v176 = vrsqrt.pop %v175
  %v179 = vunpack.c.l.s4 839922192
  %v180 = vunpack.c.0.s8 %v179
  %v181 = vlaneseq
  %v182 = vshrl.u32 %v181, 7
  %v183 = vsub.s32 %v180, %v182
  %v184 = vrot.slane %v176, %v183
  %v186 = vmul.f32 %v160, %v184
  %v187 = vmul.f32 %v161, %v184
  %v188 = vld [vmem:[%s1] sm:$0xf]
  %190 = vset.pattern.permute.xlu0 0
  %191 = vperm.xlu0 %190, %v188
  %v192 = vpop.permute.xlu0 %191
  %v194 = vunpack.c.l.s4 839922192
  %v195 = vunpack.c.0.s8 %v194
  %v196 = vlaneseq
  %v197 = vshrl.u32 %v196, 7
  %v198 = vsub.s32 %v195, %v197
  %v199 = vrot.slane %v192, %v198
  %v201 = vmul.f32 %v186, %v199
  %v202 = vmul.f32 %v187, %v199
  %v203 = vld [vmem:[%s2] sm:$0xf]
  %205 = vset.pattern.permute.xlu0 0
  %206 = vperm.xlu0 %205, %v203
  %v207 = vpop.permute.xlu0 %206
  %v209 = vunpack.c.l.s4 839922192
  %v210 = vunpack.c.0.s8 %v209
  %v211 = vlaneseq
  %v212 = vshrl.u32 %v211, 7
  %v213 = vsub.s32 %v210, %v212
  %v214 = vrot.slane %v207, %v213
  %v216 = vadd.f32 %v201, %v214
  %v217 = vadd.f32 %v202, %v214
  %218 = vst [vmem:[%s3] sm:$0xff] %v216
  %219 = vst.msk [vmem:[%s3 + $0x8] sm:$0xf] %vm88, %v217
  // Predicated region
  $region14: #{forward.21} parent=0 // pred_check
    _
  $region15: #{forward.21} parent=0 // pred_check_branch
    %221 = sbr.rel (0) target = $region17
  $region16: #{forward.21} parent=0 // pred_region
    _
  $region17: #{forward.21} parent=0 // pred_fallthru
    _
  // Predicated region
  $region18: #{forward.21} parent=0 // pred_check
    _
  $region19: #{forward.21} parent=0 // pred_check_branch
    %223 = sbr.rel (0) target = $region21
  $region20: #{forward.21} parent=0 // pred_region
    _
  $region21: #{forward.21} parent=0 // pred_fallthru
    _

// kernel: forward.22
$region0: #{forward.22}
  #allocation0 [shape = 'u32[]', space=smem, size = 0x4, offset = 0x4, fixed_abs, tag = 'smem constant byte address 0x4 - core index']
  #allocation1 [shape = 'u32[144,128]{1,0:T(1,128)}', space=vmem, size = 0x12000, scoped, tag = 'internal scratch']
  %s0 = inlined_call_operand.vmem [shape: bf16[8,36], index: 0, kind: input, shape index: {}]
  %s1 = inlined_call_operand.vmem [shape: bf16[36,288], index: 1, kind: input, shape index: {}]
  %s2 = inlined_call_operand.vmem [shape: f32[8,1], index: 2, kind: input, shape index: {}]
  %s3 = inlined_call_operand.vmem [shape: f32[8,288], index: 3, kind: output, shape index: {}]
  %s4 = sld [smem:[#allocation0]]
  $region22: #{forward.22} parent=0
    _
  %s6 = ssub.s32 1, %s4
  %s7 = scalar_select 0, %s6, %s4
  // Predicated region
  $region2: #{forward.22} parent=0 // pred_check
    _
  $region3: #{forward.22} parent=0 // pred_check_branch
    %9 = sbr.rel (0) target = $region5
  $region4: #{forward.22} parent=0 // pred_region
    _
  $region5: #{forward.22} parent=0 // pred_fallthru
    _
  // Predicated region
  $region6: #{forward.22} parent=0 // pred_check
    _
  $region7: #{forward.22} parent=0 // pred_check_branch
    %11 = sbr.rel (0) target = $region9
  $region8: #{forward.22} parent=0 // pred_region
    _
  $region9: #{forward.22} parent=0 // pred_fallthru
    _
  // Predicated region
  $region10: #{forward.22} parent=0 // pred_check
    _
  $region11: #{forward.22} parent=0 // pred_check_branch
    %13 = sbr.rel (0) target = $region13
  $region12: #{forward.22} parent=0 // pred_region
    _
  $region13: #{forward.22} parent=0 // pred_fallthru
    _
  %v15 = vld [vmem:[%s0] sm:$0xf]
  %v16 = vld [vmem:[%s1] sm:$0xff]
  %v17 = vld [vmem:[%s1 + $0x8] sm:$0xf]
  %v18 = vld [vmem:[%s1 + $0xc] sm:$0xff]
  %v19 = vld [vmem:[%s1 + $0x14] sm:$0xf]
  %v20 = vld [vmem:[%s1 + $0x18] sm:$0xff]
  %v21 = vld [vmem:[%s1 + $0x20] sm:$0xf]
  %v22 = vld [vmem:[%s1 + $0x24] sm:$0xff]
  %v23 = vld [vmem:[%s1 + $0x2c] sm:$0xf]
  %v24 = vld [vmem:[%s1 + $0x30] sm:$0x33]
  %v25 = vld [vmem:[%s1 + $0x38] sm:$0x3]
  %v26 = vld [vmem:[%s2] sm:$0xff]
  %28 = vset.pattern.permute.xlu0 0
  %29 = vperm.xlu0 %28, %v26
  %v30 = vpop.permute.xlu0 %29
  %v42 = vunpack.c.l.b16 %v16
  %v43 = vunpack.c.h.b16 %v16
  %v44 = vunpack.c.l.b16 %v17
  %v45 = vunpack.c.l.b16 %v18
  %v46 = vunpack.c.h.b16 %v18
  %v47 = vunpack.c.l.b16 %v19
  %v48 = vunpack.c.l.b16 %v20
  %v49 = vunpack.c.h.b16 %v20
  %v50 = vunpack.c.l.b16 %v21
  %v51 = vunpack.c.l.b16 %v22
  %v52 = vunpack.c.h.b16 %v22
  %v53 = vunpack.c.l.b16 %v23
  %v54 = vunpack.c.l.b16 %v24
  %v55 = vunpack.c.h.b16 %v24
  %v56 = vunpack.c.l.b16 %v25
  %v57 = vpack.c.b16 %v45, %v42
  %v58 = vpack.c.b16 %v46, %v43
  %v59 = vpack.c.b16 %v47, %v44
  %v60 = vpack.c.b16 %v51, %v48
  %v61 = vpack.c.b16 %v52, %v49
  %v62 = vpack.c.b16 %v53, %v50
  %v63 = vpack.c.b16 %v54, %v54
  %v64 = vpack.c.b16 %v55, %v55
  %v65 = vpack.c.b16 %v56, %v56
  %vm72 = vcmask 293888
  %v74 = vsel %vm72, %v15, 0
  %vm76 = vcmask 1041408
  %v78 = vsel %vm76, %v63, 0
  %v81 = vsel %vm76, %v64, 0
  %v84 = vsel %vm76, %v65, 0
  %86 = vmatprep.subr.bf16.mxu0 %v58
  %87 = vmatpush1.bf16.msra.mxu0 %v57
  %88 = vmatprep.subr.bf16.mxu0 %v61
  %89 = vmatpush1.bf16.msra.mxu0 %v60
  %90 = vmatprep.subr.bf16.mxu0 %v81
  %91 = vmatpush1.bf16.msra.mxu0 %v78
  %92 = vmatprep.subr.bf16.mxu0 0
  %93 = vmatpush1.bf16.msra.mxu0 0
  %94 = vmatprep.subr.bf16.mxu0 0
  %95 = vmatpush1.bf16.msra.mxu0 0
  %96 = vmatprep.subr.bf16.mxu0 0
  %97 = vmatpush1.bf16.msra.mxu0 0
  %98 = vmatprep.subr.bf16.mxu0 0
  %99 = vmatpush1.bf16.msra.mxu0 0
  %100 = vmatprep.subr.bf16.mxu0 0
  %101 = vmatpush1.bf16.msra.mxu0 0
  %102 = vmatprep.subr.bf16.mxu0 0
  %103 = vmatpush1.bf16.msra.mxu0 0
  %104 = vmatprep.subr.bf16.mxu0 0
  %105 = vmatpush1.bf16.msra.mxu0 0
  %106 = vmatprep.subr.bf16.mxu0 0
  %107 = vmatpush1.bf16.msra.mxu0 0
  %108 = vmatprep.subr.bf16.mxu0 0
  %109 = vmatpush1.bf16.msra.mxu0 0
  %110 = vmatprep.subr.bf16.mxu0 0
  %111 = vmatpush1.bf16.msra.mxu0 0
  %112 = vmatprep.subr.bf16.mxu0 0
  %113 = vmatpush1.bf16.msra.mxu0 0
  %114 = vmatprep.subr.bf16.mxu0 0
  %115 = vmatpush1.bf16.msra.mxu0 0
  %116 = vmatprep.subr.bf16.mxu0 0
  %117 = vmatpush1.bf16.msra.mxu0 0
  %118 = vmatprep.mubr.bf16.mxu0 0
  %119 = vmatmul.mubr.bf16.gmra.mrb[0].mxu0 %v74
  %v120 = vpop.f32.mrb[0].mxu0
  %v121 = vadd.f32 %v30, %v120
  %v122 = vpop.f32.mrb[0].mxu0
  %v123 = vadd.f32 %v30, %v122
  %v124 = vpop.f32.mrb[0].mxu0
  %v125 = vpop.f32.mrb[0].mxu0
  %126 = vdwg.mxu0
  %127 = vmatprep.subr.bf16.mxu0 0
  %128 = vmatpush1.bf16.msra.mxu0 %v59
  %129 = vmatprep.subr.bf16.mxu0 0
  %130 = vmatpush1.bf16.msra.mxu0 %v62
  %131 = vmatprep.subr.bf16.mxu0 0
  %132 = vmatpush1.bf16.msra.mxu0 %v84
  %133 = vmatprep.subr.bf16.mxu0 0
  %134 = vmatpush1.bf16.msra.mxu0 0
  %135 = vmatprep.subr.bf16.mxu0 0
  %136 = vmatpush1.bf16.msra.mxu0 0
  %137 = vmatprep.subr.bf16.mxu0 0
  %138 = vmatpush1.bf16.msra.mxu0 0
  %139 = vmatprep.subr.bf16.mxu0 0
  %140 = vmatpush1.bf16.msra.mxu0 0
  %141 = vmatprep.subr.bf16.mxu0 0
  %142 = vmatpush1.bf16.msra.mxu0 0
  %143 = vmatprep.subr.bf16.mxu0 0
  %144 = vmatpush1.bf16.msra.mxu0 0
  %145 = vmatprep.subr.bf16.mxu0 0
  %146 = vmatpush1.bf16.msra.mxu0 0
  %147 = vmatprep.subr.bf16.mxu0 0
  %148 = vmatpush1.bf16.msra.mxu0 0
  %149 = vmatprep.subr.bf16.mxu0 0
  %150 = vmatpush1.bf16.msra.mxu0 0
  %151 = vmatprep.subr.bf16.mxu0 0
  %152 = vmatpush1.bf16.msra.mxu0 0
  %153 = vmatprep.subr.bf16.mxu0 0
  %154 = vmatpush1.bf16.msra.mxu0 0
  %155 = vmatprep.subr.bf16.mxu0 0
  %156 = vmatpush1.bf16.msra.mxu0 0
  %157 = vmatprep.subr.bf16.mxu0 0
  %158 = vmatpush1.bf16.msra.mxu0 0
  %159 = vmatprep.mubr.bf16.mxu0 0
  %160 = vmatmul.mubr.bf16.gmra.mrb[0].mxu0 %v74
  %v161 = vpop.f32.mrb[0].mxu0
  %v162 = vadd.f32 %v30, %v161
  %v163 = vpop.f32.mrb[0].mxu0
  %v164 = vpop.f32.mrb[0].mxu0
  %v165 = vpop.f32.mrb[0].mxu0
  %166 = vdwg.mxu0
  %v167 = vmax.f32 %v121, 0.0
  %v168 = vmax.f32 %v123, 0.0
  %v169 = vmax.f32 %v162, 0.0
  %170 = vst [vmem:[%s3] sm:$0xff] %v167
  %171 = vst [vmem:[%s3 + $0x8] sm:$0xff] %v168
  %vm172 = vcmask 261120
  %173 = vst.msk [vmem:[%s3 + $0x10] sm:$0xff] %vm172, %v169
  // Predicated region
  $region14: #{forward.22} parent=0 // pred_check
    _
  $region15: #{forward.22} parent=0 // pred_check_branch
    %175 = sbr.rel (0) target = $region17
  $region16: #{forward.22} parent=0 // pred_region
    _
  $region17: #{forward.22} parent=0 // pred_fallthru
    _
  // Predicated region
  $region18: #{forward.22} parent=0 // pred_check
    _
  $region19: #{forward.22} parent=0 // pred_check_branch
    %177 = sbr.rel (0) target = $region21
  $region20: #{forward.22} parent=0 // pred_region
    _
  $region21: #{forward.22} parent=0 // pred_fallthru
    _

// kernel: forward.23
$region0: #{forward.23}
  #allocation0 [shape = 'u32[]', space=smem, size = 0x4, offset = 0x4, fixed_abs, tag = 'smem constant byte address 0x4 - core index']
  #allocation1 [shape = 'u32[144,128]{1,0:T(1,128)}', space=vmem, size = 0x12000, scoped, tag = 'internal scratch']
  %s0 = inlined_call_operand.vmem [shape: f32[9,8,32], index: 0, kind: input, shape index: {}]
  %s1 = inlined_call_operand.vmem [shape: f32[8,1], index: 1, kind: input, shape index: {}]
  %s2 = inlined_call_operand.vmem [shape: f32[8,1], index: 2, kind: input, shape index: {}]
  %s3 = inlined_call_operand.vmem [shape: f32[8,32], index: 3, kind: output, shape index: {}]
  %s4 = sld [smem:[#allocation0]]
  $region22: #{forward.23} parent=0
    _
  %s6 = ssub.s32 1, %s4
  %s7 = scalar_select 0, %s6, %s4
  // Predicated region
  $region2: #{forward.23} parent=0 // pred_check
    _
  $region3: #{forward.23} parent=0 // pred_check_branch
    %9 = sbr.rel (0) target = $region5
  $region4: #{forward.23} parent=0 // pred_region
    _
  $region5: #{forward.23} parent=0 // pred_fallthru
    _
  // Predicated region
  $region6: #{forward.23} parent=0 // pred_check
    _
  $region7: #{forward.23} parent=0 // pred_check_branch
    %11 = sbr.rel (0) target = $region9
  $region8: #{forward.23} parent=0 // pred_region
    _
  $region9: #{forward.23} parent=0 // pred_fallthru
    _
  // Predicated region
  $region10: #{forward.23} parent=0 // pred_check
    _
  $region11: #{forward.23} parent=0 // pred_check_branch
    %13 = sbr.rel (0) target = $region13
  $region12: #{forward.23} parent=0 // pred_region
    _
  $region13: #{forward.23} parent=0 // pred_fallthru
    _
  %v14 = vld [vmem:[%s0] sm:$0xff]
  %v15 = vld [vmem:[%s0 + $0x8] sm:$0xff]
  %v16 = vld [vmem:[%s0 + $0x10] sm:$0xff]
  %v17 = vld [vmem:[%s0 + $0x18] sm:$0xff]
  %v18 = vld [vmem:[%s0 + $0x20] sm:$0xff]
  %v19 = vld [vmem:[%s0 + $0x28] sm:$0xff]
  %v20 = vld [vmem:[%s0 + $0x30] sm:$0xff]
  %v21 = vld [vmem:[%s0 + $0x38] sm:$0xff]
  %v22 = vld [vmem:[%s0 + $0x40] sm:$0xff]
  %vm23 = vcmask 261120
  %v24 = vsel %vm23, %v14, -inf
  %v25 = vsel %vm23, %v15, -inf
  %v26 = vsel %vm23, %v16, -inf
  %v27 = vsel %vm23, %v17, -inf
  %v28 = vsel %vm23, %v18, -inf
  %v29 = vmax.f32 %v24, %v28
  %v30 = vsel %vm23, %v19, -inf
  %v31 = vmax.f32 %v25, %v30
  %v32 = vsel %vm23, %v20, -inf
  %v33 = vmax.f32 %v26, %v32
  %v34 = vsel %vm23, %v21, -inf
  %v35 = vmax.f32 %v27, %v34
  %v36 = vsel %vm23, %v22, -inf
  %v37 = vmax.f32 %v29, %v36
  %v38 = vmax.f32 %v37, %v31
  %v39 = vmax.f32 %v33, %v35
  %v40 = vmax.f32 %v38, %v39
  %v41 = vsel %vm23, %v40, 0.0
  %42 = vadd.xlane.f32.xlu0 %v41
  %v43 = vpop.xlane.xlu0 %42
  %v44 = vrcp.pop 32.0
  %v45 = vmul.f32 %v43, %v44
  %v46 = vsub.f32 %v40, %v45
  %v47 = vmul.f32 %v46, %v46
  %v48 = vsel %vm23, %v47, 0.0
  %49 = vadd.xlane.f32.xlu0 %v48
  %v50 = vpop.xlane.xlu0 %49
  %v51 = vmul.f32 %v50, %v44
  %v52 = vadd.f32 %v51, 1e-05
  %v53 = vrsqrt.pop %v52
  %v54 = vmul.f32 %v46, %v53
  %v55 = vld [vmem:[%s1] sm:$0xff]
  %57 = vset.pattern.permute.xlu0 0
  %58 = vperm.xlu0 %57, %v55
  %v59 = vpop.permute.xlu0 %58
  %v61 = vmul.f32 %v54, %v59
  %v62 = vld [vmem:[%s2] sm:$0xff]
  %64 = vset.pattern.permute.xlu0 0
  %65 = vperm.xlu0 %64, %v62
  %v66 = vpop.permute.xlu0 %65
  %v68 = vadd.f32 %v61, %v66
  %69 = vst.msk [vmem:[%s3] sm:$0xff] %vm23, %v68
  // Predicated region
  $region14: #{forward.23} parent=0 // pred_check
    _
  $region15: #{forward.23} parent=0 // pred_check_branch
    %71 = sbr.rel (0) target = $region17
  $region16: #{forward.23} parent=0 // pred_region
    _
  $region17: #{forward.23} parent=0 // pred_fallthru
    _
  // Predicated region
  $region18: #{forward.23} parent=0 // pred_check
    _
  $region19: #{forward.23} parent=0 // pred_check_branch
    %73 = sbr.rel (0) target = $region21
  $region20: #{forward.23} parent=0 // pred_region
    _
  $region21: #{forward.23} parent=0 // pred_fallthru
    _

// kernel: forward.24
$region0: #{forward.24}
  #allocation0 [shape = 'u32[]', space=smem, size = 0x4, offset = 0x4, fixed_abs, tag = 'smem constant byte address 0x4 - core index']
  #allocation1 [shape = 'u32[144,128]{1,0:T(1,128)}', space=vmem, size = 0x12000, scoped, tag = 'internal scratch']
  %s0 = inlined_call_operand.vmem [shape: bf16[16,72], index: 0, kind: input, shape index: {}]
  %s1 = inlined_call_operand.vmem [shape: bf16[72,32], index: 1, kind: input, shape index: {}]
  %s2 = inlined_call_operand.vmem [shape: f32[16,1], index: 2, kind: input, shape index: {}]
  %s3 = inlined_call_operand.vmem [shape: f32[16,1], index: 3, kind: input, shape index: {}]
  %s4 = inlined_call_operand.vmem [shape: f32[16,1], index: 4, kind: input, shape index: {}]
  %s5 = inlined_call_operand.vmem [shape: f32[16,32], index: 5, kind: output, shape index: {}]
  %s6 = sld [smem:[#allocation0]]
  $region30: #{forward.24} parent=0
    _
  %s8 = ssub.s32 1, %s6
  %s9 = scalar_select 0, %s8, %s6
  // Predicated region
  $region2: #{forward.24} parent=0 // pred_check
    _
  $region3: #{forward.24} parent=0 // pred_check_branch
    %11 = sbr.rel (0) target = $region5
  $region4: #{forward.24} parent=0 // pred_region
    _
  $region5: #{forward.24} parent=0 // pred_fallthru
    _
  // Predicated region
  $region6: #{forward.24} parent=0 // pred_check
    _
  $region7: #{forward.24} parent=0 // pred_check_branch
    %13 = sbr.rel (0) target = $region9
  $region8: #{forward.24} parent=0 // pred_region
    _
  $region9: #{forward.24} parent=0 // pred_fallthru
    _
  // Predicated region
  $region10: #{forward.24} parent=0 // pred_check
    _
  $region11: #{forward.24} parent=0 // pred_check_branch
    %15 = sbr.rel (0) target = $region13
  $region12: #{forward.24} parent=0 // pred_region
    _
  $region13: #{forward.24} parent=0 // pred_fallthru
    _
  // Predicated region
  $region14: #{forward.24} parent=0 // pred_check
    _
  $region15: #{forward.24} parent=0 // pred_check_branch
    %17 = sbr.rel (0) target = $region17
  $region16: #{forward.24} parent=0 // pred_region
    _
  $region17: #{forward.24} parent=0 // pred_fallthru
    _
  // Predicated region
  $region18: #{forward.24} parent=0 // pred_check
    _
  $region19: #{forward.24} parent=0 // pred_check_branch
    %19 = sbr.rel (0) target = $region21
  $region20: #{forward.24} parent=0 // pred_region
    _
  $region21: #{forward.24} parent=0 // pred_fallthru
    _
  %v21 = vld [vmem:[%s0] sm:$0xf]
  %v22 = vld [vmem:[%s0 + $0x4] sm:$0xf]
  %v23 = vld [vmem:[%s1] sm:$0xf]
  %v24 = vld [vmem:[%s1 + $0x4] sm:$0xf]
  %v25 = vld [vmem:[%s1 + $0x8] sm:$0xf]
  %v26 = vld [vmem:[%s1 + $0xc] sm:$0xf]
  %v27 = vld [vmem:[%s1 + $0x10] sm:$0xf]
  %v28 = vld [vmem:[%s1 + $0x14] sm:$0xf]
  %v29 = vld [vmem:[%s1 + $0x18] sm:$0xf]
  %v30 = vld [vmem:[%s1 + $0x1c] sm:$0xf]
  %v31 = vld [vmem:[%s1 + $0x20] sm:$0xf]
  %v32 = vld [vmem:[%s2] sm:$0xff]
  %v33 = vld [vmem:[%s2 + $0x8] sm:$0xff]
  %35 = vset.pattern.permute.xlu0 0
  %36 = vperm.xlu0 %35, %v32
  %v37 = vpop.permute.xlu0 %36
  %40 = vset.pattern.permute.xlu0 0
  %41 = vperm.xlu0 %40, %v33
  %v42 = vpop.permute.xlu0 %41
  %v46 = vunpack.c.l.b16 %v21
  %v47 = vunpack.c.l.b16 %v22
  %v48 = vpack.c.b16 %v47, %v46
  %v58 = vunpack.c.l.b16 %v23
  %v59 = vunpack.c.l.b16 %v24
  %v60 = vunpack.c.l.b16 %v25
  %v61 = vunpack.c.l.b16 %v26
  %v62 = vunpack.c.l.b16 %v27
  %v63 = vunpack.c.l.b16 %v28
  %v64 = vunpack.c.l.b16 %v29
  %v65 = vunpack.c.l.b16 %v30
  %v66 = vunpack.c.l.b16 %v31
  %v67 = vpack.c.b16 %v59, %v58
  %v68 = vpack.c.b16 %v61, %v60
  %v69 = vpack.c.b16 %v63, %v62
  %v70 = vpack.c.b16 %v65, %v64
  %v71 = vpack.c.b16 %v66, %v66
  %vm76 = vcmask 588800
  %v78 = vsel %vm76, %v48, 0
  %vm80 = vcmask 1043456
  %v82 = vsel %vm80, %v71, 0
  %84 = vmatprep.subr.bf16.mxu0 0
  %85 = vmatpush1.bf16.msra.mxu0 %v67
  %86 = vmatprep.subr.bf16.mxu0 0
  %87 = vmatpush1.bf16.msra.mxu0 %v68
  %88 = vmatprep.subr.bf16.mxu0 0
  %89 = vmatpush1.bf16.msra.mxu0 %v69
  %90 = vmatprep.subr.bf16.mxu0 0
  %91 = vmatpush1.bf16.msra.mxu0 %v70
  %92 = vmatprep.subr.bf16.mxu0 0
  %93 = vmatpush1.bf16.msra.mxu0 %v82
  %94 = vmatprep.subr.bf16.mxu0 0
  %95 = vmatpush1.bf16.msra.mxu0 0
  %96 = vmatprep.subr.bf16.mxu0 0
  %97 = vmatpush1.bf16.msra.mxu0 0
  %98 = vmatprep.subr.bf16.mxu0 0
  %99 = vmatpush1.bf16.msra.mxu0 0
  %100 = vmatprep.subr.bf16.mxu0 0
  %101 = vmatpush1.bf16.msra.mxu0 0
  %102 = vmatprep.subr.bf16.mxu0 0
  %103 = vmatpush1.bf16.msra.mxu0 0
  %104 = vmatprep.subr.bf16.mxu0 0
  %105 = vmatpush1.bf16.msra.mxu0 0
  %106 = vmatprep.subr.bf16.mxu0 0
  %107 = vmatpush1.bf16.msra.mxu0 0
  %108 = vmatprep.subr.bf16.mxu0 0
  %109 = vmatpush1.bf16.msra.mxu0 0
  %110 = vmatprep.subr.bf16.mxu0 0
  %111 = vmatpush1.bf16.msra.mxu0 0
  %112 = vmatprep.subr.bf16.mxu0 0
  %113 = vmatpush1.bf16.msra.mxu0 0
  %114 = vmatprep.subr.bf16.mxu0 0
  %115 = vmatpush1.bf16.msra.mxu0 0
  %116 = vmatprep.mubr.bf16.mxu0 0
  %117 = vmatmul.mubr.bf16.gmra.mrb[0].mxu0 %v78
  %v118 = vpop.f32.mrb[0].mxu0
  %v119 = vadd.f32 %v37, %v118
  %v120 = vpop.f32.mrb[0].mxu0
  %v121 = vpop.f32.mrb[0].mxu0
  %v122 = vadd.f32 %v42, %v121
  %v123 = vpop.f32.mrb[0].mxu0
  %124 = vdwg.mxu0
  %v125 = vmax.f32 %v119, 0.0
  %v126 = vmax.f32 %v122, 0.0
  %vm127 = vcmask 261120
  %v128 = vsel %vm127, %v125, 0.0
  %129 = vadd.xlane.f32.xlu0 %v128
  %v130 = vpop.xlane.xlu0 %129
  %v131 = vsel %vm127, %v126, 0.0
  %132 = vadd.xlane.f32.xlu0 %v131
  %v133 = vpop.xlane.xlu0 %132
  %v134 = vrcp.pop 32.0
  %v135 = vmul.f32 %v130, %v134
  %v136 = vmul.f32 %v133, %v134
  %v137 = vsub.f32 %v125, %v135
  %v138 = vsub.f32 %v126, %v136
  %v139 = vmul.f32 %v137, %v137
  %v140 = vmul.f32 %v138, %v138
  %v141 = vsel %vm127, %v139, 0.0
  %142 = vadd.xlane.f32.xlu0 %v141
  %v143 = vpop.xlane.xlu0 %142
  %v144 = vsel %vm127, %v140, 0.0
  %145 = vadd.xlane.f32.xlu0 %v144
  %v146 = vpop.xlane.xlu0 %145
  %v147 = vmul.f32 %v143, %v134
  %v148 = vmul.f32 %v146, %v134
  %v149 = vadd.f32 %v147, 1e-05
  %v150 = vadd.f32 %v148, 1e-05
  %v151 = vrsqrt.pop %v149
  %v152 = vrsqrt.pop %v150
  %v153 = vmul.f32 %v137, %v151
  %v154 = vmul.f32 %v138, %v152
  %v155 = vld [vmem:[%s3] sm:$0xff]
  %v156 = vld [vmem:[%s3 + $0x8] sm:$0xff]
  %158 = vset.pattern.permute.xlu0 0
  %159 = vperm.xlu0 %158, %v155
  %v160 = vpop.permute.xlu0 %159
  %163 = vset.pattern.permute.xlu0 0
  %164 = vperm.xlu0 %163, %v156
  %v165 = vpop.permute.xlu0 %164
  %v167 = vmul.f32 %v153, %v160
  %v168 = vmul.f32 %v154, %v165
  %v169 = vld [vmem:[%s4] sm:$0xff]
  %v170 = vld [vmem:[%s4 + $0x8] sm:$0xff]
  %172 = vset.pattern.permute.xlu0 0
  %173 = vperm.xlu0 %172, %v169
  %v174 = vpop.permute.xlu0 %173
  %177 = vset.pattern.permute.xlu0 0
  %178 = vperm.xlu0 %177, %v170
  %v179 = vpop.permute.xlu0 %178
  %v181 = vadd.f32 %v167, %v174
  %v182 = vadd.f32 %v168, %v179
  %183 = vst.msk [vmem:[%s5] sm:$0xff] %vm127, %v181
  %184 = vst.msk [vmem:[%s5 + $0x8] sm:$0xff] %vm127, %v182
  // Predicated region
  $region22: #{forward.24} parent=0 // pred_check
    _
  $region23: #{forward.24} parent=0 // pred_check_branch
    %186 = sbr.rel (0) target = $region25
  $region24: #{forward.24} parent=0 // pred_region
    _
  $region25: #{forward.24} parent=0 // pred_fallthru
    _
  // Predicated region
  $region26: #{forward.24} parent=0 // pred_check
    _
  $region27: #{forward.24} parent=0 // pred_check_branch
    %188 = sbr.rel (0) target = $region29
  $region28: #{forward.24} parent=0 // pred_region
    _
  $region29: #{forward.24} parent=0 // pred_fallthru
    _

// kernel: forward.25
$region0: #{forward.25}
  #allocation0 [shape = 'u32[]', space=smem, size = 0x4, offset = 0x4, fixed_abs, tag = 'smem constant byte address 0x4 - core index']
  #allocation1 [shape = 'u32[144,128]{1,0:T(1,128)}', space=vmem, size = 0x12000, scoped, tag = 'internal scratch']
  %s0 = inlined_call_operand.vmem [shape: bf16[16,144], index: 0, kind: input, shape index: {}]
  %s1 = inlined_call_operand.vmem [shape: bf16[144,32], index: 1, kind: input, shape index: {}]
  %s2 = inlined_call_operand.vmem [shape: f32[16,1], index: 2, kind: input, shape index: {}]
  %s3 = inlined_call_operand.vmem [shape: f32[16,32], index: 3, kind: output, shape index: {}]
  %s4 = sld [smem:[#allocation0]]
  $region22: #{forward.25} parent=0
    _
  %s6 = ssub.s32 1, %s4
  %s7 = scalar_select 0, %s6, %s4
  // Predicated region
  $region2: #{forward.25} parent=0 // pred_check
    _
  $region3: #{forward.25} parent=0 // pred_check_branch
    %9 = sbr.rel (0) target = $region5
  $region4: #{forward.25} parent=0 // pred_region
    _
  $region5: #{forward.25} parent=0 // pred_fallthru
    _
  // Predicated region
  $region6: #{forward.25} parent=0 // pred_check
    _
  $region7: #{forward.25} parent=0 // pred_check_branch
    %11 = sbr.rel (0) target = $region9
  $region8: #{forward.25} parent=0 // pred_region
    _
  $region9: #{forward.25} parent=0 // pred_fallthru
    _
  // Predicated region
  $region10: #{forward.25} parent=0 // pred_check
    _
  $region11: #{forward.25} parent=0 // pred_check_branch
    %13 = sbr.rel (0) target = $region13
  $region12: #{forward.25} parent=0 // pred_region
    _
  $region13: #{forward.25} parent=0 // pred_fallthru
    _
  %v15 = vld [vmem:[%s0] sm:$0xff]
  %v16 = vld [vmem:[%s0 + $0x8] sm:$0xff]
  %v17 = vld [vmem:[%s1] sm:$0xf]
  %v18 = vld [vmem:[%s1 + $0x4] sm:$0xf]
  %v19 = vld [vmem:[%s1 + $0x8] sm:$0xf]
  %v20 = vld [vmem:[%s1 + $0xc] sm:$0xf]
  %v21 = vld [vmem:[%s1 + $0x10] sm:$0xf]
  %v22 = vld [vmem:[%s1 + $0x14] sm:$0xf]
  %v23 = vld [vmem:[%s1 + $0x18] sm:$0xf]
  %v24 = vld [vmem:[%s1 + $0x1c] sm:$0xf]
  %v25 = vld [vmem:[%s1 + $0x20] sm:$0xf]
  %v26 = vld [vmem:[%s1 + $0x24] sm:$0xf]
  %v27 = vld [vmem:[%s1 + $0x28] sm:$0xf]
  %v28 = vld [vmem:[%s1 + $0x2c] sm:$0xf]
  %v29 = vld [vmem:[%s1 + $0x30] sm:$0xf]
  %v30 = vld [vmem:[%s1 + $0x34] sm:$0xf]
  %v31 = vld [vmem:[%s1 + $0x38] sm:$0xf]
  %v32 = vld [vmem:[%s1 + $0x3c] sm:$0xf]
  %v33 = vld [vmem:[%s1 + $0x40] sm:$0xf]
  %v34 = vld [vmem:[%s1 + $0x44] sm:$0xf]
  %v35 = vld [vmem:[%s2] sm:$0xff]
  %v36 = vld [vmem:[%s2 + $0x8] sm:$0xff]
  %38 = vset.pattern.permute.xlu0 0
  %39 = vperm.xlu0 %38, %v35
  %v40 = vpop.permute.xlu0 %39
  %43 = vset.pattern.permute.xlu0 0
  %44 = vperm.xlu0 %43, %v36
  %v45 = vpop.permute.xlu0 %44
  %v49 = vunpack.c.l.b16 %v15
  %v50 = vunpack.c.h.b16 %v15
  %v51 = vunpack.c.l.b16 %v16
  %v52 = vunpack.c.h.b16 %v16
  %v53 = vpack.c.b16 %v51, %v49
  %v54 = vpack.c.b16 %v52, %v50
  %v74 = vunpack.c.l.b16 %v17
  %v75 = vunpack.c.l.b16 %v18
  %v76 = vunpack.c.l.b16 %v19
  %v77 = vunpack.c.l.b16 %v20
  %v78 = vunpack.c.l.b16 %v21
  %v79 = vunpack.c.l.b16 %v22
  %v80 = vunpack.c.l.b16 %v23
  %v81 = vunpack.c.l.b16 %v24
  %v82 = vunpack.c.l.b16 %v25
  %v83 = vunpack.c.l.b16 %v26
  %v84 = vunpack.c.l.b16 %v27
  %v85 = vunpack.c.l.b16 %v28
  %v86 = vunpack.c.l.b16 %v29
  %v87 = vunpack.c.l.b16 %v30
  %v88 = vunpack.c.l.b16 %v31
  %v89 = vunpack.c.l.b16 %v32
  %v90 = vunpack.c.l.b16 %v33
  %v91 = vunpack.c.l.b16 %v34
  %v92 = vpack.c.b16 %v75, %v74
  %v93 = vpack.c.b16 %v77, %v76
  %v94 = vpack.c.b16 %v79, %v78
  %v95 = vpack.c.b16 %v81, %v80
  %v96 = vpack.c.b16 %v83, %v82
  %v97 = vpack.c.b16 %v85, %v84
  %v98 = vpack.c.b16 %v87, %v86
  %v99 = vpack.c.b16 %v89, %v88
  %v100 = vpack.c.b16 %v91, %v90
  %vm110 = vcmask 130048
  %v112 = vsel %vm110, %v54, 0
  %114 = vmatprep.subr.bf16.mxu0 0
  %115 = vmatpush1.bf16.msra.mxu0 %v92
  %116 = vmatprep.subr.bf16.mxu0 0
  %117 = vmatpush1.bf16.msra.mxu0 %v93
  %118 = vmatprep.subr.bf16.mxu0 0
  %119 = vmatpush1.bf16.msra.mxu0 %v94
  %120 = vmatprep.subr.bf16.mxu0 0
  %121 = vmatpush1.bf16.msra.mxu0 %v95
  %122 = vmatprep.subr.bf16.mxu0 0
  %123 = vmatpush1.bf16.msra.mxu0 %v96
  %124 = vmatprep.subr.bf16.mxu0 0
  %125 = vmatpush1.bf16.msra.mxu0 %v97
  %126 = vmatprep.subr.bf16.mxu0 0
  %127 = vmatpush1.bf16.msra.mxu0 %v98
  %128 = vmatprep.subr.bf16.mxu0 0
  %129 = vmatpush1.bf16.msra.mxu0 %v99
  %130 = vmatprep.subr.bf16.mxu0 0
  %131 = vmatpush1.bf16.msra.mxu0 %v100
  %132 = vmatprep.subr.bf16.mxu0 0
  %133 = vmatpush1.bf16.msra.mxu0 0
  %134 = vmatprep.subr.bf16.mxu0 0
  %135 = vmatpush1.bf16.msra.mxu0 0
  %136 = vmatprep.subr.bf16.mxu0 0
  %137 = vmatpush1.bf16.msra.mxu0 0
  %138 = vmatprep.subr.bf16.mxu0 0
  %139 = vmatpush1.bf16.msra.mxu0 0
  %140 = vmatprep.subr.bf16.mxu0 0
  %141 = vmatpush1.bf16.msra.mxu0 0
  %142 = vmatprep.subr.bf16.mxu0 0
  %143 = vmatpush1.bf16.msra.mxu0 0
  %144 = vmatprep.subr.bf16.mxu0 0
  %145 = vmatpush1.bf16.msra.mxu0 0
  %146 = vmatprep.mubr.bf16.mxu0 %v112
  %147 = vmatmul.mubr.bf16.gmra.mrb[0].mxu0 %v53
  %v148 = vpop.f32.mrb[0].mxu0
  %v149 = vadd.f32 %v40, %v148
  %v150 = vpop.f32.mrb[0].mxu0
  %v151 = vpop.f32.mrb[0].mxu0
  %v152 = vadd.f32 %v45, %v151
  %v153 = vpop.f32.mrb[0].mxu0
  %154 = vdwg.mxu0
  %v155 = vmax.f32 %v149, 0.0
  %v156 = vmax.f32 %v152, 0.0
  %vm157 = vcmask 261120
  %158 = vst.msk [vmem:[%s3] sm:$0xff] %vm157, %v155
  %159 = vst.msk [vmem:[%s3 + $0x8] sm:$0xff] %vm157, %v156
  // Predicated region
  $region14: #{forward.25} parent=0 // pred_check
    _
  $region15: #{forward.25} parent=0 // pred_check_branch
    %161 = sbr.rel (0) target = $region17
  $region16: #{forward.25} parent=0 // pred_region
    _
  $region17: #{forward.25} parent=0 // pred_fallthru
    _
  // Predicated region
  $region18: #{forward.25} parent=0 // pred_check
    _
  $region19: #{forward.25} parent=0 // pred_check_branch
    %163 = sbr.rel (0) target = $region21
  $region20: #{forward.25} parent=0 // pred_region
    _
  $region21: #{forward.25} parent=0 // pred_fallthru
    _

// kernel: forward.26
$region0: #{forward.26}
  #allocation0 [shape = 'u32[]', space=smem, size = 0x4, offset = 0x4, fixed_abs, tag = 'smem constant byte address 0x4 - core index']
  #allocation1 [shape = 'u32[144,128]{1,0:T(1,128)}', space=vmem, size = 0x12000, scoped, tag = 'internal scratch']
  %s0 = inlined_call_operand.vmem [shape: f32[4,16,8], index: 0, kind: input, shape index: {}]
  %s1 = inlined_call_operand.vmem [shape: f32[16,1], index: 1, kind: input, shape index: {}]
  %s2 = inlined_call_operand.vmem [shape: f32[16,1], index: 2, kind: input, shape index: {}]
  %s3 = inlined_call_operand.vmem [shape: f32[16,8], index: 3, kind: output, shape index: {}]
  %s4 = sld [smem:[#allocation0]]
  $region22: #{forward.26} parent=0
    _
  %s6 = ssub.s32 1, %s4
  %s7 = scalar_select 0, %s6, %s4
  // Predicated region
  $region2: #{forward.26} parent=0 // pred_check
    _
  $region3: #{forward.26} parent=0 // pred_check_branch
    %9 = sbr.rel (0) target = $region5
  $region4: #{forward.26} parent=0 // pred_region
    _
  $region5: #{forward.26} parent=0 // pred_fallthru
    _
  // Predicated region
  $region6: #{forward.26} parent=0 // pred_check
    _
  $region7: #{forward.26} parent=0 // pred_check_branch
    %11 = sbr.rel (0) target = $region9
  $region8: #{forward.26} parent=0 // pred_region
    _
  $region9: #{forward.26} parent=0 // pred_fallthru
    _
  // Predicated region
  $region10: #{forward.26} parent=0 // pred_check
    _
  $region11: #{forward.26} parent=0 // pred_check_branch
    %13 = sbr.rel (0) target = $region13
  $region12: #{forward.26} parent=0 // pred_region
    _
  $region13: #{forward.26} parent=0 // pred_fallthru
    _
  %v14 = vld [vmem:[%s0] sm:$0xff]
  %v15 = vld [vmem:[%s0 + $0x8] sm:$0xff]
  %v16 = vld [vmem:[%s0 + $0x10] sm:$0xff]
  %v17 = vld [vmem:[%s0 + $0x18] sm:$0xff]
  %v18 = vld [vmem:[%s0 + $0x20] sm:$0xff]
  %v19 = vld [vmem:[%s0 + $0x28] sm:$0xff]
  %v20 = vld [vmem:[%s0 + $0x30] sm:$0xff]
  %v21 = vld [vmem:[%s0 + $0x38] sm:$0xff]
  %vm22 = vcmask 64512
  %v23 = vsel %vm22, %v14, -inf
  %v24 = vsel %vm22, %v16, -inf
  %v25 = vsel %vm22, %v18, -inf
  %v26 = vmax.f32 %v23, %v25
  %v27 = vsel %vm22, %v20, -inf
  %v28 = vmax.f32 %v24, %v27
  %v29 = vmax.f32 %v26, %v28
  %v30 = vsel %vm22, %v15, -inf
  %v31 = vsel %vm22, %v17, -inf
  %v32 = vsel %vm22, %v19, -inf
  %v33 = vmax.f32 %v30, %v32
  %v34 = vsel %vm22, %v21, -inf
  %v35 = vmax.f32 %v31, %v34
  %v36 = vmax.f32 %v33, %v35
  %v37 = vsel %vm22, %v29, 0.0
  %38 = vadd.xlane.f32.xlu0 %v37
  %v39 = vpop.xlane.xlu0 %38
  %v40 = vsel %vm22, %v36, 0.0
  %41 = vadd.xlane.f32.xlu0 %v40
  %v42 = vpop.xlane.xlu0 %41
  %v43 = vrcp.pop 8.0
  %v44 = vmul.f32 %v39, %v43
  %v45 = vmul.f32 %v42, %v43
  %v46 = vsub.f32 %v29, %v44
  %v47 = vsub.f32 %v36, %v45
  %v48 = vmul.f32 %v46, %v46
  %v49 = vmul.f32 %v47, %v47
  %v50 = vsel %vm22, %v48, 0.0
  %51 = vadd.xlane.f32.xlu0 %v50
  %v52 = vpop.xlane.xlu0 %51
  %v53 = vsel %vm22, %v49, 0.0
  %54 = vadd.xlane.f32.xlu0 %v53
  %v55 = vpop.xlane.xlu0 %54
  %v56 = vmul.f32 %v52, %v43
  %v57 = vmul.f32 %v55, %v43
  %v58 = vadd.f32 %v56, 1e-05
  %v59 = vadd.f32 %v57, 1e-05
  %v60 = vrsqrt.pop %v58
  %v61 = vrsqrt.pop %v59
  %v62 = vmul.f32 %v46, %v60
  %v63 = vmul.f32 %v47, %v61
  %v64 = vld [vmem:[%s1] sm:$0xff]
  %v65 = vld [vmem:[%s1 + $0x8] sm:$0xff]
  %67 = vset.pattern.permute.xlu0 0
  %68 = vperm.xlu0 %67, %v64
  %v69 = vpop.permute.xlu0 %68
  %72 = vset.pattern.permute.xlu0 0
  %73 = vperm.xlu0 %72, %v65
  %v74 = vpop.permute.xlu0 %73
  %v76 = vmul.f32 %v62, %v69
  %v77 = vmul.f32 %v63, %v74
  %v78 = vld [vmem:[%s2] sm:$0xff]
  %v79 = vld [vmem:[%s2 + $0x8] sm:$0xff]
  %81 = vset.pattern.permute.xlu0 0
  %82 = vperm.xlu0 %81, %v78
  %v83 = vpop.permute.xlu0 %82
  %86 = vset.pattern.permute.xlu0 0
  %87 = vperm.xlu0 %86, %v79
  %v88 = vpop.permute.xlu0 %87
  %v90 = vadd.f32 %v76, %v83
  %v91 = vadd.f32 %v77, %v88
  %92 = vst.msk [vmem:[%s3] sm:$0xff] %vm22, %v90
  %93 = vst.msk [vmem:[%s3 + $0x8] sm:$0xff] %vm22, %v91
  // Predicated region
  $region14: #{forward.26} parent=0 // pred_check
    _
  $region15: #{forward.26} parent=0 // pred_check_branch
    %95 = sbr.rel (0) target = $region17
  $region16: #{forward.26} parent=0 // pred_region
    _
  $region17: #{forward.26} parent=0 // pred_fallthru
    _
  // Predicated region
  $region18: #{forward.26} parent=0 // pred_check
    _
  $region19: #{forward.26} parent=0 // pred_check_branch
    %97 = sbr.rel (0) target = $region21
  $region20: #{forward.26} parent=0 // pred_region
    _
  $region21: #{forward.26} parent=0 // pred_fallthru
    _

// kernel: forward.27
$region0: #{forward.27}
  #allocation0 [shape = 'u32[]', space=smem, size = 0x4, offset = 0x4, fixed_abs, tag = 'smem constant byte address 0x4 - core index']
  #allocation1 [shape = 'u32[144,128]{1,0:T(1,128)}', space=vmem, size = 0x12000, scoped, tag = 'internal scratch']
  %s0 = inlined_call_operand.vmem [shape: bf16[8,144], index: 0, kind: input, shape index: {}]
  %s1 = inlined_call_operand.vmem [shape: bf16[144,8], index: 1, kind: input, shape index: {}]
  %s2 = inlined_call_operand.vmem [shape: f32[8,1], index: 2, kind: input, shape index: {}]
  %s3 = inlined_call_operand.vmem [shape: f32[8,8], index: 3, kind: output, shape index: {}]
  %s4 = sld [smem:[#allocation0]]
  $region22: #{forward.27} parent=0
    _
  %s6 = ssub.s32 1, %s4
  %s7 = scalar_select 0, %s6, %s4
  // Predicated region
  $region2: #{forward.27} parent=0 // pred_check
    _
  $region3: #{forward.27} parent=0 // pred_check_branch
    %9 = sbr.rel (0) target = $region5
  $region4: #{forward.27} parent=0 // pred_region
    _
  $region5: #{forward.27} parent=0 // pred_fallthru
    _
  // Predicated region
  $region6: #{forward.27} parent=0 // pred_check
    _
  $region7: #{forward.27} parent=0 // pred_check_branch
    %11 = sbr.rel (0) target = $region9
  $region8: #{forward.27} parent=0 // pred_region
    _
  $region9: #{forward.27} parent=0 // pred_fallthru
    _
  // Predicated region
  $region10: #{forward.27} parent=0 // pred_check
    _
  $region11: #{forward.27} parent=0 // pred_check_branch
    %13 = sbr.rel (0) target = $region13
  $region12: #{forward.27} parent=0 // pred_region
    _
  $region13: #{forward.27} parent=0 // pred_fallthru
    _
  %v15 = vld [vmem:[%s0] sm:$0xff]
  %v16 = vld [vmem:[%s1] sm:$0xf]
  %v17 = vld [vmem:[%s1 + $0x4] sm:$0xf]
  %v18 = vld [vmem:[%s1 + $0x8] sm:$0xf]
  %v19 = vld [vmem:[%s1 + $0xc] sm:$0xf]
  %v20 = vld [vmem:[%s1 + $0x10] sm:$0xf]
  %v21 = vld [vmem:[%s1 + $0x14] sm:$0xf]
  %v22 = vld [vmem:[%s1 + $0x18] sm:$0xf]
  %v23 = vld [vmem:[%s1 + $0x1c] sm:$0xf]
  %v24 = vld [vmem:[%s1 + $0x20] sm:$0xf]
  %v25 = vld [vmem:[%s1 + $0x24] sm:$0xf]
  %v26 = vld [vmem:[%s1 + $0x28] sm:$0xf]
  %v27 = vld [vmem:[%s1 + $0x2c] sm:$0xf]
  %v28 = vld [vmem:[%s1 + $0x30] sm:$0xf]
  %v29 = vld [vmem:[%s1 + $0x34] sm:$0xf]
  %v30 = vld [vmem:[%s1 + $0x38] sm:$0xf]
  %v31 = vld [vmem:[%s1 + $0x3c] sm:$0xf]
  %v32 = vld [vmem:[%s1 + $0x40] sm:$0xf]
  %v33 = vld [vmem:[%s1 + $0x44] sm:$0xf]
  %v34 = vld [vmem:[%s2] sm:$0xff]
  %36 = vset.pattern.permute.xlu0 0
  %37 = vperm.xlu0 %36, %v34
  %v38 = vpop.permute.xlu0 %37
  %v41 = vunpack.c.l.b16 %v15
  %v42 = vunpack.c.h.b16 %v15
  %v43 = vpack.c.b16 %v41, %v41
  %v44 = vpack.c.b16 %v42, %v42
  %v64 = vunpack.c.l.b16 %v16
  %v65 = vunpack.c.l.b16 %v17
  %v66 = vunpack.c.l.b16 %v18
  %v67 = vunpack.c.l.b16 %v19
  %v68 = vunpack.c.l.b16 %v20
  %v69 = vunpack.c.l.b16 %v21
  %v70 = vunpack.c.l.b16 %v22
  %v71 = vunpack.c.l.b16 %v23
  %v72 = vunpack.c.l.b16 %v24
  %v73 = vunpack.c.l.b16 %v25
  %v74 = vunpack.c.l.b16 %v26
  %v75 = vunpack.c.l.b16 %v27
  %v76 = vunpack.c.l.b16 %v28
  %v77 = vunpack.c.l.b16 %v29
  %v78 = vunpack.c.l.b16 %v30
  %v79 = vunpack.c.l.b16 %v31
  %v80 = vunpack.c.l.b16 %v32
  %v81 = vunpack.c.l.b16 %v33
  %v82 = vpack.c.b16 %v65, %v64
  %v83 = vpack.c.b16 %v67, %v66
  %v84 = vpack.c.b16 %v69, %v68
  %v85 = vpack.c.b16 %v71, %v70
  %v86 = vpack.c.b16 %v73, %v72
  %v87 = vpack.c.b16 %v75, %v74
  %v88 = vpack.c.b16 %v77, %v76
  %v89 = vpack.c.b16 %v79, %v78
  %v90 = vpack.c.b16 %v81, %v80
  %vm100 = vcmask 130048
  %v102 = vsel %vm100, %v44, 0
  %104 = vmatprep.subr.bf16.mxu0 0
  %105 = vmatpush1.bf16.msra.mxu0 %v82
  %106 = vmatprep.subr.bf16.mxu0 0
  %107 = vmatpush1.bf16.msra.mxu0 %v83
  %108 = vmatprep.subr.bf16.mxu0 0
  %109 = vmatpush1.bf16.msra.mxu0 %v84
  %110 = vmatprep.subr.bf16.mxu0 0
  %111 = vmatpush1.bf16.msra.mxu0 %v85
  %112 = vmatprep.subr.bf16.mxu0 0
  %113 = vmatpush1.bf16.msra.mxu0 %v86
  %114 = vmatprep.subr.bf16.mxu0 0
  %115 = vmatpush1.bf16.msra.mxu0 %v87
  %116 = vmatprep.subr.bf16.mxu0 0
  %117 = vmatpush1.bf16.msra.mxu0 %v88
  %118 = vmatprep.subr.bf16.mxu0 0
  %119 = vmatpush1.bf16.msra.mxu0 %v89
  %120 = vmatprep.subr.bf16.mxu0 0
  %121 = vmatpush1.bf16.msra.mxu0 %v90
  %122 = vmatprep.subr.bf16.mxu0 0
  %123 = vmatpush1.bf16.msra.mxu0 0
  %124 = vmatprep.subr.bf16.mxu0 0
  %125 = vmatpush1.bf16.msra.mxu0 0
  %126 = vmatprep.subr.bf16.mxu0 0
  %127 = vmatpush1.bf16.msra.mxu0 0
  %128 = vmatprep.subr.bf16.mxu0 0
  %129 = vmatpush1.bf16.msra.mxu0 0
  %130 = vmatprep.subr.bf16.mxu0 0
  %131 = vmatpush1.bf16.msra.mxu0 0
  %132 = vmatprep.subr.bf16.mxu0 0
  %133 = vmatpush1.bf16.msra.mxu0 0
  %134 = vmatprep.subr.bf16.mxu0 0
  %135 = vmatpush1.bf16.msra.mxu0 0
  %136 = vmatprep.mubr.bf16.mxu0 %v102
  %137 = vmatmul.mubr.bf16.gmra.mrb[0].mxu0 %v43
  %v138 = vpop.f32.mrb[0].mxu0
  %v139 = vadd.f32 %v38, %v138
  %v140 = vpop.f32.mrb[0].mxu0
  %v141 = vpop.f32.mrb[0].mxu0
  %v142 = vpop.f32.mrb[0].mxu0
  %143 = vdwg.mxu0
  %v144 = vmax.f32 %v139, 0.0
  %vm145 = vcmask 64512
  %146 = vst.msk [vmem:[%s3] sm:$0xff] %vm145, %v144
  // Predicated region
  $region14: #{forward.27} parent=0 // pred_check
    _
  $region15: #{forward.27} parent=0 // pred_check_branch
    %148 = sbr.rel (0) target = $region17
  $region16: #{forward.27} parent=0 // pred_region
    _
  $region17: #{forward.27} parent=0 // pred_fallthru
    _
  // Predicated region
  $region18: #{forward.27} parent=0 // pred_check
    _
  $region19: #{forward.27} parent=0 // pred_check_branch
    %150 = sbr.rel (0) target = $region21
  $region20: #{forward.27} parent=0 // pred_region
    _
  $region21: #{forward.27} parent=0 // pred_fallthru
    _

// kernel: forward.28
$region0: #{forward.28}
  #allocation0 [shape = 'u32[]', space=smem, size = 0x4, offset = 0x4, fixed_abs, tag = 'smem constant byte address 0x4 - core index']
  #allocation1 [shape = 'u32[144,128]{1,0:T(1,128)}', space=vmem, size = 0x12000, scoped, tag = 'internal scratch']
  %s0 = inlined_call_operand.vmem [shape: f32[4,8,2], index: 0, kind: input, shape index: {}]
  %s1 = inlined_call_operand.vmem [shape: f32[8,1], index: 1, kind: input, shape index: {}]
  %s2 = inlined_call_operand.vmem [shape: f32[8,1], index: 2, kind: input, shape index: {}]
  %s3 = inlined_call_operand.vmem [shape: f32[8,2], index: 3, kind: output, shape index: {}]
  %s4 = sld [smem:[#allocation0]]
  $region22: #{forward.28} parent=0
    _
  %s6 = ssub.s32 1, %s4
  %s7 = scalar_select 0, %s6, %s4
  // Predicated region
  $region2: #{forward.28} parent=0 // pred_check
    _
  $region3: #{forward.28} parent=0 // pred_check_branch
    %9 = sbr.rel (0) target = $region5
  $region4: #{forward.28} parent=0 // pred_region
    _
  $region5: #{forward.28} parent=0 // pred_fallthru
    _
  // Predicated region
  $region6: #{forward.28} parent=0 // pred_check
    _
  $region7: #{forward.28} parent=0 // pred_check_branch
    %11 = sbr.rel (0) target = $region9
  $region8: #{forward.28} parent=0 // pred_region
    _
  $region9: #{forward.28} parent=0 // pred_fallthru
    _
  // Predicated region
  $region10: #{forward.28} parent=0 // pred_check
    _
  $region11: #{forward.28} parent=0 // pred_check_branch
    %13 = sbr.rel (0) target = $region13
  $region12: #{forward.28} parent=0 // pred_region
    _
  $region13: #{forward.28} parent=0 // pred_fallthru
    _
  %v14 = vld [vmem:[%s0] sm:$0xff]
  %v15 = vld [vmem:[%s0 + $0x8] sm:$0xff]
  %v16 = vld [vmem:[%s0 + $0x10] sm:$0xff]
  %v17 = vld [vmem:[%s0 + $0x18] sm:$0xff]
  %vm18 = vcmask 15360
  %v19 = vsel %vm18, %v14, -inf
  %v20 = vsel %vm18, %v15, -inf
  %v21 = vsel %vm18, %v16, -inf
  %v22 = vsel %vm18, %v17, -inf
  %v23 = vmax.f32 %v19, %v20
  %v24 = vmax.f32 %v21, %v22
  %v25 = vmax.f32 %v23, %v24
  %v26 = vsel %vm18, %v25, 0.0
  %27 = vadd.xlane.f32.xlu0 %v26
  %v28 = vpop.xlane.xlu0 %27
  %v29 = vrcp.pop 2.0
  %v30 = vmul.f32 %v28, %v29
  %v31 = vsub.f32 %v25, %v30
  %v32 = vmul.f32 %v31, %v31
  %v33 = vsel %vm18, %v32, 0.0
  %34 = vadd.xlane.f32.xlu0 %v33
  %v35 = vpop.xlane.xlu0 %34
  %v36 = vmul.f32 %v35, %v29
  %v37 = vadd.f32 %v36, 1e-05
  %v38 = vrsqrt.pop %v37
  %v39 = vmul.f32 %v31, %v38
  %v40 = vld [vmem:[%s1] sm:$0xff]
  %42 = vset.pattern.permute.xlu0 0
  %43 = vperm.xlu0 %42, %v40
  %v44 = vpop.permute.xlu0 %43
  %v46 = vmul.f32 %v39, %v44
  %v47 = vld [vmem:[%s2] sm:$0xff]
  %49 = vset.pattern.permute.xlu0 0
  %50 = vperm.xlu0 %49, %v47
  %v51 = vpop.permute.xlu0 %50
  %v53 = vadd.f32 %v46, %v51
  %54 = vst.msk [vmem:[%s3] sm:$0xff] %vm18, %v53
  // Predicated region
  $region14: #{forward.28} parent=0 // pred_check
    _
  $region15: #{forward.28} parent=0 // pred_check_branch
    %56 = sbr.rel (0) target = $region17
  $region16: #{forward.28} parent=0 // pred_region
    _
  $region17: #{forward.28} parent=0 // pred_fallthru
    _
  // Predicated region
  $region18: #{forward.28} parent=0 // pred_check
    _
  $region19: #{forward.28} parent=0 // pred_check_branch
    %58 = sbr.rel (0) target = $region21
  $region20: #{forward.28} parent=0 // pred_region
    _
  $region21: #{forward.28} parent=0 // pred_fallthru
    _

// kernel: forward.29
$region0: #{forward.29}
  #allocation0 [shape = 'u32[]', space=smem, size = 0x4, offset = 0x4, fixed_abs, tag = 'smem constant byte address 0x4 - core index']
  #allocation1 [shape = 'u32[144,128]{1,0:T(1,128)}', space=vmem, size = 0x12000, scoped, tag = 'internal scratch']
  %s0 = inlined_call_operand.vmem [shape: bf16[16,72], index: 0, kind: input, shape index: {}]
  %s1 = inlined_call_operand.vmem [shape: bf16[72,2], index: 1, kind: input, shape index: {}]
  %s2 = inlined_call_operand.vmem [shape: f32[16,1], index: 2, kind: input, shape index: {}]
  %s3 = inlined_call_operand.vmem [shape: f32[16,1], index: 3, kind: input, shape index: {}]
  %s4 = inlined_call_operand.vmem [shape: f32[16,1], index: 4, kind: input, shape index: {}]
  %s5 = inlined_call_operand.vmem [shape: f32[16,2], index: 5, kind: output, shape index: {}]
  %s6 = sld [smem:[#allocation0]]
  $region30: #{forward.29} parent=0
    _
  %s8 = ssub.s32 1, %s6
  %s9 = scalar_select 0, %s8, %s6
  // Predicated region
  $region2: #{forward.29} parent=0 // pred_check
    _
  $region3: #{forward.29} parent=0 // pred_check_branch
    %11 = sbr.rel (0) target = $region5
  $region4: #{forward.29} parent=0 // pred_region
    _
  $region5: #{forward.29} parent=0 // pred_fallthru
    _
  // Predicated region
  $region6: #{forward.29} parent=0 // pred_check
    _
  $region7: #{forward.29} parent=0 // pred_check_branch
    %13 = sbr.rel (0) target = $region9
  $region8: #{forward.29} parent=0 // pred_region
    _
  $region9: #{forward.29} parent=0 // pred_fallthru
    _
  // Predicated region
  $region10: #{forward.29} parent=0 // pred_check
    _
  $region11: #{forward.29} parent=0 // pred_check_branch
    %15 = sbr.rel (0) target = $region13
  $region12: #{forward.29} parent=0 // pred_region
    _
  $region13: #{forward.29} parent=0 // pred_fallthru
    _
  // Predicated region
  $region14: #{forward.29} parent=0 // pred_check
    _
  $region15: #{forward.29} parent=0 // pred_check_branch
    %17 = sbr.rel (0) target = $region17
  $region16: #{forward.29} parent=0 // pred_region
    _
  $region17: #{forward.29} parent=0 // pred_fallthru
    _
  // Predicated region
  $region18: #{forward.29} parent=0 // pred_check
    _
  $region19: #{forward.29} parent=0 // pred_check_branch
    %19 = sbr.rel (0) target = $region21
  $region20: #{forward.29} parent=0 // pred_region
    _
  $region21: #{forward.29} parent=0 // pred_fallthru
    _
  %v21 = vld [vmem:[%s0] sm:$0xf]
  %v22 = vld [vmem:[%s0 + $0x4] sm:$0xf]
  %v23 = vld [vmem:[%s1] sm:$0xf]
  %v24 = vld [vmem:[%s1 + $0x4] sm:$0xf]
  %v25 = vld [vmem:[%s1 + $0x8] sm:$0xf]
  %v26 = vld [vmem:[%s1 + $0xc] sm:$0xf]
  %v27 = vld [vmem:[%s1 + $0x10] sm:$0xf]
  %v28 = vld [vmem:[%s1 + $0x14] sm:$0xf]
  %v29 = vld [vmem:[%s1 + $0x18] sm:$0xf]
  %v30 = vld [vmem:[%s1 + $0x1c] sm:$0xf]
  %v31 = vld [vmem:[%s1 + $0x20] sm:$0xf]
  %v32 = vld [vmem:[%s2] sm:$0xff]
  %v33 = vld [vmem:[%s2 + $0x8] sm:$0xff]
  %35 = vset.pattern.permute.xlu0 0
  %36 = vperm.xlu0 %35, %v32
  %v37 = vpop.permute.xlu0 %36
  %40 = vset.pattern.permute.xlu0 0
  %41 = vperm.xlu0 %40, %v33
  %v42 = vpop.permute.xlu0 %41
  %v46 = vunpack.c.l.b16 %v21
  %v47 = vunpack.c.l.b16 %v22
  %v48 = vpack.c.b16 %v47, %v46
  %v58 = vunpack.c.l.b16 %v23
  %v59 = vunpack.c.l.b16 %v24
  %v60 = vunpack.c.l.b16 %v25
  %v61 = vunpack.c.l.b16 %v26
  %v62 = vunpack.c.l.b16 %v27
  %v63 = vunpack.c.l.b16 %v28
  %v64 = vunpack.c.l.b16 %v29
  %v65 = vunpack.c.l.b16 %v30
  %v66 = vunpack.c.l.b16 %v31
  %v67 = vpack.c.b16 %v59, %v58
  %v68 = vpack.c.b16 %v61, %v60
  %v69 = vpack.c.b16 %v63, %v62
  %v70 = vpack.c.b16 %v65, %v64
  %v71 = vpack.c.b16 %v66, %v66
  %vm76 = vcmask 588800
  %v78 = vsel %vm76, %v48, 0
  %vm80 = vcmask 1043456
  %v82 = vsel %vm80, %v71, 0
  %84 = vmatprep.subr.bf16.mxu0 0
  %85 = vmatpush1.bf16.msra.mxu0 %v67
  %86 = vmatprep.subr.bf16.mxu0 0
  %87 = vmatpush1.bf16.msra.mxu0 %v68
  %88 = vmatprep.subr.bf16.mxu0 0
  %89 = vmatpush1.bf16.msra.mxu0 %v69
  %90 = vmatprep.subr.bf16.mxu0 0
  %91 = vmatpush1.bf16.msra.mxu0 %v70
  %92 = vmatprep.subr.bf16.mxu0 0
  %93 = vmatpush1.bf16.msra.mxu0 %v82
  %94 = vmatprep.subr.bf16.mxu0 0
  %95 = vmatpush1.bf16.msra.mxu0 0
  %96 = vmatprep.subr.bf16.mxu0 0
  %97 = vmatpush1.bf16.msra.mxu0 0
  %98 = vmatprep.subr.bf16.mxu0 0
  %99 = vmatpush1.bf16.msra.mxu0 0
  %100 = vmatprep.subr.bf16.mxu0 0
  %101 = vmatpush1.bf16.msra.mxu0 0
  %102 = vmatprep.subr.bf16.mxu0 0
  %103 = vmatpush1.bf16.msra.mxu0 0
  %104 = vmatprep.subr.bf16.mxu0 0
  %105 = vmatpush1.bf16.msra.mxu0 0
  %106 = vmatprep.subr.bf16.mxu0 0
  %107 = vmatpush1.bf16.msra.mxu0 0
  %108 = vmatprep.subr.bf16.mxu0 0
  %109 = vmatpush1.bf16.msra.mxu0 0
  %110 = vmatprep.subr.bf16.mxu0 0
  %111 = vmatpush1.bf16.msra.mxu0 0
  %112 = vmatprep.subr.bf16.mxu0 0
  %113 = vmatpush1.bf16.msra.mxu0 0
  %114 = vmatprep.subr.bf16.mxu0 0
  %115 = vmatpush1.bf16.msra.mxu0 0
  %116 = vmatprep.mubr.bf16.mxu0 0
  %117 = vmatmul.mubr.bf16.gmra.mrb[0].mxu0 %v78
  %v118 = vpop.f32.mrb[0].mxu0
  %v119 = vadd.f32 %v37, %v118
  %v120 = vpop.f32.mrb[0].mxu0
  %v121 = vpop.f32.mrb[0].mxu0
  %v122 = vadd.f32 %v42, %v121
  %v123 = vpop.f32.mrb[0].mxu0
  %124 = vdwg.mxu0
  %v125 = vmax.f32 %v119, 0.0
  %v126 = vmax.f32 %v122, 0.0
  %vm127 = vcmask 15360
  %v128 = vsel %vm127, %v125, 0.0
  %129 = vadd.xlane.f32.xlu0 %v128
  %v130 = vpop.xlane.xlu0 %129
  %v131 = vsel %vm127, %v126, 0.0
  %132 = vadd.xlane.f32.xlu0 %v131
  %v133 = vpop.xlane.xlu0 %132
  %v134 = vrcp.pop 2.0
  %v135 = vmul.f32 %v130, %v134
  %v136 = vmul.f32 %v133, %v134
  %v137 = vsub.f32 %v125, %v135
  %v138 = vsub.f32 %v126, %v136
  %v139 = vmul.f32 %v137, %v137
  %v140 = vmul.f32 %v138, %v138
  %v141 = vsel %vm127, %v139, 0.0
  %142 = vadd.xlane.f32.xlu0 %v141
  %v143 = vpop.xlane.xlu0 %142
  %v144 = vsel %vm127, %v140, 0.0
  %145 = vadd.xlane.f32.xlu0 %v144
  %v146 = vpop.xlane.xlu0 %145
  %v147 = vmul.f32 %v143, %v134
  %v148 = vmul.f32 %v146, %v134
  %v149 = vadd.f32 %v147, 1e-05
  %v150 = vadd.f32 %v148, 1e-05
  %v151 = vrsqrt.pop %v149
  %v152 = vrsqrt.pop %v150
  %v153 = vmul.f32 %v137, %v151
  %v154 = vmul.f32 %v138, %v152
  %v155 = vld [vmem:[%s3] sm:$0xff]
  %v156 = vld [vmem:[%s3 + $0x8] sm:$0xff]
  %158 = vset.pattern.permute.xlu0 0
  %159 = vperm.xlu0 %158, %v155
  %v160 = vpop.permute.xlu0 %159
  %163 = vset.pattern.permute.xlu0 0
  %164 = vperm.xlu0 %163, %v156
  %v165 = vpop.permute.xlu0 %164
  %v167 = vmul.f32 %v153, %v160
  %v168 = vmul.f32 %v154, %v165
  %v169 = vld [vmem:[%s4] sm:$0xff]
  %v170 = vld [vmem:[%s4 + $0x8] sm:$0xff]
  %172 = vset.pattern.permute.xlu0 0
  %173 = vperm.xlu0 %172, %v169
  %v174 = vpop.permute.xlu0 %173
  %177 = vset.pattern.permute.xlu0 0
  %178 = vperm.xlu0 %177, %v170
  %v179 = vpop.permute.xlu0 %178
  %v181 = vadd.f32 %v167, %v174
  %v182 = vadd.f32 %v168, %v179
  %183 = vst.msk [vmem:[%s5] sm:$0xff] %vm127, %v181
  %184 = vst.msk [vmem:[%s5 + $0x8] sm:$0xff] %vm127, %v182
  // Predicated region
  $region22: #{forward.29} parent=0 // pred_check
    _
  $region23: #{forward.29} parent=0 // pred_check_branch
    %186 = sbr.rel (0) target = $region25
  $region24: #{forward.29} parent=0 // pred_region
    _
  $region25: #{forward.29} parent=0 // pred_fallthru
    _
  // Predicated region
  $region26: #{forward.29} parent=0 // pred_check
    _
  $region27: #{forward.29} parent=0 // pred_check_branch
    %188 = sbr.rel (0) target = $region29
  $region28: #{forward.29} parent=0 // pred_region
    _
  $region29: #{forward.29} parent=0 // pred_fallthru
    _

// kernel: forward.31
$region0: #{forward.31}
  #allocation0 [shape = 'u32[]', space=smem, size = 0x4, offset = 0x4, fixed_abs, tag = 'smem constant byte address 0x4 - core index']
  #allocation1 [shape = 'u32[144,128]{1,0:T(1,128)}', space=vmem, size = 0x12000, scoped, tag = 'internal scratch']
  %s0 = inlined_call_operand.vmem [shape: bf16[16,144], index: 0, kind: input, shape index: {}]
  %s1 = inlined_call_operand.vmem [shape: bf16[144,8], index: 1, kind: input, shape index: {}]
  %s2 = inlined_call_operand.vmem [shape: f32[16,1], index: 2, kind: input, shape index: {}]
  %s3 = inlined_call_operand.vmem [shape: f32[16,8], index: 3, kind: output, shape index: {}]
  %s4 = sld [smem:[#allocation0]]
  $region22: #{forward.31} parent=0
    _
  %s6 = ssub.s32 1, %s4
  %s7 = scalar_select 0, %s6, %s4
  // Predicated region
  $region2: #{forward.31} parent=0 // pred_check
    _
  $region3: #{forward.31} parent=0 // pred_check_branch
    %9 = sbr.rel (0) target = $region5
  $region4: #{forward.31} parent=0 // pred_region
    _
  $region5: #{forward.31} parent=0 // pred_fallthru
    _
  // Predicated region
  $region6: #{forward.31} parent=0 // pred_check
    _
  $region7: #{forward.31} parent=0 // pred_check_branch
    %11 = sbr.rel (0) target = $region9
  $region8: #{forward.31} parent=0 // pred_region
    _
  $region9: #{forward.31} parent=0 // pred_fallthru
    _
  // Predicated region
  $region10: #{forward.31} parent=0 // pred_check
    _
  $region11: #{forward.31} parent=0 // pred_check_branch
    %13 = sbr.rel (0) target = $region13
  $region12: #{forward.31} parent=0 // pred_region
    _
  $region13: #{forward.31} parent=0 // pred_fallthru
    _
  %v15 = vld [vmem:[%s0] sm:$0xff]
  %v16 = vld [vmem:[%s0 + $0x8] sm:$0xff]
  %v17 = vld [vmem:[%s1] sm:$0xf]
  %v18 = vld [vmem:[%s1 + $0x4] sm:$0xf]
  %v19 = vld [vmem:[%s1 + $0x8] sm:$0xf]
  %v20 = vld [vmem:[%s1 + $0xc] sm:$0xf]
  %v21 = vld [vmem:[%s1 + $0x10] sm:$0xf]
  %v22 = vld [vmem:[%s1 + $0x14] sm:$0xf]
  %v23 = vld [vmem:[%s1 + $0x18] sm:$0xf]
  %v24 = vld [vmem:[%s1 + $0x1c] sm:$0xf]
  %v25 = vld [vmem:[%s1 + $0x20] sm:$0xf]
  %v26 = vld [vmem:[%s1 + $0x24] sm:$0xf]
  %v27 = vld [vmem:[%s1 + $0x28] sm:$0xf]
  %v28 = vld [vmem:[%s1 + $0x2c] sm:$0xf]
  %v29 = vld [vmem:[%s1 + $0x30] sm:$0xf]
  %v30 = vld [vmem:[%s1 + $0x34] sm:$0xf]
  %v31 = vld [vmem:[%s1 + $0x38] sm:$0xf]
  %v32 = vld [vmem:[%s1 + $0x3c] sm:$0xf]
  %v33 = vld [vmem:[%s1 + $0x40] sm:$0xf]
  %v34 = vld [vmem:[%s1 + $0x44] sm:$0xf]
  %v35 = vld [vmem:[%s2] sm:$0xff]
  %v36 = vld [vmem:[%s2 + $0x8] sm:$0xff]
  %38 = vset.pattern.permute.xlu0 0
  %39 = vperm.xlu0 %38, %v35
  %v40 = vpop.permute.xlu0 %39
  %43 = vset.pattern.permute.xlu0 0
  %44 = vperm.xlu0 %43, %v36
  %v45 = vpop.permute.xlu0 %44
  %v49 = vunpack.c.l.b16 %v15
  %v50 = vunpack.c.h.b16 %v15
  %v51 = vunpack.c.l.b16 %v16
  %v52 = vunpack.c.h.b16 %v16
  %v53 = vpack.c.b16 %v51, %v49
  %v54 = vpack.c.b16 %v52, %v50
  %v74 = vunpack.c.l.b16 %v17
  %v75 = vunpack.c.l.b16 %v18
  %v76 = vunpack.c.l.b16 %v19
  %v77 = vunpack.c.l.b16 %v20
  %v78 = vunpack.c.l.b16 %v21
  %v79 = vunpack.c.l.b16 %v22
  %v80 = vunpack.c.l.b16 %v23
  %v81 = vunpack.c.l.b16 %v24
  %v82 = vunpack.c.l.b16 %v25
  %v83 = vunpack.c.l.b16 %v26
  %v84 = vunpack.c.l.b16 %v27
  %v85 = vunpack.c.l.b16 %v28
  %v86 = vunpack.c.l.b16 %v29
  %v87 = vunpack.c.l.b16 %v30
  %v88 = vunpack.c.l.b16 %v31
  %v89 = vunpack.c.l.b16 %v32
  %v90 = vunpack.c.l.b16 %v33
  %v91 = vunpack.c.l.b16 %v34
  %v92 = vpack.c.b16 %v75, %v74
  %v93 = vpack.c.b16 %v77, %v76
  %v94 = vpack.c.b16 %v79, %v78
  %v95 = vpack.c.b16 %v81, %v80
  %v96 = vpack.c.b16 %v83, %v82
  %v97 = vpack.c.b16 %v85, %v84
  %v98 = vpack.c.b16 %v87, %v86
  %v99 = vpack.c.b16 %v89, %v88
  %v100 = vpack.c.b16 %v91, %v90
  %vm110 = vcmask 130048
  %v112 = vsel %vm110, %v54, 0
  %114 = vmatprep.subr.bf16.mxu0 0
  %115 = vmatpush1.bf16.msra.mxu0 %v92
  %116 = vmatprep.subr.bf16.mxu0 0
  %117 = vmatpush1.bf16.msra.mxu0 %v93
  %118 = vmatprep.subr.bf16.mxu0 0
  %119 = vmatpush1.bf16.msra.mxu0 %v94
  %120 = vmatprep.subr.bf16.mxu0 0
  %121 = vmatpush1.bf16.msra.mxu0 %v95
  %122 = vmatprep.subr.bf16.mxu0 0
  %123 = vmatpush1.bf16.msra.mxu0 %v96
  %124 = vmatprep.subr.bf16.mxu0 0
  %125 = vmatpush1.bf16.msra.mxu0 %v97
  %126 = vmatprep.subr.bf16.mxu0 0
  %127 = vmatpush1.bf16.msra.mxu0 %v98
  %128 = vmatprep.subr.bf16.mxu0 0
  %129 = vmatpush1.bf16.msra.mxu0 %v99
  %130 = vmatprep.subr.bf16.mxu0 0
  %131 = vmatpush1.bf16.msra.mxu0 %v100
  %132 = vmatprep.subr.bf16.mxu0 0
  %133 = vmatpush1.bf16.msra.mxu0 0
  %134 = vmatprep.subr.bf16.mxu0 0
  %135 = vmatpush1.bf16.msra.mxu0 0
  %136 = vmatprep.subr.bf16.mxu0 0
  %137 = vmatpush1.bf16.msra.mxu0 0
  %138 = vmatprep.subr.bf16.mxu0 0
  %139 = vmatpush1.bf16.msra.mxu0 0
  %140 = vmatprep.subr.bf16.mxu0 0
  %141 = vmatpush1.bf16.msra.mxu0 0
  %142 = vmatprep.subr.bf16.mxu0 0
  %143 = vmatpush1.bf16.msra.mxu0 0
  %144 = vmatprep.subr.bf16.mxu0 0
  %145 = vmatpush1.bf16.msra.mxu0 0
  %146 = vmatprep.mubr.bf16.mxu0 %v112
  %147 = vmatmul.mubr.bf16.gmra.mrb[0].mxu0 %v53
  %v148 = vpop.f32.mrb[0].mxu0
  %v149 = vadd.f32 %v40, %v148
  %v150 = vpop.f32.mrb[0].mxu0
  %v151 = vpop.f32.mrb[0].mxu0
  %v152 = vadd.f32 %v45, %v151
  %v153 = vpop.f32.mrb[0].mxu0
  %154 = vdwg.mxu0
  %vm155 = vcmask 64512
  %156 = vst.msk [vmem:[%s3] sm:$0xff] %vm155, %v149
  %157 = vst.msk [vmem:[%s3 + $0x8] sm:$0xff] %vm155, %v152
  // Predicated region
  $region14: #{forward.31} parent=0 // pred_check
    _
  $region15: #{forward.31} parent=0 // pred_check_branch
    %159 = sbr.rel (0) target = $region17
  $region16: #{forward.31} parent=0 // pred_region
    _
  $region17: #{forward.31} parent=0 // pred_fallthru
    _
  // Predicated region
  $region18: #{forward.31} parent=0 // pred_check
    _
  $region19: #{forward.31} parent=0 // pred_check_branch
    %161 = sbr.rel (0) target = $region21
  $region20: #{forward.31} parent=0 // pred_region
    _
  $region21: #{forward.31} parent=0 // pred_fallthru
    _

// kernel: forward.30
$region0: #{forward.30}
  #allocation0 [shape = 'u32[]', space=smem, size = 0x4, offset = 0x4, fixed_abs, tag = 'smem constant byte address 0x4 - core index']
  #allocation1 [shape = 'u32[144,128]{1,0:T(1,128)}', space=vmem, size = 0x12000, scoped, tag = 'internal scratch']
  %s0 = inlined_call_operand.vmem [shape: bf16[16,144], index: 0, kind: input, shape index: {}]
  %s1 = inlined_call_operand.vmem [shape: bf16[144,8], index: 1, kind: input, shape index: {}]
  %s2 = inlined_call_operand.vmem [shape: f32[16,1], index: 2, kind: input, shape index: {}]
  %s3 = inlined_call_operand.vmem [shape: f32[16,1], index: 3, kind: input, shape index: {}]
  %s4 = inlined_call_operand.vmem [shape: f32[16,1], index: 4, kind: input, shape index: {}]
  %s5 = inlined_call_operand.vmem [shape: f32[16,8], index: 5, kind: output, shape index: {}]
  %s6 = sld [smem:[#allocation0]]
  $region30: #{forward.30} parent=0
    _
  %s8 = ssub.s32 1, %s6
  %s9 = scalar_select 0, %s8, %s6
  // Predicated region
  $region2: #{forward.30} parent=0 // pred_check
    _
  $region3: #{forward.30} parent=0 // pred_check_branch
    %11 = sbr.rel (0) target = $region5
  $region4: #{forward.30} parent=0 // pred_region
    _
  $region5: #{forward.30} parent=0 // pred_fallthru
    _
  // Predicated region
  $region6: #{forward.30} parent=0 // pred_check
    _
  $region7: #{forward.30} parent=0 // pred_check_branch
    %13 = sbr.rel (0) target = $region9
  $region8: #{forward.30} parent=0 // pred_region
    _
  $region9: #{forward.30} parent=0 // pred_fallthru
    _
  // Predicated region
  $region10: #{forward.30} parent=0 // pred_check
    _
  $region11: #{forward.30} parent=0 // pred_check_branch
    %15 = sbr.rel (0) target = $region13
  $region12: #{forward.30} parent=0 // pred_region
    _
  $region13: #{forward.30} parent=0 // pred_fallthru
    _
  // Predicated region
  $region14: #{forward.30} parent=0 // pred_check
    _
  $region15: #{forward.30} parent=0 // pred_check_branch
    %17 = sbr.rel (0) target = $region17
  $region16: #{forward.30} parent=0 // pred_region
    _
  $region17: #{forward.30} parent=0 // pred_fallthru
    _
  // Predicated region
  $region18: #{forward.30} parent=0 // pred_check
    _
  $region19: #{forward.30} parent=0 // pred_check_branch
    %19 = sbr.rel (0) target = $region21
  $region20: #{forward.30} parent=0 // pred_region
    _
  $region21: #{forward.30} parent=0 // pred_fallthru
    _
  %v21 = vld [vmem:[%s0] sm:$0xff]
  %v22 = vld [vmem:[%s0 + $0x8] sm:$0xff]
  %v23 = vld [vmem:[%s1] sm:$0xf]
  %v24 = vld [vmem:[%s1 + $0x4] sm:$0xf]
  %v25 = vld [vmem:[%s1 + $0x8] sm:$0xf]
  %v26 = vld [vmem:[%s1 + $0xc] sm:$0xf]
  %v27 = vld [vmem:[%s1 + $0x10] sm:$0xf]
  %v28 = vld [vmem:[%s1 + $0x14] sm:$0xf]
  %v29 = vld [vmem:[%s1 + $0x18] sm:$0xf]
  %v30 = vld [vmem:[%s1 + $0x1c] sm:$0xf]
  %v31 = vld [vmem:[%s1 + $0x20] sm:$0xf]
  %v32 = vld [vmem:[%s1 + $0x24] sm:$0xf]
  %v33 = vld [vmem:[%s1 + $0x28] sm:$0xf]
  %v34 = vld [vmem:[%s1 + $0x2c] sm:$0xf]
  %v35 = vld [vmem:[%s1 + $0x30] sm:$0xf]
  %v36 = vld [vmem:[%s1 + $0x34] sm:$0xf]
  %v37 = vld [vmem:[%s1 + $0x38] sm:$0xf]
  %v38 = vld [vmem:[%s1 + $0x3c] sm:$0xf]
  %v39 = vld [vmem:[%s1 + $0x40] sm:$0xf]
  %v40 = vld [vmem:[%s1 + $0x44] sm:$0xf]
  %v41 = vld [vmem:[%s2] sm:$0xff]
  %v42 = vld [vmem:[%s2 + $0x8] sm:$0xff]
  %44 = vset.pattern.permute.xlu0 0
  %45 = vperm.xlu0 %44, %v41
  %v46 = vpop.permute.xlu0 %45
  %49 = vset.pattern.permute.xlu0 0
  %50 = vperm.xlu0 %49, %v42
  %v51 = vpop.permute.xlu0 %50
  %v55 = vunpack.c.l.b16 %v21
  %v56 = vunpack.c.h.b16 %v21
  %v57 = vunpack.c.l.b16 %v22
  %v58 = vunpack.c.h.b16 %v22
  %v59 = vpack.c.b16 %v57, %v55
  %v60 = vpack.c.b16 %v58, %v56
  %v80 = vunpack.c.l.b16 %v23
  %v81 = vunpack.c.l.b16 %v24
  %v82 = vunpack.c.l.b16 %v25
  %v83 = vunpack.c.l.b16 %v26
  %v84 = vunpack.c.l.b16 %v27
  %v85 = vunpack.c.l.b16 %v28
  %v86 = vunpack.c.l.b16 %v29
  %v87 = vunpack.c.l.b16 %v30
  %v88 = vunpack.c.l.b16 %v31
  %v89 = vunpack.c.l.b16 %v32
  %v90 = vunpack.c.l.b16 %v33
  %v91 = vunpack.c.l.b16 %v34
  %v92 = vunpack.c.l.b16 %v35
  %v93 = vunpack.c.l.b16 %v36
  %v94 = vunpack.c.l.b16 %v37
  %v95 = vunpack.c.l.b16 %v38
  %v96 = vunpack.c.l.b16 %v39
  %v97 = vunpack.c.l.b16 %v40
  %v98 = vpack.c.b16 %v81, %v80
  %v99 = vpack.c.b16 %v83, %v82
  %v100 = vpack.c.b16 %v85, %v84
  %v101 = vpack.c.b16 %v87, %v86
  %v102 = vpack.c.b16 %v89, %v88
  %v103 = vpack.c.b16 %v91, %v90
  %v104 = vpack.c.b16 %v93, %v92
  %v105 = vpack.c.b16 %v95, %v94
  %v106 = vpack.c.b16 %v97, %v96
  %vm116 = vcmask 130048
  %v118 = vsel %vm116, %v60, 0
  %120 = vmatprep.subr.bf16.mxu0 0
  %121 = vmatpush1.bf16.msra.mxu0 %v98
  %122 = vmatprep.subr.bf16.mxu0 0
  %123 = vmatpush1.bf16.msra.mxu0 %v99
  %124 = vmatprep.subr.bf16.mxu0 0
  %125 = vmatpush1.bf16.msra.mxu0 %v100
  %126 = vmatprep.subr.bf16.mxu0 0
  %127 = vmatpush1.bf16.msra.mxu0 %v101
  %128 = vmatprep.subr.bf16.mxu0 0
  %129 = vmatpush1.bf16.msra.mxu0 %v102
  %130 = vmatprep.subr.bf16.mxu0 0
  %131 = vmatpush1.bf16.msra.mxu0 %v103
  %132 = vmatprep.subr.bf16.mxu0 0
  %133 = vmatpush1.bf16.msra.mxu0 %v104
  %134 = vmatprep.subr.bf16.mxu0 0
  %135 = vmatpush1.bf16.msra.mxu0 %v105
  %136 = vmatprep.subr.bf16.mxu0 0
  %137 = vmatpush1.bf16.msra.mxu0 %v106
  %138 = vmatprep.subr.bf16.mxu0 0
  %139 = vmatpush1.bf16.msra.mxu0 0
  %140 = vmatprep.subr.bf16.mxu0 0
  %141 = vmatpush1.bf16.msra.mxu0 0
  %142 = vmatprep.subr.bf16.mxu0 0
  %143 = vmatpush1.bf16.msra.mxu0 0
  %144 = vmatprep.subr.bf16.mxu0 0
  %145 = vmatpush1.bf16.msra.mxu0 0
  %146 = vmatprep.subr.bf16.mxu0 0
  %147 = vmatpush1.bf16.msra.mxu0 0
  %148 = vmatprep.subr.bf16.mxu0 0
  %149 = vmatpush1.bf16.msra.mxu0 0
  %150 = vmatprep.subr.bf16.mxu0 0
  %151 = vmatpush1.bf16.msra.mxu0 0
  %152 = vmatprep.mubr.bf16.mxu0 %v118
  %153 = vmatmul.mubr.bf16.gmra.mrb[0].mxu0 %v59
  %v154 = vpop.f32.mrb[0].mxu0
  %v155 = vadd.f32 %v46, %v154
  %v156 = vpop.f32.mrb[0].mxu0
  %v157 = vpop.f32.mrb[0].mxu0
  %v158 = vadd.f32 %v51, %v157
  %v159 = vpop.f32.mrb[0].mxu0
  %160 = vdwg.mxu0
  %v161 = vmax.f32 %v155, 0.0
  %v162 = vmax.f32 %v158, 0.0
  %vm163 = vcmask 64512
  %v164 = vsel %vm163, %v161, 0.0
  %165 = vadd.xlane.f32.xlu0 %v164
  %v166 = vpop.xlane.xlu0 %165
  %v167 = vsel %vm163, %v162, 0.0
  %168 = vadd.xlane.f32.xlu0 %v167
  %v169 = vpop.xlane.xlu0 %168
  %v170 = vrcp.pop 8.0
  %v171 = vmul.f32 %v166, %v170
  %v172 = vmul.f32 %v169, %v170
  %v173 = vsub.f32 %v161, %v171
  %v174 = vsub.f32 %v162, %v172
  %v175 = vmul.f32 %v173, %v173
  %v176 = vmul.f32 %v174, %v174
  %v177 = vsel %vm163, %v175, 0.0
  %178 = vadd.xlane.f32.xlu0 %v177
  %v179 = vpop.xlane.xlu0 %178
  %v180 = vsel %vm163, %v176, 0.0
  %181 = vadd.xlane.f32.xlu0 %v180
  %v182 = vpop.xlane.xlu0 %181
  %v183 = vmul.f32 %v179, %v170
  %v184 = vmul.f32 %v182, %v170
  %v185 = vadd.f32 %v183, 1e-05
  %v186 = vadd.f32 %v184, 1e-05
  %v187 = vrsqrt.pop %v185
  %v188 = vrsqrt.pop %v186
  %v189 = vmul.f32 %v173, %v187
  %v190 = vmul.f32 %v174, %v188
  %v191 = vld [vmem:[%s3] sm:$0xff]
  %v192 = vld [vmem:[%s3 + $0x8] sm:$0xff]
  %194 = vset.pattern.permute.xlu0 0
  %195 = vperm.xlu0 %194, %v191
  %v196 = vpop.permute.xlu0 %195
  %199 = vset.pattern.permute.xlu0 0
  %200 = vperm.xlu0 %199, %v192
  %v201 = vpop.permute.xlu0 %200
  %v203 = vmul.f32 %v189, %v196
  %v204 = vmul.f32 %v190, %v201
  %v205 = vld [vmem:[%s4] sm:$0xff]
  %v206 = vld [vmem:[%s4 + $0x8] sm:$0xff]
  %208 = vset.pattern.permute.xlu0 0
  %209 = vperm.xlu0 %208, %v205
  %v210 = vpop.permute.xlu0 %209
  %213 = vset.pattern.permute.xlu0 0
  %214 = vperm.xlu0 %213, %v206
  %v215 = vpop.permute.xlu0 %214
  %v217 = vadd.f32 %v203, %v210
  %v218 = vadd.f32 %v204, %v215
  %219 = vst.msk [vmem:[%s5] sm:$0xff] %vm163, %v217
  %220 = vst.msk [vmem:[%s5 + $0x8] sm:$0xff] %vm163, %v218
  // Predicated region
  $region22: #{forward.30} parent=0 // pred_check
    _
  $region23: #{forward.30} parent=0 // pred_check_branch
    %222 = sbr.rel (0) target = $region25
  $region24: #{forward.30} parent=0 // pred_region
    _
  $region25: #{forward.30} parent=0 // pred_fallthru
    _
  // Predicated region
  $region26: #{forward.30} parent=0 // pred_check
    _
  $region27: #{forward.30} parent=0 // pred_check_branch
    %224 = sbr.rel (0) target = $region29
  $region28: #{forward.30} parent=0 // pred_region
    _
  $region29: #{forward.30} parent=0 // pred_fallthru
    _

// kernel: forward.32
$region0: #{forward.32}
  #allocation0 [shape = 'u32[]', space=smem, size = 0x4, offset = 0x4, fixed_abs, tag = 'smem constant byte address 0x4 - core index']
  #allocation1 [shape = 'u32[144,128]{1,0:T(1,128)}', space=vmem, size = 0x12000, scoped, tag = 'internal scratch']
  %s0 = inlined_call_operand.vmem [shape: bf16[16,144], index: 0, kind: input, shape index: {}]
  %s1 = inlined_call_operand.vmem [shape: bf16[144,32], index: 1, kind: input, shape index: {}]
  %s2 = inlined_call_operand.vmem [shape: f32[16,1], index: 2, kind: input, shape index: {}]
  %s3 = inlined_call_operand.vmem [shape: f32[16,1], index: 3, kind: input, shape index: {}]
  %s4 = inlined_call_operand.vmem [shape: f32[16,1], index: 4, kind: input, shape index: {}]
  %s5 = inlined_call_operand.vmem [shape: f32[16,32], index: 5, kind: output, shape index: {}]
  %s6 = sld [smem:[#allocation0]]
  $region30: #{forward.32} parent=0
    _
  %s8 = ssub.s32 1, %s6
  %s9 = scalar_select 0, %s8, %s6
  // Predicated region
  $region2: #{forward.32} parent=0 // pred_check
    _
  $region3: #{forward.32} parent=0 // pred_check_branch
    %11 = sbr.rel (0) target = $region5
  $region4: #{forward.32} parent=0 // pred_region
    _
  $region5: #{forward.32} parent=0 // pred_fallthru
    _
  // Predicated region
  $region6: #{forward.32} parent=0 // pred_check
    _
  $region7: #{forward.32} parent=0 // pred_check_branch
    %13 = sbr.rel (0) target = $region9
  $region8: #{forward.32} parent=0 // pred_region
    _
  $region9: #{forward.32} parent=0 // pred_fallthru
    _
  // Predicated region
  $region10: #{forward.32} parent=0 // pred_check
    _
  $region11: #{forward.32} parent=0 // pred_check_branch
    %15 = sbr.rel (0) target = $region13
  $region12: #{forward.32} parent=0 // pred_region
    _
  $region13: #{forward.32} parent=0 // pred_fallthru
    _
  // Predicated region
  $region14: #{forward.32} parent=0 // pred_check
    _
  $region15: #{forward.32} parent=0 // pred_check_branch
    %17 = sbr.rel (0) target = $region17
  $region16: #{forward.32} parent=0 // pred_region
    _
  $region17: #{forward.32} parent=0 // pred_fallthru
    _
  // Predicated region
  $region18: #{forward.32} parent=0 // pred_check
    _
  $region19: #{forward.32} parent=0 // pred_check_branch
    %19 = sbr.rel (0) target = $region21
  $region20: #{forward.32} parent=0 // pred_region
    _
  $region21: #{forward.32} parent=0 // pred_fallthru
    _
  %v21 = vld [vmem:[%s0] sm:$0xff]
  %v22 = vld [vmem:[%s0 + $0x8] sm:$0xff]
  %v23 = vld [vmem:[%s1] sm:$0xf]
  %v24 = vld [vmem:[%s1 + $0x4] sm:$0xf]
  %v25 = vld [vmem:[%s1 + $0x8] sm:$0xf]
  %v26 = vld [vmem:[%s1 + $0xc] sm:$0xf]
  %v27 = vld [vmem:[%s1 + $0x10] sm:$0xf]
  %v28 = vld [vmem:[%s1 + $0x14] sm:$0xf]
  %v29 = vld [vmem:[%s1 + $0x18] sm:$0xf]
  %v30 = vld [vmem:[%s1 + $0x1c] sm:$0xf]
  %v31 = vld [vmem:[%s1 + $0x20] sm:$0xf]
  %v32 = vld [vmem:[%s1 + $0x24] sm:$0xf]
  %v33 = vld [vmem:[%s1 + $0x28] sm:$0xf]
  %v34 = vld [vmem:[%s1 + $0x2c] sm:$0xf]
  %v35 = vld [vmem:[%s1 + $0x30] sm:$0xf]
  %v36 = vld [vmem:[%s1 + $0x34] sm:$0xf]
  %v37 = vld [vmem:[%s1 + $0x38] sm:$0xf]
  %v38 = vld [vmem:[%s1 + $0x3c] sm:$0xf]
  %v39 = vld [vmem:[%s1 + $0x40] sm:$0xf]
  %v40 = vld [vmem:[%s1 + $0x44] sm:$0xf]
  %v41 = vld [vmem:[%s2] sm:$0xff]
  %v42 = vld [vmem:[%s2 + $0x8] sm:$0xff]
  %44 = vset.pattern.permute.xlu0 0
  %45 = vperm.xlu0 %44, %v41
  %v46 = vpop.permute.xlu0 %45
  %49 = vset.pattern.permute.xlu0 0
  %50 = vperm.xlu0 %49, %v42
  %v51 = vpop.permute.xlu0 %50
  %v55 = vunpack.c.l.b16 %v21
  %v56 = vunpack.c.h.b16 %v21
  %v57 = vunpack.c.l.b16 %v22
  %v58 = vunpack.c.h.b16 %v22
  %v59 = vpack.c.b16 %v57, %v55
  %v60 = vpack.c.b16 %v58, %v56
  %v80 = vunpack.c.l.b16 %v23
  %v81 = vunpack.c.l.b16 %v24
  %v82 = vunpack.c.l.b16 %v25
  %v83 = vunpack.c.l.b16 %v26
  %v84 = vunpack.c.l.b16 %v27
  %v85 = vunpack.c.l.b16 %v28
  %v86 = vunpack.c.l.b16 %v29
  %v87 = vunpack.c.l.b16 %v30
  %v88 = vunpack.c.l.b16 %v31
  %v89 = vunpack.c.l.b16 %v32
  %v90 = vunpack.c.l.b16 %v33
  %v91 = vunpack.c.l.b16 %v34
  %v92 = vunpack.c.l.b16 %v35
  %v93 = vunpack.c.l.b16 %v36
  %v94 = vunpack.c.l.b16 %v37
  %v95 = vunpack.c.l.b16 %v38
  %v96 = vunpack.c.l.b16 %v39
  %v97 = vunpack.c.l.b16 %v40
  %v98 = vpack.c.b16 %v81, %v80
  %v99 = vpack.c.b16 %v83, %v82
  %v100 = vpack.c.b16 %v85, %v84
  %v101 = vpack.c.b16 %v87, %v86
  %v102 = vpack.c.b16 %v89, %v88
  %v103 = vpack.c.b16 %v91, %v90
  %v104 = vpack.c.b16 %v93, %v92
  %v105 = vpack.c.b16 %v95, %v94
  %v106 = vpack.c.b16 %v97, %v96
  %vm116 = vcmask 130048
  %v118 = vsel %vm116, %v60, 0
  %120 = vmatprep.subr.bf16.mxu0 0
  %121 = vmatpush1.bf16.msra.mxu0 %v98
  %122 = vmatprep.subr.bf16.mxu0 0
  %123 = vmatpush1.bf16.msra.mxu0 %v99
  %124 = vmatprep.subr.bf16.mxu0 0
  %125 = vmatpush1.bf16.msra.mxu0 %v100
  %126 = vmatprep.subr.bf16.mxu0 0
  %127 = vmatpush1.bf16.msra.mxu0 %v101
  %128 = vmatprep.subr.bf16.mxu0 0
  %129 = vmatpush1.bf16.msra.mxu0 %v102
  %130 = vmatprep.subr.bf16.mxu0 0
  %131 = vmatpush1.bf16.msra.mxu0 %v103
  %132 = vmatprep.subr.bf16.mxu0 0
  %133 = vmatpush1.bf16.msra.mxu0 %v104
  %134 = vmatprep.subr.bf16.mxu0 0
  %135 = vmatpush1.bf16.msra.mxu0 %v105
  %136 = vmatprep.subr.bf16.mxu0 0
  %137 = vmatpush1.bf16.msra.mxu0 %v106
  %138 = vmatprep.subr.bf16.mxu0 0
  %139 = vmatpush1.bf16.msra.mxu0 0
  %140 = vmatprep.subr.bf16.mxu0 0
  %141 = vmatpush1.bf16.msra.mxu0 0
  %142 = vmatprep.subr.bf16.mxu0 0
  %143 = vmatpush1.bf16.msra.mxu0 0
  %144 = vmatprep.subr.bf16.mxu0 0
  %145 = vmatpush1.bf16.msra.mxu0 0
  %146 = vmatprep.subr.bf16.mxu0 0
  %147 = vmatpush1.bf16.msra.mxu0 0
  %148 = vmatprep.subr.bf16.mxu0 0
  %149 = vmatpush1.bf16.msra.mxu0 0
  %150 = vmatprep.subr.bf16.mxu0 0
  %151 = vmatpush1.bf16.msra.mxu0 0
  %152 = vmatprep.mubr.bf16.mxu0 %v118
  %153 = vmatmul.mubr.bf16.gmra.mrb[0].mxu0 %v59
  %v154 = vpop.f32.mrb[0].mxu0
  %v155 = vadd.f32 %v46, %v154
  %v156 = vpop.f32.mrb[0].mxu0
  %v157 = vpop.f32.mrb[0].mxu0
  %v158 = vadd.f32 %v51, %v157
  %v159 = vpop.f32.mrb[0].mxu0
  %160 = vdwg.mxu0
  %v161 = vmax.f32 %v155, 0.0
  %v162 = vmax.f32 %v158, 0.0
  %vm163 = vcmask 261120
  %v164 = vsel %vm163, %v161, 0.0
  %165 = vadd.xlane.f32.xlu0 %v164
  %v166 = vpop.xlane.xlu0 %165
  %v167 = vsel %vm163, %v162, 0.0
  %168 = vadd.xlane.f32.xlu0 %v167
  %v169 = vpop.xlane.xlu0 %168
  %v170 = vrcp.pop 32.0
  %v171 = vmul.f32 %v166, %v170
  %v172 = vmul.f32 %v169, %v170
  %v173 = vsub.f32 %v161, %v171
  %v174 = vsub.f32 %v162, %v172
  %v175 = vmul.f32 %v173, %v173
  %v176 = vmul.f32 %v174, %v174
  %v177 = vsel %vm163, %v175, 0.0
  %178 = vadd.xlane.f32.xlu0 %v177
  %v179 = vpop.xlane.xlu0 %178
  %v180 = vsel %vm163, %v176, 0.0
  %181 = vadd.xlane.f32.xlu0 %v180
  %v182 = vpop.xlane.xlu0 %181
  %v183 = vmul.f32 %v179, %v170
  %v184 = vmul.f32 %v182, %v170
  %v185 = vadd.f32 %v183, 1e-05
  %v186 = vadd.f32 %v184, 1e-05
  %v187 = vrsqrt.pop %v185
  %v188 = vrsqrt.pop %v186
  %v189 = vmul.f32 %v173, %v187
  %v190 = vmul.f32 %v174, %v188
  %v191 = vld [vmem:[%s3] sm:$0xff]
  %v192 = vld [vmem:[%s3 + $0x8] sm:$0xff]
  %194 = vset.pattern.permute.xlu0 0
  %195 = vperm.xlu0 %194, %v191
  %v196 = vpop.permute.xlu0 %195
  %199 = vset.pattern.permute.xlu0 0
  %200 = vperm.xlu0 %199, %v192
  %v201 = vpop.permute.xlu0 %200
  %v203 = vmul.f32 %v189, %v196
  %v204 = vmul.f32 %v190, %v201
  %v205 = vld [vmem:[%s4] sm:$0xff]
  %v206 = vld [vmem:[%s4 + $0x8] sm:$0xff]
  %208 = vset.pattern.permute.xlu0 0
  %209 = vperm.xlu0 %208, %v205
  %v210 = vpop.permute.xlu0 %209
  %213 = vset.pattern.permute.xlu0 0
  %214 = vperm.xlu0 %213, %v206
  %v215 = vpop.permute.xlu0 %214
  %v217 = vadd.f32 %v203, %v210
  %v218 = vadd.f32 %v204, %v215
  %219 = vst.msk [vmem:[%s5] sm:$0xff] %vm163, %v217
  %220 = vst.msk [vmem:[%s5 + $0x8] sm:$0xff] %vm163, %v218
  // Predicated region
  $region22: #{forward.32} parent=0 // pred_check
    _
  $region23: #{forward.32} parent=0 // pred_check_branch
    %222 = sbr.rel (0) target = $region25
  $region24: #{forward.32} parent=0 // pred_region
    _
  $region25: #{forward.32} parent=0 // pred_fallthru
    _
  // Predicated region
  $region26: #{forward.32} parent=0 // pred_check
    _
  $region27: #{forward.32} parent=0 // pred_check_branch
    %224 = sbr.rel (0) target = $region29
  $region28: #{forward.32} parent=0 // pred_region
    _
  $region29: #{forward.32} parent=0 // pred_fallthru
    _

// kernel: forward.33
$region0: #{forward.33}
  #allocation0 [shape = 'u32[]', space=smem, size = 0x4, offset = 0x4, fixed_abs, tag = 'smem constant byte address 0x4 - core index']
  #allocation1 [shape = 'u32[144,128]{1,0:T(1,128)}', space=vmem, size = 0x12000, scoped, tag = 'internal scratch']
  %s0 = inlined_call_operand.vmem [shape: bf16[8,144], index: 0, kind: input, shape index: {}]
  %s1 = inlined_call_operand.vmem [shape: bf16[144,32], index: 1, kind: input, shape index: {}]
  %s2 = inlined_call_operand.vmem [shape: f32[8,1], index: 2, kind: input, shape index: {}]
  %s3 = inlined_call_operand.vmem [shape: f32[8,1], index: 3, kind: input, shape index: {}]
  %s4 = inlined_call_operand.vmem [shape: f32[8,1], index: 4, kind: input, shape index: {}]
  %s5 = inlined_call_operand.vmem [shape: f32[8,32], index: 5, kind: output, shape index: {}]
  %s6 = sld [smem:[#allocation0]]
  $region30: #{forward.33} parent=0
    _
  %s8 = ssub.s32 1, %s6
  %s9 = scalar_select 0, %s8, %s6
  // Predicated region
  $region2: #{forward.33} parent=0 // pred_check
    _
  $region3: #{forward.33} parent=0 // pred_check_branch
    %11 = sbr.rel (0) target = $region5
  $region4: #{forward.33} parent=0 // pred_region
    _
  $region5: #{forward.33} parent=0 // pred_fallthru
    _
  // Predicated region
  $region6: #{forward.33} parent=0 // pred_check
    _
  $region7: #{forward.33} parent=0 // pred_check_branch
    %13 = sbr.rel (0) target = $region9
  $region8: #{forward.33} parent=0 // pred_region
    _
  $region9: #{forward.33} parent=0 // pred_fallthru
    _
  // Predicated region
  $region10: #{forward.33} parent=0 // pred_check
    _
  $region11: #{forward.33} parent=0 // pred_check_branch
    %15 = sbr.rel (0) target = $region13
  $region12: #{forward.33} parent=0 // pred_region
    _
  $region13: #{forward.33} parent=0 // pred_fallthru
    _
  // Predicated region
  $region14: #{forward.33} parent=0 // pred_check
    _
  $region15: #{forward.33} parent=0 // pred_check_branch
    %17 = sbr.rel (0) target = $region17
  $region16: #{forward.33} parent=0 // pred_region
    _
  $region17: #{forward.33} parent=0 // pred_fallthru
    _
  // Predicated region
  $region18: #{forward.33} parent=0 // pred_check
    _
  $region19: #{forward.33} parent=0 // pred_check_branch
    %19 = sbr.rel (0) target = $region21
  $region20: #{forward.33} parent=0 // pred_region
    _
  $region21: #{forward.33} parent=0 // pred_fallthru
    _
  %v21 = vld [vmem:[%s0] sm:$0xff]
  %v22 = vld [vmem:[%s1] sm:$0xf]
  %v23 = vld [vmem:[%s1 + $0x4] sm:$0xf]
  %v24 = vld [vmem:[%s1 + $0x8] sm:$0xf]
  %v25 = vld [vmem:[%s1 + $0xc] sm:$0xf]
  %v26 = vld [vmem:[%s1 + $0x10] sm:$0xf]
  %v27 = vld [vmem:[%s1 + $0x14] sm:$0xf]
  %v28 = vld [vmem:[%s1 + $0x18] sm:$0xf]
  %v29 = vld [vmem:[%s1 + $0x1c] sm:$0xf]
  %v30 = vld [vmem:[%s1 + $0x20] sm:$0xf]
  %v31 = vld [vmem:[%s1 + $0x24] sm:$0xf]
  %v32 = vld [vmem:[%s1 + $0x28] sm:$0xf]
  %v33 = vld [vmem:[%s1 + $0x2c] sm:$0xf]
  %v34 = vld [vmem:[%s1 + $0x30] sm:$0xf]
  %v35 = vld [vmem:[%s1 + $0x34] sm:$0xf]
  %v36 = vld [vmem:[%s1 + $0x38] sm:$0xf]
  %v37 = vld [vmem:[%s1 + $0x3c] sm:$0xf]
  %v38 = vld [vmem:[%s1 + $0x40] sm:$0xf]
  %v39 = vld [vmem:[%s1 + $0x44] sm:$0xf]
  %v40 = vld [vmem:[%s2] sm:$0xff]
  %42 = vset.pattern.permute.xlu0 0
  %43 = vperm.xlu0 %42, %v40
  %v44 = vpop.permute.xlu0 %43
  %v47 = vunpack.c.l.b16 %v21
  %v48 = vunpack.c.h.b16 %v21
  %v49 = vpack.c.b16 %v47, %v47
  %v50 = vpack.c.b16 %v48, %v48
  %v70 = vunpack.c.l.b16 %v22
  %v71 = vunpack.c.l.b16 %v23
  %v72 = vunpack.c.l.b16 %v24
  %v73 = vunpack.c.l.b16 %v25
  %v74 = vunpack.c.l.b16 %v26
  %v75 = vunpack.c.l.b16 %v27
  %v76 = vunpack.c.l.b16 %v28
  %v77 = vunpack.c.l.b16 %v29
  %v78 = vunpack.c.l.b16 %v30
  %v79 = vunpack.c.l.b16 %v31
  %v80 = vunpack.c.l.b16 %v32
  %v81 = vunpack.c.l.b16 %v33
  %v82 = vunpack.c.l.b16 %v34
  %v83 = vunpack.c.l.b16 %v35
  %v84 = vunpack.c.l.b16 %v36
  %v85 = vunpack.c.l.b16 %v37
  %v86 = vunpack.c.l.b16 %v38
  %v87 = vunpack.c.l.b16 %v39
  %v88 = vpack.c.b16 %v71, %v70
  %v89 = vpack.c.b16 %v73, %v72
  %v90 = vpack.c.b16 %v75, %v74
  %v91 = vpack.c.b16 %v77, %v76
  %v92 = vpack.c.b16 %v79, %v78
  %v93 = vpack.c.b16 %v81, %v80
  %v94 = vpack.c.b16 %v83, %v82
  %v95 = vpack.c.b16 %v85, %v84
  %v96 = vpack.c.b16 %v87, %v86
  %vm106 = vcmask 130048
  %v108 = vsel %vm106, %v50, 0
  %110 = vmatprep.subr.bf16.mxu0 0
  %111 = vmatpush1.bf16.msra.mxu0 %v88
  %112 = vmatprep.subr.bf16.mxu0 0
  %113 = vmatpush1.bf16.msra.mxu0 %v89
  %114 = vmatprep.subr.bf16.mxu0 0
  %115 = vmatpush1.bf16.msra.mxu0 %v90
  %116 = vmatprep.subr.bf16.mxu0 0
  %117 = vmatpush1.bf16.msra.mxu0 %v91
  %118 = vmatprep.subr.bf16.mxu0 0
  %119 = vmatpush1.bf16.msra.mxu0 %v92
  %120 = vmatprep.subr.bf16.mxu0 0
  %121 = vmatpush1.bf16.msra.mxu0 %v93
  %122 = vmatprep.subr.bf16.mxu0 0
  %123 = vmatpush1.bf16.msra.mxu0 %v94
  %124 = vmatprep.subr.bf16.mxu0 0
  %125 = vmatpush1.bf16.msra.mxu0 %v95
  %126 = vmatprep.subr.bf16.mxu0 0
  %127 = vmatpush1.bf16.msra.mxu0 %v96
  %128 = vmatprep.subr.bf16.mxu0 0
  %129 = vmatpush1.bf16.msra.mxu0 0
  %130 = vmatprep.subr.bf16.mxu0 0
  %131 = vmatpush1.bf16.msra.mxu0 0
  %132 = vmatprep.subr.bf16.mxu0 0
  %133 = vmatpush1.bf16.msra.mxu0 0
  %134 = vmatprep.subr.bf16.mxu0 0
  %135 = vmatpush1.bf16.msra.mxu0 0
  %136 = vmatprep.subr.bf16.mxu0 0
  %137 = vmatpush1.bf16.msra.mxu0 0
  %138 = vmatprep.subr.bf16.mxu0 0
  %139 = vmatpush1.bf16.msra.mxu0 0
  %140 = vmatprep.subr.bf16.mxu0 0
  %141 = vmatpush1.bf16.msra.mxu0 0
  %142 = vmatprep.mubr.bf16.mxu0 %v108
  %143 = vmatmul.mubr.bf16.gmra.mrb[0].mxu0 %v49
  %v144 = vpop.f32.mrb[0].mxu0
  %v145 = vadd.f32 %v44, %v144
  %v146 = vpop.f32.mrb[0].mxu0
  %v147 = vpop.f32.mrb[0].mxu0
  %v148 = vpop.f32.mrb[0].mxu0
  %149 = vdwg.mxu0
  %v150 = vmax.f32 %v145, 0.0
  %vm151 = vcmask 261120
  %v152 = vsel %vm151, %v150, 0.0
  %153 = vadd.xlane.f32.xlu0 %v152
  %v154 = vpop.xlane.xlu0 %153
  %v155 = vrcp.pop 32.0
  %v156 = vmul.f32 %v154, %v155
  %v157 = vsub.f32 %v150, %v156
  %v158 = vmul.f32 %v157, %v157
  %v159 = vsel %vm151, %v158, 0.0
  %160 = vadd.xlane.f32.xlu0 %v159
  %v161 = vpop.xlane.xlu0 %160
  %v162 = vmul.f32 %v161, %v155
  %v163 = vadd.f32 %v162, 1e-05
  %v164 = vrsqrt.pop %v163
  %v165 = vmul.f32 %v157, %v164
  %v166 = vld [vmem:[%s3] sm:$0xff]
  %168 = vset.pattern.permute.xlu0 0
  %169 = vperm.xlu0 %168, %v166
  %v170 = vpop.permute.xlu0 %169
  %v172 = vmul.f32 %v165, %v170
  %v173 = vld [vmem:[%s4] sm:$0xff]
  %175 = vset.pattern.permute.xlu0 0
  %176 = vperm.xlu0 %175, %v173
  %v177 = vpop.permute.xlu0 %176
  %v179 = vadd.f32 %v172, %v177
  %180 = vst.msk [vmem:[%s5] sm:$0xff] %vm151, %v179
  // Predicated region
  $region22: #{forward.33} parent=0 // pred_check
    _
  $region23: #{forward.33} parent=0 // pred_check_branch
    %182 = sbr.rel (0) target = $region25
  $region24: #{forward.33} parent=0 // pred_region
    _
  $region25: #{forward.33} parent=0 // pred_fallthru
    _
  // Predicated region
  $region26: #{forward.33} parent=0 // pred_check
    _
  $region27: #{forward.33} parent=0 // pred_check_branch
    %184 = sbr.rel (0) target = $region29
  $region28: #{forward.33} parent=0 // pred_region
    _
  $region29: #{forward.33} parent=0 // pred_fallthru
    _

// kernel: forward.34
$region0: #{forward.34}
  #allocation0 [shape = 'u32[]', space=smem, size = 0x4, offset = 0x4, fixed_abs, tag = 'smem constant byte address 0x4 - core index']
  #allocation1 [shape = 'u32[144,128]{1,0:T(1,128)}', space=vmem, size = 0x12000, scoped, tag = 'internal scratch']
  %s0 = inlined_call_operand.vmem [shape: bf16[4,72], index: 0, kind: input, shape index: {}]
  %s1 = inlined_call_operand.vmem [shape: bf16[72,32], index: 1, kind: input, shape index: {}]
  %s2 = inlined_call_operand.vmem [shape: f32[4,1], index: 2, kind: input, shape index: {}]
  %s3 = inlined_call_operand.vmem [shape: f32[4,32], index: 3, kind: output, shape index: {}]
  %s4 = sld [smem:[#allocation0]]
  $region22: #{forward.34} parent=0
    _
  %s6 = ssub.s32 1, %s4
  %s7 = scalar_select 0, %s6, %s4
  // Predicated region
  $region2: #{forward.34} parent=0 // pred_check
    _
  $region3: #{forward.34} parent=0 // pred_check_branch
    %9 = sbr.rel (0) target = $region5
  $region4: #{forward.34} parent=0 // pred_region
    _
  $region5: #{forward.34} parent=0 // pred_fallthru
    _
  // Predicated region
  $region6: #{forward.34} parent=0 // pred_check
    _
  $region7: #{forward.34} parent=0 // pred_check_branch
    %11 = sbr.rel (0) target = $region9
  $region8: #{forward.34} parent=0 // pred_region
    _
  $region9: #{forward.34} parent=0 // pred_fallthru
    _
  // Predicated region
  $region10: #{forward.34} parent=0 // pred_check
    _
  $region11: #{forward.34} parent=0 // pred_check_branch
    %13 = sbr.rel (0) target = $region13
  $region12: #{forward.34} parent=0 // pred_region
    _
  $region13: #{forward.34} parent=0 // pred_fallthru
    _
  %v15 = vld [vmem:[%s0] sm:$0x3]
  %v16 = vld [vmem:[%s1] sm:$0xf]
  %v17 = vld [vmem:[%s1 + $0x4] sm:$0xf]
  %v18 = vld [vmem:[%s1 + $0x8] sm:$0xf]
  %v19 = vld [vmem:[%s1 + $0xc] sm:$0xf]
  %v20 = vld [vmem:[%s1 + $0x10] sm:$0xf]
  %v21 = vld [vmem:[%s1 + $0x14] sm:$0xf]
  %v22 = vld [vmem:[%s1 + $0x18] sm:$0xf]
  %v23 = vld [vmem:[%s1 + $0x1c] sm:$0xf]
  %v24 = vld [vmem:[%s1 + $0x20] sm:$0xf]
  %v25 = vld [vmem:[%s2] sm:$0xf]
  %27 = vset.pattern.permute.xlu0 0
  %28 = vperm.xlu0 %27, %v25
  %v29 = vpop.permute.xlu0 %28
  %v40 = vunpack.c.l.b16 %v16
  %v41 = vunpack.c.l.b16 %v17
  %v42 = vunpack.c.l.b16 %v18
  %v43 = vunpack.c.l.b16 %v19
  %v44 = vunpack.c.l.b16 %v20
  %v45 = vunpack.c.l.b16 %v21
  %v46 = vunpack.c.l.b16 %v22
  %v47 = vunpack.c.l.b16 %v23
  %v48 = vunpack.c.l.b16 %v24
  %v49 = vpack.c.b16 %v41, %v40
  %v50 = vpack.c.b16 %v43, %v42
  %v51 = vpack.c.b16 %v45, %v44
  %v52 = vpack.c.b16 %v47, %v46
  %v53 = vpack.c.b16 %v48, %v48
  %vm58 = vcmask 588800
  %v60 = vsel %vm58, %v15, 0
  %vm62 = vcmask 1043456
  %v64 = vsel %vm62, %v53, 0
  %66 = vmatprep.subr.bf16.mxu0 0
  %67 = vmatpush1.bf16.msra.mxu0 %v49
  %68 = vmatprep.subr.bf16.mxu0 0
  %69 = vmatpush1.bf16.msra.mxu0 %v50
  %70 = vmatprep.subr.bf16.mxu0 0
  %71 = vmatpush1.bf16.msra.mxu0 %v51
  %72 = vmatprep.subr.bf16.mxu0 0
  %73 = vmatpush1.bf16.msra.mxu0 %v52
  %74 = vmatprep.subr.bf16.mxu0 0
  %75 = vmatpush1.bf16.msra.mxu0 %v64
  %76 = vmatprep.subr.bf16.mxu0 0
  %77 = vmatpush1.bf16.msra.mxu0 0
  %78 = vmatprep.subr.bf16.mxu0 0
  %79 = vmatpush1.bf16.msra.mxu0 0
  %80 = vmatprep.subr.bf16.mxu0 0
  %81 = vmatpush1.bf16.msra.mxu0 0
  %82 = vmatprep.subr.bf16.mxu0 0
  %83 = vmatpush1.bf16.msra.mxu0 0
  %84 = vmatprep.subr.bf16.mxu0 0
  %85 = vmatpush1.bf16.msra.mxu0 0
  %86 = vmatprep.subr.bf16.mxu0 0
  %87 = vmatpush1.bf16.msra.mxu0 0
  %88 = vmatprep.subr.bf16.mxu0 0
  %89 = vmatpush1.bf16.msra.mxu0 0
  %90 = vmatprep.subr.bf16.mxu0 0
  %91 = vmatpush1.bf16.msra.mxu0 0
  %92 = vmatprep.subr.bf16.mxu0 0
  %93 = vmatpush1.bf16.msra.mxu0 0
  %94 = vmatprep.subr.bf16.mxu0 0
  %95 = vmatpush1.bf16.msra.mxu0 0
  %96 = vmatprep.subr.bf16.mxu0 0
  %97 = vmatpush1.bf16.msra.mxu0 0
  %98 = vmatprep.mubr.bf16.mxu0 0
  %99 = vmatmul.mubr.bf16.gmra.mrb[0].mxu0 %v60
  %v100 = vpop.f32.mrb[0].mxu0
  %v101 = vadd.f32 %v29, %v100
  %v102 = vpop.f32.mrb[0].mxu0
  %v103 = vpop.f32.mrb[0].mxu0
  %v104 = vpop.f32.mrb[0].mxu0
  %105 = vdwg.mxu0
  %vm106 = vcmask 257024
  %107 = vst.msk [vmem:[%s3] sm:$0xf] %vm106, %v101
  // Predicated region
  $region14: #{forward.34} parent=0 // pred_check
    _
  $region15: #{forward.34} parent=0 // pred_check_branch
    %109 = sbr.rel (0) target = $region17
  $region16: #{forward.34} parent=0 // pred_region
    _
  $region17: #{forward.34} parent=0 // pred_fallthru
    _
  // Predicated region
  $region18: #{forward.34} parent=0 // pred_check
    _
  $region19: #{forward.34} parent=0 // pred_check_branch
    %111 = sbr.rel (0) target = $region21
  $region20: #{forward.34} parent=0 // pred_region
    _
  $region21: #{forward.34} parent=0 // pred_fallthru
    _

// kernel: forward.35
$region0: #{forward.35}
  #allocation0 [shape = 'u32[]', space=smem, size = 0x4, offset = 0x4, fixed_abs, tag = 'smem constant byte address 0x4 - core index']
  #allocation1 [shape = 'u32[144,128]{1,0:T(1,128)}', space=vmem, size = 0x12000, scoped, tag = 'internal scratch']
  %s0 = inlined_call_operand.vmem [shape: bf16[4,64], index: 0, kind: input, shape index: {}]
  %s1 = inlined_call_operand.vmem [shape: bf16[64,288], index: 1, kind: input, shape index: {}]
  %s2 = inlined_call_operand.vmem [shape: f32[4,1], index: 2, kind: input, shape index: {}]
  %s3 = inlined_call_operand.vmem [shape: f32[4,1], index: 3, kind: input, shape index: {}]
  %s4 = inlined_call_operand.vmem [shape: f32[4,1], index: 4, kind: input, shape index: {}]
  %s5 = inlined_call_operand.vmem [shape: f32[4,288], index: 5, kind: output, shape index: {}]
  %s6 = sld [smem:[#allocation0]]
  $region30: #{forward.35} parent=0
    _
  %s8 = ssub.s32 1, %s6
  %s9 = scalar_select 0, %s8, %s6
  // Predicated region
  $region2: #{forward.35} parent=0 // pred_check
    _
  $region3: #{forward.35} parent=0 // pred_check_branch
    %11 = sbr.rel (0) target = $region5
  $region4: #{forward.35} parent=0 // pred_region
    _
  $region5: #{forward.35} parent=0 // pred_fallthru
    _
  // Predicated region
  $region6: #{forward.35} parent=0 // pred_check
    _
  $region7: #{forward.35} parent=0 // pred_check_branch
    %13 = sbr.rel (0) target = $region9
  $region8: #{forward.35} parent=0 // pred_region
    _
  $region9: #{forward.35} parent=0 // pred_fallthru
    _
  // Predicated region
  $region10: #{forward.35} parent=0 // pred_check
    _
  $region11: #{forward.35} parent=0 // pred_check_branch
    %15 = sbr.rel (0) target = $region13
  $region12: #{forward.35} parent=0 // pred_region
    _
  $region13: #{forward.35} parent=0 // pred_fallthru
    _
  // Predicated region
  $region14: #{forward.35} parent=0 // pred_check
    _
  $region15: #{forward.35} parent=0 // pred_check_branch
    %17 = sbr.rel (0) target = $region17
  $region16: #{forward.35} parent=0 // pred_region
    _
  $region17: #{forward.35} parent=0 // pred_fallthru
    _
  // Predicated region
  $region18: #{forward.35} parent=0 // pred_check
    _
  $region19: #{forward.35} parent=0 // pred_check_branch
    %19 = sbr.rel (0) target = $region21
  $region20: #{forward.35} parent=0 // pred_region
    _
  $region21: #{forward.35} parent=0 // pred_fallthru
    _
  %v21 = vld [vmem:[%s0] sm:$0x3]
  %v22 = vld [vmem:[%s1] sm:$0xff]
  %v23 = vld [vmem:[%s1 + $0x8] sm:$0xf]
  %v24 = vld [vmem:[%s1 + $0xc] sm:$0xff]
  %v25 = vld [vmem:[%s1 + $0x14] sm:$0xf]
  %v26 = vld [vmem:[%s1 + $0x18] sm:$0xff]
  %v27 = vld [vmem:[%s1 + $0x20] sm:$0xf]
  %v28 = vld [vmem:[%s1 + $0x24] sm:$0xff]
  %v29 = vld [vmem:[%s1 + $0x2c] sm:$0xf]
  %v30 = vld [vmem:[%s1 + $0x30] sm:$0xff]
  %v31 = vld [vmem:[%s1 + $0x38] sm:$0xf]
  %v32 = vld [vmem:[%s1 + $0x3c] sm:$0xff]
  %v33 = vld [vmem:[%s1 + $0x44] sm:$0xf]
  %v34 = vld [vmem:[%s1 + $0x48] sm:$0xff]
  %v35 = vld [vmem:[%s1 + $0x50] sm:$0xf]
  %v36 = vld [vmem:[%s1 + $0x54] sm:$0xff]
  %v37 = vld [vmem:[%s1 + $0x5c] sm:$0xf]
  %v38 = vld [vmem:[%s2] sm:$0xf]
  %40 = vset.pattern.permute.xlu0 0
  %41 = vperm.xlu0 %40, %v38
  %v42 = vpop.permute.xlu0 %41
  %v60 = vunpack.c.l.b16 %v22
  %v61 = vunpack.c.h.b16 %v22
  %v62 = vunpack.c.l.b16 %v23
  %v63 = vunpack.c.l.b16 %v24
  %v64 = vunpack.c.h.b16 %v24
  %v65 = vunpack.c.l.b16 %v25
  %v66 = vunpack.c.l.b16 %v26
  %v67 = vunpack.c.h.b16 %v26
  %v68 = vunpack.c.l.b16 %v27
  %v69 = vunpack.c.l.b16 %v28
  %v70 = vunpack.c.h.b16 %v28
  %v71 = vunpack.c.l.b16 %v29
  %v72 = vunpack.c.l.b16 %v30
  %v73 = vunpack.c.h.b16 %v30
  %v74 = vunpack.c.l.b16 %v31
  %v75 = vunpack.c.l.b16 %v32
  %v76 = vunpack.c.h.b16 %v32
  %v77 = vunpack.c.l.b16 %v33
  %v78 = vunpack.c.l.b16 %v34
  %v79 = vunpack.c.h.b16 %v34
  %v80 = vunpack.c.l.b16 %v35
  %v81 = vunpack.c.l.b16 %v36
  %v82 = vunpack.c.h.b16 %v36
  %v83 = vunpack.c.l.b16 %v37
  %v84 = vpack.c.b16 %v63, %v60
  %v85 = vpack.c.b16 %v64, %v61
  %v86 = vpack.c.b16 %v65, %v62
  %v87 = vpack.c.b16 %v69, %v66
  %v88 = vpack.c.b16 %v70, %v67
  %v89 = vpack.c.b16 %v71, %v68
  %v90 = vpack.c.b16 %v75, %v72
  %v91 = vpack.c.b16 %v76, %v73
  %v92 = vpack.c.b16 %v77, %v74
  %v93 = vpack.c.b16 %v81, %v78
  %v94 = vpack.c.b16 %v82, %v79
  %v95 = vpack.c.b16 %v83, %v80
  %vm108 = vcmask 523264
  %v110 = vsel %vm108, %v21, 0
  %112 = vmatprep.subr.bf16.mxu0 %v85
  %113 = vmatpush1.bf16.msra.mxu0 %v84
  %114 = vmatprep.subr.bf16.mxu0 %v88
  %115 = vmatpush1.bf16.msra.mxu0 %v87
  %116 = vmatprep.subr.bf16.mxu0 %v91
  %117 = vmatpush1.bf16.msra.mxu0 %v90
  %118 = vmatprep.subr.bf16.mxu0 %v94
  %119 = vmatpush1.bf16.msra.mxu0 %v93
  %120 = vmatprep.subr.bf16.mxu0 0
  %121 = vmatpush1.bf16.msra.mxu0 0
  %122 = vmatprep.subr.bf16.mxu0 0
  %123 = vmatpush1.bf16.msra.mxu0 0
  %124 = vmatprep.subr.bf16.mxu0 0
  %125 = vmatpush1.bf16.msra.mxu0 0
  %126 = vmatprep.subr.bf16.mxu0 0
  %127 = vmatpush1.bf16.msra.mxu0 0
  %128 = vmatprep.subr.bf16.mxu0 0
  %129 = vmatpush1.bf16.msra.mxu0 0
  %130 = vmatprep.subr.bf16.mxu0 0
  %131 = vmatpush1.bf16.msra.mxu0 0
  %132 = vmatprep.subr.bf16.mxu0 0
  %133 = vmatpush1.bf16.msra.mxu0 0
  %134 = vmatprep.subr.bf16.mxu0 0
  %135 = vmatpush1.bf16.msra.mxu0 0
  %136 = vmatprep.subr.bf16.mxu0 0
  %137 = vmatpush1.bf16.msra.mxu0 0
  %138 = vmatprep.subr.bf16.mxu0 0
  %139 = vmatpush1.bf16.msra.mxu0 0
  %140 = vmatprep.subr.bf16.mxu0 0
  %141 = vmatpush1.bf16.msra.mxu0 0
  %142 = vmatprep.subr.bf16.mxu0 0
  %143 = vmatpush1.bf16.msra.mxu0 0
  %144 = vmatprep.mubr.bf16.mxu0 0
  %145 = vmatmul.mubr.bf16.gmra.mrb[0].mxu0 %v110
  %v146 = vpop.f32.mrb[0].mxu0
  %v147 = vadd.f32 %v42, %v146
  %v148 = vpop.f32.mrb[0].mxu0
  %v149 = vadd.f32 %v42, %v148
  %v150 = vpop.f32.mrb[0].mxu0
  %v151 = vpop.f32.mrb[0].mxu0
  %152 = vdwg.mxu0
  %153 = vmatprep.subr.bf16.mxu0 0
  %154 = vmatpush1.bf16.msra.mxu0 %v86
  %155 = vmatprep.subr.bf16.mxu0 0
  %156 = vmatpush1.bf16.msra.mxu0 %v89
  %157 = vmatprep.subr.bf16.mxu0 0
  %158 = vmatpush1.bf16.msra.mxu0 %v92
  %159 = vmatprep.subr.bf16.mxu0 0
  %160 = vmatpush1.bf16.msra.mxu0 %v95
  %161 = vmatprep.subr.bf16.mxu0 0
  %162 = vmatpush1.bf16.msra.mxu0 0
  %163 = vmatprep.subr.bf16.mxu0 0
  %164 = vmatpush1.bf16.msra.mxu0 0
  %165 = vmatprep.subr.bf16.mxu0 0
  %166 = vmatpush1.bf16.msra.mxu0 0
  %167 = vmatprep.subr.bf16.mxu0 0
  %168 = vmatpush1.bf16.msra.mxu0 0
  %169 = vmatprep.subr.bf16.mxu0 0
  %170 = vmatpush1.bf16.msra.mxu0 0
  %171 = vmatprep.subr.bf16.mxu0 0
  %172 = vmatpush1.bf16.msra.mxu0 0
  %173 = vmatprep.subr.bf16.mxu0 0
  %174 = vmatpush1.bf16.msra.mxu0 0
  %175 = vmatprep.subr.bf16.mxu0 0
  %176 = vmatpush1.bf16.msra.mxu0 0
  %177 = vmatprep.subr.bf16.mxu0 0
  %178 = vmatpush1.bf16.msra.mxu0 0
  %179 = vmatprep.subr.bf16.mxu0 0
  %180 = vmatpush1.bf16.msra.mxu0 0
  %181 = vmatprep.subr.bf16.mxu0 0
  %182 = vmatpush1.bf16.msra.mxu0 0
  %183 = vmatprep.subr.bf16.mxu0 0
  %184 = vmatpush1.bf16.msra.mxu0 0
  %185 = vmatprep.mubr.bf16.mxu0 0
  %186 = vmatmul.mubr.bf16.gmra.mrb[0].mxu0 %v110
  %v187 = vpop.f32.mrb[0].mxu0
  %v188 = vadd.f32 %v42, %v187
  %v189 = vpop.f32.mrb[0].mxu0
  %v190 = vpop.f32.mrb[0].mxu0
  %v191 = vpop.f32.mrb[0].mxu0
  %192 = vdwg.mxu0
  %v193 = vmax.f32 %v147, 0.0
  %v194 = vmax.f32 %v149, 0.0
  %v195 = vmax.f32 %v188, 0.0
  %vm196 = vcmask 1043456
  %v197 = vsel %vm196, %v193, 0.0
  %v198 = vsel %vm196, %v194, 0.0
  %v199 = vadd.f32 %v197, %v198
  %vm200 = vcmask 257024
  %v201 = vsel %vm200, %v195, 0.0
  %v202 = vadd.f32 %v199, %v201
  %203 = vadd.xlane.f32.xlu0 %v202
  %v204 = vpop.xlane.xlu0 %203
  %v205 = vrcp.pop 288.0
  %v206 = vmul.f32 %v204, %v205
  %v207 = vsub.f32 %v193, %v206
  %v208 = vsub.f32 %v194, %v206
  %v209 = vsub.f32 %v195, %v206
  %v210 = vmul.f32 %v207, %v207
  %v211 = vmul.f32 %v208, %v208
  %v212 = vmul.f32 %v209, %v209
  %v213 = vsel %vm196, %v210, 0.0
  %v214 = vsel %vm196, %v211, 0.0
  %v215 = vadd.f32 %v213, %v214
  %v216 = vsel %vm200, %v212, 0.0
  %v217 = vadd.f32 %v215, %v216
  %218 = vadd.xlane.f32.xlu0 %v217
  %v219 = vpop.xlane.xlu0 %218
  %v220 = vmul.f32 %v219, %v205
  %v221 = vadd.f32 %v220, 1e-05
  %v222 = vrsqrt.pop %v221
  %v223 = vmul.f32 %v207, %v222
  %v224 = vmul.f32 %v208, %v222
  %v225 = vmul.f32 %v209, %v222
  %v226 = vld [vmem:[%s3] sm:$0xf]
  %228 = vset.pattern.permute.xlu0 0
  %229 = vperm.xlu0 %228, %v226
  %v230 = vpop.permute.xlu0 %229
  %v232 = vmul.f32 %v223, %v230
  %v233 = vmul.f32 %v224, %v230
  %v234 = vmul.f32 %v225, %v230
  %v235 = vld [vmem:[%s4] sm:$0xf]
  %237 = vset.pattern.permute.xlu0 0
  %238 = vperm.xlu0 %237, %v235
  %v239 = vpop.permute.xlu0 %238
  %v241 = vadd.f32 %v232, %v239
  %v242 = vadd.f32 %v233, %v239
  %v243 = vadd.f32 %v234, %v239
  %v246 = vcombine.low %v241, %v242
  %248 = vst [vmem:[%s5] sm:$0xff] %v246
  %249 = vst.msk [vmem:[%s5 + $0x8] sm:$0xf] %vm200, %v243
  // Predicated region
  $region22: #{forward.35} parent=0 // pred_check
    _
  $region23: #{forward.35} parent=0 // pred_check_branch
    %251 = sbr.rel (0) target = $region25
  $region24: #{forward.35} parent=0 // pred_region
    _
  $region25: #{forward.35} parent=0 // pred_fallthru
    _
  // Predicated region
  $region26: #{forward.35} parent=0 // pred_check
    _
  $region27: #{forward.35} parent=0 // pred_check_branch
    %253 = sbr.rel (0) target = $region29
  $region28: #{forward.35} parent=0 // pred_region
    _
  $region29: #{forward.35} parent=0 // pred_fallthru
    _

// kernel: forward.36
$region0: #{forward.36}
  #allocation0 [shape = 'u32[]', space=smem, size = 0x4, offset = 0x4, fixed_abs, tag = 'smem constant byte address 0x4 - core index']
  #allocation1 [shape = 'u32[144,128]{1,0:T(1,128)}', space=vmem, size = 0x12000, scoped, tag = 'internal scratch']
  #allocation2 [shape = 'f32[1,1]{1,0:T(1,128)S(1)}', space=vmem, size = 0x200, scoped, tag = 'scoped memory for forward.36']
  %s0 = inlined_call_operand.vmem [shape: bf16[1,36], index: 0, kind: input, shape index: {}]
  %s1 = inlined_call_operand.vmem [shape: bf16[36,288], index: 1, kind: input, shape index: {}]
  %s2 = inlined_call_operand.<no memory space> [shape: f32[1,1], index: 2, kind: input, shape index: {}]
  %s3 = inlined_call_operand.vmem [shape: f32[1,288], index: 3, kind: output, shape index: {}]
  %s4 = sld [smem:[#allocation0]]
  $region22: #{forward.36} parent=0
    _
  %s6 = ssub.s32 1, %s4
  %s7 = scalar_select 0, %s6, %s4
  %v8 = vstv %s2
  %9 = vst [vmem:[#allocation2] sm:$0x1] %v8
  // Predicated region
  $region2: #{forward.36} parent=0 // pred_check
    _
  $region3: #{forward.36} parent=0 // pred_check_branch
    %11 = sbr.rel (0) target = $region5
  $region4: #{forward.36} parent=0 // pred_region
    _
  $region5: #{forward.36} parent=0 // pred_fallthru
    _
  // Predicated region
  $region6: #{forward.36} parent=0 // pred_check
    _
  $region7: #{forward.36} parent=0 // pred_check_branch
    %13 = sbr.rel (0) target = $region9
  $region8: #{forward.36} parent=0 // pred_region
    _
  $region9: #{forward.36} parent=0 // pred_fallthru
    _
  // Predicated region
  $region10: #{forward.36} parent=0 // pred_check
    _
  $region11: #{forward.36} parent=0 // pred_check_branch
    %15 = sbr.rel (0) target = $region13
  $region12: #{forward.36} parent=0 // pred_region
    _
  $region13: #{forward.36} parent=0 // pred_fallthru
    _
  %v17 = vld [vmem:[%s0] sm:$0x1]
  %v18 = vld [vmem:[%s1] sm:$0xff]
  %v19 = vld [vmem:[%s1 + $0x8] sm:$0xf]
  %v20 = vld [vmem:[%s1 + $0xc] sm:$0xff]
  %v21 = vld [vmem:[%s1 + $0x14] sm:$0xf]
  %v22 = vld [vmem:[%s1 + $0x18] sm:$0xff]
  %v23 = vld [vmem:[%s1 + $0x20] sm:$0xf]
  %v24 = vld [vmem:[%s1 + $0x24] sm:$0xff]
  %v25 = vld [vmem:[%s1 + $0x2c] sm:$0xf]
  %v26 = vld [vmem:[%s1 + $0x30] sm:$0x33]
  %v27 = vld [vmem:[%s1 + $0x38] sm:$0x3]
  %v28 = vld [vmem:[#allocation2] sm:$0x1]
  %30 = vset.pattern.permute.xlu0 0
  %31 = vperm.xlu0 %30, %v28
  %v32 = vpop.permute.xlu0 %31
  %v34 = vlaneseq
  %v35 = vshrl.u32 %v34, 7
  %v36 = vsub.s32 0, %v35
  %v37 = vrot.slane %v32, %v36
  %v48 = vunpack.c.l.b16 %v18
  %v49 = vunpack.c.h.b16 %v18
  %v50 = vunpack.c.l.b16 %v19
  %v51 = vunpack.c.l.b16 %v20
  %v52 = vunpack.c.h.b16 %v20
  %v53 = vunpack.c.l.b16 %v21
  %v54 = vunpack.c.l.b16 %v22
  %v55 = vunpack.c.h.b16 %v22
  %v56 = vunpack.c.l.b16 %v23
  %v57 = vunpack.c.l.b16 %v24
  %v58 = vunpack.c.h.b16 %v24
  %v59 = vunpack.c.l.b16 %v25
  %v60 = vunpack.c.l.b16 %v26
  %v61 = vunpack.c.h.b16 %v26
  %v62 = vunpack.c.l.b16 %v27
  %v63 = vpack.c.b16 %v51, %v48
  %v64 = vpack.c.b16 %v52, %v49
  %v65 = vpack.c.b16 %v53, %v50
  %v66 = vpack.c.b16 %v57, %v54
  %v67 = vpack.c.b16 %v58, %v55
  %v68 = vpack.c.b16 %v59, %v56
  %v69 = vpack.c.b16 %v60, %v60
  %v70 = vpack.c.b16 %v61, %v61
  %v71 = vpack.c.b16 %v62, %v62
  %vm78 = vcmask 293888
  %v80 = vsel %vm78, %v17, 0
  %vm82 = vcmask 1041408
  %v84 = vsel %vm82, %v69, 0
  %v87 = vsel %vm82, %v70, 0
  %v90 = vsel %vm82, %v71, 0
  %92 = vmatprep.subr.bf16.mxu0 %v64
  %93 = vmatpush1.bf16.msra.mxu0 %v63
  %94 = vmatprep.subr.bf16.mxu0 %v67
  %95 = vmatpush1.bf16.msra.mxu0 %v66
  %96 = vmatprep.subr.bf16.mxu0 %v87
  %97 = vmatpush1.bf16.msra.mxu0 %v84
  %98 = vmatprep.subr.bf16.mxu0 0
  %99 = vmatpush1.bf16.msra.mxu0 0
  %100 = vmatprep.subr.bf16.mxu0 0
  %101 = vmatpush1.bf16.msra.mxu0 0
  %102 = vmatprep.subr.bf16.mxu0 0
  %103 = vmatpush1.bf16.msra.mxu0 0
  %104 = vmatprep.subr.bf16.mxu0 0
  %105 = vmatpush1.bf16.msra.mxu0 0
  %106 = vmatprep.subr.bf16.mxu0 0
  %107 = vmatpush1.bf16.msra.mxu0 0
  %108 = vmatprep.subr.bf16.mxu0 0
  %109 = vmatpush1.bf16.msra.mxu0 0
  %110 = vmatprep.subr.bf16.mxu0 0
  %111 = vmatpush1.bf16.msra.mxu0 0
  %112 = vmatprep.subr.bf16.mxu0 0
  %113 = vmatpush1.bf16.msra.mxu0 0
  %114 = vmatprep.subr.bf16.mxu0 0
  %115 = vmatpush1.bf16.msra.mxu0 0
  %116 = vmatprep.subr.bf16.mxu0 0
  %117 = vmatpush1.bf16.msra.mxu0 0
  %118 = vmatprep.subr.bf16.mxu0 0
  %119 = vmatpush1.bf16.msra.mxu0 0
  %120 = vmatprep.subr.bf16.mxu0 0
  %121 = vmatpush1.bf16.msra.mxu0 0
  %122 = vmatprep.subr.bf16.mxu0 0
  %123 = vmatpush1.bf16.msra.mxu0 0
  %124 = vmatprep.mubr.bf16.mxu0 0
  %125 = vmatmul.mubr.bf16.gmra.mrb[0].mxu0 %v80
  %v126 = vpop.f32.mrb[0].mxu0
  %v127 = vadd.f32 %v37, %v126
  %v128 = vpop.f32.mrb[0].mxu0
  %v129 = vadd.f32 %v37, %v128
  %v130 = vpop.f32.mrb[0].mxu0
  %v131 = vpop.f32.mrb[0].mxu0
  %132 = vdwg.mxu0
  %133 = vmatprep.subr.bf16.mxu0 0
  %134 = vmatpush1.bf16.msra.mxu0 %v65
  %135 = vmatprep.subr.bf16.mxu0 0
  %136 = vmatpush1.bf16.msra.mxu0 %v68
  %137 = vmatprep.subr.bf16.mxu0 0
  %138 = vmatpush1.bf16.msra.mxu0 %v90
  %139 = vmatprep.subr.bf16.mxu0 0
  %140 = vmatpush1.bf16.msra.mxu0 0
  %141 = vmatprep.subr.bf16.mxu0 0
  %142 = vmatpush1.bf16.msra.mxu0 0
  %143 = vmatprep.subr.bf16.mxu0 0
  %144 = vmatpush1.bf16.msra.mxu0 0
  %145 = vmatprep.subr.bf16.mxu0 0
  %146 = vmatpush1.bf16.msra.mxu0 0
  %147 = vmatprep.subr.bf16.mxu0 0
  %148 = vmatpush1.bf16.msra.mxu0 0
  %149 = vmatprep.subr.bf16.mxu0 0
  %150 = vmatpush1.bf16.msra.mxu0 0
  %151 = vmatprep.subr.bf16.mxu0 0
  %152 = vmatpush1.bf16.msra.mxu0 0
  %153 = vmatprep.subr.bf16.mxu0 0
  %154 = vmatpush1.bf16.msra.mxu0 0
  %155 = vmatprep.subr.bf16.mxu0 0
  %156 = vmatpush1.bf16.msra.mxu0 0
  %157 = vmatprep.subr.bf16.mxu0 0
  %158 = vmatpush1.bf16.msra.mxu0 0
  %159 = vmatprep.subr.bf16.mxu0 0
  %160 = vmatpush1.bf16.msra.mxu0 0
  %161 = vmatprep.subr.bf16.mxu0 0
  %162 = vmatpush1.bf16.msra.mxu0 0
  %163 = vmatprep.subr.bf16.mxu0 0
  %164 = vmatpush1.bf16.msra.mxu0 0
  %165 = vmatprep.mubr.bf16.mxu0 0
  %166 = vmatmul.mubr.bf16.gmra.mrb[0].mxu0 %v80
  %v167 = vpop.f32.mrb[0].mxu0
  %v168 = vadd.f32 %v37, %v167
  %v169 = vpop.f32.mrb[0].mxu0
  %v170 = vpop.f32.mrb[0].mxu0
  %v171 = vpop.f32.mrb[0].mxu0
  %172 = vdwg.mxu0
  %v176 = vcombine.low %v127, %v129
  %v178 = vunpack.c.l.s4 1966171168
  %v179 = vunpack.c.0.s8 %v178
  %v180 = vlaneseq
  %v181 = vshrl.u32 %v180, 7
  %v182 = vsub.s32 %v179, %v181
  %v183 = vrot.slane %v176, %v182
  %v185 = vunpack.c.l.s4 1966171168
  %v186 = vunpack.c.0.s8 %v185
  %v187 = vlaneseq
  %v188 = vshrl.u32 %v187, 7
  %v189 = vsub.s32 %v186, %v188
  %v190 = vrot.slane %v168, %v189
  %v191 = vcombine.low %v183, %v190
  %v193 = vunpack.c.l.s4 1966171168
  %v194 = vunpack.c.0.s8 %v193
  %v195 = vlaneseq
  %v196 = vshrl.u32 %v195, 7
  %v197 = vsub.s32 %v194, %v196
  %v198 = vrot.slane %v191, %v197
  %v200 = vlaneseq
  %vm201 = vcmp.ge.s32.totalorder %v200, 0
  %vm202 = vcmp.lt.s32.totalorder %v200, 288
  %vm203 = vmand %vm201, %vm202
  %204 = vst.msk [vmem:[%s3] sm:$0x7] %vm203, %v198
  // Predicated region
  $region14: #{forward.36} parent=0 // pred_check
    _
  $region15: #{forward.36} parent=0 // pred_check_branch
    %206 = sbr.rel (0) target = $region17
  $region16: #{forward.36} parent=0 // pred_region
    _
  $region17: #{forward.36} parent=0 // pred_fallthru
    _
  // Predicated region
  $region18: #{forward.36} parent=0 // pred_check
    _
  $region19: #{forward.36} parent=0 // pred_check_branch
    %208 = sbr.rel (0) target = $region21
  $region20: #{forward.36} parent=0 // pred_region
    _
  $region21: #{forward.36} parent=0 // pred_fallthru
    _

// kernel: forward.37
$region0: #{forward.37}
  #allocation0 [shape = 'u32[]', space=smem, size = 0x4, offset = 0x4, fixed_abs, tag = 'smem constant byte address 0x4 - core index']
  #allocation1 [shape = 'u32[144,128]{1,0:T(1,128)}', space=vmem, size = 0x12000, scoped, tag = 'internal scratch']
  #allocation2 [shape = 'f32[1,1]{1,0:T(1,128)S(1)}', space=vmem, size = 0x200, scoped, tag = 'scoped memory for forward.37']
  %s0 = inlined_call_operand.vmem [shape: bf16[1,36], index: 0, kind: input, shape index: {}]
  %s1 = inlined_call_operand.vmem [shape: bf16[36,7200], index: 1, kind: input, shape index: {}]
  %s2 = inlined_call_operand.<no memory space> [shape: f32[1,1], index: 2, kind: input, shape index: {}]
  %s3 = inlined_call_operand.vmem [shape: f32[1,7200], index: 3, kind: output, shape index: {}]
  %s4 = sld [smem:[#allocation0]]
  $region22: #{forward.37} parent=0
    _
  %s6 = ssub.s32 1, %s4
  %s7 = scalar_select 0, %s6, %s4
  %v8 = vstv %s2
  %9 = vst [vmem:[#allocation2] sm:$0x1] %v8
  // Predicated region
  $region2: #{forward.37} parent=0 // pred_check
    _
  $region3: #{forward.37} parent=0 // pred_check_branch
    %11 = sbr.rel (0) target = $region5
  $region4: #{forward.37} parent=0 // pred_region
    _
  $region5: #{forward.37} parent=0 // pred_fallthru
    _
  // Predicated region
  $region6: #{forward.37} parent=0 // pred_check
    _
  $region7: #{forward.37} parent=0 // pred_check_branch
    %13 = sbr.rel (0) target = $region9
  $region8: #{forward.37} parent=0 // pred_region
    _
  $region9: #{forward.37} parent=0 // pred_fallthru
    _
  // Predicated region
  $region10: #{forward.37} parent=0 // pred_check
    _
  $region11: #{forward.37} parent=0 // pred_check_branch
    %15 = sbr.rel (0) target = $region13
  $region12: #{forward.37} parent=0 // pred_region
    _
  $region13: #{forward.37} parent=0 // pred_fallthru
    _
  %v17 = vld [vmem:[%s0] sm:$0x1]
  %v18 = vld [vmem:[%s1] sm:$0xff]
  %v19 = vld [vmem:[%s1 + $0x8] sm:$0xff]
  %v20 = vld [vmem:[%s1 + $0x10] sm:$0xff]
  %v21 = vld [vmem:[%s1 + $0x18] sm:$0xff]
  %v22 = vld [vmem:[%s1 + $0x20] sm:$0xff]
  %v23 = vld [vmem:[%s1 + $0x28] sm:$0xff]
  %v24 = vld [vmem:[%s1 + $0x30] sm:$0xff]
  %v25 = vld [vmem:[%s1 + $0x38] sm:$0xff]
  %v26 = vld [vmem:[%s1 + $0x40] sm:$0xff]
  %v27 = vld [vmem:[%s1 + $0x48] sm:$0xff]
  %v28 = vld [vmem:[%s1 + $0x50] sm:$0xff]
  %v29 = vld [vmem:[%s1 + $0x58] sm:$0xff]
  %v30 = vld [vmem:[%s1 + $0x60] sm:$0xff]
  %v31 = vld [vmem:[%s1 + $0x68] sm:$0xff]
  %v32 = vld [vmem:[%s1 + $0x70] sm:$0xff]
  %v33 = vld [vmem:[%s1 + $0x78] sm:$0xff]
  %v34 = vld [vmem:[%s1 + $0x80] sm:$0xff]
  %v35 = vld [vmem:[%s1 + $0x88] sm:$0xff]
  %v36 = vld [vmem:[%s1 + $0x90] sm:$0xff]
  %v37 = vld [vmem:[%s1 + $0x98] sm:$0xff]
  %v38 = vld [vmem:[%s1 + $0xa0] sm:$0xff]
  %v39 = vld [vmem:[%s1 + $0xa8] sm:$0xff]
  %v40 = vld [vmem:[%s1 + $0xb0] sm:$0xff]
  %v41 = vld [vmem:[%s1 + $0xb8] sm:$0xff]
  %v42 = vld [vmem:[%s1 + $0xc0] sm:$0xff]
  %v43 = vld [vmem:[%s1 + $0xc8] sm:$0xff]
  %v44 = vld [vmem:[%s1 + $0xd0] sm:$0xff]
  %v45 = vld [vmem:[%s1 + $0xd8] sm:$0xff]
  %v46 = vld [vmem:[%s1 + $0xe0] sm:$0xf]
  %v47 = vld [vmem:[%s1 + $0xe4] sm:$0xff]
  %v48 = vld [vmem:[%s1 + $0xec] sm:$0xff]
  %v49 = vld [vmem:[%s1 + $0xf4] sm:$0xff]
  %v50 = vld [vmem:[%s1 + $0xfc] sm:$0xff]
  %v51 = vld [vmem:[%s1 + $0x104] sm:$0xff]
  %v52 = vld [vmem:[%s1 + $0x10c] sm:$0xff]
  %v53 = vld [vmem:[%s1 + $0x114] sm:$0xff]
  %v54 = vld [vmem:[%s1 + $0x11c] sm:$0xff]
  %v55 = vld [vmem:[%s1 + $0x124] sm:$0xff]
  %v56 = vld [vmem:[%s1 + $0x12c] sm:$0xff]
  %v57 = vld [vmem:[%s1 + $0x134] sm:$0xff]
  %v58 = vld [vmem:[%s1 + $0x13c] sm:$0xff]
  %v59 = vld [vmem:[%s1 + $0x144] sm:$0xff]
  %v60 = vld [vmem:[%s1 + $0x14c] sm:$0xff]
  %v61 = vld [vmem:[%s1 + $0x154] sm:$0xff]
  %v62 = vld [vmem:[%s1 + $0x15c] sm:$0xff]
  %v63 = vld [vmem:[%s1 + $0x164] sm:$0xff]
  %v64 = vld [vmem:[%s1 + $0x16c] sm:$0xff]
  %v65 = vld [vmem:[%s1 + $0x174] sm:$0xff]
  %v66 = vld [vmem:[%s1 + $0x17c] sm:$0xff]
  %v67 = vld [vmem:[%s1 + $0x184] sm:$0xff]
  %v68 = vld [vmem:[%s1 + $0x18c] sm:$0xff]
  %v69 = vld [vmem:[%s1 + $0x194] sm:$0xff]
  %v70 = vld [vmem:[%s1 + $0x19c] sm:$0xff]
  %v71 = vld [vmem:[%s1 + $0x1a4] sm:$0xff]
  %v72 = vld [vmem:[%s1 + $0x1ac] sm:$0xff]
  %v73 = vld [vmem:[%s1 + $0x1b4] sm:$0xff]
  %v74 = vld [vmem:[%s1 + $0x1bc] sm:$0xff]
  %v75 = vld [vmem:[%s1 + $0x1c4] sm:$0xf]
  %v76 = vld [vmem:[%s1 + $0x1c8] sm:$0xff]
  %v77 = vld [vmem:[%s1 + $0x1d0] sm:$0xff]
  %v78 = vld [vmem:[%s1 + $0x1d8] sm:$0xff]
  %v79 = vld [vmem:[%s1 + $0x1e0] sm:$0xff]
  %v80 = vld [vmem:[%s1 + $0x1e8] sm:$0xff]
  %v81 = vld [vmem:[%s1 + $0x1f0] sm:$0xff]
  %v82 = vld [vmem:[%s1 + $0x1f8] sm:$0xff]
  %v83 = vld [vmem:[%s1 + $0x200] sm:$0xff]
  %v84 = vld [vmem:[%s1 + $0x208] sm:$0xff]
  %v85 = vld [vmem:[%s1 + $0x210] sm:$0xff]
  %v86 = vld [vmem:[%s1 + $0x218] sm:$0xff]
  %v87 = vld [vmem:[%s1 + $0x220] sm:$0xff]
  %v88 = vld [vmem:[%s1 + $0x228] sm:$0xff]
  %v89 = vld [vmem:[%s1 + $0x230] sm:$0xff]
  %v90 = vld [vmem:[%s1 + $0x238] sm:$0xff]
  %v91 = vld [vmem:[%s1 + $0x240] sm:$0xff]
  %v92 = vld [vmem:[%s1 + $0x248] sm:$0xff]
  %v93 = vld [vmem:[%s1 + $0x250] sm:$0xff]
  %v94 = vld [vmem:[%s1 + $0x258] sm:$0xff]
  %v95 = vld [vmem:[%s1 + $0x260] sm:$0xff]
  %v96 = vld [vmem:[%s1 + $0x268] sm:$0xff]
  %v97 = vld [vmem:[%s1 + $0x270] sm:$0xff]
  %v98 = vld [vmem:[%s1 + $0x278] sm:$0xff]
  %v99 = vld [vmem:[%s1 + $0x280] sm:$0xff]
  %v100 = vld [vmem:[%s1 + $0x288] sm:$0xff]
  %v101 = vld [vmem:[%s1 + $0x290] sm:$0xff]
  %v102 = vld [vmem:[%s1 + $0x298] sm:$0xff]
  %v103 = vld [vmem:[%s1 + $0x2a0] sm:$0xff]
  %v104 = vld [vmem:[%s1 + $0x2a8] sm:$0xf]
  %v105 = vld [vmem:[%s1 + $0x2ac] sm:$0xff]
  %v106 = vld [vmem:[%s1 + $0x2b4] sm:$0xff]
  %v107 = vld [vmem:[%s1 + $0x2bc] sm:$0xff]
  %v108 = vld [vmem:[%s1 + $0x2c4] sm:$0xff]
  %v109 = vld [vmem:[%s1 + $0x2cc] sm:$0xff]
  %v110 = vld [vmem:[%s1 + $0x2d4] sm:$0xff]
  %v111 = vld [vmem:[%s1 + $0x2dc] sm:$0xff]
  %v112 = vld [vmem:[%s1 + $0x2e4] sm:$0xff]
  %v113 = vld [vmem:[%s1 + $0x2ec] sm:$0xff]
  %v114 = vld [vmem:[%s1 + $0x2f4] sm:$0xff]
  %v115 = vld [vmem:[%s1 + $0x2fc] sm:$0xff]
  %v116 = vld [vmem:[%s1 + $0x304] sm:$0xff]
  %v117 = vld [vmem:[%s1 + $0x30c] sm:$0xff]
  %v118 = vld [vmem:[%s1 + $0x314] sm:$0xff]
  %v119 = vld [vmem:[%s1 + $0x31c] sm:$0xff]
  %v120 = vld [vmem:[%s1 + $0x324] sm:$0xff]
  %v121 = vld [vmem:[%s1 + $0x32c] sm:$0xff]
  %v122 = vld [vmem:[%s1 + $0x334] sm:$0xff]
  %v123 = vld [vmem:[%s1 + $0x33c] sm:$0xff]
  %v124 = vld [vmem:[%s1 + $0x344] sm:$0xff]
  %v125 = vld [vmem:[%s1 + $0x34c] sm:$0xff]
  %v126 = vld [vmem:[%s1 + $0x354] sm:$0xff]
  %v127 = vld [vmem:[%s1 + $0x35c] sm:$0xff]
  %v128 = vld [vmem:[%s1 + $0x364] sm:$0xff]
  %v129 = vld [vmem:[%s1 + $0x36c] sm:$0xff]
  %v130 = vld [vmem:[%s1 + $0x374] sm:$0xff]
  %v131 = vld [vmem:[%s1 + $0x37c] sm:$0xff]
  %v132 = vld [vmem:[%s1 + $0x384] sm:$0xff]
  %v133 = vld [vmem:[%s1 + $0x38c] sm:$0xf]
  %v134 = vld [vmem:[%s1 + $0x390] sm:$0x33]
  %v135 = vld [vmem:[%s1 + $0x398] sm:$0x33]
  %v136 = vld [vmem:[%s1 + $0x3a0] sm:$0x33]
  %v137 = vld [vmem:[%s1 + $0x3a8] sm:$0x33]
  %v138 = vld [vmem:[%s1 + $0x3b0] sm:$0x33]
  %v139 = vld [vmem:[%s1 + $0x3b8] sm:$0x33]
  %v140 = vld [vmem:[%s1 + $0x3c0] sm:$0x33]
  %v141 = vld [vmem:[%s1 + $0x3c8] sm:$0x33]
  %v142 = vld [vmem:[%s1 + $0x3d0] sm:$0x33]
  %v143 = vld [vmem:[%s1 + $0x3d8] sm:$0x33]
  %v144 = vld [vmem:[%s1 + $0x3e0] sm:$0x33]
  %v145 = vld [vmem:[%s1 + $0x3e8] sm:$0x33]
  %v146 = vld [vmem:[%s1 + $0x3f0] sm:$0x33]
  %v147 = vld [vmem:[%s1 + $0x3f8] sm:$0x33]
  %v148 = vld [vmem:[%s1 + $0x400] sm:$0x33]
  %v149 = vld [vmem:[%s1 + $0x408] sm:$0x33]
  %v150 = vld [vmem:[%s1 + $0x410] sm:$0x33]
  %v151 = vld [vmem:[%s1 + $0x418] sm:$0x33]
  %v152 = vld [vmem:[%s1 + $0x420] sm:$0x33]
  %v153 = vld [vmem:[%s1 + $0x428] sm:$0x33]
  %v154 = vld [vmem:[%s1 + $0x430] sm:$0x33]
  %v155 = vld [vmem:[%s1 + $0x438] sm:$0x33]
  %v156 = vld [vmem:[%s1 + $0x440] sm:$0x33]
  %v157 = vld [vmem:[%s1 + $0x448] sm:$0x33]
  %v158 = vld [vmem:[%s1 + $0x450] sm:$0x33]
  %v159 = vld [vmem:[%s1 + $0x458] sm:$0x33]
  %v160 = vld [vmem:[%s1 + $0x460] sm:$0x33]
  %v161 = vld [vmem:[%s1 + $0x468] sm:$0x33]
  %v162 = vld [vmem:[%s1 + $0x470] sm:$0x3]
  %v163 = vld [vmem:[#allocation2] sm:$0x1]
  %165 = vset.pattern.permute.xlu0 0
  %166 = vperm.xlu0 %165, %v163
  %v167 = vpop.permute.xlu0 %166
  %v169 = vlaneseq
  %v170 = vshrl.u32 %v169, 7
  %v171 = vsub.s32 0, %v170
  %v172 = vrot.slane %v167, %v171
  %v318 = vunpack.c.l.b16 %v18
  %v319 = vunpack.c.h.b16 %v18
  %v320 = vunpack.c.l.b16 %v19
  %v321 = vunpack.c.h.b16 %v19
  %v322 = vunpack.c.l.b16 %v20
  %v323 = vunpack.c.h.b16 %v20
  %v324 = vunpack.c.l.b16 %v21
  %v325 = vunpack.c.h.b16 %v21
  %v326 = vunpack.c.l.b16 %v22
  %v327 = vunpack.c.h.b16 %v22
  %v328 = vunpack.c.l.b16 %v23
  %v329 = vunpack.c.h.b16 %v23
  %v330 = vunpack.c.l.b16 %v24
  %v331 = vunpack.c.h.b16 %v24
  %v332 = vunpack.c.l.b16 %v25
  %v333 = vunpack.c.h.b16 %v25
  %v334 = vunpack.c.l.b16 %v26
  %v335 = vunpack.c.h.b16 %v26
  %v336 = vunpack.c.l.b16 %v27
  %v337 = vunpack.c.h.b16 %v27
  %v338 = vunpack.c.l.b16 %v28
  %v339 = vunpack.c.h.b16 %v28
  %v340 = vunpack.c.l.b16 %v29
  %v341 = vunpack.c.h.b16 %v29
  %v342 = vunpack.c.l.b16 %v30
  %v343 = vunpack.c.h.b16 %v30
  %v344 = vunpack.c.l.b16 %v31
  %v345 = vunpack.c.h.b16 %v31
  %v346 = vunpack.c.l.b16 %v32
  %v347 = vunpack.c.h.b16 %v32
  %v348 = vunpack.c.l.b16 %v33
  %v349 = vunpack.c.h.b16 %v33
  %v350 = vunpack.c.l.b16 %v34
  %v351 = vunpack.c.h.b16 %v34
  %v352 = vunpack.c.l.b16 %v35
  %v353 = vunpack.c.h.b16 %v35
  %v354 = vunpack.c.l.b16 %v36
  %v355 = vunpack.c.h.b16 %v36
  %v356 = vunpack.c.l.b16 %v37
  %v357 = vunpack.c.h.b16 %v37
  %v358 = vunpack.c.l.b16 %v38
  %v359 = vunpack.c.h.b16 %v38
  %v360 = vunpack.c.l.b16 %v39
  %v361 = vunpack.c.h.b16 %v39
  %v362 = vunpack.c.l.b16 %v40
  %v363 = vunpack.c.h.b16 %v40
  %v364 = vunpack.c.l.b16 %v41
  %v365 = vunpack.c.h.b16 %v41
  %v366 = vunpack.c.l.b16 %v42
  %v367 = vunpack.c.h.b16 %v42
  %v368 = vunpack.c.l.b16 %v43
  %v369 = vunpack.c.h.b16 %v43
  %v370 = vunpack.c.l.b16 %v44
  %v371 = vunpack.c.h.b16 %v44
  %v372 = vunpack.c.l.b16 %v45
  %v373 = vunpack.c.h.b16 %v45
  %v374 = vunpack.c.l.b16 %v46
  %v375 = vunpack.c.l.b16 %v47
  %v376 = vunpack.c.h.b16 %v47
  %v377 = vunpack.c.l.b16 %v48
  %v378 = vunpack.c.h.b16 %v48
  %v379 = vunpack.c.l.b16 %v49
  %v380 = vunpack.c.h.b16 %v49
  %v381 = vunpack.c.l.b16 %v50
  %v382 = vunpack.c.h.b16 %v50
  %v383 = vunpack.c.l.b16 %v51
  %v384 = vunpack.c.h.b16 %v51
  %v385 = vunpack.c.l.b16 %v52
  %v386 = vunpack.c.h.b16 %v52
  %v387 = vunpack.c.l.b16 %v53
  %v388 = vunpack.c.h.b16 %v53
  %v389 = vunpack.c.l.b16 %v54
  %v390 = vunpack.c.h.b16 %v54
  %v391 = vunpack.c.l.b16 %v55
  %v392 = vunpack.c.h.b16 %v55
  %v393 = vunpack.c.l.b16 %v56
  %v394 = vunpack.c.h.b16 %v56
  %v395 = vunpack.c.l.b16 %v57
  %v396 = vunpack.c.h.b16 %v57
  %v397 = vunpack.c.l.b16 %v58
  %v398 = vunpack.c.h.b16 %v58
  %v399 = vunpack.c.l.b16 %v59
  %v400 = vunpack.c.h.b16 %v59
  %v401 = vunpack.c.l.b16 %v60
  %v402 = vunpack.c.h.b16 %v60
  %v403 = vunpack.c.l.b16 %v61
  %v404 = vunpack.c.h.b16 %v61
  %v405 = vunpack.c.l.b16 %v62
  %v406 = vunpack.c.h.b16 %v62
  %v407 = vunpack.c.l.b16 %v63
  %v408 = vunpack.c.h.b16 %v63
  %v409 = vunpack.c.l.b16 %v64
  %v410 = vunpack.c.h.b16 %v64
  %v411 = vunpack.c.l.b16 %v65
  %v412 = vunpack.c.h.b16 %v65
  %v413 = vunpack.c.l.b16 %v66
  %v414 = vunpack.c.h.b16 %v66
  %v415 = vunpack.c.l.b16 %v67
  %v416 = vunpack.c.h.b16 %v67
  %v417 = vunpack.c.l.b16 %v68
  %v418 = vunpack.c.h.b16 %v68
  %v419 = vunpack.c.l.b16 %v69
  %v420 = vunpack.c.h.b16 %v69
  %v421 = vunpack.c.l.b16 %v70
  %v422 = vunpack.c.h.b16 %v70
  %v423 = vunpack.c.l.b16 %v71
  %v424 = vunpack.c.h.b16 %v71
  %v425 = vunpack.c.l.b16 %v72
  %v426 = vunpack.c.h.b16 %v72
  %v427 = vunpack.c.l.b16 %v73
  %v428 = vunpack.c.h.b16 %v73
  %v429 = vunpack.c.l.b16 %v74
  %v430 = vunpack.c.h.b16 %v74
  %v431 = vunpack.c.l.b16 %v75
  %v432 = vunpack.c.l.b16 %v76
  %v433 = vunpack.c.h.b16 %v76
  %v434 = vunpack.c.l.b16 %v77
  %v435 = vunpack.c.h.b16 %v77
  %v436 = vunpack.c.l.b16 %v78
  %v437 = vunpack.c.h.b16 %v78
  %v438 = vunpack.c.l.b16 %v79
  %v439 = vunpack.c.h.b16 %v79
  %v440 = vunpack.c.l.b16 %v80
  %v441 = vunpack.c.h.b16 %v80
  %v442 = vunpack.c.l.b16 %v81
  %v443 = vunpack.c.h.b16 %v81
  %v444 = vunpack.c.l.b16 %v82
  %v445 = vunpack.c.h.b16 %v82
  %v446 = vunpack.c.l.b16 %v83
  %v447 = vunpack.c.h.b16 %v83
  %v448 = vunpack.c.l.b16 %v84
  %v449 = vunpack.c.h.b16 %v84
  %v450 = vunpack.c.l.b16 %v85
  %v451 = vunpack.c.h.b16 %v85
  %v452 = vunpack.c.l.b16 %v86
  %v453 = vunpack.c.h.b16 %v86
  %v454 = vunpack.c.l.b16 %v87
  %v455 = vunpack.c.h.b16 %v87
  %v456 = vunpack.c.l.b16 %v88
  %v457 = vunpack.c.h.b16 %v88
  %v458 = vunpack.c.l.b16 %v89
  %v459 = vunpack.c.h.b16 %v89
  %v460 = vunpack.c.l.b16 %v90
  %v461 = vunpack.c.h.b16 %v90
  %v462 = vunpack.c.l.b16 %v91
  %v463 = vunpack.c.h.b16 %v91
  %v464 = vunpack.c.l.b16 %v92
  %v465 = vunpack.c.h.b16 %v92
  %v466 = vunpack.c.l.b16 %v93
  %v467 = vunpack.c.h.b16 %v93
  %v468 = vunpack.c.l.b16 %v94
  %v469 = vunpack.c.h.b16 %v94
  %v470 = vunpack.c.l.b16 %v95
  %v471 = vunpack.c.h.b16 %v95
  %v472 = vunpack.c.l.b16 %v96
  %v473 = vunpack.c.h.b16 %v96
  %v474 = vunpack.c.l.b16 %v97
  %v475 = vunpack.c.h.b16 %v97
  %v476 = vunpack.c.l.b16 %v98
  %v477 = vunpack.c.h.b16 %v98
  %v478 = vunpack.c.l.b16 %v99
  %v479 = vunpack.c.h.b16 %v99
  %v480 = vunpack.c.l.b16 %v100
  %v481 = vunpack.c.h.b16 %v100
  %v482 = vunpack.c.l.b16 %v101
  %v483 = vunpack.c.h.b16 %v101
  %v484 = vunpack.c.l.b16 %v102
  %v485 = vunpack.c.h.b16 %v102
  %v486 = vunpack.c.l.b16 %v103
  %v487 = vunpack.c.h.b16 %v103
  %v488 = vunpack.c.l.b16 %v104
  %v489 = vunpack.c.l.b16 %v105
  %v490 = vunpack.c.h.b16 %v105
  %v491 = vunpack.c.l.b16 %v106
  %v492 = vunpack.c.h.b16 %v106
  %v493 = vunpack.c.l.b16 %v107
  %v494 = vunpack.c.h.b16 %v107
  %v495 = vunpack.c.l.b16 %v108
  %v496 = vunpack.c.h.b16 %v108
  %v497 = vunpack.c.l.b16 %v109
  %v498 = vunpack.c.h.b16 %v109
  %v499 = vunpack.c.l.b16 %v110
  %v500 = vunpack.c.h.b16 %v110
  %v501 = vunpack.c.l.b16 %v111
  %v502 = vunpack.c.h.b16 %v111
  %v503 = vunpack.c.l.b16 %v112
  %v504 = vunpack.c.h.b16 %v112
  %v505 = vunpack.c.l.b16 %v113
  %v506 = vunpack.c.h.b16 %v113
  %v507 = vunpack.c.l.b16 %v114
  %v508 = vunpack.c.h.b16 %v114
  %v509 = vunpack.c.l.b16 %v115
  %v510 = vunpack.c.h.b16 %v115
  %v511 = vunpack.c.l.b16 %v116
  %v512 = vunpack.c.h.b16 %v116
  %v513 = vunpack.c.l.b16 %v117
  %v514 = vunpack.c.h.b16 %v117
  %v515 = vunpack.c.l.b16 %v118
  %v516 = vunpack.c.h.b16 %v118
  %v517 = vunpack.c.l.b16 %v119
  %v518 = vunpack.c.h.b16 %v119
  %v519 = vunpack.c.l.b16 %v120
  %v520 = vunpack.c.h.b16 %v120
  %v521 = vunpack.c.l.b16 %v121
  %v522 = vunpack.c.h.b16 %v121
  %v523 = vunpack.c.l.b16 %v122
  %v524 = vunpack.c.h.b16 %v122
  %v525 = vunpack.c.l.b16 %v123
  %v526 = vunpack.c.h.b16 %v123
  %v527 = vunpack.c.l.b16 %v124
  %v528 = vunpack.c.h.b16 %v124
  %v529 = vunpack.c.l.b16 %v125
  %v530 = vunpack.c.h.b16 %v125
  %v531 = vunpack.c.l.b16 %v126
  %v532 = vunpack.c.h.b16 %v126
  %v533 = vunpack.c.l.b16 %v127
  %v534 = vunpack.c.h.b16 %v127
  %v535 = vunpack.c.l.b16 %v128
  %v536 = vunpack.c.h.b16 %v128
  %v537 = vunpack.c.l.b16 %v129
  %v538 = vunpack.c.h.b16 %v129
  %v539 = vunpack.c.l.b16 %v130
  %v540 = vunpack.c.h.b16 %v130
  %v541 = vunpack.c.l.b16 %v131
  %v542 = vunpack.c.h.b16 %v131
  %v543 = vunpack.c.l.b16 %v132
  %v544 = vunpack.c.h.b16 %v132
  %v545 = vunpack.c.l.b16 %v133
  %v546 = vunpack.c.l.b16 %v134
  %v547 = vunpack.c.h.b16 %v134
  %v548 = vunpack.c.l.b16 %v135
  %v549 = vunpack.c.h.b16 %v135
  %v550 = vunpack.c.l.b16 %v136
  %v551 = vunpack.c.h.b16 %v136
  %v552 = vunpack.c.l.b16 %v137
  %v553 = vunpack.c.h.b16 %v137
  %v554 = vunpack.c.l.b16 %v138
  %v555 = vunpack.c.h.b16 %v138
  %v556 = vunpack.c.l.b16 %v139
  %v557 = vunpack.c.h.b16 %v139
  %v558 = vunpack.c.l.b16 %v140
  %v559 = vunpack.c.h.b16 %v140
  %v560 = vunpack.c.l.b16 %v141
  %v561 = vunpack.c.h.b16 %v141
  %v562 = vunpack.c.l.b16 %v142
  %v563 = vunpack.c.h.b16 %v142
  %v564 = vunpack.c.l.b16 %v143
  %v565 = vunpack.c.h.b16 %v143
  %v566 = vunpack.c.l.b16 %v144
  %v567 = vunpack.c.h.b16 %v144
  %v568 = vunpack.c.l.b16 %v145
  %v569 = vunpack.c.h.b16 %v145
  %v570 = vunpack.c.l.b16 %v146
  %v571 = vunpack.c.h.b16 %v146
  %v572 = vunpack.c.l.b16 %v147
  %v573 = vunpack.c.h.b16 %v147
  %v574 = vunpack.c.l.b16 %v148
  %v575 = vunpack.c.h.b16 %v148
  %v576 = vunpack.c.l.b16 %v149
  %v577 = vunpack.c.h.b16 %v149
  %v578 = vunpack.c.l.b16 %v150
  %v579 = vunpack.c.h.b16 %v150
  %v580 = vunpack.c.l.b16 %v151
  %v581 = vunpack.c.h.b16 %v151
  %v582 = vunpack.c.l.b16 %v152
  %v583 = vunpack.c.h.b16 %v152
  %v584 = vunpack.c.l.b16 %v153
  %v585 = vunpack.c.h.b16 %v153
  %v586 = vunpack.c.l.b16 %v154
  %v587 = vunpack.c.h.b16 %v154
  %v588 = vunpack.c.l.b16 %v155
  %v589 = vunpack.c.h.b16 %v155
  %v590 = vunpack.c.l.b16 %v156
  %v591 = vunpack.c.h.b16 %v156
  %v592 = vunpack.c.l.b16 %v157
  %v593 = vunpack.c.h.b16 %v157
  %v594 = vunpack.c.l.b16 %v158
  %v595 = vunpack.c.h.b16 %v158
  %v596 = vunpack.c.l.b16 %v159
  %v597 = vunpack.c.h.b16 %v159
  %v598 = vunpack.c.l.b16 %v160
  %v599 = vunpack.c.h.b16 %v160
  %v600 = vunpack.c.l.b16 %v161
  %v601 = vunpack.c.h.b16 %v161
  %v602 = vunpack.c.l.b16 %v162
  %v603 = vpack.c.b16 %v375, %v318
  %v604 = vpack.c.b16 %v376, %v319
  %v605 = vpack.c.b16 %v377, %v320
  %v606 = vpack.c.b16 %v378, %v321
  %v607 = vpack.c.b16 %v379, %v322
  %v608 = vpack.c.b16 %v380, %v323
  %v609 = vpack.c.b16 %v381, %v324
  %v610 = vpack.c.b16 %v382, %v325
  %v611 = vpack.c.b16 %v383, %v326
  %v612 = vpack.c.b16 %v384, %v327
  %v613 = vpack.c.b16 %v385, %v328
  %v614 = vpack.c.b16 %v386, %v329
  %v615 = vpack.c.b16 %v387, %v330
  %v616 = vpack.c.b16 %v388, %v331
  %v617 = vpack.c.b16 %v389, %v332
  %v618 = vpack.c.b16 %v390, %v333
  %v619 = vpack.c.b16 %v391, %v334
  %v620 = vpack.c.b16 %v392, %v335
  %v621 = vpack.c.b16 %v393, %v336
  %v622 = vpack.c.b16 %v394, %v337
  %v623 = vpack.c.b16 %v395, %v338
  %v624 = vpack.c.b16 %v396, %v339
  %v625 = vpack.c.b16 %v397, %v340
  %v626 = vpack.c.b16 %v398, %v341
  %v627 = vpack.c.b16 %v399, %v342
  %v628 = vpack.c.b16 %v400, %v343
  %v629 = vpack.c.b16 %v401, %v344
  %v630 = vpack.c.b16 %v402, %v345
  %v631 = vpack.c.b16 %v403, %v346
  %v632 = vpack.c.b16 %v404, %v347
  %v633 = vpack.c.b16 %v405, %v348
  %v634 = vpack.c.b16 %v406, %v349
  %v635 = vpack.c.b16 %v407, %v350
  %v636 = vpack.c.b16 %v408, %v351
  %v637 = vpack.c.b16 %v409, %v352
  %v638 = vpack.c.b16 %v410, %v353
  %v639 = vpack.c.b16 %v411, %v354
  %v640 = vpack.c.b16 %v412, %v355
  %v641 = vpack.c.b16 %v413, %v356
  %v642 = vpack.c.b16 %v414, %v357
  %v643 = vpack.c.b16 %v415, %v358
  %v644 = vpack.c.b16 %v416, %v359
  %v645 = vpack.c.b16 %v417, %v360
  %v646 = vpack.c.b16 %v418, %v361
  %v647 = vpack.c.b16 %v419, %v362
  %v648 = vpack.c.b16 %v420, %v363
  %v649 = vpack.c.b16 %v421, %v364
  %v650 = vpack.c.b16 %v422, %v365
  %v651 = vpack.c.b16 %v423, %v366
  %v652 = vpack.c.b16 %v424, %v367
  %v653 = vpack.c.b16 %v425, %v368
  %v654 = vpack.c.b16 %v426, %v369
  %v655 = vpack.c.b16 %v427, %v370
  %v656 = vpack.c.b16 %v428, %v371
  %v657 = vpack.c.b16 %v429, %v372
  %v658 = vpack.c.b16 %v430, %v373
  %v659 = vpack.c.b16 %v431, %v374
  %v660 = vpack.c.b16 %v489, %v432
  %v661 = vpack.c.b16 %v490, %v433
  %v662 = vpack.c.b16 %v491, %v434
  %v663 = vpack.c.b16 %v492, %v435
  %v664 = vpack.c.b16 %v493, %v436
  %v665 = vpack.c.b16 %v494, %v437
  %v666 = vpack.c.b16 %v495, %v438
  %v667 = vpack.c.b16 %v496, %v439
  %v668 = vpack.c.b16 %v497, %v440
  %v669 = vpack.c.b16 %v498, %v441
  %v670 = vpack.c.b16 %v499, %v442
  %v671 = vpack.c.b16 %v500, %v443
  %v672 = vpack.c.b16 %v501, %v444
  %v673 = vpack.c.b16 %v502, %v445
  %v674 = vpack.c.b16 %v503, %v446
  %v675 = vpack.c.b16 %v504, %v447
  %v676 = vpack.c.b16 %v505, %v448
  %v677 = vpack.c.b16 %v506, %v449
  %v678 = vpack.c.b16 %v507, %v450
  %v679 = vpack.c.b16 %v508, %v451
  %v680 = vpack.c.b16 %v509, %v452
  %v681 = vpack.c.b16 %v510, %v453
  %v682 = vpack.c.b16 %v511, %v454
  %v683 = vpack.c.b16 %v512, %v455
  %v684 = vpack.c.b16 %v513, %v456
  %v685 = vpack.c.b16 %v514, %v457
  %v686 = vpack.c.b16 %v515, %v458
  %v687 = vpack.c.b16 %v516, %v459
  %v688 = vpack.c.b16 %v517, %v460
  %v689 = vpack.c.b16 %v518, %v461
  %v690 = vpack.c.b16 %v519, %v462
  %v691 = vpack.c.b16 %v520, %v463
  %v692 = vpack.c.b16 %v521, %v464
  %v693 = vpack.c.b16 %v522, %v465
  %v694 = vpack.c.b16 %v523, %v466
  %v695 = vpack.c.b16 %v524, %v467
  %v696 = vpack.c.b16 %v525, %v468
  %v697 = vpack.c.b16 %v526, %v469
  %v698 = vpack.c.b16 %v527, %v470
  %v699 = vpack.c.b16 %v528, %v471
  %v700 = vpack.c.b16 %v529, %v472
  %v701 = vpack.c.b16 %v530, %v473
  %v702 = vpack.c.b16 %v531, %v474
  %v703 = vpack.c.b16 %v532, %v475
  %v704 = vpack.c.b16 %v533, %v476
  %v705 = vpack.c.b16 %v534, %v477
  %v706 = vpack.c.b16 %v535, %v478
  %v707 = vpack.c.b16 %v536, %v479
  %v708 = vpack.c.b16 %v537, %v480
  %v709 = vpack.c.b16 %v538, %v481
  %v710 = vpack.c.b16 %v539, %v482
  %v711 = vpack.c.b16 %v540, %v483
  %v712 = vpack.c.b16 %v541, %v484
  %v713 = vpack.c.b16 %v542, %v485
  %v714 = vpack.c.b16 %v543, %v486
  %v715 = vpack.c.b16 %v544, %v487
  %v716 = vpack.c.b16 %v545, %v488
  %v717 = vpack.c.b16 %v546, %v546
  %v718 = vpack.c.b16 %v547, %v547
  %v719 = vpack.c.b16 %v548, %v548
  %v720 = vpack.c.b16 %v549, %v549
  %v721 = vpack.c.b16 %v550, %v550
  %v722 = vpack.c.b16 %v551, %v551
  %v723 = vpack.c.b16 %v552, %v552
  %v724 = vpack.c.b16 %v553, %v553
  %v725 = vpack.c.b16 %v554, %v554
  %v726 = vpack.c.b16 %v555, %v555
  %v727 = vpack.c.b16 %v556, %v556
  %v728 = vpack.c.b16 %v557, %v557
  %v729 = vpack.c.b16 %v558, %v558
  %v730 = vpack.c.b16 %v559, %v559
  %v731 = vpack.c.b16 %v560, %v560
  %v732 = vpack.c.b16 %v561, %v561
  %v733 = vpack.c.b16 %v562, %v562
  %v734 = vpack.c.b16 %v563, %v563
  %v735 = vpack.c.b16 %v564, %v564
  %v736 = vpack.c.b16 %v565, %v565
  %v737 = vpack.c.b16 %v566, %v566
  %v738 = vpack.c.b16 %v567, %v567
  %v739 = vpack.c.b16 %v568, %v568
  %v740 = vpack.c.b16 %v569, %v569
  %v741 = vpack.c.b16 %v570, %v570
  %v742 = vpack.c.b16 %v571, %v571
  %v743 = vpack.c.b16 %v572, %v572
  %v744 = vpack.c.b16 %v573, %v573
  %v745 = vpack.c.b16 %v574, %v574
  %v746 = vpack.c.b16 %v575, %v575
  %v747 = vpack.c.b16 %v576, %v576
  %v748 = vpack.c.b16 %v577, %v577
  %v749 = vpack.c.b16 %v578, %v578
  %v750 = vpack.c.b16 %v579, %v579
  %v751 = vpack.c.b16 %v580, %v580
  %v752 = vpack.c.b16 %v581, %v581
  %v753 = vpack.c.b16 %v582, %v582
  %v754 = vpack.c.b16 %v583, %v583
  %v755 = vpack.c.b16 %v584, %v584
  %v756 = vpack.c.b16 %v585, %v585
  %v757 = vpack.c.b16 %v586, %v586
  %v758 = vpack.c.b16 %v587, %v587
  %v759 = vpack.c.b16 %v588, %v588
  %v760 = vpack.c.b16 %v589, %v589
  %v761 = vpack.c.b16 %v590, %v590
  %v762 = vpack.c.b16 %v591, %v591
  %v763 = vpack.c.b16 %v592, %v592
  %v764 = vpack.c.b16 %v593, %v593
  %v765 = vpack.c.b16 %v594, %v594
  %v766 = vpack.c.b16 %v595, %v595
  %v767 = vpack.c.b16 %v596, %v596
  %v768 = vpack.c.b16 %v597, %v597
  %v769 = vpack.c.b16 %v598, %v598
  %v770 = vpack.c.b16 %v599, %v599
  %v771 = vpack.c.b16 %v600, %v600
  %v772 = vpack.c.b16 %v601, %v601
  %v773 = vpack.c.b16 %v602, %v602
  %vm888 = vcmask 293888
  %v890 = vsel %vm888, %v17, 0
  %vm892 = vcmask 1041408
  %v894 = vsel %vm892, %v717, 0
  %v897 = vsel %vm892, %v718, 0
  %v900 = vsel %vm892, %v719, 0
  %v903 = vsel %vm892, %v720, 0
  %v906 = vsel %vm892, %v721, 0
  %v909 = vsel %vm892, %v722, 0
  %v912 = vsel %vm892, %v723, 0
  %v915 = vsel %vm892, %v724, 0
  %v918 = vsel %vm892, %v725, 0
  %v921 = vsel %vm892, %v726, 0
  %v924 = vsel %vm892, %v727, 0
  %v927 = vsel %vm892, %v728, 0
  %v930 = vsel %vm892, %v729, 0
  %v933 = vsel %vm892, %v730, 0
  %v936 = vsel %vm892, %v731, 0
  %v939 = vsel %vm892, %v732, 0
  %v942 = vsel %vm892, %v733, 0
  %v945 = vsel %vm892, %v734, 0
  %v948 = vsel %vm892, %v735, 0
  %v951 = vsel %vm892, %v736, 0
  %v954 = vsel %vm892, %v737, 0
  %v957 = vsel %vm892, %v738, 0
  %v960 = vsel %vm892, %v739, 0
  %v963 = vsel %vm892, %v740, 0
  %v966 = vsel %vm892, %v741, 0
  %v969 = vsel %vm892, %v742, 0
  %v972 = vsel %vm892, %v743, 0
  %v975 = vsel %vm892, %v744, 0
  %v978 = vsel %vm892, %v745, 0
  %v981 = vsel %vm892, %v746, 0
  %v984 = vsel %vm892, %v747, 0
  %v987 = vsel %vm892, %v748, 0
  %v990 = vsel %vm892, %v749, 0
  %v993 = vsel %vm892, %v750, 0
  %v996 = vsel %vm892, %v751, 0
  %v999 = vsel %vm892, %v752, 0
  %v1002 = vsel %vm892, %v753, 0
  %v1005 = vsel %vm892, %v754, 0
  %v1008 = vsel %vm892, %v755, 0
  %v1011 = vsel %vm892, %v756, 0
  %v1014 = vsel %vm892, %v757, 0
  %v1017 = vsel %vm892, %v758, 0
  %v1020 = vsel %vm892, %v759, 0
  %v1023 = vsel %vm892, %v760, 0
  %v1026 = vsel %vm892, %v761, 0
  %v1029 = vsel %vm892, %v762, 0
  %v1032 = vsel %vm892, %v763, 0
  %v1035 = vsel %vm892, %v764, 0
  %v1038 = vsel %vm892, %v765, 0
  %v1041 = vsel %vm892, %v766, 0
  %v1044 = vsel %vm892, %v767, 0
  %v1047 = vsel %vm892, %v768, 0
  %v1050 = vsel %vm892, %v769, 0
  %v1053 = vsel %vm892, %v770, 0
  %v1056 = vsel %vm892, %v771, 0
  %v1059 = vsel %vm892, %v772, 0
  %v1062 = vsel %vm892, %v773, 0
  %1064 = vmatprep.subr.bf16.mxu0 %v604
  %1065 = vmatpush1.bf16.msra.mxu0 %v603
  %1066 = vmatprep.subr.bf16.mxu0 %v661
  %1067 = vmatpush1.bf16.msra.mxu0 %v660
  %1068 = vmatprep.subr.bf16.mxu0 %v897
  %1069 = vmatpush1.bf16.msra.mxu0 %v894
  %1070 = vmatprep.subr.bf16.mxu0 0
  %1071 = vmatpush1.bf16.msra.mxu0 0
  %1072 = vmatprep.subr.bf16.mxu0 0
  %1073 = vmatpush1.bf16.msra.mxu0 0
  %1074 = vmatprep.subr.bf16.mxu0 0
  %1075 = vmatpush1.bf16.msra.mxu0 0
  %1076 = vmatprep.subr.bf16.mxu0 0
  %1077 = vmatpush1.bf16.msra.mxu0 0
  %1078 = vmatprep.subr.bf16.mxu0 0
  %1079 = vmatpush1.bf16.msra.mxu0 0
  %1080 = vmatprep.subr.bf16.mxu0 0
  %1081 = vmatpush1.bf16.msra.mxu0 0
  %1082 = vmatprep.subr.bf16.mxu0 0
  %1083 = vmatpush1.bf16.msra.mxu0 0
  %1084 = vmatprep.subr.bf16.mxu0 0
  %1085 = vmatpush1.bf16.msra.mxu0 0
  %1086 = vmatprep.subr.bf16.mxu0 0
  %1087 = vmatpush1.bf16.msra.mxu0 0
  %1088 = vmatprep.subr.bf16.mxu0 0
  %1089 = vmatpush1.bf16.msra.mxu0 0
  %1090 = vmatprep.subr.bf16.mxu0 0
  %1091 = vmatpush1.bf16.msra.mxu0 0
  %1092 = vmatprep.subr.bf16.mxu0 0
  %1093 = vmatpush1.bf16.msra.mxu0 0
  %1094 = vmatprep.subr.bf16.mxu0 0
  %1095 = vmatpush1.bf16.msra.mxu0 0
  %1096 = vmatprep.mubr.bf16.mxu0 0
  %1097 = vmatmul.mubr.bf16.gmra.mrb[0].mxu0 %v890
  %v1098 = vpop.f32.mrb[0].mxu0
  %v1099 = vadd.f32 %v172, %v1098
  %v1100 = vpop.f32.mrb[0].mxu0
  %v1101 = vadd.f32 %v172, %v1100
  %v1102 = vpop.f32.mrb[0].mxu0
  %v1103 = vpop.f32.mrb[0].mxu0
  %1104 = vdwg.mxu0
  %1105 = vmatprep.subr.bf16.mxu0 %v606
  %1106 = vmatpush1.bf16.msra.mxu0 %v605
  %1107 = vmatprep.subr.bf16.mxu0 %v663
  %1108 = vmatpush1.bf16.msra.mxu0 %v662
  %1109 = vmatprep.subr.bf16.mxu0 %v903
  %1110 = vmatpush1.bf16.msra.mxu0 %v900
  %1111 = vmatprep.subr.bf16.mxu0 0
  %1112 = vmatpush1.bf16.msra.mxu0 0
  %1113 = vmatprep.subr.bf16.mxu0 0
  %1114 = vmatpush1.bf16.msra.mxu0 0
  %1115 = vmatprep.subr.bf16.mxu0 0
  %1116 = vmatpush1.bf16.msra.mxu0 0
  %1117 = vmatprep.subr.bf16.mxu0 0
  %1118 = vmatpush1.bf16.msra.mxu0 0
  %1119 = vmatprep.subr.bf16.mxu0 0
  %1120 = vmatpush1.bf16.msra.mxu0 0
  %1121 = vmatprep.subr.bf16.mxu0 0
  %1122 = vmatpush1.bf16.msra.mxu0 0
  %1123 = vmatprep.subr.bf16.mxu0 0
  %1124 = vmatpush1.bf16.msra.mxu0 0
  %1125 = vmatprep.subr.bf16.mxu0 0
  %1126 = vmatpush1.bf16.msra.mxu0 0
  %1127 = vmatprep.subr.bf16.mxu0 0
  %1128 = vmatpush1.bf16.msra.mxu0 0
  %1129 = vmatprep.subr.bf16.mxu0 0
  %1130 = vmatpush1.bf16.msra.mxu0 0
  %1131 = vmatprep.subr.bf16.mxu0 0
  %1132 = vmatpush1.bf16.msra.mxu0 0
  %1133 = vmatprep.subr.bf16.mxu0 0
  %1134 = vmatpush1.bf16.msra.mxu0 0
  %1135 = vmatprep.subr.bf16.mxu0 0
  %1136 = vmatpush1.bf16.msra.mxu0 0
  %1137 = vmatprep.mubr.bf16.mxu0 0
  %1138 = vmatmul.mubr.bf16.gmra.mrb[0].mxu0 %v890
  %v1139 = vpop.f32.mrb[0].mxu0
  %v1140 = vadd.f32 %v172, %v1139
  %v1141 = vpop.f32.mrb[0].mxu0
  %v1142 = vadd.f32 %v172, %v1141
  %v1143 = vpop.f32.mrb[0].mxu0
  %v1144 = vpop.f32.mrb[0].mxu0
  %1145 = vdwg.mxu0
  %1146 = vmatprep.subr.bf16.mxu0 %v608
  %1147 = vmatpush1.bf16.msra.mxu0 %v607
  %1148 = vmatprep.subr.bf16.mxu0 %v665
  %1149 = vmatpush1.bf16.msra.mxu0 %v664
  %1150 = vmatprep.subr.bf16.mxu0 %v909
  %1151 = vmatpush1.bf16.msra.mxu0 %v906
  %1152 = vmatprep.subr.bf16.mxu0 0
  %1153 = vmatpush1.bf16.msra.mxu0 0
  %1154 = vmatprep.subr.bf16.mxu0 0
  %1155 = vmatpush1.bf16.msra.mxu0 0
  %1156 = vmatprep.subr.bf16.mxu0 0
  %1157 = vmatpush1.bf16.msra.mxu0 0
  %1158 = vmatprep.subr.bf16.mxu0 0
  %1159 = vmatpush1.bf16.msra.mxu0 0
  %1160 = vmatprep.subr.bf16.mxu0 0
  %1161 = vmatpush1.bf16.msra.mxu0 0
  %1162 = vmatprep.subr.bf16.mxu0 0
  %1163 = vmatpush1.bf16.msra.mxu0 0
  %1164 = vmatprep.subr.bf16.mxu0 0
  %1165 = vmatpush1.bf16.msra.mxu0 0
  %1166 = vmatprep.subr.bf16.mxu0 0
  %1167 = vmatpush1.bf16.msra.mxu0 0
  %1168 = vmatprep.subr.bf16.mxu0 0
  %1169 = vmatpush1.bf16.msra.mxu0 0
  %1170 = vmatprep.subr.bf16.mxu0 0
  %1171 = vmatpush1.bf16.msra.mxu0 0
  %1172 = vmatprep.subr.bf16.mxu0 0
  %1173 = vmatpush1.bf16.msra.mxu0 0
  %1174 = vmatprep.subr.bf16.mxu0 0
  %1175 = vmatpush1.bf16.msra.mxu0 0
  %1176 = vmatprep.subr.bf16.mxu0 0
  %1177 = vmatpush1.bf16.msra.mxu0 0
  %1178 = vmatprep.mubr.bf16.mxu0 0
  %1179 = vmatmul.mubr.bf16.gmra.mrb[0].mxu0 %v890
  %v1180 = vpop.f32.mrb[0].mxu0
  %v1181 = vadd.f32 %v172, %v1180
  %v1182 = vpop.f32.mrb[0].mxu0
  %v1183 = vadd.f32 %v172, %v1182
  %v1184 = vpop.f32.mrb[0].mxu0
  %v1185 = vpop.f32.mrb[0].mxu0
  %1186 = vdwg.mxu0
  %1187 = vmatprep.subr.bf16.mxu0 %v610
  %1188 = vmatpush1.bf16.msra.mxu0 %v609
  %1189 = vmatprep.subr.bf16.mxu0 %v667
  %1190 = vmatpush1.bf16.msra.mxu0 %v666
  %1191 = vmatprep.subr.bf16.mxu0 %v915
  %1192 = vmatpush1.bf16.msra.mxu0 %v912
  %1193 = vmatprep.subr.bf16.mxu0 0
  %1194 = vmatpush1.bf16.msra.mxu0 0
  %1195 = vmatprep.subr.bf16.mxu0 0
  %1196 = vmatpush1.bf16.msra.mxu0 0
  %1197 = vmatprep.subr.bf16.mxu0 0
  %1198 = vmatpush1.bf16.msra.mxu0 0
  %1199 = vmatprep.subr.bf16.mxu0 0
  %1200 = vmatpush1.bf16.msra.mxu0 0
  %1201 = vmatprep.subr.bf16.mxu0 0
  %1202 = vmatpush1.bf16.msra.mxu0 0
  %1203 = vmatprep.subr.bf16.mxu0 0
  %1204 = vmatpush1.bf16.msra.mxu0 0
  %1205 = vmatprep.subr.bf16.mxu0 0
  %1206 = vmatpush1.bf16.msra.mxu0 0
  %1207 = vmatprep.subr.bf16.mxu0 0
  %1208 = vmatpush1.bf16.msra.mxu0 0
  %1209 = vmatprep.subr.bf16.mxu0 0
  %1210 = vmatpush1.bf16.msra.mxu0 0
  %1211 = vmatprep.subr.bf16.mxu0 0
  %1212 = vmatpush1.bf16.msra.mxu0 0
  %1213 = vmatprep.subr.bf16.mxu0 0
  %1214 = vmatpush1.bf16.msra.mxu0 0
  %1215 = vmatprep.subr.bf16.mxu0 0
  %1216 = vmatpush1.bf16.msra.mxu0 0
  %1217 = vmatprep.subr.bf16.mxu0 0
  %1218 = vmatpush1.bf16.msra.mxu0 0
  %1219 = vmatprep.mubr.bf16.mxu0 0
  %1220 = vmatmul.mubr.bf16.gmra.mrb[0].mxu0 %v890
  %v1221 = vpop.f32.mrb[0].mxu0
  %v1222 = vadd.f32 %v172, %v1221
  %v1223 = vpop.f32.mrb[0].mxu0
  %v1224 = vadd.f32 %v172, %v1223
  %v1225 = vpop.f32.mrb[0].mxu0
  %v1226 = vpop.f32.mrb[0].mxu0
  %1227 = vdwg.mxu0
  %1228 = vmatprep.subr.bf16.mxu0 %v612
  %1229 = vmatpush1.bf16.msra.mxu0 %v611
  %1230 = vmatprep.subr.bf16.mxu0 %v669
  %1231 = vmatpush1.bf16.msra.mxu0 %v668
  %1232 = vmatprep.subr.bf16.mxu0 %v921
  %1233 = vmatpush1.bf16.msra.mxu0 %v918
  %1234 = vmatprep.subr.bf16.mxu0 0
  %1235 = vmatpush1.bf16.msra.mxu0 0
  %1236 = vmatprep.subr.bf16.mxu0 0
  %1237 = vmatpush1.bf16.msra.mxu0 0
  %1238 = vmatprep.subr.bf16.mxu0 0
  %1239 = vmatpush1.bf16.msra.mxu0 0
  %1240 = vmatprep.subr.bf16.mxu0 0
  %1241 = vmatpush1.bf16.msra.mxu0 0
  %1242 = vmatprep.subr.bf16.mxu0 0
  %1243 = vmatpush1.bf16.msra.mxu0 0
  %1244 = vmatprep.subr.bf16.mxu0 0
  %1245 = vmatpush1.bf16.msra.mxu0 0
  %1246 = vmatprep.subr.bf16.mxu0 0
  %1247 = vmatpush1.bf16.msra.mxu0 0
  %1248 = vmatprep.subr.bf16.mxu0 0
  %1249 = vmatpush1.bf16.msra.mxu0 0
  %1250 = vmatprep.subr.bf16.mxu0 0
  %1251 = vmatpush1.bf16.msra.mxu0 0
  %1252 = vmatprep.subr.bf16.mxu0 0
  %1253 = vmatpush1.bf16.msra.mxu0 0
  %1254 = vmatprep.subr.bf16.mxu0 0
  %1255 = vmatpush1.bf16.msra.mxu0 0
  %1256 = vmatprep.subr.bf16.mxu0 0
  %1257 = vmatpush1.bf16.msra.mxu0 0
  %1258 = vmatprep.subr.bf16.mxu0 0
  %1259 = vmatpush1.bf16.msra.mxu0 0
  %1260 = vmatprep.mubr.bf16.mxu0 0
  %1261 = vmatmul.mubr.bf16.gmra.mrb[0].mxu0 %v890
  %v1262 = vpop.f32.mrb[0].mxu0
  %v1263 = vadd.f32 %v172, %v1262
  %v1264 = vpop.f32.mrb[0].mxu0
  %v1265 = vadd.f32 %v172, %v1264
  %v1266 = vpop.f32.mrb[0].mxu0
  %v1267 = vpop.f32.mrb[0].mxu0
  %1268 = vdwg.mxu0
  %1269 = vmatprep.subr.bf16.mxu0 %v614
  %1270 = vmatpush1.bf16.msra.mxu0 %v613
  %1271 = vmatprep.subr.bf16.mxu0 %v671
  %1272 = vmatpush1.bf16.msra.mxu0 %v670
  %1273 = vmatprep.subr.bf16.mxu0 %v927
  %1274 = vmatpush1.bf16.msra.mxu0 %v924
  %1275 = vmatprep.subr.bf16.mxu0 0
  %1276 = vmatpush1.bf16.msra.mxu0 0
  %1277 = vmatprep.subr.bf16.mxu0 0
  %1278 = vmatpush1.bf16.msra.mxu0 0
  %1279 = vmatprep.subr.bf16.mxu0 0
  %1280 = vmatpush1.bf16.msra.mxu0 0
  %1281 = vmatprep.subr.bf16.mxu0 0
  %1282 = vmatpush1.bf16.msra.mxu0 0
  %1283 = vmatprep.subr.bf16.mxu0 0
  %1284 = vmatpush1.bf16.msra.mxu0 0
  %1285 = vmatprep.subr.bf16.mxu0 0
  %1286 = vmatpush1.bf16.msra.mxu0 0
  %1287 = vmatprep.subr.bf16.mxu0 0
  %1288 = vmatpush1.bf16.msra.mxu0 0
  %1289 = vmatprep.subr.bf16.mxu0 0
  %1290 = vmatpush1.bf16.msra.mxu0 0
  %1291 = vmatprep.subr.bf16.mxu0 0
  %1292 = vmatpush1.bf16.msra.mxu0 0
  %1293 = vmatprep.subr.bf16.mxu0 0
  %1294 = vmatpush1.bf16.msra.mxu0 0
  %1295 = vmatprep.subr.bf16.mxu0 0
  %1296 = vmatpush1.bf16.msra.mxu0 0
  %1297 = vmatprep.subr.bf16.mxu0 0
  %1298 = vmatpush1.bf16.msra.mxu0 0
  %1299 = vmatprep.subr.bf16.mxu0 0
  %1300 = vmatpush1.bf16.msra.mxu0 0
  %1301 = vmatprep.mubr.bf16.mxu0 0
  %1302 = vmatmul.mubr.bf16.gmra.mrb[0].mxu0 %v890
  %v1303 = vpop.f32.mrb[0].mxu0
  %v1304 = vadd.f32 %v172, %v1303
  %v1305 = vpop.f32.mrb[0].mxu0
  %v1306 = vadd.f32 %v172, %v1305
  %v1307 = vpop.f32.mrb[0].mxu0
  %v1308 = vpop.f32.mrb[0].mxu0
  %1309 = vdwg.mxu0
  %1310 = vmatprep.subr.bf16.mxu0 %v616
  %1311 = vmatpush1.bf16.msra.mxu0 %v615
  %1312 = vmatprep.subr.bf16.mxu0 %v673
  %1313 = vmatpush1.bf16.msra.mxu0 %v672
  %1314 = vmatprep.subr.bf16.mxu0 %v933
  %1315 = vmatpush1.bf16.msra.mxu0 %v930
  %1316 = vmatprep.subr.bf16.mxu0 0
  %1317 = vmatpush1.bf16.msra.mxu0 0
  %1318 = vmatprep.subr.bf16.mxu0 0
  %1319 = vmatpush1.bf16.msra.mxu0 0
  %1320 = vmatprep.subr.bf16.mxu0 0
  %1321 = vmatpush1.bf16.msra.mxu0 0
  %1322 = vmatprep.subr.bf16.mxu0 0
  %1323 = vmatpush1.bf16.msra.mxu0 0
  %1324 = vmatprep.subr.bf16.mxu0 0
  %1325 = vmatpush1.bf16.msra.mxu0 0
  %1326 = vmatprep.subr.bf16.mxu0 0
  %1327 = vmatpush1.bf16.msra.mxu0 0
  %1328 = vmatprep.subr.bf16.mxu0 0
  %1329 = vmatpush1.bf16.msra.mxu0 0
  %1330 = vmatprep.subr.bf16.mxu0 0
  %1331 = vmatpush1.bf16.msra.mxu0 0
  %1332 = vmatprep.subr.bf16.mxu0 0
  %1333 = vmatpush1.bf16.msra.mxu0 0
  %1334 = vmatprep.subr.bf16.mxu0 0
  %1335 = vmatpush1.bf16.msra.mxu0 0
  %1336 = vmatprep.subr.bf16.mxu0 0
  %1337 = vmatpush1.bf16.msra.mxu0 0
  %1338 = vmatprep.subr.bf16.mxu0 0
  %1339 = vmatpush1.bf16.msra.mxu0 0
  %1340 = vmatprep.subr.bf16.mxu0 0
  %1341 = vmatpush1.bf16.msra.mxu0 0
  %1342 = vmatprep.mubr.bf16.mxu0 0
  %1343 = vmatmul.mubr.bf16.gmra.mrb[0].mxu0 %v890
  %v1344 = vpop.f32.mrb[0].mxu0
  %v1345 = vadd.f32 %v172, %v1344
  %v1346 = vpop.f32.mrb[0].mxu0
  %v1347 = vadd.f32 %v172, %v1346
  %v1348 = vpop.f32.mrb[0].mxu0
  %v1349 = vpop.f32.mrb[0].mxu0
  %1350 = vdwg.mxu0
  %1351 = vmatprep.subr.bf16.mxu0 %v618
  %1352 = vmatpush1.bf16.msra.mxu0 %v617
  %1353 = vmatprep.subr.bf16.mxu0 %v675
  %1354 = vmatpush1.bf16.msra.mxu0 %v674
  %1355 = vmatprep.subr.bf16.mxu0 %v939
  %1356 = vmatpush1.bf16.msra.mxu0 %v936
  %1357 = vmatprep.subr.bf16.mxu0 0
  %1358 = vmatpush1.bf16.msra.mxu0 0
  %1359 = vmatprep.subr.bf16.mxu0 0
  %1360 = vmatpush1.bf16.msra.mxu0 0
  %1361 = vmatprep.subr.bf16.mxu0 0
  %1362 = vmatpush1.bf16.msra.mxu0 0
  %1363 = vmatprep.subr.bf16.mxu0 0
  %1364 = vmatpush1.bf16.msra.mxu0 0
  %1365 = vmatprep.subr.bf16.mxu0 0
  %1366 = vmatpush1.bf16.msra.mxu0 0
  %1367 = vmatprep.subr.bf16.mxu0 0
  %1368 = vmatpush1.bf16.msra.mxu0 0
  %1369 = vmatprep.subr.bf16.mxu0 0
  %1370 = vmatpush1.bf16.msra.mxu0 0
  %1371 = vmatprep.subr.bf16.mxu0 0
  %1372 = vmatpush1.bf16.msra.mxu0 0
  %1373 = vmatprep.subr.bf16.mxu0 0
  %1374 = vmatpush1.bf16.msra.mxu0 0
  %1375 = vmatprep.subr.bf16.mxu0 0
  %1376 = vmatpush1.bf16.msra.mxu0 0
  %1377 = vmatprep.subr.bf16.mxu0 0
  %1378 = vmatpush1.bf16.msra.mxu0 0
  %1379 = vmatprep.subr.bf16.mxu0 0
  %1380 = vmatpush1.bf16.msra.mxu0 0
  %1381 = vmatprep.subr.bf16.mxu0 0
  %1382 = vmatpush1.bf16.msra.mxu0 0
  %1383 = vmatprep.mubr.bf16.mxu0 0
  %1384 = vmatmul.mubr.bf16.gmra.mrb[0].mxu0 %v890
  %v1385 = vpop.f32.mrb[0].mxu0
  %v1386 = vadd.f32 %v172, %v1385
  %v1387 = vpop.f32.mrb[0].mxu0
  %v1388 = vadd.f32 %v172, %v1387
  %v1389 = vpop.f32.mrb[0].mxu0
  %v1390 = vpop.f32.mrb[0].mxu0
  %1391 = vdwg.mxu0
  %1392 = vmatprep.subr.bf16.mxu0 %v620
  %1393 = vmatpush1.bf16.msra.mxu0 %v619
  %1394 = vmatprep.subr.bf16.mxu0 %v677
  %1395 = vmatpush1.bf16.msra.mxu0 %v676
  %1396 = vmatprep.subr.bf16.mxu0 %v945
  %1397 = vmatpush1.bf16.msra.mxu0 %v942
  %1398 = vmatprep.subr.bf16.mxu0 0
  %1399 = vmatpush1.bf16.msra.mxu0 0
  %1400 = vmatprep.subr.bf16.mxu0 0
  %1401 = vmatpush1.bf16.msra.mxu0 0
  %1402 = vmatprep.subr.bf16.mxu0 0
  %1403 = vmatpush1.bf16.msra.mxu0 0
  %1404 = vmatprep.subr.bf16.mxu0 0
  %1405 = vmatpush1.bf16.msra.mxu0 0
  %1406 = vmatprep.subr.bf16.mxu0 0
  %1407 = vmatpush1.bf16.msra.mxu0 0
  %1408 = vmatprep.subr.bf16.mxu0 0
  %1409 = vmatpush1.bf16.msra.mxu0 0
  %1410 = vmatprep.subr.bf16.mxu0 0
  %1411 = vmatpush1.bf16.msra.mxu0 0
  %1412 = vmatprep.subr.bf16.mxu0 0
  %1413 = vmatpush1.bf16.msra.mxu0 0
  %1414 = vmatprep.subr.bf16.mxu0 0
  %1415 = vmatpush1.bf16.msra.mxu0 0
  %1416 = vmatprep.subr.bf16.mxu0 0
  %1417 = vmatpush1.bf16.msra.mxu0 0
  %1418 = vmatprep.subr.bf16.mxu0 0
  %1419 = vmatpush1.bf16.msra.mxu0 0
  %1420 = vmatprep.subr.bf16.mxu0 0
  %1421 = vmatpush1.bf16.msra.mxu0 0
  %1422 = vmatprep.subr.bf16.mxu0 0
  %1423 = vmatpush1.bf16.msra.mxu0 0
  %1424 = vmatprep.mubr.bf16.mxu0 0
  %1425 = vmatmul.mubr.bf16.gmra.mrb[0].mxu0 %v890
  %v1426 = vpop.f32.mrb[0].mxu0
  %v1427 = vadd.f32 %v172, %v1426
  %v1428 = vpop.f32.mrb[0].mxu0
  %v1429 = vadd.f32 %v172, %v1428
  %v1430 = vpop.f32.mrb[0].mxu0
  %v1431 = vpop.f32.mrb[0].mxu0
  %1432 = vdwg.mxu0
  %1433 = vmatprep.subr.bf16.mxu0 %v622
  %1434 = vmatpush1.bf16.msra.mxu0 %v621
  %1435 = vmatprep.subr.bf16.mxu0 %v679
  %1436 = vmatpush1.bf16.msra.mxu0 %v678
  %1437 = vmatprep.subr.bf16.mxu0 %v951
  %1438 = vmatpush1.bf16.msra.mxu0 %v948
  %1439 = vmatprep.subr.bf16.mxu0 0
  %1440 = vmatpush1.bf16.msra.mxu0 0
  %1441 = vmatprep.subr.bf16.mxu0 0
  %1442 = vmatpush1.bf16.msra.mxu0 0
  %1443 = vmatprep.subr.bf16.mxu0 0
  %1444 = vmatpush1.bf16.msra.mxu0 0
  %1445 = vmatprep.subr.bf16.mxu0 0
  %1446 = vmatpush1.bf16.msra.mxu0 0
  %1447 = vmatprep.subr.bf16.mxu0 0
  %1448 = vmatpush1.bf16.msra.mxu0 0
  %1449 = vmatprep.subr.bf16.mxu0 0
  %1450 = vmatpush1.bf16.msra.mxu0 0
  %1451 = vmatprep.subr.bf16.mxu0 0
  %1452 = vmatpush1.bf16.msra.mxu0 0
  %1453 = vmatprep.subr.bf16.mxu0 0
  %1454 = vmatpush1.bf16.msra.mxu0 0
  %1455 = vmatprep.subr.bf16.mxu0 0
  %1456 = vmatpush1.bf16.msra.mxu0 0
  %1457 = vmatprep.subr.bf16.mxu0 0
  %1458 = vmatpush1.bf16.msra.mxu0 0
  %1459 = vmatprep.subr.bf16.mxu0 0
  %1460 = vmatpush1.bf16.msra.mxu0 0
  %1461 = vmatprep.subr.bf16.mxu0 0
  %1462 = vmatpush1.bf16.msra.mxu0 0
  %1463 = vmatprep.subr.bf16.mxu0 0
  %1464 = vmatpush1.bf16.msra.mxu0 0
  %1465 = vmatprep.mubr.bf16.mxu0 0
  %1466 = vmatmul.mubr.bf16.gmra.mrb[0].mxu0 %v890
  %v1467 = vpop.f32.mrb[0].mxu0
  %v1468 = vadd.f32 %v172, %v1467
  %v1469 = vpop.f32.mrb[0].mxu0
  %v1470 = vadd.f32 %v172, %v1469
  %v1471 = vpop.f32.mrb[0].mxu0
  %v1472 = vpop.f32.mrb[0].mxu0
  %1473 = vdwg.mxu0
  %1474 = vmatprep.subr.bf16.mxu0 %v624
  %1475 = vmatpush1.bf16.msra.mxu0 %v623
  %1476 = vmatprep.subr.bf16.mxu0 %v681
  %1477 = vmatpush1.bf16.msra.mxu0 %v680
  %1478 = vmatprep.subr.bf16.mxu0 %v957
  %1479 = vmatpush1.bf16.msra.mxu0 %v954
  %1480 = vmatprep.subr.bf16.mxu0 0
  %1481 = vmatpush1.bf16.msra.mxu0 0
  %1482 = vmatprep.subr.bf16.mxu0 0
  %1483 = vmatpush1.bf16.msra.mxu0 0
  %1484 = vmatprep.subr.bf16.mxu0 0
  %1485 = vmatpush1.bf16.msra.mxu0 0
  %1486 = vmatprep.subr.bf16.mxu0 0
  %1487 = vmatpush1.bf16.msra.mxu0 0
  %1488 = vmatprep.subr.bf16.mxu0 0
  %1489 = vmatpush1.bf16.msra.mxu0 0
  %1490 = vmatprep.subr.bf16.mxu0 0
  %1491 = vmatpush1.bf16.msra.mxu0 0
  %1492 = vmatprep.subr.bf16.mxu0 0
  %1493 = vmatpush1.bf16.msra.mxu0 0
  %1494 = vmatprep.subr.bf16.mxu0 0
  %1495 = vmatpush1.bf16.msra.mxu0 0
  %1496 = vmatprep.subr.bf16.mxu0 0
  %1497 = vmatpush1.bf16.msra.mxu0 0
  %1498 = vmatprep.subr.bf16.mxu0 0
  %1499 = vmatpush1.bf16.msra.mxu0 0
  %1500 = vmatprep.subr.bf16.mxu0 0
  %1501 = vmatpush1.bf16.msra.mxu0 0
  %1502 = vmatprep.subr.bf16.mxu0 0
  %1503 = vmatpush1.bf16.msra.mxu0 0
  %1504 = vmatprep.subr.bf16.mxu0 0
  %1505 = vmatpush1.bf16.msra.mxu0 0
  %1506 = vmatprep.mubr.bf16.mxu0 0
  %1507 = vmatmul.mubr.bf16.gmra.mrb[0].mxu0 %v890
  %v1508 = vpop.f32.mrb[0].mxu0
  %v1509 = vadd.f32 %v172, %v1508
  %v1510 = vpop.f32.mrb[0].mxu0
  %v1511 = vadd.f32 %v172, %v1510
  %v1512 = vpop.f32.mrb[0].mxu0
  %v1513 = vpop.f32.mrb[0].mxu0
  %1514 = vdwg.mxu0
  %1515 = vmatprep.subr.bf16.mxu0 %v626
  %1516 = vmatpush1.bf16.msra.mxu0 %v625
  %1517 = vmatprep.subr.bf16.mxu0 %v683
  %1518 = vmatpush1.bf16.msra.mxu0 %v682
  %1519 = vmatprep.subr.bf16.mxu0 %v963
  %1520 = vmatpush1.bf16.msra.mxu0 %v960
  %1521 = vmatprep.subr.bf16.mxu0 0
  %1522 = vmatpush1.bf16.msra.mxu0 0
  %1523 = vmatprep.subr.bf16.mxu0 0
  %1524 = vmatpush1.bf16.msra.mxu0 0
  %1525 = vmatprep.subr.bf16.mxu0 0
  %1526 = vmatpush1.bf16.msra.mxu0 0
  %1527 = vmatprep.subr.bf16.mxu0 0
  %1528 = vmatpush1.bf16.msra.mxu0 0
  %1529 = vmatprep.subr.bf16.mxu0 0
  %1530 = vmatpush1.bf16.msra.mxu0 0
  %1531 = vmatprep.subr.bf16.mxu0 0
  %1532 = vmatpush1.bf16.msra.mxu0 0
  %1533 = vmatprep.subr.bf16.mxu0 0
  %1534 = vmatpush1.bf16.msra.mxu0 0
  %1535 = vmatprep.subr.bf16.mxu0 0
  %1536 = vmatpush1.bf16.msra.mxu0 0
  %1537 = vmatprep.subr.bf16.mxu0 0
  %1538 = vmatpush1.bf16.msra.mxu0 0
  %1539 = vmatprep.subr.bf16.mxu0 0
  %1540 = vmatpush1.bf16.msra.mxu0 0
  %1541 = vmatprep.subr.bf16.mxu0 0
  %1542 = vmatpush1.bf16.msra.mxu0 0
  %1543 = vmatprep.subr.bf16.mxu0 0
  %1544 = vmatpush1.bf16.msra.mxu0 0
  %1545 = vmatprep.subr.bf16.mxu0 0
  %1546 = vmatpush1.bf16.msra.mxu0 0
  %1547 = vmatprep.mubr.bf16.mxu0 0
  %1548 = vmatmul.mubr.bf16.gmra.mrb[0].mxu0 %v890
  %v1549 = vpop.f32.mrb[0].mxu0
  %v1550 = vadd.f32 %v172, %v1549
  %v1551 = vpop.f32.mrb[0].mxu0
  %v1552 = vadd.f32 %v172, %v1551
  %v1553 = vpop.f32.mrb[0].mxu0
  %v1554 = vpop.f32.mrb[0].mxu0
  %1555 = vdwg.mxu0
  %1556 = vmatprep.subr.bf16.mxu0 %v628
  %1557 = vmatpush1.bf16.msra.mxu0 %v627
  %1558 = vmatprep.subr.bf16.mxu0 %v685
  %1559 = vmatpush1.bf16.msra.mxu0 %v684
  %1560 = vmatprep.subr.bf16.mxu0 %v969
  %1561 = vmatpush1.bf16.msra.mxu0 %v966
  %1562 = vmatprep.subr.bf16.mxu0 0
  %1563 = vmatpush1.bf16.msra.mxu0 0
  %1564 = vmatprep.subr.bf16.mxu0 0
  %1565 = vmatpush1.bf16.msra.mxu0 0
  %1566 = vmatprep.subr.bf16.mxu0 0
  %1567 = vmatpush1.bf16.msra.mxu0 0
  %1568 = vmatprep.subr.bf16.mxu0 0
  %1569 = vmatpush1.bf16.msra.mxu0 0
  %1570 = vmatprep.subr.bf16.mxu0 0
  %1571 = vmatpush1.bf16.msra.mxu0 0
  %1572 = vmatprep.subr.bf16.mxu0 0
  %1573 = vmatpush1.bf16.msra.mxu0 0
  %1574 = vmatprep.subr.bf16.mxu0 0
  %1575 = vmatpush1.bf16.msra.mxu0 0
  %1576 = vmatprep.subr.bf16.mxu0 0
  %1577 = vmatpush1.bf16.msra.mxu0 0
  %1578 = vmatprep.subr.bf16.mxu0 0
  %1579 = vmatpush1.bf16.msra.mxu0 0
  %1580 = vmatprep.subr.bf16.mxu0 0
  %1581 = vmatpush1.bf16.msra.mxu0 0
  %1582 = vmatprep.subr.bf16.mxu0 0
  %1583 = vmatpush1.bf16.msra.mxu0 0
  %1584 = vmatprep.subr.bf16.mxu0 0
  %1585 = vmatpush1.bf16.msra.mxu0 0
  %1586 = vmatprep.subr.bf16.mxu0 0
  %1587 = vmatpush1.bf16.msra.mxu0 0
  %1588 = vmatprep.mubr.bf16.mxu0 0
  %1589 = vmatmul.mubr.bf16.gmra.mrb[0].mxu0 %v890
  %v1590 = vpop.f32.mrb[0].mxu0
  %v1591 = vadd.f32 %v172, %v1590
  %v1592 = vpop.f32.mrb[0].mxu0
  %v1593 = vadd.f32 %v172, %v1592
  %v1594 = vpop.f32.mrb[0].mxu0
  %v1595 = vpop.f32.mrb[0].mxu0
  %1596 = vdwg.mxu0
  %1597 = vmatprep.subr.bf16.mxu0 %v630
  %1598 = vmatpush1.bf16.msra.mxu0 %v629
  %1599 = vmatprep.subr.bf16.mxu0 %v687
  %1600 = vmatpush1.bf16.msra.mxu0 %v686
  %1601 = vmatprep.subr.bf16.mxu0 %v975
  %1602 = vmatpush1.bf16.msra.mxu0 %v972
  %1603 = vmatprep.subr.bf16.mxu0 0
  %1604 = vmatpush1.bf16.msra.mxu0 0
  %1605 = vmatprep.subr.bf16.mxu0 0
  %1606 = vmatpush1.bf16.msra.mxu0 0
  %1607 = vmatprep.subr.bf16.mxu0 0
  %1608 = vmatpush1.bf16.msra.mxu0 0
  %1609 = vmatprep.subr.bf16.mxu0 0
  %1610 = vmatpush1.bf16.msra.mxu0 0
  %1611 = vmatprep.subr.bf16.mxu0 0
  %1612 = vmatpush1.bf16.msra.mxu0 0
  %1613 = vmatprep.subr.bf16.mxu0 0
  %1614 = vmatpush1.bf16.msra.mxu0 0
  %1615 = vmatprep.subr.bf16.mxu0 0
  %1616 = vmatpush1.bf16.msra.mxu0 0
  %1617 = vmatprep.subr.bf16.mxu0 0
  %1618 = vmatpush1.bf16.msra.mxu0 0
  %1619 = vmatprep.subr.bf16.mxu0 0
  %1620 = vmatpush1.bf16.msra.mxu0 0
  %1621 = vmatprep.subr.bf16.mxu0 0
  %1622 = vmatpush1.bf16.msra.mxu0 0
  %1623 = vmatprep.subr.bf16.mxu0 0
  %1624 = vmatpush1.bf16.msra.mxu0 0
  %1625 = vmatprep.subr.bf16.mxu0 0
  %1626 = vmatpush1.bf16.msra.mxu0 0
  %1627 = vmatprep.subr.bf16.mxu0 0
  %1628 = vmatpush1.bf16.msra.mxu0 0
  %1629 = vmatprep.mubr.bf16.mxu0 0
  %1630 = vmatmul.mubr.bf16.gmra.mrb[0].mxu0 %v890
  %v1631 = vpop.f32.mrb[0].mxu0
  %v1632 = vadd.f32 %v172, %v1631
  %v1633 = vpop.f32.mrb[0].mxu0
  %v1634 = vadd.f32 %v172, %v1633
  %v1635 = vpop.f32.mrb[0].mxu0
  %v1636 = vpop.f32.mrb[0].mxu0
  %1637 = vdwg.mxu0
  %1638 = vmatprep.subr.bf16.mxu0 %v632
  %1639 = vmatpush1.bf16.msra.mxu0 %v631
  %1640 = vmatprep.subr.bf16.mxu0 %v689
  %1641 = vmatpush1.bf16.msra.mxu0 %v688
  %1642 = vmatprep.subr.bf16.mxu0 %v981
  %1643 = vmatpush1.bf16.msra.mxu0 %v978
  %1644 = vmatprep.subr.bf16.mxu0 0
  %1645 = vmatpush1.bf16.msra.mxu0 0
  %1646 = vmatprep.subr.bf16.mxu0 0
  %1647 = vmatpush1.bf16.msra.mxu0 0
  %1648 = vmatprep.subr.bf16.mxu0 0
  %1649 = vmatpush1.bf16.msra.mxu0 0
  %1650 = vmatprep.subr.bf16.mxu0 0
  %1651 = vmatpush1.bf16.msra.mxu0 0
  %1652 = vmatprep.subr.bf16.mxu0 0
  %1653 = vmatpush1.bf16.msra.mxu0 0
  %1654 = vmatprep.subr.bf16.mxu0 0
  %1655 = vmatpush1.bf16.msra.mxu0 0
  %1656 = vmatprep.subr.bf16.mxu0 0
  %1657 = vmatpush1.bf16.msra.mxu0 0
  %1658 = vmatprep.subr.bf16.mxu0 0
  %1659 = vmatpush1.bf16.msra.mxu0 0
  %1660 = vmatprep.subr.bf16.mxu0 0
  %1661 = vmatpush1.bf16.msra.mxu0 0
  %1662 = vmatprep.subr.bf16.mxu0 0
  %1663 = vmatpush1.bf16.msra.mxu0 0
  %1664 = vmatprep.subr.bf16.mxu0 0
  %1665 = vmatpush1.bf16.msra.mxu0 0
  %1666 = vmatprep.subr.bf16.mxu0 0
  %1667 = vmatpush1.bf16.msra.mxu0 0
  %1668 = vmatprep.subr.bf16.mxu0 0
  %1669 = vmatpush1.bf16.msra.mxu0 0
  %1670 = vmatprep.mubr.bf16.mxu0 0
  %1671 = vmatmul.mubr.bf16.gmra.mrb[0].mxu0 %v890
  %v1672 = vpop.f32.mrb[0].mxu0
  %v1673 = vadd.f32 %v172, %v1672
  %v1674 = vpop.f32.mrb[0].mxu0
  %v1675 = vadd.f32 %v172, %v1674
  %v1676 = vpop.f32.mrb[0].mxu0
  %v1677 = vpop.f32.mrb[0].mxu0
  %1678 = vdwg.mxu0
  %1679 = vmatprep.subr.bf16.mxu0 %v634
  %1680 = vmatpush1.bf16.msra.mxu0 %v633
  %1681 = vmatprep.subr.bf16.mxu0 %v691
  %1682 = vmatpush1.bf16.msra.mxu0 %v690
  %1683 = vmatprep.subr.bf16.mxu0 %v987
  %1684 = vmatpush1.bf16.msra.mxu0 %v984
  %1685 = vmatprep.subr.bf16.mxu0 0
  %1686 = vmatpush1.bf16.msra.mxu0 0
  %1687 = vmatprep.subr.bf16.mxu0 0
  %1688 = vmatpush1.bf16.msra.mxu0 0
  %1689 = vmatprep.subr.bf16.mxu0 0
  %1690 = vmatpush1.bf16.msra.mxu0 0
  %1691 = vmatprep.subr.bf16.mxu0 0
  %1692 = vmatpush1.bf16.msra.mxu0 0
  %1693 = vmatprep.subr.bf16.mxu0 0
  %1694 = vmatpush1.bf16.msra.mxu0 0
  %1695 = vmatprep.subr.bf16.mxu0 0
  %1696 = vmatpush1.bf16.msra.mxu0 0
  %1697 = vmatprep.subr.bf16.mxu0 0
  %1698 = vmatpush1.bf16.msra.mxu0 0
  %1699 = vmatprep.subr.bf16.mxu0 0
  %1700 = vmatpush1.bf16.msra.mxu0 0
  %1701 = vmatprep.subr.bf16.mxu0 0
  %1702 = vmatpush1.bf16.msra.mxu0 0
  %1703 = vmatprep.subr.bf16.mxu0 0
  %1704 = vmatpush1.bf16.msra.mxu0 0
  %1705 = vmatprep.subr.bf16.mxu0 0
  %1706 = vmatpush1.bf16.msra.mxu0 0
  %1707 = vmatprep.subr.bf16.mxu0 0
  %1708 = vmatpush1.bf16.msra.mxu0 0
  %1709 = vmatprep.subr.bf16.mxu0 0
  %1710 = vmatpush1.bf16.msra.mxu0 0
  %1711 = vmatprep.mubr.bf16.mxu0 0
  %1712 = vmatmul.mubr.bf16.gmra.mrb[0].mxu0 %v890
  %v1713 = vpop.f32.mrb[0].mxu0
  %v1714 = vadd.f32 %v172, %v1713
  %v1715 = vpop.f32.mrb[0].mxu0
  %v1716 = vadd.f32 %v172, %v1715
  %v1717 = vpop.f32.mrb[0].mxu0
  %v1718 = vpop.f32.mrb[0].mxu0
  %1719 = vdwg.mxu0
  %1720 = vmatprep.subr.bf16.mxu0 %v636
  %1721 = vmatpush1.bf16.msra.mxu0 %v635
  %1722 = vmatprep.subr.bf16.mxu0 %v693
  %1723 = vmatpush1.bf16.msra.mxu0 %v692
  %1724 = vmatprep.subr.bf16.mxu0 %v993
  %1725 = vmatpush1.bf16.msra.mxu0 %v990
  %1726 = vmatprep.subr.bf16.mxu0 0
  %1727 = vmatpush1.bf16.msra.mxu0 0
  %1728 = vmatprep.subr.bf16.mxu0 0
  %1729 = vmatpush1.bf16.msra.mxu0 0
  %1730 = vmatprep.subr.bf16.mxu0 0
  %1731 = vmatpush1.bf16.msra.mxu0 0
  %1732 = vmatprep.subr.bf16.mxu0 0
  %1733 = vmatpush1.bf16.msra.mxu0 0
  %1734 = vmatprep.subr.bf16.mxu0 0
  %1735 = vmatpush1.bf16.msra.mxu0 0
  %1736 = vmatprep.subr.bf16.mxu0 0
  %1737 = vmatpush1.bf16.msra.mxu0 0
  %1738 = vmatprep.subr.bf16.mxu0 0
  %1739 = vmatpush1.bf16.msra.mxu0 0
  %1740 = vmatprep.subr.bf16.mxu0 0
  %1741 = vmatpush1.bf16.msra.mxu0 0
  %1742 = vmatprep.subr.bf16.mxu0 0
  %1743 = vmatpush1.bf16.msra.mxu0 0
  %1744 = vmatprep.subr.bf16.mxu0 0
  %1745 = vmatpush1.bf16.msra.mxu0 0
  %1746 = vmatprep.subr.bf16.mxu0 0
  %1747 = vmatpush1.bf16.msra.mxu0 0
  %1748 = vmatprep.subr.bf16.mxu0 0
  %1749 = vmatpush1.bf16.msra.mxu0 0
  %1750 = vmatprep.subr.bf16.mxu0 0
  %1751 = vmatpush1.bf16.msra.mxu0 0
  %1752 = vmatprep.mubr.bf16.mxu0 0
  %1753 = vmatmul.mubr.bf16.gmra.mrb[0].mxu0 %v890
  %v1754 = vpop.f32.mrb[0].mxu0
  %v1755 = vadd.f32 %v172, %v1754
  %v1756 = vpop.f32.mrb[0].mxu0
  %v1757 = vadd.f32 %v172, %v1756
  %v1758 = vpop.f32.mrb[0].mxu0
  %v1759 = vpop.f32.mrb[0].mxu0
  %1760 = vdwg.mxu0
  %1761 = vmatprep.subr.bf16.mxu0 %v638
  %1762 = vmatpush1.bf16.msra.mxu0 %v637
  %1763 = vmatprep.subr.bf16.mxu0 %v695
  %1764 = vmatpush1.bf16.msra.mxu0 %v694
  %1765 = vmatprep.subr.bf16.mxu0 %v999
  %1766 = vmatpush1.bf16.msra.mxu0 %v996
  %1767 = vmatprep.subr.bf16.mxu0 0
  %1768 = vmatpush1.bf16.msra.mxu0 0
  %1769 = vmatprep.subr.bf16.mxu0 0
  %1770 = vmatpush1.bf16.msra.mxu0 0
  %1771 = vmatprep.subr.bf16.mxu0 0
  %1772 = vmatpush1.bf16.msra.mxu0 0
  %1773 = vmatprep.subr.bf16.mxu0 0
  %1774 = vmatpush1.bf16.msra.mxu0 0
  %1775 = vmatprep.subr.bf16.mxu0 0
  %1776 = vmatpush1.bf16.msra.mxu0 0
  %1777 = vmatprep.subr.bf16.mxu0 0
  %1778 = vmatpush1.bf16.msra.mxu0 0
  %1779 = vmatprep.subr.bf16.mxu0 0
  %1780 = vmatpush1.bf16.msra.mxu0 0
  %1781 = vmatprep.subr.bf16.mxu0 0
  %1782 = vmatpush1.bf16.msra.mxu0 0
  %1783 = vmatprep.subr.bf16.mxu0 0
  %1784 = vmatpush1.bf16.msra.mxu0 0
  %1785 = vmatprep.subr.bf16.mxu0 0
  %1786 = vmatpush1.bf16.msra.mxu0 0
  %1787 = vmatprep.subr.bf16.mxu0 0
  %1788 = vmatpush1.bf16.msra.mxu0 0
  %1789 = vmatprep.subr.bf16.mxu0 0
  %1790 = vmatpush1.bf16.msra.mxu0 0
  %1791 = vmatprep.subr.bf16.mxu0 0
  %1792 = vmatpush1.bf16.msra.mxu0 0
  %1793 = vmatprep.mubr.bf16.mxu0 0
  %1794 = vmatmul.mubr.bf16.gmra.mrb[0].mxu0 %v890
  %v1795 = vpop.f32.mrb[0].mxu0
  %v1796 = vadd.f32 %v172, %v1795
  %v1797 = vpop.f32.mrb[0].mxu0
  %v1798 = vadd.f32 %v172, %v1797
  %v1799 = vpop.f32.mrb[0].mxu0
  %v1800 = vpop.f32.mrb[0].mxu0
  %1801 = vdwg.mxu0
  %1802 = vmatprep.subr.bf16.mxu0 %v640
  %1803 = vmatpush1.bf16.msra.mxu0 %v639
  %1804 = vmatprep.subr.bf16.mxu0 %v697
  %1805 = vmatpush1.bf16.msra.mxu0 %v696
  %1806 = vmatprep.subr.bf16.mxu0 %v1005
  %1807 = vmatpush1.bf16.msra.mxu0 %v1002
  %1808 = vmatprep.subr.bf16.mxu0 0
  %1809 = vmatpush1.bf16.msra.mxu0 0
  %1810 = vmatprep.subr.bf16.mxu0 0
  %1811 = vmatpush1.bf16.msra.mxu0 0
  %1812 = vmatprep.subr.bf16.mxu0 0
  %1813 = vmatpush1.bf16.msra.mxu0 0
  %1814 = vmatprep.subr.bf16.mxu0 0
  %1815 = vmatpush1.bf16.msra.mxu0 0
  %1816 = vmatprep.subr.bf16.mxu0 0
  %1817 = vmatpush1.bf16.msra.mxu0 0
  %1818 = vmatprep.subr.bf16.mxu0 0
  %1819 = vmatpush1.bf16.msra.mxu0 0
  %1820 = vmatprep.subr.bf16.mxu0 0
  %1821 = vmatpush1.bf16.msra.mxu0 0
  %1822 = vmatprep.subr.bf16.mxu0 0
  %1823 = vmatpush1.bf16.msra.mxu0 0
  %1824 = vmatprep.subr.bf16.mxu0 0
  %1825 = vmatpush1.bf16.msra.mxu0 0
  %1826 = vmatprep.subr.bf16.mxu0 0
  %1827 = vmatpush1.bf16.msra.mxu0 0
  %1828 = vmatprep.subr.bf16.mxu0 0
  %1829 = vmatpush1.bf16.msra.mxu0 0
  %1830 = vmatprep.subr.bf16.mxu0 0
  %1831 = vmatpush1.bf16.msra.mxu0 0
  %1832 = vmatprep.subr.bf16.mxu0 0
  %1833 = vmatpush1.bf16.msra.mxu0 0
  %1834 = vmatprep.mubr.bf16.mxu0 0
  %1835 = vmatmul.mubr.bf16.gmra.mrb[0].mxu0 %v890
  %v1836 = vpop.f32.mrb[0].mxu0
  %v1837 = vadd.f32 %v172, %v1836
  %v1838 = vpop.f32.mrb[0].mxu0
  %v1839 = vadd.f32 %v172, %v1838
  %v1840 = vpop.f32.mrb[0].mxu0
  %v1841 = vpop.f32.mrb[0].mxu0
  %1842 = vdwg.mxu0
  %1843 = vmatprep.subr.bf16.mxu0 %v642
  %1844 = vmatpush1.bf16.msra.mxu0 %v641
  %1845 = vmatprep.subr.bf16.mxu0 %v699
  %1846 = vmatpush1.bf16.msra.mxu0 %v698
  %1847 = vmatprep.subr.bf16.mxu0 %v1011
  %1848 = vmatpush1.bf16.msra.mxu0 %v1008
  %1849 = vmatprep.subr.bf16.mxu0 0
  %1850 = vmatpush1.bf16.msra.mxu0 0
  %1851 = vmatprep.subr.bf16.mxu0 0
  %1852 = vmatpush1.bf16.msra.mxu0 0
  %1853 = vmatprep.subr.bf16.mxu0 0
  %1854 = vmatpush1.bf16.msra.mxu0 0
  %1855 = vmatprep.subr.bf16.mxu0 0
  %1856 = vmatpush1.bf16.msra.mxu0 0
  %1857 = vmatprep.subr.bf16.mxu0 0
  %1858 = vmatpush1.bf16.msra.mxu0 0
  %1859 = vmatprep.subr.bf16.mxu0 0
  %1860 = vmatpush1.bf16.msra.mxu0 0
  %1861 = vmatprep.subr.bf16.mxu0 0
  %1862 = vmatpush1.bf16.msra.mxu0 0
  %1863 = vmatprep.subr.bf16.mxu0 0
  %1864 = vmatpush1.bf16.msra.mxu0 0
  %1865 = vmatprep.subr.bf16.mxu0 0
  %1866 = vmatpush1.bf16.msra.mxu0 0
  %1867 = vmatprep.subr.bf16.mxu0 0
  %1868 = vmatpush1.bf16.msra.mxu0 0
  %1869 = vmatprep.subr.bf16.mxu0 0
  %1870 = vmatpush1.bf16.msra.mxu0 0
  %1871 = vmatprep.subr.bf16.mxu0 0
  %1872 = vmatpush1.bf16.msra.mxu0 0
  %1873 = vmatprep.subr.bf16.mxu0 0
  %1874 = vmatpush1.bf16.msra.mxu0 0
  %1875 = vmatprep.mubr.bf16.mxu0 0
  %1876 = vmatmul.mubr.bf16.gmra.mrb[0].mxu0 %v890
  %v1877 = vpop.f32.mrb[0].mxu0
  %v1878 = vadd.f32 %v172, %v1877
  %v1879 = vpop.f32.mrb[0].mxu0
  %v1880 = vadd.f32 %v172, %v1879
  %v1881 = vpop.f32.mrb[0].mxu0
  %v1882 = vpop.f32.mrb[0].mxu0
  %1883 = vdwg.mxu0
  %1884 = vmatprep.subr.bf16.mxu0 %v644
  %1885 = vmatpush1.bf16.msra.mxu0 %v643
  %1886 = vmatprep.subr.bf16.mxu0 %v701
  %1887 = vmatpush1.bf16.msra.mxu0 %v700
  %1888 = vmatprep.subr.bf16.mxu0 %v1017
  %1889 = vmatpush1.bf16.msra.mxu0 %v1014
  %1890 = vmatprep.subr.bf16.mxu0 0
  %1891 = vmatpush1.bf16.msra.mxu0 0
  %1892 = vmatprep.subr.bf16.mxu0 0
  %1893 = vmatpush1.bf16.msra.mxu0 0
  %1894 = vmatprep.subr.bf16.mxu0 0
  %1895 = vmatpush1.bf16.msra.mxu0 0
  %1896 = vmatprep.subr.bf16.mxu0 0
  %1897 = vmatpush1.bf16.msra.mxu0 0
  %1898 = vmatprep.subr.bf16.mxu0 0
  %1899 = vmatpush1.bf16.msra.mxu0 0
  %1900 = vmatprep.subr.bf16.mxu0 0
  %1901 = vmatpush1.bf16.msra.mxu0 0
  %1902 = vmatprep.subr.bf16.mxu0 0
  %1903 = vmatpush1.bf16.msra.mxu0 0
  %1904 = vmatprep.subr.bf16.mxu0 0
  %1905 = vmatpush1.bf16.msra.mxu0 0
  %1906 = vmatprep.subr.bf16.mxu0 0
  %1907 = vmatpush1.bf16.msra.mxu0 0
  %1908 = vmatprep.subr.bf16.mxu0 0
  %1909 = vmatpush1.bf16.msra.mxu0 0
  %1910 = vmatprep.subr.bf16.mxu0 0
  %1911 = vmatpush1.bf16.msra.mxu0 0
  %1912 = vmatprep.subr.bf16.mxu0 0
  %1913 = vmatpush1.bf16.msra.mxu0 0
  %1914 = vmatprep.subr.bf16.mxu0 0
  %1915 = vmatpush1.bf16.msra.mxu0 0
  %1916 = vmatprep.mubr.bf16.mxu0 0
  %1917 = vmatmul.mubr.bf16.gmra.mrb[0].mxu0 %v890
  %v1918 = vpop.f32.mrb[0].mxu0
  %v1919 = vadd.f32 %v172, %v1918
  %v1920 = vpop.f32.mrb[0].mxu0
  %v1921 = vadd.f32 %v172, %v1920
  %v1922 = vpop.f32.mrb[0].mxu0
  %v1923 = vpop.f32.mrb[0].mxu0
  %1924 = vdwg.mxu0
  %1925 = vmatprep.subr.bf16.mxu0 %v646
  %1926 = vmatpush1.bf16.msra.mxu0 %v645
  %1927 = vmatprep.subr.bf16.mxu0 %v703
  %1928 = vmatpush1.bf16.msra.mxu0 %v702
  %1929 = vmatprep.subr.bf16.mxu0 %v1023
  %1930 = vmatpush1.bf16.msra.mxu0 %v1020
  %1931 = vmatprep.subr.bf16.mxu0 0
  %1932 = vmatpush1.bf16.msra.mxu0 0
  %1933 = vmatprep.subr.bf16.mxu0 0
  %1934 = vmatpush1.bf16.msra.mxu0 0
  %1935 = vmatprep.subr.bf16.mxu0 0
  %1936 = vmatpush1.bf16.msra.mxu0 0
  %1937 = vmatprep.subr.bf16.mxu0 0
  %1938 = vmatpush1.bf16.msra.mxu0 0
  %1939 = vmatprep.subr.bf16.mxu0 0
  %1940 = vmatpush1.bf16.msra.mxu0 0
  %1941 = vmatprep.subr.bf16.mxu0 0
  %1942 = vmatpush1.bf16.msra.mxu0 0
  %1943 = vmatprep.subr.bf16.mxu0 0
  %1944 = vmatpush1.bf16.msra.mxu0 0
  %1945 = vmatprep.subr.bf16.mxu0 0
  %1946 = vmatpush1.bf16.msra.mxu0 0
  %1947 = vmatprep.subr.bf16.mxu0 0
  %1948 = vmatpush1.bf16.msra.mxu0 0
  %1949 = vmatprep.subr.bf16.mxu0 0
  %1950 = vmatpush1.bf16.msra.mxu0 0
  %1951 = vmatprep.subr.bf16.mxu0 0
  %1952 = vmatpush1.bf16.msra.mxu0 0
  %1953 = vmatprep.subr.bf16.mxu0 0
  %1954 = vmatpush1.bf16.msra.mxu0 0
  %1955 = vmatprep.subr.bf16.mxu0 0
  %1956 = vmatpush1.bf16.msra.mxu0 0
  %1957 = vmatprep.mubr.bf16.mxu0 0
  %1958 = vmatmul.mubr.bf16.gmra.mrb[0].mxu0 %v890
  %v1959 = vpop.f32.mrb[0].mxu0
  %v1960 = vadd.f32 %v172, %v1959
  %v1961 = vpop.f32.mrb[0].mxu0
  %v1962 = vadd.f32 %v172, %v1961
  %v1963 = vpop.f32.mrb[0].mxu0
  %v1964 = vpop.f32.mrb[0].mxu0
  %1965 = vdwg.mxu0
  %1966 = vmatprep.subr.bf16.mxu0 %v648
  %1967 = vmatpush1.bf16.msra.mxu0 %v647
  %1968 = vmatprep.subr.bf16.mxu0 %v705
  %1969 = vmatpush1.bf16.msra.mxu0 %v704
  %1970 = vmatprep.subr.bf16.mxu0 %v1029
  %1971 = vmatpush1.bf16.msra.mxu0 %v1026
  %1972 = vmatprep.subr.bf16.mxu0 0
  %1973 = vmatpush1.bf16.msra.mxu0 0
  %1974 = vmatprep.subr.bf16.mxu0 0
  %1975 = vmatpush1.bf16.msra.mxu0 0
  %1976 = vmatprep.subr.bf16.mxu0 0
  %1977 = vmatpush1.bf16.msra.mxu0 0
  %1978 = vmatprep.subr.bf16.mxu0 0
  %1979 = vmatpush1.bf16.msra.mxu0 0
  %1980 = vmatprep.subr.bf16.mxu0 0
  %1981 = vmatpush1.bf16.msra.mxu0 0
  %1982 = vmatprep.subr.bf16.mxu0 0
  %1983 = vmatpush1.bf16.msra.mxu0 0
  %1984 = vmatprep.subr.bf16.mxu0 0
  %1985 = vmatpush1.bf16.msra.mxu0 0
  %1986 = vmatprep.subr.bf16.mxu0 0
  %1987 = vmatpush1.bf16.msra.mxu0 0
  %1988 = vmatprep.subr.bf16.mxu0 0
  %1989 = vmatpush1.bf16.msra.mxu0 0
  %1990 = vmatprep.subr.bf16.mxu0 0
  %1991 = vmatpush1.bf16.msra.mxu0 0
  %1992 = vmatprep.subr.bf16.mxu0 0
  %1993 = vmatpush1.bf16.msra.mxu0 0
  %1994 = vmatprep.subr.bf16.mxu0 0
  %1995 = vmatpush1.bf16.msra.mxu0 0
  %1996 = vmatprep.subr.bf16.mxu0 0
  %1997 = vmatpush1.bf16.msra.mxu0 0
  %1998 = vmatprep.mubr.bf16.mxu0 0
  %1999 = vmatmul.mubr.bf16.gmra.mrb[0].mxu0 %v890
  %v2000 = vpop.f32.mrb[0].mxu0
  %v2001 = vadd.f32 %v172, %v2000
  %v2002 = vpop.f32.mrb[0].mxu0
  %v2003 = vadd.f32 %v172, %v2002
  %v2004 = vpop.f32.mrb[0].mxu0
  %v2005 = vpop.f32.mrb[0].mxu0
  %2006 = vdwg.mxu0
  %2007 = vmatprep.subr.bf16.mxu0 %v650
  %2008 = vmatpush1.bf16.msra.mxu0 %v649
  %2009 = vmatprep.subr.bf16.mxu0 %v707
  %2010 = vmatpush1.bf16.msra.mxu0 %v706
  %2011 = vmatprep.subr.bf16.mxu0 %v1035
  %2012 = vmatpush1.bf16.msra.mxu0 %v1032
  %2013 = vmatprep.subr.bf16.mxu0 0
  %2014 = vmatpush1.bf16.msra.mxu0 0
  %2015 = vmatprep.subr.bf16.mxu0 0
  %2016 = vmatpush1.bf16.msra.mxu0 0
  %2017 = vmatprep.subr.bf16.mxu0 0
  %2018 = vmatpush1.bf16.msra.mxu0 0
  %2019 = vmatprep.subr.bf16.mxu0 0
  %2020 = vmatpush1.bf16.msra.mxu0 0
  %2021 = vmatprep.subr.bf16.mxu0 0
  %2022 = vmatpush1.bf16.msra.mxu0 0
  %2023 = vmatprep.subr.bf16.mxu0 0
  %2024 = vmatpush1.bf16.msra.mxu0 0
  %2025 = vmatprep.subr.bf16.mxu0 0
  %2026 = vmatpush1.bf16.msra.mxu0 0
  %2027 = vmatprep.subr.bf16.mxu0 0
  %2028 = vmatpush1.bf16.msra.mxu0 0
  %2029 = vmatprep.subr.bf16.mxu0 0
  %2030 = vmatpush1.bf16.msra.mxu0 0
  %2031 = vmatprep.subr.bf16.mxu0 0
  %2032 = vmatpush1.bf16.msra.mxu0 0
  %2033 = vmatprep.subr.bf16.mxu0 0
  %2034 = vmatpush1.bf16.msra.mxu0 0
  %2035 = vmatprep.subr.bf16.mxu0 0
  %2036 = vmatpush1.bf16.msra.mxu0 0
  %2037 = vmatprep.subr.bf16.mxu0 0
  %2038 = vmatpush1.bf16.msra.mxu0 0
  %2039 = vmatprep.mubr.bf16.mxu0 0
  %2040 = vmatmul.mubr.bf16.gmra.mrb[0].mxu0 %v890
  %v2041 = vpop.f32.mrb[0].mxu0
  %v2042 = vadd.f32 %v172, %v2041
  %v2043 = vpop.f32.mrb[0].mxu0
  %v2044 = vadd.f32 %v172, %v2043
  %v2045 = vpop.f32.mrb[0].mxu0
  %v2046 = vpop.f32.mrb[0].mxu0
  %2047 = vdwg.mxu0
  %2048 = vmatprep.subr.bf16.mxu0 %v652
  %2049 = vmatpush1.bf16.msra.mxu0 %v651
  %2050 = vmatprep.subr.bf16.mxu0 %v709
  %2051 = vmatpush1.bf16.msra.mxu0 %v708
  %2052 = vmatprep.subr.bf16.mxu0 %v1041
  %2053 = vmatpush1.bf16.msra.mxu0 %v1038
  %2054 = vmatprep.subr.bf16.mxu0 0
  %2055 = vmatpush1.bf16.msra.mxu0 0
  %2056 = vmatprep.subr.bf16.mxu0 0
  %2057 = vmatpush1.bf16.msra.mxu0 0
  %2058 = vmatprep.subr.bf16.mxu0 0
  %2059 = vmatpush1.bf16.msra.mxu0 0
  %2060 = vmatprep.subr.bf16.mxu0 0
  %2061 = vmatpush1.bf16.msra.mxu0 0
  %2062 = vmatprep.subr.bf16.mxu0 0
  %2063 = vmatpush1.bf16.msra.mxu0 0
  %2064 = vmatprep.subr.bf16.mxu0 0
  %2065 = vmatpush1.bf16.msra.mxu0 0
  %2066 = vmatprep.subr.bf16.mxu0 0
  %2067 = vmatpush1.bf16.msra.mxu0 0
  %2068 = vmatprep.subr.bf16.mxu0 0
  %2069 = vmatpush1.bf16.msra.mxu0 0
  %2070 = vmatprep.subr.bf16.mxu0 0
  %2071 = vmatpush1.bf16.msra.mxu0 0
  %2072 = vmatprep.subr.bf16.mxu0 0
  %2073 = vmatpush1.bf16.msra.mxu0 0
  %2074 = vmatprep.subr.bf16.mxu0 0
  %2075 = vmatpush1.bf16.msra.mxu0 0
  %2076 = vmatprep.subr.bf16.mxu0 0
  %2077 = vmatpush1.bf16.msra.mxu0 0
  %2078 = vmatprep.subr.bf16.mxu0 0
  %2079 = vmatpush1.bf16.msra.mxu0 0
  %2080 = vmatprep.mubr.bf16.mxu0 0
  %2081 = vmatmul.mubr.bf16.gmra.mrb[0].mxu0 %v890
  %v2082 = vpop.f32.mrb[0].mxu0
  %v2083 = vadd.f32 %v172, %v2082
  %v2084 = vpop.f32.mrb[0].mxu0
  %v2085 = vadd.f32 %v172, %v2084
  %v2086 = vpop.f32.mrb[0].mxu0
  %v2087 = vpop.f32.mrb[0].mxu0
  %2088 = vdwg.mxu0
  %2089 = vmatprep.subr.bf16.mxu0 %v654
  %2090 = vmatpush1.bf16.msra.mxu0 %v653
  %2091 = vmatprep.subr.bf16.mxu0 %v711
  %2092 = vmatpush1.bf16.msra.mxu0 %v710
  %2093 = vmatprep.subr.bf16.mxu0 %v1047
  %2094 = vmatpush1.bf16.msra.mxu0 %v1044
  %2095 = vmatprep.subr.bf16.mxu0 0
  %2096 = vmatpush1.bf16.msra.mxu0 0
  %2097 = vmatprep.subr.bf16.mxu0 0
  %2098 = vmatpush1.bf16.msra.mxu0 0
  %2099 = vmatprep.subr.bf16.mxu0 0
  %2100 = vmatpush1.bf16.msra.mxu0 0
  %2101 = vmatprep.subr.bf16.mxu0 0
  %2102 = vmatpush1.bf16.msra.mxu0 0
  %2103 = vmatprep.subr.bf16.mxu0 0
  %2104 = vmatpush1.bf16.msra.mxu0 0
  %2105 = vmatprep.subr.bf16.mxu0 0
  %2106 = vmatpush1.bf16.msra.mxu0 0
  %2107 = vmatprep.subr.bf16.mxu0 0
  %2108 = vmatpush1.bf16.msra.mxu0 0
  %2109 = vmatprep.subr.bf16.mxu0 0
  %2110 = vmatpush1.bf16.msra.mxu0 0
  %2111 = vmatprep.subr.bf16.mxu0 0
  %2112 = vmatpush1.bf16.msra.mxu0 0
  %2113 = vmatprep.subr.bf16.mxu0 0
  %2114 = vmatpush1.bf16.msra.mxu0 0
  %2115 = vmatprep.subr.bf16.mxu0 0
  %2116 = vmatpush1.bf16.msra.mxu0 0
  %2117 = vmatprep.subr.bf16.mxu0 0
  %2118 = vmatpush1.bf16.msra.mxu0 0
  %2119 = vmatprep.subr.bf16.mxu0 0
  %2120 = vmatpush1.bf16.msra.mxu0 0
  %2121 = vmatprep.mubr.bf16.mxu0 0
  %2122 = vmatmul.mubr.bf16.gmra.mrb[0].mxu0 %v890
  %v2123 = vpop.f32.mrb[0].mxu0
  %v2124 = vadd.f32 %v172, %v2123
  %v2125 = vpop.f32.mrb[0].mxu0
  %v2126 = vadd.f32 %v172, %v2125
  %v2127 = vpop.f32.mrb[0].mxu0
  %v2128 = vpop.f32.mrb[0].mxu0
  %2129 = vdwg.mxu0
  %2130 = vmatprep.subr.bf16.mxu0 %v656
  %2131 = vmatpush1.bf16.msra.mxu0 %v655
  %2132 = vmatprep.subr.bf16.mxu0 %v713
  %2133 = vmatpush1.bf16.msra.mxu0 %v712
  %2134 = vmatprep.subr.bf16.mxu0 %v1053
  %2135 = vmatpush1.bf16.msra.mxu0 %v1050
  %2136 = vmatprep.subr.bf16.mxu0 0
  %2137 = vmatpush1.bf16.msra.mxu0 0
  %2138 = vmatprep.subr.bf16.mxu0 0
  %2139 = vmatpush1.bf16.msra.mxu0 0
  %2140 = vmatprep.subr.bf16.mxu0 0
  %2141 = vmatpush1.bf16.msra.mxu0 0
  %2142 = vmatprep.subr.bf16.mxu0 0
  %2143 = vmatpush1.bf16.msra.mxu0 0
  %2144 = vmatprep.subr.bf16.mxu0 0
  %2145 = vmatpush1.bf16.msra.mxu0 0
  %2146 = vmatprep.subr.bf16.mxu0 0
  %2147 = vmatpush1.bf16.msra.mxu0 0
  %2148 = vmatprep.subr.bf16.mxu0 0
  %2149 = vmatpush1.bf16.msra.mxu0 0
  %2150 = vmatprep.subr.bf16.mxu0 0
  %2151 = vmatpush1.bf16.msra.mxu0 0
  %2152 = vmatprep.subr.bf16.mxu0 0
  %2153 = vmatpush1.bf16.msra.mxu0 0
  %2154 = vmatprep.subr.bf16.mxu0 0
  %2155 = vmatpush1.bf16.msra.mxu0 0
  %2156 = vmatprep.subr.bf16.mxu0 0
  %2157 = vmatpush1.bf16.msra.mxu0 0
  %2158 = vmatprep.subr.bf16.mxu0 0
  %2159 = vmatpush1.bf16.msra.mxu0 0
  %2160 = vmatprep.subr.bf16.mxu0 0
  %2161 = vmatpush1.bf16.msra.mxu0 0
  %2162 = vmatprep.mubr.bf16.mxu0 0
  %2163 = vmatmul.mubr.bf16.gmra.mrb[0].mxu0 %v890
  %v2164 = vpop.f32.mrb[0].mxu0
  %v2165 = vadd.f32 %v172, %v2164
  %v2166 = vpop.f32.mrb[0].mxu0
  %v2167 = vadd.f32 %v172, %v2166
  %v2168 = vpop.f32.mrb[0].mxu0
  %v2169 = vpop.f32.mrb[0].mxu0
  %2170 = vdwg.mxu0
  %2171 = vmatprep.subr.bf16.mxu0 %v658
  %2172 = vmatpush1.bf16.msra.mxu0 %v657
  %2173 = vmatprep.subr.bf16.mxu0 %v715
  %2174 = vmatpush1.bf16.msra.mxu0 %v714
  %2175 = vmatprep.subr.bf16.mxu0 %v1059
  %2176 = vmatpush1.bf16.msra.mxu0 %v1056
  %2177 = vmatprep.subr.bf16.mxu0 0
  %2178 = vmatpush1.bf16.msra.mxu0 0
  %2179 = vmatprep.subr.bf16.mxu0 0
  %2180 = vmatpush1.bf16.msra.mxu0 0
  %2181 = vmatprep.subr.bf16.mxu0 0
  %2182 = vmatpush1.bf16.msra.mxu0 0
  %2183 = vmatprep.subr.bf16.mxu0 0
  %2184 = vmatpush1.bf16.msra.mxu0 0
  %2185 = vmatprep.subr.bf16.mxu0 0
  %2186 = vmatpush1.bf16.msra.mxu0 0
  %2187 = vmatprep.subr.bf16.mxu0 0
  %2188 = vmatpush1.bf16.msra.mxu0 0
  %2189 = vmatprep.subr.bf16.mxu0 0
  %2190 = vmatpush1.bf16.msra.mxu0 0
  %2191 = vmatprep.subr.bf16.mxu0 0
  %2192 = vmatpush1.bf16.msra.mxu0 0
  %2193 = vmatprep.subr.bf16.mxu0 0
  %2194 = vmatpush1.bf16.msra.mxu0 0
  %2195 = vmatprep.subr.bf16.mxu0 0
  %2196 = vmatpush1.bf16.msra.mxu0 0
  %2197 = vmatprep.subr.bf16.mxu0 0
  %2198 = vmatpush1.bf16.msra.mxu0 0
  %2199 = vmatprep.subr.bf16.mxu0 0
  %2200 = vmatpush1.bf16.msra.mxu0 0
  %2201 = vmatprep.subr.bf16.mxu0 0
  %2202 = vmatpush1.bf16.msra.mxu0 0
  %2203 = vmatprep.mubr.bf16.mxu0 0
  %2204 = vmatmul.mubr.bf16.gmra.mrb[0].mxu0 %v890
  %v2205 = vpop.f32.mrb[0].mxu0
  %v2206 = vadd.f32 %v172, %v2205
  %v2207 = vpop.f32.mrb[0].mxu0
  %v2208 = vadd.f32 %v172, %v2207
  %v2209 = vpop.f32.mrb[0].mxu0
  %v2210 = vpop.f32.mrb[0].mxu0
  %2211 = vdwg.mxu0
  %2212 = vmatprep.subr.bf16.mxu0 0
  %2213 = vmatpush1.bf16.msra.mxu0 %v659
  %2214 = vmatprep.subr.bf16.mxu0 0
  %2215 = vmatpush1.bf16.msra.mxu0 %v716
  %2216 = vmatprep.subr.bf16.mxu0 0
  %2217 = vmatpush1.bf16.msra.mxu0 %v1062
  %2218 = vmatprep.subr.bf16.mxu0 0
  %2219 = vmatpush1.bf16.msra.mxu0 0
  %2220 = vmatprep.subr.bf16.mxu0 0
  %2221 = vmatpush1.bf16.msra.mxu0 0
  %2222 = vmatprep.subr.bf16.mxu0 0
  %2223 = vmatpush1.bf16.msra.mxu0 0
  %2224 = vmatprep.subr.bf16.mxu0 0
  %2225 = vmatpush1.bf16.msra.mxu0 0
  %2226 = vmatprep.subr.bf16.mxu0 0
  %2227 = vmatpush1.bf16.msra.mxu0 0
  %2228 = vmatprep.subr.bf16.mxu0 0
  %2229 = vmatpush1.bf16.msra.mxu0 0
  %2230 = vmatprep.subr.bf16.mxu0 0
  %2231 = vmatpush1.bf16.msra.mxu0 0
  %2232 = vmatprep.subr.bf16.mxu0 0
  %2233 = vmatpush1.bf16.msra.mxu0 0
  %2234 = vmatprep.subr.bf16.mxu0 0
  %2235 = vmatpush1.bf16.msra.mxu0 0
  %2236 = vmatprep.subr.bf16.mxu0 0
  %2237 = vmatpush1.bf16.msra.mxu0 0
  %2238 = vmatprep.subr.bf16.mxu0 0
  %2239 = vmatpush1.bf16.msra.mxu0 0
  %2240 = vmatprep.subr.bf16.mxu0 0
  %2241 = vmatpush1.bf16.msra.mxu0 0
  %2242 = vmatprep.subr.bf16.mxu0 0
  %2243 = vmatpush1.bf16.msra.mxu0 0
  %2244 = vmatprep.mubr.bf16.mxu0 0
  %2245 = vmatmul.mubr.bf16.gmra.mrb[0].mxu0 %v890
  %v2246 = vpop.f32.mrb[0].mxu0
  %v2247 = vadd.f32 %v172, %v2246
  %v2248 = vpop.f32.mrb[0].mxu0
  %v2249 = vpop.f32.mrb[0].mxu0
  %v2250 = vpop.f32.mrb[0].mxu0
  %2251 = vdwg.mxu0
  %v2252 = vmul.f32 %v1099, 0.5
  %v2253 = vmul.f32 %v1101, 0.5
  %v2254 = vmul.f32 %v1140, 0.5
  %v2255 = vmul.f32 %v1142, 0.5
  %v2256 = vmul.f32 %v1181, 0.5
  %v2257 = vmul.f32 %v1183, 0.5
  %v2258 = vmul.f32 %v1222, 0.5
  %v2259 = vmul.f32 %v1224, 0.5
  %v2260 = vmul.f32 %v1263, 0.5
  %v2261 = vmul.f32 %v1265, 0.5
  %v2262 = vmul.f32 %v1304, 0.5
  %v2263 = vmul.f32 %v1306, 0.5
  %v2264 = vmul.f32 %v1345, 0.5
  %v2265 = vmul.f32 %v1347, 0.5
  %v2266 = vmul.f32 %v1386, 0.5
  %v2267 = vmul.f32 %v1388, 0.5
  %v2268 = vmul.f32 %v1427, 0.5
  %v2269 = vmul.f32 %v1429, 0.5
  %v2270 = vmul.f32 %v1468, 0.5
  %v2271 = vmul.f32 %v1470, 0.5
  %v2272 = vmul.f32 %v1509, 0.5
  %v2273 = vmul.f32 %v1511, 0.5
  %v2274 = vmul.f32 %v1550, 0.5
  %v2275 = vmul.f32 %v1552, 0.5
  %v2276 = vmul.f32 %v1591, 0.5
  %v2277 = vmul.f32 %v1593, 0.5
  %v2278 = vmul.f32 %v1632, 0.5
  %v2279 = vmul.f32 %v1634, 0.5
  %v2280 = vmul.f32 %v1673, 0.5
  %v2281 = vmul.f32 %v1675, 0.5
  %v2282 = vmul.f32 %v1714, 0.5
  %v2283 = vmul.f32 %v1716, 0.5
  %v2284 = vmul.f32 %v1755, 0.5
  %v2285 = vmul.f32 %v1757, 0.5
  %v2286 = vmul.f32 %v1796, 0.5
  %v2287 = vmul.f32 %v1798, 0.5
  %v2288 = vmul.f32 %v1837, 0.5
  %v2289 = vmul.f32 %v1839, 0.5
  %v2290 = vmul.f32 %v1878, 0.5
  %v2291 = vmul.f32 %v1880, 0.5
  %v2292 = vmul.f32 %v1919, 0.5
  %v2293 = vmul.f32 %v1921, 0.5
  %v2294 = vmul.f32 %v1960, 0.5
  %v2295 = vmul.f32 %v1962, 0.5
  %v2296 = vmul.f32 %v2001, 0.5
  %v2297 = vmul.f32 %v2003, 0.5
  %v2298 = vmul.f32 %v2042, 0.5
  %v2299 = vmul.f32 %v2044, 0.5
  %v2300 = vmul.f32 %v2083, 0.5
  %v2301 = vmul.f32 %v2085, 0.5
  %v2302 = vmul.f32 %v2124, 0.5
  %v2303 = vmul.f32 %v2126, 0.5
  %v2304 = vmul.f32 %v2165, 0.5
  %v2305 = vmul.f32 %v2167, 0.5
  %v2306 = vmul.f32 %v2206, 0.5
  %v2307 = vmul.f32 %v2208, 0.5
  %v2308 = vmul.f32 %v2247, 0.5
  %v2309 = vtanh.pop %v2252
  %v2310 = vtanh.pop %v2253
  %v2311 = vtanh.pop %v2254
  %v2312 = vtanh.pop %v2255
  %v2313 = vtanh.pop %v2256
  %v2314 = vtanh.pop %v2257
  %v2315 = vtanh.pop %v2258
  %v2316 = vtanh.pop %v2259
  %v2317 = vtanh.pop %v2260
  %v2318 = vtanh.pop %v2261
  %v2319 = vtanh.pop %v2262
  %v2320 = vtanh.pop %v2263
  %v2321 = vtanh.pop %v2264
  %v2322 = vtanh.pop %v2265
  %v2323 = vtanh.pop %v2266
  %v2324 = vtanh.pop %v2267
  %v2325 = vtanh.pop %v2268
  %v2326 = vtanh.pop %v2269
  %v2327 = vtanh.pop %v2270
  %v2328 = vtanh.pop %v2271
  %v2329 = vtanh.pop %v2272
  %v2330 = vtanh.pop %v2273
  %v2331 = vtanh.pop %v2274
  %v2332 = vtanh.pop %v2275
  %v2333 = vtanh.pop %v2276
  %v2334 = vtanh.pop %v2277
  %v2335 = vtanh.pop %v2278
  %v2336 = vtanh.pop %v2279
  %v2337 = vtanh.pop %v2280
  %v2338 = vtanh.pop %v2281
  %v2339 = vtanh.pop %v2282
  %v2340 = vtanh.pop %v2283
  %v2341 = vtanh.pop %v2284
  %v2342 = vtanh.pop %v2285
  %v2343 = vtanh.pop %v2286
  %v2344 = vtanh.pop %v2287
  %v2345 = vtanh.pop %v2288
  %v2346 = vtanh.pop %v2289
  %v2347 = vtanh.pop %v2290
  %v2348 = vtanh.pop %v2291
  %v2349 = vtanh.pop %v2292
  %v2350 = vtanh.pop %v2293
  %v2351 = vtanh.pop %v2294
  %v2352 = vtanh.pop %v2295
  %v2353 = vtanh.pop %v2296
  %v2354 = vtanh.pop %v2297
  %v2355 = vtanh.pop %v2298
  %v2356 = vtanh.pop %v2299
  %v2357 = vtanh.pop %v2300
  %v2358 = vtanh.pop %v2301
  %v2359 = vtanh.pop %v2302
  %v2360 = vtanh.pop %v2303
  %v2361 = vtanh.pop %v2304
  %v2362 = vtanh.pop %v2305
  %v2363 = vtanh.pop %v2306
  %v2364 = vtanh.pop %v2307
  %v2365 = vtanh.pop %v2308
  %v2366 = vadd.f32 %v2309, 1.0
  %v2367 = vadd.f32 %v2310, 1.0
  %v2368 = vadd.f32 %v2311, 1.0
  %v2369 = vadd.f32 %v2312, 1.0
  %v2370 = vadd.f32 %v2313, 1.0
  %v2371 = vadd.f32 %v2314, 1.0
  %v2372 = vadd.f32 %v2315, 1.0
  %v2373 = vadd.f32 %v2316, 1.0
  %v2374 = vadd.f32 %v2317, 1.0
  %v2375 = vadd.f32 %v2318, 1.0
  %v2376 = vadd.f32 %v2319, 1.0
  %v2377 = vadd.f32 %v2320, 1.0
  %v2378 = vadd.f32 %v2321, 1.0
  %v2379 = vadd.f32 %v2322, 1.0
  %v2380 = vadd.f32 %v2323, 1.0
  %v2381 = vadd.f32 %v2324, 1.0
  %v2382 = vadd.f32 %v2325, 1.0
  %v2383 = vadd.f32 %v2326, 1.0
  %v2384 = vadd.f32 %v2327, 1.0
  %v2385 = vadd.f32 %v2328, 1.0
  %v2386 = vadd.f32 %v2329, 1.0
  %v2387 = vadd.f32 %v2330, 1.0
  %v2388 = vadd.f32 %v2331, 1.0
  %v2389 = vadd.f32 %v2332, 1.0
  %v2390 = vadd.f32 %v2333, 1.0
  %v2391 = vadd.f32 %v2334, 1.0
  %v2392 = vadd.f32 %v2335, 1.0
  %v2393 = vadd.f32 %v2336, 1.0
  %v2394 = vadd.f32 %v2337, 1.0
  %v2395 = vadd.f32 %v2338, 1.0
  %v2396 = vadd.f32 %v2339, 1.0
  %v2397 = vadd.f32 %v2340, 1.0
  %v2398 = vadd.f32 %v2341, 1.0
  %v2399 = vadd.f32 %v2342, 1.0
  %v2400 = vadd.f32 %v2343, 1.0
  %v2401 = vadd.f32 %v2344, 1.0
  %v2402 = vadd.f32 %v2345, 1.0
  %v2403 = vadd.f32 %v2346, 1.0
  %v2404 = vadd.f32 %v2347, 1.0
  %v2405 = vadd.f32 %v2348, 1.0
  %v2406 = vadd.f32 %v2349, 1.0
  %v2407 = vadd.f32 %v2350, 1.0
  %v2408 = vadd.f32 %v2351, 1.0
  %v2409 = vadd.f32 %v2352, 1.0
  %v2410 = vadd.f32 %v2353, 1.0
  %v2411 = vadd.f32 %v2354, 1.0
  %v2412 = vadd.f32 %v2355, 1.0
  %v2413 = vadd.f32 %v2356, 1.0
  %v2414 = vadd.f32 %v2357, 1.0
  %v2415 = vadd.f32 %v2358, 1.0
  %v2416 = vadd.f32 %v2359, 1.0
  %v2417 = vadd.f32 %v2360, 1.0
  %v2418 = vadd.f32 %v2361, 1.0
  %v2419 = vadd.f32 %v2362, 1.0
  %v2420 = vadd.f32 %v2363, 1.0
  %v2421 = vadd.f32 %v2364, 1.0
  %v2422 = vadd.f32 %v2365, 1.0
  %v2423 = vmul.f32 %v2366, 0.5
  %v2424 = vmul.f32 %v2367, 0.5
  %v2425 = vmul.f32 %v2368, 0.5
  %v2426 = vmul.f32 %v2369, 0.5
  %v2427 = vmul.f32 %v2370, 0.5
  %v2428 = vmul.f32 %v2371, 0.5
  %v2429 = vmul.f32 %v2372, 0.5
  %v2430 = vmul.f32 %v2373, 0.5
  %v2431 = vmul.f32 %v2374, 0.5
  %v2432 = vmul.f32 %v2375, 0.5
  %v2433 = vmul.f32 %v2376, 0.5
  %v2434 = vmul.f32 %v2377, 0.5
  %v2435 = vmul.f32 %v2378, 0.5
  %v2436 = vmul.f32 %v2379, 0.5
  %v2437 = vmul.f32 %v2380, 0.5
  %v2438 = vmul.f32 %v2381, 0.5
  %v2439 = vmul.f32 %v2382, 0.5
  %v2440 = vmul.f32 %v2383, 0.5
  %v2441 = vmul.f32 %v2384, 0.5
  %v2442 = vmul.f32 %v2385, 0.5
  %v2443 = vmul.f32 %v2386, 0.5
  %v2444 = vmul.f32 %v2387, 0.5
  %v2445 = vmul.f32 %v2388, 0.5
  %v2446 = vmul.f32 %v2389, 0.5
  %v2447 = vmul.f32 %v2390, 0.5
  %v2448 = vmul.f32 %v2391, 0.5
  %v2449 = vmul.f32 %v2392, 0.5
  %v2450 = vmul.f32 %v2393, 0.5
  %v2451 = vmul.f32 %v2394, 0.5
  %v2452 = vmul.f32 %v2395, 0.5
  %v2453 = vmul.f32 %v2396, 0.5
  %v2454 = vmul.f32 %v2397, 0.5
  %v2455 = vmul.f32 %v2398, 0.5
  %v2456 = vmul.f32 %v2399, 0.5
  %v2457 = vmul.f32 %v2400, 0.5
  %v2458 = vmul.f32 %v2401, 0.5
  %v2459 = vmul.f32 %v2402, 0.5
  %v2460 = vmul.f32 %v2403, 0.5
  %v2461 = vmul.f32 %v2404, 0.5
  %v2462 = vmul.f32 %v2405, 0.5
  %v2463 = vmul.f32 %v2406, 0.5
  %v2464 = vmul.f32 %v2407, 0.5
  %v2465 = vmul.f32 %v2408, 0.5
  %v2466 = vmul.f32 %v2409, 0.5
  %v2467 = vmul.f32 %v2410, 0.5
  %v2468 = vmul.f32 %v2411, 0.5
  %v2469 = vmul.f32 %v2412, 0.5
  %v2470 = vmul.f32 %v2413, 0.5
  %v2471 = vmul.f32 %v2414, 0.5
  %v2472 = vmul.f32 %v2415, 0.5
  %v2473 = vmul.f32 %v2416, 0.5
  %v2474 = vmul.f32 %v2417, 0.5
  %v2475 = vmul.f32 %v2418, 0.5
  %v2476 = vmul.f32 %v2419, 0.5
  %v2477 = vmul.f32 %v2420, 0.5
  %v2478 = vmul.f32 %v2421, 0.5
  %v2479 = vmul.f32 %v2422, 0.5
  %v2537 = vcombine.low %v2423, %v2424
  %v2538 = vcombine.low %v2425, %v2426
  %v2539 = vcombine.low %v2427, %v2428
  %v2540 = vcombine.low %v2429, %v2430
  %v2542 = vunpack.c.l.s4 1966171168
  %v2543 = vunpack.c.0.s8 %v2542
  %v2544 = vlaneseq
  %v2545 = vshrl.u32 %v2544, 7
  %v2546 = vsub.s32 %v2543, %v2545
  %v2547 = vrot.slane %v2537, %v2546
  %v2549 = vunpack.c.l.s4 1966171168
  %v2550 = vunpack.c.0.s8 %v2549
  %v2551 = vlaneseq
  %v2552 = vshrl.u32 %v2551, 7
  %v2553 = vsub.s32 %v2550, %v2552
  %v2554 = vrot.slane %v2538, %v2553
  %v2556 = vunpack.c.l.s4 1966171168
  %v2557 = vunpack.c.0.s8 %v2556
  %v2558 = vlaneseq
  %v2559 = vshrl.u32 %v2558, 7
  %v2560 = vsub.s32 %v2557, %v2559
  %v2561 = vrot.slane %v2539, %v2560
  %v2563 = vunpack.c.l.s4 1966171168
  %v2564 = vunpack.c.0.s8 %v2563
  %v2565 = vlaneseq
  %v2566 = vshrl.u32 %v2565, 7
  %v2567 = vsub.s32 %v2564, %v2566
  %v2568 = vrot.slane %v2540, %v2567
  %v2569 = vcombine.low %v2547, %v2554
  %v2570 = vcombine.low %v2561, %v2568
  %v2572 = vunpack.c.l.s4 1966171168
  %v2573 = vunpack.c.0.s8 %v2572
  %v2574 = vlaneseq
  %v2575 = vshrl.u32 %v2574, 7
  %v2576 = vsub.s32 %v2573, %v2575
  %v2577 = vrot.slane %v2569, %v2576
  %v2579 = vunpack.c.l.s4 1966171168
  %v2580 = vunpack.c.0.s8 %v2579
  %v2581 = vlaneseq
  %v2582 = vshrl.u32 %v2581, 7
  %v2583 = vsub.s32 %v2580, %v2582
  %v2584 = vrot.slane %v2570, %v2583
  %v2585 = vcombine.low %v2577, %v2584
  %v2586 = vcombine.low %v2431, %v2432
  %v2587 = vcombine.low %v2433, %v2434
  %v2588 = vcombine.low %v2435, %v2436
  %v2589 = vcombine.low %v2437, %v2438
  %v2591 = vunpack.c.l.s4 1966171168
  %v2592 = vunpack.c.0.s8 %v2591
  %v2593 = vlaneseq
  %v2594 = vshrl.u32 %v2593, 7
  %v2595 = vsub.s32 %v2592, %v2594
  %v2596 = vrot.slane %v2586, %v2595
  %v2598 = vunpack.c.l.s4 1966171168
  %v2599 = vunpack.c.0.s8 %v2598
  %v2600 = vlaneseq
  %v2601 = vshrl.u32 %v2600, 7
  %v2602 = vsub.s32 %v2599, %v2601
  %v2603 = vrot.slane %v2587, %v2602
  %v2605 = vunpack.c.l.s4 1966171168
  %v2606 = vunpack.c.0.s8 %v2605
  %v2607 = vlaneseq
  %v2608 = vshrl.u32 %v2607, 7
  %v2609 = vsub.s32 %v2606, %v2608
  %v2610 = vrot.slane %v2588, %v2609
  %v2612 = vunpack.c.l.s4 1966171168
  %v2613 = vunpack.c.0.s8 %v2612
  %v2614 = vlaneseq
  %v2615 = vshrl.u32 %v2614, 7
  %v2616 = vsub.s32 %v2613, %v2615
  %v2617 = vrot.slane %v2589, %v2616
  %v2618 = vcombine.low %v2596, %v2603
  %v2619 = vcombine.low %v2610, %v2617
  %v2621 = vunpack.c.l.s4 1966171168
  %v2622 = vunpack.c.0.s8 %v2621
  %v2623 = vlaneseq
  %v2624 = vshrl.u32 %v2623, 7
  %v2625 = vsub.s32 %v2622, %v2624
  %v2626 = vrot.slane %v2618, %v2625
  %v2628 = vunpack.c.l.s4 1966171168
  %v2629 = vunpack.c.0.s8 %v2628
  %v2630 = vlaneseq
  %v2631 = vshrl.u32 %v2630, 7
  %v2632 = vsub.s32 %v2629, %v2631
  %v2633 = vrot.slane %v2619, %v2632
  %v2634 = vcombine.low %v2626, %v2633
  %v2635 = vcombine.low %v2439, %v2440
  %v2636 = vcombine.low %v2441, %v2442
  %v2637 = vcombine.low %v2443, %v2444
  %v2638 = vcombine.low %v2445, %v2446
  %v2640 = vunpack.c.l.s4 1966171168
  %v2641 = vunpack.c.0.s8 %v2640
  %v2642 = vlaneseq
  %v2643 = vshrl.u32 %v2642, 7
  %v2644 = vsub.s32 %v2641, %v2643
  %v2645 = vrot.slane %v2635, %v2644
  %v2647 = vunpack.c.l.s4 1966171168
  %v2648 = vunpack.c.0.s8 %v2647
  %v2649 = vlaneseq
  %v2650 = vshrl.u32 %v2649, 7
  %v2651 = vsub.s32 %v2648, %v2650
  %v2652 = vrot.slane %v2636, %v2651
  %v2654 = vunpack.c.l.s4 1966171168
  %v2655 = vunpack.c.0.s8 %v2654
  %v2656 = vlaneseq
  %v2657 = vshrl.u32 %v2656, 7
  %v2658 = vsub.s32 %v2655, %v2657
  %v2659 = vrot.slane %v2637, %v2658
  %v2661 = vunpack.c.l.s4 1966171168
  %v2662 = vunpack.c.0.s8 %v2661
  %v2663 = vlaneseq
  %v2664 = vshrl.u32 %v2663, 7
  %v2665 = vsub.s32 %v2662, %v2664
  %v2666 = vrot.slane %v2638, %v2665
  %v2667 = vcombine.low %v2645, %v2652
  %v2668 = vcombine.low %v2659, %v2666
  %v2670 = vunpack.c.l.s4 1966171168
  %v2671 = vunpack.c.0.s8 %v2670
  %v2672 = vlaneseq
  %v2673 = vshrl.u32 %v2672, 7
  %v2674 = vsub.s32 %v2671, %v2673
  %v2675 = vrot.slane %v2667, %v2674
  %v2677 = vunpack.c.l.s4 1966171168
  %v2678 = vunpack.c.0.s8 %v2677
  %v2679 = vlaneseq
  %v2680 = vshrl.u32 %v2679, 7
  %v2681 = vsub.s32 %v2678, %v2680
  %v2682 = vrot.slane %v2668, %v2681
  %v2683 = vcombine.low %v2675, %v2682
  %v2684 = vcombine.low %v2447, %v2448
  %v2685 = vcombine.low %v2449, %v2450
  %v2686 = vcombine.low %v2451, %v2452
  %v2687 = vcombine.low %v2453, %v2454
  %v2689 = vunpack.c.l.s4 1966171168
  %v2690 = vunpack.c.0.s8 %v2689
  %v2691 = vlaneseq
  %v2692 = vshrl.u32 %v2691, 7
  %v2693 = vsub.s32 %v2690, %v2692
  %v2694 = vrot.slane %v2684, %v2693
  %v2696 = vunpack.c.l.s4 1966171168
  %v2697 = vunpack.c.0.s8 %v2696
  %v2698 = vlaneseq
  %v2699 = vshrl.u32 %v2698, 7
  %v2700 = vsub.s32 %v2697, %v2699
  %v2701 = vrot.slane %v2685, %v2700
  %v2703 = vunpack.c.l.s4 1966171168
  %v2704 = vunpack.c.0.s8 %v2703
  %v2705 = vlaneseq
  %v2706 = vshrl.u32 %v2705, 7
  %v2707 = vsub.s32 %v2704, %v2706
  %v2708 = vrot.slane %v2686, %v2707
  %v2710 = vunpack.c.l.s4 1966171168
  %v2711 = vunpack.c.0.s8 %v2710
  %v2712 = vlaneseq
  %v2713 = vshrl.u32 %v2712, 7
  %v2714 = vsub.s32 %v2711, %v2713
  %v2715 = vrot.slane %v2687, %v2714
  %v2716 = vcombine.low %v2694, %v2701
  %v2717 = vcombine.low %v2708, %v2715
  %v2719 = vunpack.c.l.s4 1966171168
  %v2720 = vunpack.c.0.s8 %v2719
  %v2721 = vlaneseq
  %v2722 = vshrl.u32 %v2721, 7
  %v2723 = vsub.s32 %v2720, %v2722
  %v2724 = vrot.slane %v2716, %v2723
  %v2726 = vunpack.c.l.s4 1966171168
  %v2727 = vunpack.c.0.s8 %v2726
  %v2728 = vlaneseq
  %v2729 = vshrl.u32 %v2728, 7
  %v2730 = vsub.s32 %v2727, %v2729
  %v2731 = vrot.slane %v2717, %v2730
  %v2732 = vcombine.low %v2724, %v2731
  %v2733 = vcombine.low %v2455, %v2456
  %v2734 = vcombine.low %v2457, %v2458
  %v2735 = vcombine.low %v2459, %v2460
  %v2736 = vcombine.low %v2461, %v2462
  %v2738 = vunpack.c.l.s4 1966171168
  %v2739 = vunpack.c.0.s8 %v2738
  %v2740 = vlaneseq
  %v2741 = vshrl.u32 %v2740, 7
  %v2742 = vsub.s32 %v2739, %v2741
  %v2743 = vrot.slane %v2733, %v2742
  %v2745 = vunpack.c.l.s4 1966171168
  %v2746 = vunpack.c.0.s8 %v2745
  %v2747 = vlaneseq
  %v2748 = vshrl.u32 %v2747, 7
  %v2749 = vsub.s32 %v2746, %v2748
  %v2750 = vrot.slane %v2734, %v2749
  %v2752 = vunpack.c.l.s4 1966171168
  %v2753 = vunpack.c.0.s8 %v2752
  %v2754 = vlaneseq
  %v2755 = vshrl.u32 %v2754, 7
  %v2756 = vsub.s32 %v2753, %v2755
  %v2757 = vrot.slane %v2735, %v2756
  %v2759 = vunpack.c.l.s4 1966171168
  %v2760 = vunpack.c.0.s8 %v2759
  %v2761 = vlaneseq
  %v2762 = vshrl.u32 %v2761, 7
  %v2763 = vsub.s32 %v2760, %v2762
  %v2764 = vrot.slane %v2736, %v2763
  %v2765 = vcombine.low %v2743, %v2750
  %v2766 = vcombine.low %v2757, %v2764
  %v2768 = vunpack.c.l.s4 1966171168
  %v2769 = vunpack.c.0.s8 %v2768
  %v2770 = vlaneseq
  %v2771 = vshrl.u32 %v2770, 7
  %v2772 = vsub.s32 %v2769, %v2771
  %v2773 = vrot.slane %v2765, %v2772
  %v2775 = vunpack.c.l.s4 1966171168
  %v2776 = vunpack.c.0.s8 %v2775
  %v2777 = vlaneseq
  %v2778 = vshrl.u32 %v2777, 7
  %v2779 = vsub.s32 %v2776, %v2778
  %v2780 = vrot.slane %v2766, %v2779
  %v2781 = vcombine.low %v2773, %v2780
  %v2782 = vcombine.low %v2463, %v2464
  %v2783 = vcombine.low %v2465, %v2466
  %v2784 = vcombine.low %v2467, %v2468
  %v2785 = vcombine.low %v2469, %v2470
  %v2787 = vunpack.c.l.s4 1966171168
  %v2788 = vunpack.c.0.s8 %v2787
  %v2789 = vlaneseq
  %v2790 = vshrl.u32 %v2789, 7
  %v2791 = vsub.s32 %v2788, %v2790
  %v2792 = vrot.slane %v2782, %v2791
  %v2794 = vunpack.c.l.s4 1966171168
  %v2795 = vunpack.c.0.s8 %v2794
  %v2796 = vlaneseq
  %v2797 = vshrl.u32 %v2796, 7
  %v2798 = vsub.s32 %v2795, %v2797
  %v2799 = vrot.slane %v2783, %v2798
  %v2801 = vunpack.c.l.s4 1966171168
  %v2802 = vunpack.c.0.s8 %v2801
  %v2803 = vlaneseq
  %v2804 = vshrl.u32 %v2803, 7
  %v2805 = vsub.s32 %v2802, %v2804
  %v2806 = vrot.slane %v2784, %v2805
  %v2808 = vunpack.c.l.s4 1966171168
  %v2809 = vunpack.c.0.s8 %v2808
  %v2810 = vlaneseq
  %v2811 = vshrl.u32 %v2810, 7
  %v2812 = vsub.s32 %v2809, %v2811
  %v2813 = vrot.slane %v2785, %v2812
  %v2814 = vcombine.low %v2792, %v2799
  %v2815 = vcombine.low %v2806, %v2813
  %v2817 = vunpack.c.l.s4 1966171168
  %v2818 = vunpack.c.0.s8 %v2817
  %v2819 = vlaneseq
  %v2820 = vshrl.u32 %v2819, 7
  %v2821 = vsub.s32 %v2818, %v2820
  %v2822 = vrot.slane %v2814, %v2821
  %v2824 = vunpack.c.l.s4 1966171168
  %v2825 = vunpack.c.0.s8 %v2824
  %v2826 = vlaneseq
  %v2827 = vshrl.u32 %v2826, 7
  %v2828 = vsub.s32 %v2825, %v2827
  %v2829 = vrot.slane %v2815, %v2828
  %v2830 = vcombine.low %v2822, %v2829
  %v2831 = vcombine.low %v2471, %v2472
  %v2832 = vcombine.low %v2473, %v2474
  %v2833 = vcombine.low %v2475, %v2476
  %v2834 = vcombine.low %v2477, %v2478
  %v2836 = vunpack.c.l.s4 1966171168
  %v2837 = vunpack.c.0.s8 %v2836
  %v2838 = vlaneseq
  %v2839 = vshrl.u32 %v2838, 7
  %v2840 = vsub.s32 %v2837, %v2839
  %v2841 = vrot.slane %v2831, %v2840
  %v2843 = vunpack.c.l.s4 1966171168
  %v2844 = vunpack.c.0.s8 %v2843
  %v2845 = vlaneseq
  %v2846 = vshrl.u32 %v2845, 7
  %v2847 = vsub.s32 %v2844, %v2846
  %v2848 = vrot.slane %v2832, %v2847
  %v2850 = vunpack.c.l.s4 1966171168
  %v2851 = vunpack.c.0.s8 %v2850
  %v2852 = vlaneseq
  %v2853 = vshrl.u32 %v2852, 7
  %v2854 = vsub.s32 %v2851, %v2853
  %v2855 = vrot.slane %v2833, %v2854
  %v2857 = vunpack.c.l.s4 1966171168
  %v2858 = vunpack.c.0.s8 %v2857
  %v2859 = vlaneseq
  %v2860 = vshrl.u32 %v2859, 7
  %v2861 = vsub.s32 %v2858, %v2860
  %v2862 = vrot.slane %v2834, %v2861
  %v2863 = vcombine.low %v2841, %v2848
  %v2864 = vcombine.low %v2855, %v2862
  %v2866 = vunpack.c.l.s4 1966171168
  %v2867 = vunpack.c.0.s8 %v2866
  %v2868 = vlaneseq
  %v2869 = vshrl.u32 %v2868, 7
  %v2870 = vsub.s32 %v2867, %v2869
  %v2871 = vrot.slane %v2863, %v2870
  %v2873 = vunpack.c.l.s4 1966171168
  %v2874 = vunpack.c.0.s8 %v2873
  %v2875 = vlaneseq
  %v2876 = vshrl.u32 %v2875, 7
  %v2877 = vsub.s32 %v2874, %v2876
  %v2878 = vrot.slane %v2864, %v2877
  %v2879 = vcombine.low %v2871, %v2878
  %v2881 = vunpack.c.l.s4 1966171168
  %v2882 = vunpack.c.0.s8 %v2881
  %v2883 = vlaneseq
  %v2884 = vshrl.u32 %v2883, 7
  %v2885 = vsub.s32 %v2882, %v2884
  %v2886 = vrot.slane %v2479, %v2885
  %v2888 = vunpack.c.l.s4 1966171168
  %v2889 = vunpack.c.0.s8 %v2888
  %v2890 = vlaneseq
  %v2891 = vshrl.u32 %v2890, 7
  %v2892 = vsub.s32 %v2889, %v2891
  %v2893 = vrot.slane %v2886, %v2892
  %2902 = vst [vmem:[%s3] sm:$0xff] %v2585
  %2903 = vst [vmem:[%s3 + $0x8] sm:$0xff] %v2634
  %2904 = vst [vmem:[%s3 + $0x10] sm:$0xff] %v2683
  %2905 = vst [vmem:[%s3 + $0x18] sm:$0xff] %v2732
  %2906 = vst [vmem:[%s3 + $0x20] sm:$0xff] %v2781
  %2907 = vst [vmem:[%s3 + $0x28] sm:$0xff] %v2830
  %2908 = vst [vmem:[%s3 + $0x30] sm:$0xff] %v2879
  %v2909 = vlaneseq
  %vm2910 = vcmp.ge.s32.totalorder %v2909, 0
  %vm2911 = vcmp.lt.s32.totalorder %v2909, 32
  %vm2912 = vmand %vm2910, %vm2911
  %2913 = vst.msk [vmem:[%s3 + $0x38] sm:$0x1] %vm2912, %v2893
  // Predicated region
  $region14: #{forward.37} parent=0 // pred_check
    _
  $region15: #{forward.37} parent=0 // pred_check_branch
    %2915 = sbr.rel (0) target = $region17
  $region16: #{forward.37} parent=0 // pred_region
    _
  $region17: #{forward.37} parent=0 // pred_fallthru
    _
  // Predicated region
  $region18: #{forward.37} parent=0 // pred_check
    _
  $region19: #{forward.37} parent=0 // pred_check_branch
    %2917 = sbr.rel (0) target = $region21
  $region20: #{forward.37} parent=0 // pred_region
    _
  $region21: #{forward.37} parent=0 // pred_fallthru
    _

</llo_original>
